<compile_context>
chip_gen: v5e
topology: v5e:2x2
jax: 0.10.0
libtpu: 0.0.40
codegen_flags: <defaults>
</compile_context>

<pallas_src>
import functools

import jax
import jax.numpy as jnp
from jax.experimental import pallas as pl
from jax.experimental.pallas import tpu as pltpu


# --------------------------------------------------------------------------
# tiling helpers
# --------------------------------------------------------------------------
def _pick_row_tile(m, cap=512):
    """Largest power-of-two row tile (<= cap) dividing m, else whole array."""
    for t in (512, 256, 128, 64, 32, 16, 8):
        if t <= cap and m >= t and m % t == 0:
            return t
    return m


def _pick_col_tile(n, cap=1024):
    """Full N when it fits (weight column block stays resident per row tile),
    otherwise an MXU-aligned divisor."""
    if n <= cap:
        return n
    for t in (1024, 512, 256, 128):
        if t <= cap and n % t == 0:
            return t
    return n


def _pick_k_tile(k, cap=2048):
    """Tile the reduction dim for large K (keeps per-block VMEM small on v7x)."""
    if k > cap and k % cap == 0:
        return cap
    return k


# --------------------------------------------------------------------------
# Pallas kernels
# --------------------------------------------------------------------------
def _matmul_kernel(a_ref, b_ref, *rest, act, slope, has_bias, has_stats):
    """bf16 x bf16 -> f32 matmul (K-tiled, VMEM accumulator) with a fused
    epilogue: optional bias, optional per-channel sum/sum^2 stats (for BN),
    optional LeakyReLU / sigmoid, and cast to the output dtype.

    Argument order: a, b, [bias], then outputs: y, [stats], then scratch: acc.
    """
    idx = 0
    bias_ref = None
    if has_bias:
        bias_ref = rest[idx]
        idx += 1
    o_ref = rest[idx]
    idx += 1
    stats_ref = None
    if has_stats:
        stats_ref = rest[idx]
        idx += 1
    acc_ref = rest[idx]

    k = pl.program_id(2)

    @pl.when(k == 0)
    def _():
        acc_ref[...] = jnp.zeros_like(acc_ref)

    acc_ref[...] += jnp.dot(a_ref[...], b_ref[...],
                            preferred_element_type=jnp.float32)

    @pl.when(k == pl.num_programs(2) - 1)
    def _():
        y = acc_ref[...]
        if has_bias:
            y = y + bias_ref[...]
        if has_stats:
            # per-channel partial stats for this row tile (f32, pre-activation)
            s1 = jnp.sum(y, axis=0, keepdims=True)          # (1, tn)
            s2 = jnp.sum(y * y, axis=0, keepdims=True)      # (1, tn)
            stats_ref[...] = jnp.concatenate([s1, s2], axis=0)[None]
        if act == "lrelu":
            y = jnp.where(y > 0, y, slope * y)
        elif act == "sigmoid":
            y = 1.0 / (1.0 + jnp.exp(-y))
        o_ref[...] = y.astype(o_ref.dtype)


def _scale_shift_lrelu_kernel(x_ref, scale_ref, shift_ref, o_ref, *, slope):
    """Single-pass per-channel affine (train-mode BN normalize) + LeakyReLU."""
    y = x_ref[...].astype(jnp.float32) * scale_ref[...] + shift_ref[...]
    o_ref[...] = jnp.where(y > 0, y, slope * y).astype(o_ref.dtype)


# --------------------------------------------------------------------------
# Pallas wrappers
# --------------------------------------------------------------------------
def matmul_fused(a, b, bias=None, act=None, slope=0.2,
                 out_dtype=jnp.bfloat16, with_stats=False):
    """(M,K)@(K,N) on the MXU (bf16 operands, f32 accumulate), K-tiled,
    with fused bias/activation and optional fused per-channel BN stats."""
    m, kdim = a.shape
    _, n = b.shape
    tm = _pick_row_tile(m)
    tn = _pick_col_tile(n)
    tk = _pick_k_tile(kdim)
    gm, gn, gk = m // tm, n // tn, kdim // tk

    kern = functools.partial(_matmul_kernel, act=act, slope=slope,
                             has_bias=bias is not None, has_stats=with_stats)

    in_specs = [pl.BlockSpec((tm, tk), lambda i, j, k: (i, k)),
                pl.BlockSpec((tk, tn), lambda i, j, k: (k, j))]
    args = [a, b]
    if bias is not None:
        in_specs.append(pl.BlockSpec((1, tn), lambda i, j, k: (0, j)))
        args.append(bias.reshape(1, n).astype(jnp.float32))

    y_shape = jax.ShapeDtypeStruct((m, n), out_dtype)
    y_spec = pl.BlockSpec((tm, tn), lambda i, j, k: (i, j))
    if with_stats:
        out_shape = (y_shape, jax.ShapeDtypeStruct((gm, 2, n), jnp.float32))
        out_specs = (y_spec,
                     pl.BlockSpec((1, 2, tn), lambda i, j, k: (i, 0, j)))
    else:
        out_shape = y_shape
        out_specs = y_spec

    res = pl.pallas_call(
        kern,
        out_shape=out_shape,
        grid_spec=pltpu.PrefetchScalarGridSpec(
            num_scalar_prefetch=0,
            grid=(gm, gn, gk),
            in_specs=in_specs,
            out_specs=out_specs,
            scratch_shapes=[pltpu.VMEM((tm, tn), jnp.float32)]),
        compiler_params=pltpu.CompilerParams(
            dimension_semantics=("parallel", "parallel", "arbitrary"),
            vmem_limit_bytes=32 * 1024 * 1024),
    )(*args)

    if with_stats:
        return res[0], res[1]
    return res


def bn_apply_lrelu(y, stats, gamma, beta, eps=1e-5, slope=0.2,
                   out_dtype=jnp.bfloat16):
    """Finalize train-mode BN stats (tiny O(C) work in plain JAX) and apply a
    single-pass normalize + LeakyReLU Pallas kernel to the (M, C) data."""
    m, c = y.shape
    s = jnp.sum(stats, axis=0)                       # (2, C) f32
    mean = s[0] / m
    # NOTE: E[x^2]-E[x]^2 can cancel for huge activations; stats are f32 and
    # activations are O(1) here, so this is fine at these magnitudes.
    var = s[1] / m - mean * mean
    inv = jax.lax.rsqrt(var + eps)
    scale = (gamma.astype(jnp.float32) * inv).reshape(1, c)
    shift = (beta.astype(jnp.float32) - mean * gamma.astype(jnp.float32)
             * inv).reshape(1, c)

    tm = _pick_row_tile(m)
    gm = m // tm
    kern = functools.partial(_scale_shift_lrelu_kernel, slope=slope)
    return pl.pallas_call(
        kern,
        out_shape=jax.ShapeDtypeStruct((m, c), out_dtype),
        grid_spec=pltpu.PrefetchScalarGridSpec(
            num_scalar_prefetch=0,
            grid=(gm,),
            in_specs=[pl.BlockSpec((tm, c), lambda i: (i, 0)),
                      pl.BlockSpec((1, c), lambda i: (0, 0)),
                      pl.BlockSpec((1, c), lambda i: (0, 0))],
            out_specs=pl.BlockSpec((tm, c), lambda i: (i, 0))),
        compiler_params=pltpu.CompilerParams(
            dimension_semantics=("parallel",),
            vmem_limit_bytes=32 * 1024 * 1024),
    )(y, scale, shift)


# --------------------------------------------------------------------------
# JAX glue: gather-only im2col (static strided slices), done in bf16 so the
# 4x-expanded patch matrix is written/read in half the bytes and no separate
# convert pass exists.
# --------------------------------------------------------------------------
def im2col(x_nhwc, k, stride, pad):
    n, h, w, c = x_nhwc.shape
    if pad:
        x_nhwc = jnp.pad(x_nhwc, ((0, 0), (pad, pad), (pad, pad), (0, 0)))
    ho = (h + 2 * pad - k) // stride + 1
    wo = (w + 2 * pad - k) // stride + 1
    cols = []
    for kh in range(k):
        for kw in range(k):
            cols.append(x_nhwc[:, kh:kh + stride * (ho - 1) + 1:stride,
                                  kw:kw + stride * (wo - 1) + 1:stride, :])
    patches = jnp.stack(cols, axis=3)                # (n, ho, wo, k*k, c)
    return patches.reshape(n * ho * wo, k * k * c), ho, wo


# --------------------------------------------------------------------------
# Discriminator forward
# --------------------------------------------------------------------------
def discriminator_forward(params, x_nchw, eps=1e-5, slope=0.2):
    # bf16 inter-layer activations; f32 accumulation / stats inside kernels
    x = jnp.transpose(x_nchw, (0, 2, 3, 1)).astype(jnp.bfloat16)   # NHWC
    n = x.shape[0]

    # ---- layer 1: Conv2d(3, d, 4, 2, 1) + bias + LeakyReLU (fused) ----
    p = params[0]
    cin, cout = p["w"].shape[2], p["w"].shape[3]
    a, ho, wo = im2col(x, 4, 2, 1)
    w2d = p["w"].reshape(16 * cin, cout).astype(jnp.bfloat16)
    y = matmul_fused(a, w2d, bias=p["b"], act="lrelu", slope=slope)
    x = y.reshape(n, ho, wo, cout)

    # ---- layers 2-4: Conv2d(k=4,s=2,p=1) + BN(train) + LeakyReLU ----
    # conv bias is skipped: per-channel constant cancels in train-mode BN.
    for li in (1, 2, 3):
        p = params[li]
        cin, cout = p["w"].shape[2], p["w"].shape[3]
        a, ho, wo = im2col(x, 4, 2, 1)
        w2d = p["w"].reshape(16 * cin, cout).astype(jnp.bfloat16)
        y, stats = matmul_fused(a, w2d, with_stats=True)   # bf16 y, f32 stats
        y = bn_apply_lrelu(y, stats, p["gamma"], p["beta"], eps, slope)
        x = y.reshape(n, ho, wo, cout)

    # ---- layer 5: Conv2d(8d, 1, 4, 1, 0) + bias + sigmoid (fused) ----
    p = params[4]
    cin, cout = p["w"].shape[2], p["w"].shape[3]
    a, ho, wo = im2col(x, 4, 1, 0)
    w2d = p["w"].reshape(16 * cin, cout).astype(jnp.bfloat16)
    y = matmul_fused(a, w2d, bias=p["b"], act="sigmoid",
                     out_dtype=jnp.float32)
    x = y.reshape(n, ho, wo, cout)
    return jnp.transpose(x, (0, 3, 1, 2))                    # NCHW


# --------------------------------------------------------------------------
# deterministic synthetic parameters
# weight stored as (kH, kW, Cin, Cout)  (== PyTorch (Cout, Cin, kH, kW) perm)
# --------------------------------------------------------------------------
def init_params(key, d=16):
    dims = [(3, d), (d, 2 * d), (2 * d, 4 * d), (4 * d, 8 * d), (8 * d, 1)]
    params = []
    for i, (cin, cout) in enumerate(dims):
        key, kw_, kb_, kg_, kbt_ = jax.random.split(key, 5)
        layer = {
            "w": 0.02 * jax.random.normal(kw_, (4, 4, cin, cout), jnp.float32),
            "b": 0.01 * jax.random.normal(kb_, (cout,), jnp.float32),
        }
        if 0 < i < 4:
            layer["gamma"] = 1.0 + 0.1 * jax.random.normal(kg_, (cout,),
                                                           jnp.float32)
            layer["beta"] = 0.1 * jax.random.normal(kbt_, (cout,), jnp.float32)
        params.append(layer)
    return params


# --------------------------------------------------------------------------
# pure-JAX reference (lax.conv, bf16 operands / f32 accumulate, f32 elsewhere)
# --------------------------------------------------------------------------
def reference_forward(params, x_nchw, eps=1e-5, slope=0.2):
    x = jnp.transpose(x_nchw, (0, 2, 3, 1)).astype(jnp.float32)
    strides = [2, 2, 2, 2, 1]
    pads = [1, 1, 1, 1, 0]
    for i, p in enumerate(params):
        out = jax.lax.conv_general_dilated(
            x.astype(jnp.bfloat16), p["w"].astype(jnp.bfloat16),
            window_strides=(strides[i], strides[i]),
            padding=[(pads[i], pads[i])] * 2,
            dimension_numbers=("NHWC", "HWIO", "NHWC"),
            preferred_element_type=jnp.float32)
        out = out + p["b"]
        if i == 0:
            x = jnp.where(out > 0, out, slope * out)
        elif i < 4:
            mean = out.mean(axis=(0, 1, 2), keepdims=True)
            var = ((out - mean) ** 2).mean(axis=(0, 1, 2), keepdims=True)
            y = (out - mean) * jax.lax.rsqrt(var + eps) * p["gamma"] + p["beta"]
            x = jnp.where(y > 0, y, slope * y)
        else:
            x = jax.nn.sigmoid(out)
    return jnp.transpose(x, (0, 3, 1, 2))


# --------------------------------------------------------------------------
if __name__ == "__main__":
    d = 16                       # small d (module default 128); same structure
    key = jax.random.PRNGKey(0)
    kx, kp = jax.random.split(key)
    params = init_params(kp, d=d)
    x = jax.random.normal(kx, (2, 3, 64, 64), jnp.float32)     # NCHW input

    fwd = jax.jit(discriminator_forward)
    out = jax.block_until_ready(fwd(params, x))
    assert out.shape == (2, 1, 1, 1), out.shape

    ref = jax.block_until_ready(reference_forward(params, x))
    max_err = float(jnp.max(jnp.abs(out - ref)))
    # bf16 inter-layer activations (vs f32 in the reference) widen the error
    # budget slightly; a wrong kernel shows errors >= 1e-1 here.
    assert max_err < 2e-2, f"max abs err vs reference: {max_err}"

    print("KERNEL_OK")
</pallas_src>

<mosaic_0001>
module attributes {stable_mosaic.version = 11 : i64} {
  func.func @_matmul_kernel(%arg0: i32, %arg1: i32, %arg2: i32, %arg3: memref<512x48xbf16, #tpu.memory_space<vmem>>, %arg4: memref<48x16xbf16, #tpu.memory_space<vmem>>, %arg5: memref<1x16xf32, #tpu.memory_space<vmem>>, %arg6: memref<512x16xbf16, #tpu.memory_space<vmem>>, %arg7: memref<512x16xf32, #tpu.memory_space<vmem>>) attributes {dimension_semantics = [#tpu.dimension_semantics<parallel>, #tpu.dimension_semantics<parallel>, #tpu.dimension_semantics<arbitrary>], iteration_bounds = array<i64: 4, 1, 1>, scalar_prefetch = 0 : i64, scratch_operands = 1 : i64, tpu.core_type = #tpu.core_type<tc>, window_params = [{transform_indices = @transform_0, window_bounds = array<i64: 512, 48>}, {transform_indices = @transform_1, window_bounds = array<i64: 48, 16>}, {transform_indices = @transform_2, window_bounds = array<i64: 1, 16>}, {transform_indices = @transform_3, window_bounds = array<i64: 512, 16>}]} {
    %c0_i32 = arith.constant 0 : i32
    %0 = arith.cmpi eq, %arg2, %c0_i32 : i32
    %1 = arith.extui %0 : i1 to i32
    %c0_i32_0 = arith.constant 0 : i32
    %2 = arith.cmpi ne, %1, %c0_i32_0 : i32
    scf.if %2 {
      %cst_10 = arith.constant 0.000000e+00 : f32
      %12 = vector.broadcast %cst_10 : f32 to vector<512x16xf32>
      %c0_11 = arith.constant 0 : index
      %c0_12 = arith.constant 0 : index
      %13 = vector.load %arg7[%c0_11, %c0_12] : memref<512x16xf32, #tpu.memory_space<vmem>>, vector<512x16xf32>
      tpu.vector_store %arg7[%c0_11, %c0_12], %12 {strides = array<i32>} : memref<512x16xf32, #tpu.memory_space<vmem>>, vector<512x16xf32>,
    } else {
    }
    %c0 = arith.constant 0 : index
    %c0_1 = arith.constant 0 : index
    %3 = vector.load %arg7[%c0, %c0_1] : memref<512x16xf32, #tpu.memory_space<vmem>>, vector<512x16xf32>
    %c0_2 = arith.constant 0 : index
    %c0_3 = arith.constant 0 : index
    %4 = vector.load %arg3[%c0_2, %c0_3] : memref<512x48xbf16, #tpu.memory_space<vmem>>, vector<512x48xbf16>
    %c0_4 = arith.constant 0 : index
    %c0_5 = arith.constant 0 : index
    %5 = vector.load %arg4[%c0_4, %c0_5] : memref<48x16xbf16, #tpu.memory_space<vmem>>, vector<48x16xbf16>
    %cst = arith.constant dense<0.000000e+00> : vector<512x16xf32>
    %6 = tpu.matmul %4, %5, %cst {dimension_numbers = #tpu.dot_dimension_numbers<[1], [0], [0], [1], [0, 0, 1, 1], [], []>} : vector<512x48xbf16>, vector<48x16xbf16>, vector<512x16xf32> -> vector<512x16xf32>
    %7 = arith.addf %3, %6 : vector<512x16xf32>
    %c0_6 = arith.constant 0 : index
    %c0_7 = arith.constant 0 : index
    %8 = vector.load %arg7[%c0_6, %c0_7] : memref<512x16xf32, #tpu.memory_space<vmem>>, vector<512x16xf32>
    tpu.vector_store %arg7[%c0_6, %c0_7], %7 {strides = array<i32>} : memref<512x16xf32, #tpu.memory_space<vmem>>, vector<512x16xf32>,
    %c0_i32_8 = arith.constant 0 : i32
    %9 = arith.cmpi eq, %arg2, %c0_i32_8 : i32
    %10 = arith.extui %9 : i1 to i32
    %c0_i32_9 = arith.constant 0 : i32
    %11 = arith.cmpi ne, %10, %c0_i32_9 : i32
    scf.if %11 {
      %c0_10 = arith.constant 0 : index
      %c0_11 = arith.constant 0 : index
      %12 = vector.load %arg7[%c0_10, %c0_11] : memref<512x16xf32, #tpu.memory_space<vmem>>, vector<512x16xf32>
      %c0_12 = arith.constant 0 : index
      %c0_13 = arith.constant 0 : index
      %13 = vector.load %arg5[%c0_12, %c0_13] : memref<1x16xf32, #tpu.memory_space<vmem>>, vector<1x16xf32>
      %14 = vector.broadcast %13 : vector<1x16xf32> to vector<512x16xf32>
      %15 = arith.addf %12, %14 : vector<512x16xf32>
      %cst_14 = arith.constant 0.000000e+00 : f32
      %16 = vector.broadcast %cst_14 : f32 to vector<512x16xf32>
      %17 = arith.cmpf ogt, %15, %16 : vector<512x16xf32>
      %cst_15 = arith.constant 2.000000e-01 : f32
      %18 = vector.broadcast %cst_15 : f32 to vector<512x16xf32>
      %19 = arith.mulf %18, %15 : vector<512x16xf32>
      %20 = arith.select %17, %15, %19 : vector<512x16xi1>, vector<512x16xf32>
      %21 = arith.truncf %20 : vector<512x16xf32> to vector<512x16xbf16>
      %c0_16 = arith.constant 0 : index
      %c0_17 = arith.constant 0 : index
      %22 = vector.load %arg6[%c0_16, %c0_17] : memref<512x16xbf16, #tpu.memory_space<vmem>>, vector<512x16xbf16>
      tpu.vector_store %arg6[%c0_16, %c0_17], %21 {strides = array<i32>} : memref<512x16xbf16, #tpu.memory_space<vmem>>, vector<512x16xbf16>,
    } else {
    }
    return
  }
  func.func @transform_0(%arg0: i32, %arg1: i32, %arg2: i32) -> (i32, i32) {
    %c0_i32 = arith.constant 0 : i32
    return %arg0, %arg2 : i32, i32
  }
  func.func @transform_1(%arg0: i32, %arg1: i32, %arg2: i32) -> (i32, i32) {
    %c0_i32 = arith.constant 0 : i32
    return %arg2, %arg1 : i32, i32
  }
  func.func @transform_2(%arg0: i32, %arg1: i32, %arg2: i32) -> (i32, i32) {
    %c0_i32 = arith.constant 0 : i32
    %c0_i32_0 = arith.constant 0 : i32
    return %c0_i32, %arg1 : i32, i32
  }
  func.func @transform_3(%arg0: i32, %arg1: i32, %arg2: i32) -> (i32, i32) {
    %c0_i32 = arith.constant 0 : i32
    return %arg0, %arg1 : i32, i32
  }
}

module attributes {stable_mosaic.version = 11 : i64} {
  func.func @_matmul_kernel(%arg0: i32, %arg1: i32, %arg2: i32, %arg3: memref<512x256xbf16, #tpu.memory_space<vmem>>, %arg4: memref<256x32xbf16, #tpu.memory_space<vmem>>, %arg5: memref<512x32xbf16, #tpu.memory_space<vmem>>, %arg6: memref<1x2x32xf32, #tpu.memory_space<vmem>>, %arg7: memref<512x32xf32, #tpu.memory_space<vmem>>) attributes {dimension_semantics = [#tpu.dimension_semantics<parallel>, #tpu.dimension_semantics<parallel>, #tpu.dimension_semantics<arbitrary>], iteration_bounds = array<i64: 1, 1, 1>, scalar_prefetch = 0 : i64, scratch_operands = 1 : i64, tpu.core_type = #tpu.core_type<tc>, window_params = [{transform_indices = @transform_0, window_bounds = array<i64: 512, 256>}, {transform_indices = @transform_1, window_bounds = array<i64: 256, 32>}, {transform_indices = @transform_2, window_bounds = array<i64: 512, 32>}, {transform_indices = @transform_3, window_bounds = array<i64: 1, 2, 32>}]} {
    %c0_i32 = arith.constant 0 : i32
    %0 = arith.cmpi eq, %arg2, %c0_i32 : i32
    %1 = arith.extui %0 : i1 to i32
    %c0_i32_0 = arith.constant 0 : i32
    %2 = arith.cmpi ne, %1, %c0_i32_0 : i32
    scf.if %2 {
      %cst_10 = arith.constant 0.000000e+00 : f32
      %12 = vector.broadcast %cst_10 : f32 to vector<512x32xf32>
      %c0_11 = arith.constant 0 : index
      %c0_12 = arith.constant 0 : index
      %13 = vector.load %arg7[%c0_11, %c0_12] : memref<512x32xf32, #tpu.memory_space<vmem>>, vector<512x32xf32>
      tpu.vector_store %arg7[%c0_11, %c0_12], %12 {strides = array<i32>} : memref<512x32xf32, #tpu.memory_space<vmem>>, vector<512x32xf32>,
    } else {
    }
    %c0 = arith.constant 0 : index
    %c0_1 = arith.constant 0 : index
    %3 = vector.load %arg7[%c0, %c0_1] : memref<512x32xf32, #tpu.memory_space<vmem>>, vector<512x32xf32>
    %c0_2 = arith.constant 0 : index
    %c0_3 = arith.constant 0 : index
    %4 = vector.load %arg3[%c0_2, %c0_3] : memref<512x256xbf16, #tpu.memory_space<vmem>>, vector<512x256xbf16>
    %c0_4 = arith.constant 0 : index
    %c0_5 = arith.constant 0 : index
    %5 = vector.load %arg4[%c0_4, %c0_5] : memref<256x32xbf16, #tpu.memory_space<vmem>>, vector<256x32xbf16>
    %cst = arith.constant dense<0.000000e+00> : vector<512x32xf32>
    %6 = tpu.matmul %4, %5, %cst {dimension_numbers = #tpu.dot_dimension_numbers<[1], [0], [0], [1], [0, 0, 1, 1], [], []>} : vector<512x256xbf16>, vector<256x32xbf16>, vector<512x32xf32> -> vector<512x32xf32>
    %7 = arith.addf %3, %6 : vector<512x32xf32>
    %c0_6 = arith.constant 0 : index
    %c0_7 = arith.constant 0 : index
    %8 = vector.load %arg7[%c0_6, %c0_7] : memref<512x32xf32, #tpu.memory_space<vmem>>, vector<512x32xf32>
    tpu.vector_store %arg7[%c0_6, %c0_7], %7 {strides = array<i32>} : memref<512x32xf32, #tpu.memory_space<vmem>>, vector<512x32xf32>,
    %c0_i32_8 = arith.constant 0 : i32
    %9 = arith.cmpi eq, %arg2, %c0_i32_8 : i32
    %10 = arith.extui %9 : i1 to i32
    %c0_i32_9 = arith.constant 0 : i32
    %11 = arith.cmpi ne, %10, %c0_i32_9 : i32
    scf.if %11 {
      %c0_10 = arith.constant 0 : index
      %c0_11 = arith.constant 0 : index
      %12 = vector.load %arg7[%c0_10, %c0_11] : memref<512x32xf32, #tpu.memory_space<vmem>>, vector<512x32xf32>
      %cst_12 = arith.constant dense<0.000000e+00> : vector<32xf32>
      %13 = vector.multi_reduction <add>, %12, %cst_12 [0] : vector<512x32xf32> to vector<32xf32>
      %14 = vector.shape_cast %13 : vector<32xf32> to vector<1x32xf32>
      %15 = arith.mulf %12, %12 : vector<512x32xf32>
      %cst_13 = arith.constant dense<0.000000e+00> : vector<32xf32>
      %16 = vector.multi_reduction <add>, %15, %cst_13 [0] : vector<512x32xf32> to vector<32xf32>
      %17 = vector.shape_cast %16 : vector<32xf32> to vector<1x32xf32>
      %18 = tpu.concatenate %14, %17 in 0 : vector<1x32xf32>, vector<1x32xf32> -> vector<2x32xf32>
      %19 = vector.shape_cast %18 : vector<2x32xf32> to vector<1x2x32xf32>
      %c0_14 = arith.constant 0 : index
      %c0_15 = arith.constant 0 : index
      %c0_16 = arith.constant 0 : index
      %20 = vector.load %arg6[%c0_14, %c0_15, %c0_16] : memref<1x2x32xf32, #tpu.memory_space<vmem>>, vector<1x2x32xf32>
      tpu.vector_store %arg6[%c0_14, %c0_15, %c0_16], %19 {strides = array<i32>} : memref<1x2x32xf32, #tpu.memory_space<vmem>>, vector<1x2x32xf32>,
      %21 = arith.truncf %12 : vector<512x32xf32> to vector<512x32xbf16>
      %c0_17 = arith.constant 0 : index
      %c0_18 = arith.constant 0 : index
      %22 = vector.load %arg5[%c0_17, %c0_18] : memref<512x32xbf16, #tpu.memory_space<vmem>>, vector<512x32xbf16>
      tpu.vector_store %arg5[%c0_17, %c0_18], %21 {strides = array<i32>} : memref<512x32xbf16, #tpu.memory_space<vmem>>, vector<512x32xbf16>,
    } else {
    }
    return
  }
  func.func @transform_0(%arg0: i32, %arg1: i32, %arg2: i32) -> (i32, i32) {
    %c0_i32 = arith.constant 0 : i32
    return %arg0, %arg2 : i32, i32
  }
  func.func @transform_1(%arg0: i32, %arg1: i32, %arg2: i32) -> (i32, i32) {
    %c0_i32 = arith.constant 0 : i32
    return %arg2, %arg1 : i32, i32
  }
  func.func @transform_2(%arg0: i32, %arg1: i32, %arg2: i32) -> (i32, i32) {
    %c0_i32 = arith.constant 0 : i32
    return %arg0, %arg1 : i32, i32
  }
  func.func @transform_3(%arg0: i32, %arg1: i32, %arg2: i32) -> (i32, i32, i32) {
    %c0_i32 = arith.constant 0 : i32
    %c0_i32_0 = arith.constant 0 : i32
    return %arg0, %c0_i32, %arg1 : i32, i32, i32
  }
}

module attributes {stable_mosaic.version = 11 : i64} {
  func.func @_scale_shift_lrelu_kernel(%arg0: i32, %arg1: memref<512x32xbf16, #tpu.memory_space<vmem>>, %arg2: memref<1x32xf32, #tpu.memory_space<vmem>>, %arg3: memref<1x32xf32, #tpu.memory_space<vmem>>, %arg4: memref<512x32xbf16, #tpu.memory_space<vmem>>) attributes {dimension_semantics = [#tpu.dimension_semantics<parallel>], iteration_bounds = array<i64: 1>, scalar_prefetch = 0 : i64, scratch_operands = 0 : i64, tpu.core_type = #tpu.core_type<tc>, window_params = [{transform_indices = @transform_0, window_bounds = array<i64: 512, 32>}, {pipeline_mode = #tpu.pipeline_mode<synchronous>, transform_indices = @transform_1, window_bounds = array<i64: 1, 32>}, {pipeline_mode = #tpu.pipeline_mode<synchronous>, transform_indices = @transform_2, window_bounds = array<i64: 1, 32>}, {transform_indices = @transform_3, window_bounds = array<i64: 512, 32>}]} {
    %c0 = arith.constant 0 : index
    %c0_0 = arith.constant 0 : index
    %0 = vector.load %arg1[%c0, %c0_0] : memref<512x32xbf16, #tpu.memory_space<vmem>>, vector<512x32xbf16>
    %1 = arith.extf %0 : vector<512x32xbf16> to vector<512x32xf32>
    %c0_1 = arith.constant 0 : index
    %c0_2 = arith.constant 0 : index
    %2 = vector.load %arg2[%c0_1, %c0_2] : memref<1x32xf32, #tpu.memory_space<vmem>>, vector<1x32xf32>
    %3 = vector.broadcast %2 : vector<1x32xf32> to vector<512x32xf32>
    %4 = arith.mulf %1, %3 : vector<512x32xf32>
    %c0_3 = arith.constant 0 : index
    %c0_4 = arith.constant 0 : index
    %5 = vector.load %arg3[%c0_3, %c0_4] : memref<1x32xf32, #tpu.memory_space<vmem>>, vector<1x32xf32>
    %6 = vector.broadcast %5 : vector<1x32xf32> to vector<512x32xf32>
    %7 = arith.addf %4, %6 : vector<512x32xf32>
    %cst = arith.constant 0.000000e+00 : f32
    %8 = vector.broadcast %cst : f32 to vector<512x32xf32>
    %9 = arith.cmpf ogt, %7, %8 : vector<512x32xf32>
    %cst_5 = arith.constant 2.000000e-01 : f32
    %10 = vector.broadcast %cst_5 : f32 to vector<512x32xf32>
    %11 = arith.mulf %10, %7 : vector<512x32xf32>
    %12 = arith.select %9, %7, %11 : vector<512x32xi1>, vector<512x32xf32>
    %13 = arith.truncf %12 : vector<512x32xf32> to vector<512x32xbf16>
    %c0_6 = arith.constant 0 : index
    %c0_7 = arith.constant 0 : index
    %14 = vector.load %arg4[%c0_6, %c0_7] : memref<512x32xbf16, #tpu.memory_space<vmem>>, vector<512x32xbf16>
    tpu.vector_store %arg4[%c0_6, %c0_7], %13 {strides = array<i32>} : memref<512x32xbf16, #tpu.memory_space<vmem>>, vector<512x32xbf16>,
    return
  }
  func.func @transform_0(%arg0: i32) -> (i32, i32) {
    %c0_i32 = arith.constant 0 : i32
    %c0_i32_0 = arith.constant 0 : i32
    return %arg0, %c0_i32 : i32, i32
  }
  func.func @transform_1(%arg0: i32) -> (i32, i32) {
    %c0_i32 = arith.constant 0 : i32
    %c0_i32_0 = arith.constant 0 : i32
    %c0_i32_1 = arith.constant 0 : i32
    return %c0_i32, %c0_i32_0 : i32, i32
  }
  func.func @transform_2(%arg0: i32) -> (i32, i32) {
    %c0_i32 = arith.constant 0 : i32
    %c0_i32_0 = arith.constant 0 : i32
    %c0_i32_1 = arith.constant 0 : i32
    return %c0_i32, %c0_i32_0 : i32, i32
  }
  func.func @transform_3(%arg0: i32) -> (i32, i32) {
    %c0_i32 = arith.constant 0 : i32
    %c0_i32_0 = arith.constant 0 : i32
    return %arg0, %c0_i32 : i32, i32
  }
}

module attributes {stable_mosaic.version = 11 : i64} {
  func.func @_matmul_kernel(%arg0: i32, %arg1: i32, %arg2: i32, %arg3: memref<128x512xbf16, #tpu.memory_space<vmem>>, %arg4: memref<512x64xbf16, #tpu.memory_space<vmem>>, %arg5: memref<128x64xbf16, #tpu.memory_space<vmem>>, %arg6: memref<1x2x64xf32, #tpu.memory_space<vmem>>, %arg7: memref<128x64xf32, #tpu.memory_space<vmem>>) attributes {dimension_semantics = [#tpu.dimension_semantics<parallel>, #tpu.dimension_semantics<parallel>, #tpu.dimension_semantics<arbitrary>], iteration_bounds = array<i64: 1, 1, 1>, scalar_prefetch = 0 : i64, scratch_operands = 1 : i64, tpu.core_type = #tpu.core_type<tc>, window_params = [{transform_indices = @transform_0, window_bounds = array<i64: 128, 512>}, {transform_indices = @transform_1, window_bounds = array<i64: 512, 64>}, {transform_indices = @transform_2, window_bounds = array<i64: 128, 64>}, {transform_indices = @transform_3, window_bounds = array<i64: 1, 2, 64>}]} {
    %c0_i32 = arith.constant 0 : i32
    %0 = arith.cmpi eq, %arg2, %c0_i32 : i32
    %1 = arith.extui %0 : i1 to i32
    %c0_i32_0 = arith.constant 0 : i32
    %2 = arith.cmpi ne, %1, %c0_i32_0 : i32
    scf.if %2 {
      %cst_10 = arith.constant 0.000000e+00 : f32
      %12 = vector.broadcast %cst_10 : f32 to vector<128x64xf32>
      %c0_11 = arith.constant 0 : index
      %c0_12 = arith.constant 0 : index
      %13 = vector.load %arg7[%c0_11, %c0_12] : memref<128x64xf32, #tpu.memory_space<vmem>>, vector<128x64xf32>
      tpu.vector_store %arg7[%c0_11, %c0_12], %12 {strides = array<i32>} : memref<128x64xf32, #tpu.memory_space<vmem>>, vector<128x64xf32>,
    } else {
    }
    %c0 = arith.constant 0 : index
    %c0_1 = arith.constant 0 : index
    %3 = vector.load %arg7[%c0, %c0_1] : memref<128x64xf32, #tpu.memory_space<vmem>>, vector<128x64xf32>
    %c0_2 = arith.constant 0 : index
    %c0_3 = arith.constant 0 : index
    %4 = vector.load %arg3[%c0_2, %c0_3] : memref<128x512xbf16, #tpu.memory_space<vmem>>, vector<128x512xbf16>
    %c0_4 = arith.constant 0 : index
    %c0_5 = arith.constant 0 : index
    %5 = vector.load %arg4[%c0_4, %c0_5] : memref<512x64xbf16, #tpu.memory_space<vmem>>, vector<512x64xbf16>
    %cst = arith.constant dense<0.000000e+00> : vector<128x64xf32>
    %6 = tpu.matmul %4, %5, %cst {dimension_numbers = #tpu.dot_dimension_numbers<[1], [0], [0], [1], [0, 0, 1, 1], [], []>} : vector<128x512xbf16>, vector<512x64xbf16>, vector<128x64xf32> -> vector<128x64xf32>
    %7 = arith.addf %3, %6 : vector<128x64xf32>
    %c0_6 = arith.constant 0 : index
    %c0_7 = arith.constant 0 : index
    %8 = vector.load %arg7[%c0_6, %c0_7] : memref<128x64xf32, #tpu.memory_space<vmem>>, vector<128x64xf32>
    tpu.vector_store %arg7[%c0_6, %c0_7], %7 {strides = array<i32>} : memref<128x64xf32, #tpu.memory_space<vmem>>, vector<128x64xf32>,
    %c0_i32_8 = arith.constant 0 : i32
    %9 = arith.cmpi eq, %arg2, %c0_i32_8 : i32
    %10 = arith.extui %9 : i1 to i32
    %c0_i32_9 = arith.constant 0 : i32
    %11 = arith.cmpi ne, %10, %c0_i32_9 : i32
    scf.if %11 {
      %c0_10 = arith.constant 0 : index
      %c0_11 = arith.constant 0 : index
      %12 = vector.load %arg7[%c0_10, %c0_11] : memref<128x64xf32, #tpu.memory_space<vmem>>, vector<128x64xf32>
      %cst_12 = arith.constant dense<0.000000e+00> : vector<64xf32>
      %13 = vector.multi_reduction <add>, %12, %cst_12 [0] : vector<128x64xf32> to vector<64xf32>
      %14 = vector.shape_cast %13 : vector<64xf32> to vector<1x64xf32>
      %15 = arith.mulf %12, %12 : vector<128x64xf32>
      %cst_13 = arith.constant dense<0.000000e+00> : vector<64xf32>
      %16 = vector.multi_reduction <add>, %15, %cst_13 [0] : vector<128x64xf32> to vector<64xf32>
      %17 = vector.shape_cast %16 : vector<64xf32> to vector<1x64xf32>
      %18 = tpu.concatenate %14, %17 in 0 : vector<1x64xf32>, vector<1x64xf32> -> vector<2x64xf32>
      %19 = vector.shape_cast %18 : vector<2x64xf32> to vector<1x2x64xf32>
      %c0_14 = arith.constant 0 : index
      %c0_15 = arith.constant 0 : index
      %c0_16 = arith.constant 0 : index
      %20 = vector.load %arg6[%c0_14, %c0_15, %c0_16] : memref<1x2x64xf32, #tpu.memory_space<vmem>>, vector<1x2x64xf32>
      tpu.vector_store %arg6[%c0_14, %c0_15, %c0_16], %19 {strides = array<i32>} : memref<1x2x64xf32, #tpu.memory_space<vmem>>, vector<1x2x64xf32>,
      %21 = arith.truncf %12 : vector<128x64xf32> to vector<128x64xbf16>
      %c0_17 = arith.constant 0 : index
      %c0_18 = arith.constant 0 : index
      %22 = vector.load %arg5[%c0_17, %c0_18] : memref<128x64xbf16, #tpu.memory_space<vmem>>, vector<128x64xbf16>
      tpu.vector_store %arg5[%c0_17, %c0_18], %21 {strides = array<i32>} : memref<128x64xbf16, #tpu.memory_space<vmem>>, vector<128x64xbf16>,
    } else {
    }
    return
  }
  func.func @transform_0(%arg0: i32, %arg1: i32, %arg2: i32) -> (i32, i32) {
    %c0_i32 = arith.constant 0 : i32
    return %arg0, %arg2 : i32, i32
  }
  func.func @transform_1(%arg0: i32, %arg1: i32, %arg2: i32) -> (i32, i32) {
    %c0_i32 = arith.constant 0 : i32
    return %arg2, %arg1 : i32, i32
  }
  func.func @transform_2(%arg0: i32, %arg1: i32, %arg2: i32) -> (i32, i32) {
    %c0_i32 = arith.constant 0 : i32
    return %arg0, %arg1 : i32, i32
  }
  func.func @transform_3(%arg0: i32, %arg1: i32, %arg2: i32) -> (i32, i32, i32) {
    %c0_i32 = arith.constant 0 : i32
    %c0_i32_0 = arith.constant 0 : i32
    return %arg0, %c0_i32, %arg1 : i32, i32, i32
  }
}

module attributes {stable_mosaic.version = 11 : i64} {
  func.func @_scale_shift_lrelu_kernel(%arg0: i32, %arg1: memref<128x64xbf16, #tpu.memory_space<vmem>>, %arg2: memref<1x64xf32, #tpu.memory_space<vmem>>, %arg3: memref<1x64xf32, #tpu.memory_space<vmem>>, %arg4: memref<128x64xbf16, #tpu.memory_space<vmem>>) attributes {dimension_semantics = [#tpu.dimension_semantics<parallel>], iteration_bounds = array<i64: 1>, scalar_prefetch = 0 : i64, scratch_operands = 0 : i64, tpu.core_type = #tpu.core_type<tc>, window_params = [{transform_indices = @transform_0, window_bounds = array<i64: 128, 64>}, {pipeline_mode = #tpu.pipeline_mode<synchronous>, transform_indices = @transform_1, window_bounds = array<i64: 1, 64>}, {pipeline_mode = #tpu.pipeline_mode<synchronous>, transform_indices = @transform_2, window_bounds = array<i64: 1, 64>}, {transform_indices = @transform_3, window_bounds = array<i64: 128, 64>}]} {
    %c0 = arith.constant 0 : index
    %c0_0 = arith.constant 0 : index
    %0 = vector.load %arg1[%c0, %c0_0] : memref<128x64xbf16, #tpu.memory_space<vmem>>, vector<128x64xbf16>
    %1 = arith.extf %0 : vector<128x64xbf16> to vector<128x64xf32>
    %c0_1 = arith.constant 0 : index
    %c0_2 = arith.constant 0 : index
    %2 = vector.load %arg2[%c0_1, %c0_2] : memref<1x64xf32, #tpu.memory_space<vmem>>, vector<1x64xf32>
    %3 = vector.broadcast %2 : vector<1x64xf32> to vector<128x64xf32>
    %4 = arith.mulf %1, %3 : vector<128x64xf32>
    %c0_3 = arith.constant 0 : index
    %c0_4 = arith.constant 0 : index
    %5 = vector.load %arg3[%c0_3, %c0_4] : memref<1x64xf32, #tpu.memory_space<vmem>>, vector<1x64xf32>
    %6 = vector.broadcast %5 : vector<1x64xf32> to vector<128x64xf32>
    %7 = arith.addf %4, %6 : vector<128x64xf32>
    %cst = arith.constant 0.000000e+00 : f32
    %8 = vector.broadcast %cst : f32 to vector<128x64xf32>
    %9 = arith.cmpf ogt, %7, %8 : vector<128x64xf32>
    %cst_5 = arith.constant 2.000000e-01 : f32
    %10 = vector.broadcast %cst_5 : f32 to vector<128x64xf32>
    %11 = arith.mulf %10, %7 : vector<128x64xf32>
    %12 = arith.select %9, %7, %11 : vector<128x64xi1>, vector<128x64xf32>
    %13 = arith.truncf %12 : vector<128x64xf32> to vector<128x64xbf16>
    %c0_6 = arith.constant 0 : index
    %c0_7 = arith.constant 0 : index
    %14 = vector.load %arg4[%c0_6, %c0_7] : memref<128x64xbf16, #tpu.memory_space<vmem>>, vector<128x64xbf16>
    tpu.vector_store %arg4[%c0_6, %c0_7], %13 {strides = array<i32>} : memref<128x64xbf16, #tpu.memory_space<vmem>>, vector<128x64xbf16>,
    return
  }
  func.func @transform_0(%arg0: i32) -> (i32, i32) {
    %c0_i32 = arith.constant 0 : i32
    %c0_i32_0 = arith.constant 0 : i32
    return %arg0, %c0_i32 : i32, i32
  }
  func.func @transform_1(%arg0: i32) -> (i32, i32) {
    %c0_i32 = arith.constant 0 : i32
    %c0_i32_0 = arith.constant 0 : i32
    %c0_i32_1 = arith.constant 0 : i32
    return %c0_i32, %c0_i32_0 : i32, i32
  }
  func.func @transform_2(%arg0: i32) -> (i32, i32) {
    %c0_i32 = arith.constant 0 : i32
    %c0_i32_0 = arith.constant 0 : i32
    %c0_i32_1 = arith.constant 0 : i32
    return %c0_i32, %c0_i32_0 : i32, i32
  }
  func.func @transform_3(%arg0: i32) -> (i32, i32) {
    %c0_i32 = arith.constant 0 : i32
    %c0_i32_0 = arith.constant 0 : i32
    return %arg0, %c0_i32 : i32, i32
  }
}

module attributes {stable_mosaic.version = 11 : i64} {
  func.func @_matmul_kernel(%arg0: i32, %arg1: i32, %arg2: i32, %arg3: memref<32x1024xbf16, #tpu.memory_space<vmem>>, %arg4: memref<1024x128xbf16, #tpu.memory_space<vmem>>, %arg5: memref<32x128xbf16, #tpu.memory_space<vmem>>, %arg6: memref<1x2x128xf32, #tpu.memory_space<vmem>>, %arg7: memref<32x128xf32, #tpu.memory_space<vmem>>) attributes {dimension_semantics = [#tpu.dimension_semantics<parallel>, #tpu.dimension_semantics<parallel>, #tpu.dimension_semantics<arbitrary>], iteration_bounds = array<i64: 1, 1, 1>, scalar_prefetch = 0 : i64, scratch_operands = 1 : i64, tpu.core_type = #tpu.core_type<tc>, window_params = [{transform_indices = @transform_0, window_bounds = array<i64: 32, 1024>}, {transform_indices = @transform_1, window_bounds = array<i64: 1024, 128>}, {transform_indices = @transform_2, window_bounds = array<i64: 32, 128>}, {transform_indices = @transform_3, window_bounds = array<i64: 1, 2, 128>}]} {
    %c0_i32 = arith.constant 0 : i32
    %0 = arith.cmpi eq, %arg2, %c0_i32 : i32
    %1 = arith.extui %0 : i1 to i32
    %c0_i32_0 = arith.constant 0 : i32
    %2 = arith.cmpi ne, %1, %c0_i32_0 : i32
    scf.if %2 {
      %cst_10 = arith.constant 0.000000e+00 : f32
      %12 = vector.broadcast %cst_10 : f32 to vector<32x128xf32>
      %c0_11 = arith.constant 0 : index
      %c0_12 = arith.constant 0 : index
      %13 = vector.load %arg7[%c0_11, %c0_12] : memref<32x128xf32, #tpu.memory_space<vmem>>, vector<32x128xf32>
      tpu.vector_store %arg7[%c0_11, %c0_12], %12 {strides = array<i32>} : memref<32x128xf32, #tpu.memory_space<vmem>>, vector<32x128xf32>,
    } else {
    }
    %c0 = arith.constant 0 : index
    %c0_1 = arith.constant 0 : index
    %3 = vector.load %arg7[%c0, %c0_1] : memref<32x128xf32, #tpu.memory_space<vmem>>, vector<32x128xf32>
    %c0_2 = arith.constant 0 : index
    %c0_3 = arith.constant 0 : index
    %4 = vector.load %arg3[%c0_2, %c0_3] : memref<32x1024xbf16, #tpu.memory_space<vmem>>, vector<32x1024xbf16>
    %c0_4 = arith.constant 0 : index
    %c0_5 = arith.constant 0 : index
    %5 = vector.load %arg4[%c0_4, %c0_5] : memref<1024x128xbf16, #tpu.memory_space<vmem>>, vector<1024x128xbf16>
    %cst = arith.constant dense<0.000000e+00> : vector<32x128xf32>
    %6 = tpu.matmul %4, %5, %cst {dimension_numbers = #tpu.dot_dimension_numbers<[1], [0], [0], [1], [0, 0, 1, 1], [], []>} : vector<32x1024xbf16>, vector<1024x128xbf16>, vector<32x128xf32> -> vector<32x128xf32>
    %7 = arith.addf %3, %6 : vector<32x128xf32>
    %c0_6 = arith.constant 0 : index
    %c0_7 = arith.constant 0 : index
    %8 = vector.load %arg7[%c0_6, %c0_7] : memref<32x128xf32, #tpu.memory_space<vmem>>, vector<32x128xf32>
    tpu.vector_store %arg7[%c0_6, %c0_7], %7 {strides = array<i32>} : memref<32x128xf32, #tpu.memory_space<vmem>>, vector<32x128xf32>,
    %c0_i32_8 = arith.constant 0 : i32
    %9 = arith.cmpi eq, %arg2, %c0_i32_8 : i32
    %10 = arith.extui %9 : i1 to i32
    %c0_i32_9 = arith.constant 0 : i32
    %11 = arith.cmpi ne, %10, %c0_i32_9 : i32
    scf.if %11 {
      %c0_10 = arith.constant 0 : index
      %c0_11 = arith.constant 0 : index
      %12 = vector.load %arg7[%c0_10, %c0_11] : memref<32x128xf32, #tpu.memory_space<vmem>>, vector<32x128xf32>
      %cst_12 = arith.constant dense<0.000000e+00> : vector<128xf32>
      %13 = vector.multi_reduction <add>, %12, %cst_12 [0] : vector<32x128xf32> to vector<128xf32>
      %14 = vector.shape_cast %13 : vector<128xf32> to vector<1x128xf32>
      %15 = arith.mulf %12, %12 : vector<32x128xf32>
      %cst_13 = arith.constant dense<0.000000e+00> : vector<128xf32>
      %16 = vector.multi_reduction <add>, %15, %cst_13 [0] : vector<32x128xf32> to vector<128xf32>
      %17 = vector.shape_cast %16 : vector<128xf32> to vector<1x128xf32>
      %18 = tpu.concatenate %14, %17 in 0 : vector<1x128xf32>, vector<1x128xf32> -> vector<2x128xf32>
      %19 = vector.shape_cast %18 : vector<2x128xf32> to vector<1x2x128xf32>
      %c0_14 = arith.constant 0 : index
      %c0_15 = arith.constant 0 : index
      %c0_16 = arith.constant 0 : index
      %20 = vector.load %arg6[%c0_14, %c0_15, %c0_16] : memref<1x2x128xf32, #tpu.memory_space<vmem>>, vector<1x2x128xf32>
      tpu.vector_store %arg6[%c0_14, %c0_15, %c0_16], %19 {strides = array<i32>} : memref<1x2x128xf32, #tpu.memory_space<vmem>>, vector<1x2x128xf32>,
      %21 = arith.truncf %12 : vector<32x128xf32> to vector<32x128xbf16>
      %c0_17 = arith.constant 0 : index
      %c0_18 = arith.constant 0 : index
      %22 = vector.load %arg5[%c0_17, %c0_18] : memref<32x128xbf16, #tpu.memory_space<vmem>>, vector<32x128xbf16>
      tpu.vector_store %arg5[%c0_17, %c0_18], %21 {strides = array<i32>} : memref<32x128xbf16, #tpu.memory_space<vmem>>, vector<32x128xbf16>,
    } else {
    }
    return
  }
  func.func @transform_0(%arg0: i32, %arg1: i32, %arg2: i32) -> (i32, i32) {
    %c0_i32 = arith.constant 0 : i32
    return %arg0, %arg2 : i32, i32
  }
  func.func @transform_1(%arg0: i32, %arg1: i32, %arg2: i32) -> (i32, i32) {
    %c0_i32 = arith.constant 0 : i32
    return %arg2, %arg1 : i32, i32
  }
  func.func @transform_2(%arg0: i32, %arg1: i32, %arg2: i32) -> (i32, i32) {
    %c0_i32 = arith.constant 0 : i32
    return %arg0, %arg1 : i32, i32
  }
  func.func @transform_3(%arg0: i32, %arg1: i32, %arg2: i32) -> (i32, i32, i32) {
    %c0_i32 = arith.constant 0 : i32
    %c0_i32_0 = arith.constant 0 : i32
    return %arg0, %c0_i32, %arg1 : i32, i32, i32
  }
}

module attributes {stable_mosaic.version = 11 : i64} {
  func.func @_scale_shift_lrelu_kernel(%arg0: i32, %arg1: memref<32x128xbf16, #tpu.memory_space<vmem>>, %arg2: memref<1x128xf32, #tpu.memory_space<vmem>>, %arg3: memref<1x128xf32, #tpu.memory_space<vmem>>, %arg4: memref<32x128xbf16, #tpu.memory_space<vmem>>) attributes {dimension_semantics = [#tpu.dimension_semantics<parallel>], iteration_bounds = array<i64: 1>, scalar_prefetch = 0 : i64, scratch_operands = 0 : i64, tpu.core_type = #tpu.core_type<tc>, window_params = [{transform_indices = @transform_0, window_bounds = array<i64: 32, 128>}, {pipeline_mode = #tpu.pipeline_mode<synchronous>, transform_indices = @transform_1, window_bounds = array<i64: 1, 128>}, {pipeline_mode = #tpu.pipeline_mode<synchronous>, transform_indices = @transform_2, window_bounds = array<i64: 1, 128>}, {transform_indices = @transform_3, window_bounds = array<i64: 32, 128>}]} {
    %c0 = arith.constant 0 : index
    %c0_0 = arith.constant 0 : index
    %0 = vector.load %arg1[%c0, %c0_0] : memref<32x128xbf16, #tpu.memory_space<vmem>>, vector<32x128xbf16>
    %1 = arith.extf %0 : vector<32x128xbf16> to vector<32x128xf32>
    %c0_1 = arith.constant 0 : index
    %c0_2 = arith.constant 0 : index
    %2 = vector.load %arg2[%c0_1, %c0_2] : memref<1x128xf32, #tpu.memory_space<vmem>>, vector<1x128xf32>
    %3 = vector.broadcast %2 : vector<1x128xf32> to vector<32x128xf32>
    %4 = arith.mulf %1, %3 : vector<32x128xf32>
    %c0_3 = arith.constant 0 : index
    %c0_4 = arith.constant 0 : index
    %5 = vector.load %arg3[%c0_3, %c0_4] : memref<1x128xf32, #tpu.memory_space<vmem>>, vector<1x128xf32>
    %6 = vector.broadcast %5 : vector<1x128xf32> to vector<32x128xf32>
    %7 = arith.addf %4, %6 : vector<32x128xf32>
    %cst = arith.constant 0.000000e+00 : f32
    %8 = vector.broadcast %cst : f32 to vector<32x128xf32>
    %9 = arith.cmpf ogt, %7, %8 : vector<32x128xf32>
    %cst_5 = arith.constant 2.000000e-01 : f32
    %10 = vector.broadcast %cst_5 : f32 to vector<32x128xf32>
    %11 = arith.mulf %10, %7 : vector<32x128xf32>
    %12 = arith.select %9, %7, %11 : vector<32x128xi1>, vector<32x128xf32>
    %13 = arith.truncf %12 : vector<32x128xf32> to vector<32x128xbf16>
    %c0_6 = arith.constant 0 : index
    %c0_7 = arith.constant 0 : index
    %14 = vector.load %arg4[%c0_6, %c0_7] : memref<32x128xbf16, #tpu.memory_space<vmem>>, vector<32x128xbf16>
    tpu.vector_store %arg4[%c0_6, %c0_7], %13 {strides = array<i32>} : memref<32x128xbf16, #tpu.memory_space<vmem>>, vector<32x128xbf16>,
    return
  }
  func.func @transform_0(%arg0: i32) -> (i32, i32) {
    %c0_i32 = arith.constant 0 : i32
    %c0_i32_0 = arith.constant 0 : i32
    return %arg0, %c0_i32 : i32, i32
  }
  func.func @transform_1(%arg0: i32) -> (i32, i32) {
    %c0_i32 = arith.constant 0 : i32
    %c0_i32_0 = arith.constant 0 : i32
    %c0_i32_1 = arith.constant 0 : i32
    return %c0_i32, %c0_i32_0 : i32, i32
  }
  func.func @transform_2(%arg0: i32) -> (i32, i32) {
    %c0_i32 = arith.constant 0 : i32
    %c0_i32_0 = arith.constant 0 : i32
    %c0_i32_1 = arith.constant 0 : i32
    return %c0_i32, %c0_i32_0 : i32, i32
  }
  func.func @transform_3(%arg0: i32) -> (i32, i32) {
    %c0_i32 = arith.constant 0 : i32
    %c0_i32_0 = arith.constant 0 : i32
    return %arg0, %c0_i32 : i32, i32
  }
}

module attributes {stable_mosaic.version = 11 : i64} {
  func.func @_matmul_kernel(%arg0: i32, %arg1: i32, %arg2: i32, %arg3: memref<2x2048xbf16, #tpu.memory_space<vmem>>, %arg4: memref<2048x1xbf16, #tpu.memory_space<vmem>>, %arg5: memref<1x1xf32, #tpu.memory_space<vmem>>, %arg6: memref<2x1xf32, #tpu.memory_space<vmem>>, %arg7: memref<2x1xf32, #tpu.memory_space<vmem>>) attributes {dimension_semantics = [#tpu.dimension_semantics<parallel>, #tpu.dimension_semantics<parallel>, #tpu.dimension_semantics<arbitrary>], iteration_bounds = array<i64: 1, 1, 1>, scalar_prefetch = 0 : i64, scratch_operands = 1 : i64, tpu.core_type = #tpu.core_type<tc>, window_params = [{transform_indices = @transform_0, window_bounds = array<i64: 2, 2048>}, {transform_indices = @transform_1, window_bounds = array<i64: 2048, 1>}, {transform_indices = @transform_2, window_bounds = array<i64: 1, 1>}, {transform_indices = @transform_3, window_bounds = array<i64: 2, 1>}]} {
    %c0_i32 = arith.constant 0 : i32
    %0 = arith.cmpi eq, %arg2, %c0_i32 : i32
    %1 = arith.extui %0 : i1 to i32
    %c0_i32_0 = arith.constant 0 : i32
    %2 = arith.cmpi ne, %1, %c0_i32_0 : i32
    scf.if %2 {
      %cst_10 = arith.constant 0.000000e+00 : f32
      %12 = vector.broadcast %cst_10 : f32 to vector<2x1xf32>
      %c0_11 = arith.constant 0 : index
      %c0_12 = arith.constant 0 : index
      %13 = vector.load %arg7[%c0_11, %c0_12] : memref<2x1xf32, #tpu.memory_space<vmem>>, vector<2x1xf32>
      tpu.vector_store %arg7[%c0_11, %c0_12], %12 {strides = array<i32>} : memref<2x1xf32, #tpu.memory_space<vmem>>, vector<2x1xf32>,
    } else {
    }
    %c0 = arith.constant 0 : index
    %c0_1 = arith.constant 0 : index
    %3 = vector.load %arg7[%c0, %c0_1] : memref<2x1xf32, #tpu.memory_space<vmem>>, vector<2x1xf32>
    %c0_2 = arith.constant 0 : index
    %c0_3 = arith.constant 0 : index
    %4 = vector.load %arg3[%c0_2, %c0_3] : memref<2x2048xbf16, #tpu.memory_space<vmem>>, vector<2x2048xbf16>
    %c0_4 = arith.constant 0 : index
    %c0_5 = arith.constant 0 : index
    %5 = vector.load %arg4[%c0_4, %c0_5] : memref<2048x1xbf16, #tpu.memory_space<vmem>>, vector<2048x1xbf16>
    %cst = arith.constant dense<0.000000e+00> : vector<2x1xf32>
    %6 = tpu.matmul %4, %5, %cst {dimension_numbers = #tpu.dot_dimension_numbers<[1], [0], [0], [1], [0, 0, 1, 1], [], []>} : vector<2x2048xbf16>, vector<2048x1xbf16>, vector<2x1xf32> -> vector<2x1xf32>
    %7 = arith.addf %3, %6 : vector<2x1xf32>
    %c0_6 = arith.constant 0 : index
    %c0_7 = arith.constant 0 : index
    %8 = vector.load %arg7[%c0_6, %c0_7] : memref<2x1xf32, #tpu.memory_space<vmem>>, vector<2x1xf32>
    tpu.vector_store %arg7[%c0_6, %c0_7], %7 {strides = array<i32>} : memref<2x1xf32, #tpu.memory_space<vmem>>, vector<2x1xf32>,
    %c0_i32_8 = arith.constant 0 : i32
    %9 = arith.cmpi eq, %arg2, %c0_i32_8 : i32
    %10 = arith.extui %9 : i1 to i32
    %c0_i32_9 = arith.constant 0 : i32
    %11 = arith.cmpi ne, %10, %c0_i32_9 : i32
    scf.if %11 {
      %c0_10 = arith.constant 0 : index
      %c0_11 = arith.constant 0 : index
      %12 = vector.load %arg7[%c0_10, %c0_11] : memref<2x1xf32, #tpu.memory_space<vmem>>, vector<2x1xf32>
      %c0_12 = arith.constant 0 : index
      %c0_13 = arith.constant 0 : index
      %13 = vector.load %arg5[%c0_12, %c0_13] : memref<1x1xf32, #tpu.memory_space<vmem>>, vector<1x1xf32>
      %14 = vector.broadcast %13 : vector<1x1xf32> to vector<2x1xf32>
      %15 = arith.addf %12, %14 : vector<2x1xf32>
      %cst_14 = arith.constant 0.000000e+00 : f32
      %16 = vector.broadcast %cst_14 : f32 to vector<2x1xf32>
      %17 = arith.subf %16, %15 : vector<2x1xf32>
      %18 = math.exp %17 : vector<2x1xf32>
      %cst_15 = arith.constant 1.000000e+00 : f32
      %19 = vector.broadcast %cst_15 : f32 to vector<2x1xf32>
      %20 = arith.addf %19, %18 : vector<2x1xf32>
      %cst_16 = arith.constant 1.000000e+00 : f32
      %21 = vector.broadcast %cst_16 : f32 to vector<2x1xf32>
      %22 = arith.divf %21, %20 : vector<2x1xf32>
      %c0_17 = arith.constant 0 : index
      %c0_18 = arith.constant 0 : index
      %23 = vector.load %arg6[%c0_17, %c0_18] : memref<2x1xf32, #tpu.memory_space<vmem>>, vector<2x1xf32>
      tpu.vector_store %arg6[%c0_17, %c0_18], %22 {strides = array<i32>} : memref<2x1xf32, #tpu.memory_space<vmem>>, vector<2x1xf32>,
    } else {
    }
    return
  }
  func.func @transform_0(%arg0: i32, %arg1: i32, %arg2: i32) -> (i32, i32) {
    %c0_i32 = arith.constant 0 : i32
    return %arg0, %arg2 : i32, i32
  }
  func.func @transform_1(%arg0: i32, %arg1: i32, %arg2: i32) -> (i32, i32) {
    %c0_i32 = arith.constant 0 : i32
    return %arg2, %arg1 : i32, i32
  }
  func.func @transform_2(%arg0: i32, %arg1: i32, %arg2: i32) -> (i32, i32) {
    %c0_i32 = arith.constant 0 : i32
    %c0_i32_0 = arith.constant 0 : i32
    return %c0_i32, %arg1 : i32, i32
  }
  func.func @transform_3(%arg0: i32, %arg1: i32, %arg2: i32) -> (i32, i32) {
    %c0_i32 = arith.constant 0 : i32
    return %arg0, %arg1 : i32, i32
  }
}

</mosaic_0001>

<llo_original>
// kernel: discriminator_forward.8
$region0: #{discriminator_forward.8}
  #allocation0 [shape = 'u32[]', space=smem, size = 0x4, offset = 0x4, fixed_abs, tag = 'smem constant byte address 0x4 - core index']
  #allocation1 [shape = 'u32[72,128]{1,0:T(1,128)}', space=vmem, size = 0x9000, scoped, tag = 'internal scratch']
  #allocation2 [shape = 'f32[512,16]{1,0:T(8,128)}', space=vmem, size = 0x40000, scoped, tag = 'scratch operand']
  %s0 = inlined_call_operand.vmem [shape: bf16[2048,48], index: 0, kind: input, shape index: {}]
  %s1 = inlined_call_operand.vmem [shape: bf16[48,16], index: 1, kind: input, shape index: {}]
  %s2 = inlined_call_operand.vmem [shape: f32[1,16], index: 2, kind: input, shape index: {}]
  %s3 = inlined_call_operand.vmem [shape: bf16[2048,16], index: 3, kind: output, shape index: {}]
  %s4 = sld [smem:[#allocation0]]
  $region53: #{discriminator_forward.8} parent=0
    _
  %s6 = ssub.s32 1, %s4
  %s7 = scalar_select 0, %s6, %s4
  loop: start=0, step=1, limit=6
  $region2: #{discriminator_forward.8} parent=0 // loop_pre_header
    _
  $region3: #{discriminator_forward.8} parent=0 // loop_header
    %s9 = sphi 0, %s13
    %p10 = scmp.ge.s32.totalorder %s9, 6
    %s16 = sphi 0, %s35
    %s17 = sphi 0, %s31
    %s18 = sphi 0, %s27
    %s19 = sphi 0, %s16
    %s20 = sphi 0, %s17
    %s21 = sphi 0, %s18
    %s22 = sphi 0, %s19
    %s23 = sphi 0, %s20
    %s24 = sphi 0, %s21
    %s40 = sphi 0, %s42
    %s43 = sphi 0, %s40
    %s44 = sphi 0, %s43
    %s60 = sphi 0, %s44
    %s68 = sphi 0, %s70
    %s71 = sphi 0, %s68
    %s72 = sphi 0, %s71
    %s88 = sphi 0, %s72
    %s94 = sphi 0, %s96
    %s97 = sphi 0, %s94
    %s98 = sphi 0, %s97
    %s114 = sphi 0, %s98
    %s122 = sphi 0, %s124
    %s125 = sphi 0, %s122
    %s126 = sphi 0, %s125
    %s142 = sphi 0, %s126
  $region4: #{discriminator_forward.8} parent=0 // loop_header_branch
    %12 = sbr.rel (%p10) target = $region8
  $region5: #{discriminator_forward.8} parent=0 // loop_body
    %s14 = ssub.s32 %s9, 1
    %s15 = ssub.s32 %s9, 2
    %s25 = sadd.s32 1, %s18
    %p26 = scmp.ge.s32.totalorder %s25, 1
    %s27 = scalar_select %p26, 0, %s25
    %s28 = sadd.s32 1, %s17
    %s29 = scalar_select %p26, %s28, %s17
    %p30 = scmp.ge.s32.totalorder %s29, 1
    %s31 = scalar_select %p30, 0, %s29
    %s32 = sadd.s32 1, %s16
    %s33 = scalar_select %p30, %s32, %s16
    %p34 = scmp.ge.s32.totalorder %s33, 4
    %s35 = scalar_select %p34, 0, %s33
    %s36 = ssub.s32 %s16, %s35
    %s37 = ssub.s32 %s18, %s27
    %s38 = sor.u32 %s36, %s37
    %p39 = scmp.eq.s32.totalorder %s38, 0
    %s41 = sadd.s32 %s40, 1
    %s42 = scalar_select %p39, %s40, %s41
    %p45 = pneg %p39
    %p46 = scmp.eq.s32.totalorder %s9, 3
    %p47 = por %p45, %p46
    %p48 = scmp.ne.s32.totalorder %s40, %s43
    %p49 = scmp.eq.s32.totalorder %s9, 0
    %p50 = por %p48, %p49
    %p51 = scmp.ne.s32.totalorder %s40, %s43
    %p52 = scmp.eq.s32.totalorder %s14, 3
    %p53 = por %p51, %p52
    %p54 = scmp.ne.s32.totalorder %s43, %s44
    %p55 = scmp.eq.s32.totalorder %s14, 0
    %p56 = por %p54, %p55
    %p57 = scmp.ne.s32.totalorder %s43, %s44
    %p58 = scmp.eq.s32.totalorder %s15, 3
    %p59 = por %p57, %p58
    %p61 = scmp.ne.s32.totalorder %s44, %s60
    %p62 = scmp.eq.s32.totalorder %s15, 0
    %p63 = por %p61, %p62
    %s64 = ssub.s32 %s18, %s27
    %s65 = ssub.s32 %s17, %s31
    %s66 = sor.u32 %s64, %s65
    %p67 = scmp.eq.s32.totalorder %s66, 0
    %s69 = sadd.s32 %s68, 1
    %s70 = scalar_select %p67, %s68, %s69
    %p73 = pneg %p67
    %p74 = scmp.eq.s32.totalorder %s9, 3
    %p75 = por %p73, %p74
    %p76 = scmp.ne.s32.totalorder %s68, %s71
    %p77 = scmp.eq.s32.totalorder %s9, 0
    %p78 = por %p76, %p77
    %p79 = scmp.ne.s32.totalorder %s68, %s71
    %p80 = scmp.eq.s32.totalorder %s14, 3
    %p81 = por %p79, %p80
    %p82 = scmp.ne.s32.totalorder %s71, %s72
    %p83 = scmp.eq.s32.totalorder %s14, 0
    %p84 = por %p82, %p83
    %p85 = scmp.ne.s32.totalorder %s71, %s72
    %p86 = scmp.eq.s32.totalorder %s15, 3
    %p87 = por %p85, %p86
    %p89 = scmp.ne.s32.totalorder %s72, %s88
    %p90 = scmp.eq.s32.totalorder %s15, 0
    %p91 = por %p89, %p90
    %s92 = ssub.s32 %s17, %s31
    %p93 = scmp.eq.s32.totalorder %s92, 0
    %s95 = sadd.s32 %s94, 1
    %s96 = scalar_select %p93, %s94, %s95
    %p99 = pneg %p93
    %p100 = scmp.eq.s32.totalorder %s9, 3
    %p101 = por %p99, %p100
    %p102 = scmp.ne.s32.totalorder %s94, %s97
    %p103 = scmp.eq.s32.totalorder %s9, 0
    %p104 = por %p102, %p103
    %p105 = scmp.ne.s32.totalorder %s94, %s97
    %p106 = scmp.eq.s32.totalorder %s14, 3
    %p107 = por %p105, %p106
    %p108 = scmp.ne.s32.totalorder %s97, %s98
    %p109 = scmp.eq.s32.totalorder %s14, 0
    %p110 = por %p108, %p109
    %p111 = scmp.ne.s32.totalorder %s97, %s98
    %p112 = scmp.eq.s32.totalorder %s15, 3
    %p113 = por %p111, %p112
    %p115 = scmp.ne.s32.totalorder %s98, %s114
    %p116 = scmp.eq.s32.totalorder %s15, 0
    %p117 = por %p115, %p116
    %s118 = ssub.s32 %s16, %s35
    %s119 = ssub.s32 %s17, %s31
    %s120 = sor.u32 %s118, %s119
    %p121 = scmp.eq.s32.totalorder %s120, 0
    %s123 = sadd.s32 %s122, 1
    %s124 = scalar_select %p121, %s122, %s123
    %p127 = pneg %p121
    %p128 = scmp.eq.s32.totalorder %s9, 3
    %p129 = por %p127, %p128
    %p130 = scmp.ne.s32.totalorder %s122, %s125
    %p131 = scmp.eq.s32.totalorder %s9, 0
    %p132 = por %p130, %p131
    %p133 = scmp.ne.s32.totalorder %s122, %s125
    %p134 = scmp.eq.s32.totalorder %s14, 3
    %p135 = por %p133, %p134
    %p136 = scmp.ne.s32.totalorder %s125, %s126
    %p137 = scmp.eq.s32.totalorder %s14, 0
    %p138 = por %p136, %p137
    %p139 = scmp.ne.s32.totalorder %s125, %s126
    %p140 = scmp.eq.s32.totalorder %s15, 3
    %p141 = por %p139, %p140
    %p143 = scmp.ne.s32.totalorder %s126, %s142
    %p144 = scmp.eq.s32.totalorder %s15, 0
    %p145 = por %p143, %p144
    %p146 = scmp.le.s32.totalorder 1, %s9
    %p147 = scmp.lt.s32.totalorder %s9, 5
    %p148 = pnand %p146, %p147
    %p149 = pneg %p148
    // Predicated region
    $region9: #{discriminator_forward.8} parent=5 // pred_check
      _
    $region10: #{discriminator_forward.8} parent=5 // pred_check_branch
      %151 = sbr.rel (%p148) target = $region12
    $region11: #{discriminator_forward.8} parent=5 // pred_region
      %s152 = ssub.s32 %s9, 1
      // Predicated region
      $region13: #{discriminator_forward.8} parent=11 // pred_check
        %p153 = pneg %p84
      $region14: #{discriminator_forward.8} parent=11 // pred_check_branch
        %155 = sbr.rel (%p153) target = $region16
      $region15: #{discriminator_forward.8} parent=11 // pred_region
        %s156 = smul.u32 6, %s21
        %p157 = scmp.lt.s32.totalorder %s156, 5
        %s158 = scalar_select %p157, %s156, 5
        %p159 = scmp.lt.s32.totalorder %s20, 0
        %s160 = scalar_select %p159, %s20, 0
        %s161 = sadd.s32 %s160, %s158
        %s162 = smul.addr %s161, 4
        %s163 = scalar_lea.vmem %s1, %s162
        %s164 = smul.u32 6, %s21
      $region16: #{discriminator_forward.8} parent=11 // pred_fallthru
        _
      // Predicated region
      $region17: #{discriminator_forward.8} parent=11 // pred_check
        %p165 = pneg %p110
      $region18: #{discriminator_forward.8} parent=11 // pred_check_branch
        %167 = sbr.rel (%p165) target = $region20
      $region19: #{discriminator_forward.8} parent=11 // pred_region
        %p168 = scmp.lt.s32.totalorder %s20, 0
        %s169 = scalar_select %p168, %s20, 0
        %s170 = scalar_lea.vmem %s2, %s169
      $region20: #{discriminator_forward.8} parent=11 // pred_fallthru
        _
    $region12: #{discriminator_forward.8} parent=5 // pred_fallthru
      _
    %p171 = scmp.lt.s32.totalorder %s9, 4
    // Predicated region
    $region21: #{discriminator_forward.8} parent=5 // pred_check
      %p172 = pneg %p171
    $region22: #{discriminator_forward.8} parent=5 // pred_check_branch
      %174 = sbr.rel (%p172) target = $region24
    $region23: #{discriminator_forward.8} parent=5 // pred_region
      // Predicated region
      $region25: #{discriminator_forward.8} parent=23 // pred_check
        %p175 = pneg %p50
      $region26: #{discriminator_forward.8} parent=23 // pred_check_branch
        %177 = sbr.rel (%p175) target = $region28
      $region27: #{discriminator_forward.8} parent=23 // pred_region
        %s178 = smul.u32 64, %s16
        %p179 = scmp.lt.s32.totalorder %s178, 255
        %s180 = scalar_select %p179, %s178, 255
        %p181 = scmp.lt.s32.totalorder %s18, 0
        %s182 = scalar_select %p181, %s18, 0
        %s183 = sadd.s32 %s182, %s180
        %s184 = smul.addr %s183, 4
        %s185 = scalar_lea.vmem %s0, %s184
        %s186 = smul.u32 64, %s16
      $region28: #{discriminator_forward.8} parent=23 // pred_fallthru
        _
    $region24: #{discriminator_forward.8} parent=5 // pred_fallthru
      _
    %p187 = scmp.le.s32.totalorder 1, %s9
    %p188 = scmp.lt.s32.totalorder %s9, 5
    %p189 = pnand %p187, %p188
    %p190 = pneg %p189
    // Predicated region
    $region29: #{discriminator_forward.8} parent=5 // pred_check
      _
    $region30: #{discriminator_forward.8} parent=5 // pred_check_branch
      %192 = sbr.rel (%p189) target = $region32
    $region31: #{discriminator_forward.8} parent=5 // pred_region
      %s193 = ssub.s32 %s9, 1
      %s194 = smul.u32 64, %s19
      %p195 = scmp.lt.s32.totalorder %s194, 255
      %s196 = scalar_select %p195, %s194, 255
      %p197 = scmp.lt.s32.totalorder %s21, 0
      %s198 = scalar_select %p197, %s21, 0
      %s199 = sadd.s32 %s198, %s196
      %s200 = smul.addr %s199, 4
      %s201 = scalar_lea.vmem %s0, %s200
      %p202 = pneg %p56
      %p203 = pneg %p53
      %s204 = smul.u32 6, %s21
      %p205 = scmp.lt.s32.totalorder %s204, 5
      %s206 = scalar_select %p205, %s204, 5
      %p207 = scmp.lt.s32.totalorder %s20, 0
      %s208 = scalar_select %p207, %s20, 0
      %s209 = sadd.s32 %s208, %s206
      %s210 = smul.addr %s209, 4
      %s211 = scalar_lea.vmem %s1, %s210
      %p212 = pneg %p84
      %p213 = pneg %p81
      %p214 = scmp.lt.s32.totalorder %s20, 0
      %s215 = scalar_select %p214, %s20, 0
      %s216 = scalar_lea.vmem %s2, %s215
      %p217 = pneg %p110
      %p218 = pneg %p107
      %p219 = pneg %p138
      %p220 = pneg %p135
      %s221 = smul.u32 64, %s19
      %p222 = scmp.lt.s32.totalorder %s221, 255
      %s223 = scalar_select %p222, %s221, 255
      %p224 = scmp.lt.s32.totalorder %s20, 0
      %s225 = scalar_select %p224, %s20, 0
      %s226 = sadd.s32 %s225, %s223
      %s227 = smul.addr %s226, 4
      %s228 = scalar_lea.vmem %s3, %s227
      %s229 = smul.u32 64, %s19
      %p230 = scmp.lt.s32.totalorder %s229, 255
      %s231 = scalar_select %p230, %s229, 255
      %p232 = scmp.lt.s32.totalorder %s21, 0
      %s233 = scalar_select %p232, %s21, 0
      %s234 = sadd.s32 %s233, %s231
      %s235 = smul.addr %s234, 4
      %s236 = scalar_lea.vmem %s0, %s235
      %s237 = smul.u32 64, %s19
      %s238 = smul.u32 6, %s21
      %p239 = scmp.lt.s32.totalorder %s238, 5
      %s240 = scalar_select %p239, %s238, 5
      %p241 = scmp.lt.s32.totalorder %s20, 0
      %s242 = scalar_select %p241, %s20, 0
      %s243 = sadd.s32 %s242, %s240
      %s244 = smul.addr %s243, 4
      %s245 = scalar_lea.vmem %s1, %s244
      %s246 = smul.u32 6, %s21
      %p247 = scmp.lt.s32.totalorder %s20, 0
      %s248 = scalar_select %p247, %s20, 0
      %s249 = scalar_lea.vmem %s2, %s248
      %s250 = smul.u32 64, %s19
      %p251 = scmp.lt.s32.totalorder %s250, 255
      %s252 = scalar_select %p251, %s250, 255
      %p253 = scmp.lt.s32.totalorder %s20, 0
      %s254 = scalar_select %p253, %s20, 0
      %s255 = sadd.s32 %s254, %s252
      %s256 = smul.addr %s255, 4
      %s257 = scalar_lea.vmem %s3, %s256
      %s258 = smul.u32 64, %s19
      %p260 = scmp.eq.s32.totalorder %s21, 0
      // Predicated region
      $region33: #{discriminator_forward.8} parent=31 // pred_check
        %p261 = pneg %p260
      $region34: #{discriminator_forward.8} parent=31 // pred_check_branch
        %263 = sbr.rel (%p261) target = $region36
      $region35: #{discriminator_forward.8} parent=31 // pred_region
        %vm264 = vcmask 130048
        %265 = vst.msk [vmem:[#allocation2] sm:$0xff] %vm264, 0.0
        %266 = vst.msk [vmem:[#allocation2 + $0x8] sm:$0xff] %vm264, 0.0
        %267 = vst.msk [vmem:[#allocation2 + $0x10] sm:$0xff] %vm264, 0.0
        %268 = vst.msk [vmem:[#allocation2 + $0x18] sm:$0xff] %vm264, 0.0
        %269 = vst.msk [vmem:[#allocation2 + $0x20] sm:$0xff] %vm264, 0.0
        %270 = vst.msk [vmem:[#allocation2 + $0x28] sm:$0xff] %vm264, 0.0
        %271 = vst.msk [vmem:[#allocation2 + $0x30] sm:$0xff] %vm264, 0.0
        %272 = vst.msk [vmem:[#allocation2 + $0x38] sm:$0xff] %vm264, 0.0
        %273 = vst.msk [vmem:[#allocation2 + $0x40] sm:$0xff] %vm264, 0.0
        %274 = vst.msk [vmem:[#allocation2 + $0x48] sm:$0xff] %vm264, 0.0
        %275 = vst.msk [vmem:[#allocation2 + $0x50] sm:$0xff] %vm264, 0.0
        %276 = vst.msk [vmem:[#allocation2 + $0x58] sm:$0xff] %vm264, 0.0
        %277 = vst.msk [vmem:[#allocation2 + $0x60] sm:$0xff] %vm264, 0.0
        %278 = vst.msk [vmem:[#allocation2 + $0x68] sm:$0xff] %vm264, 0.0
        %279 = vst.msk [vmem:[#allocation2 + $0x70] sm:$0xff] %vm264, 0.0
        %280 = vst.msk [vmem:[#allocation2 + $0x78] sm:$0xff] %vm264, 0.0
        %281 = vst.msk [vmem:[#allocation2 + $0x80] sm:$0xff] %vm264, 0.0
        %282 = vst.msk [vmem:[#allocation2 + $0x88] sm:$0xff] %vm264, 0.0
        %283 = vst.msk [vmem:[#allocation2 + $0x90] sm:$0xff] %vm264, 0.0
        %284 = vst.msk [vmem:[#allocation2 + $0x98] sm:$0xff] %vm264, 0.0
        %285 = vst.msk [vmem:[#allocation2 + $0xa0] sm:$0xff] %vm264, 0.0
        %286 = vst.msk [vmem:[#allocation2 + $0xa8] sm:$0xff] %vm264, 0.0
        %287 = vst.msk [vmem:[#allocation2 + $0xb0] sm:$0xff] %vm264, 0.0
        %288 = vst.msk [vmem:[#allocation2 + $0xb8] sm:$0xff] %vm264, 0.0
        %289 = vst.msk [vmem:[#allocation2 + $0xc0] sm:$0xff] %vm264, 0.0
        %290 = vst.msk [vmem:[#allocation2 + $0xc8] sm:$0xff] %vm264, 0.0
        %291 = vst.msk [vmem:[#allocation2 + $0xd0] sm:$0xff] %vm264, 0.0
        %292 = vst.msk [vmem:[#allocation2 + $0xd8] sm:$0xff] %vm264, 0.0
        %293 = vst.msk [vmem:[#allocation2 + $0xe0] sm:$0xff] %vm264, 0.0
        %294 = vst.msk [vmem:[#allocation2 + $0xe8] sm:$0xff] %vm264, 0.0
        %295 = vst.msk [vmem:[#allocation2 + $0xf0] sm:$0xff] %vm264, 0.0
        %296 = vst.msk [vmem:[#allocation2 + $0xf8] sm:$0xff] %vm264, 0.0
        %297 = vst.msk [vmem:[#allocation2 + $0x100] sm:$0xff] %vm264, 0.0
        %298 = vst.msk [vmem:[#allocation2 + $0x108] sm:$0xff] %vm264, 0.0
        %299 = vst.msk [vmem:[#allocation2 + $0x110] sm:$0xff] %vm264, 0.0
        %300 = vst.msk [vmem:[#allocation2 + $0x118] sm:$0xff] %vm264, 0.0
        %301 = vst.msk [vmem:[#allocation2 + $0x120] sm:$0xff] %vm264, 0.0
        %302 = vst.msk [vmem:[#allocation2 + $0x128] sm:$0xff] %vm264, 0.0
        %303 = vst.msk [vmem:[#allocation2 + $0x130] sm:$0xff] %vm264, 0.0
        %304 = vst.msk [vmem:[#allocation2 + $0x138] sm:$0xff] %vm264, 0.0
        %305 = vst.msk [vmem:[#allocation2 + $0x140] sm:$0xff] %vm264, 0.0
        %306 = vst.msk [vmem:[#allocation2 + $0x148] sm:$0xff] %vm264, 0.0
        %307 = vst.msk [vmem:[#allocation2 + $0x150] sm:$0xff] %vm264, 0.0
        %308 = vst.msk [vmem:[#allocation2 + $0x158] sm:$0xff] %vm264, 0.0
        %309 = vst.msk [vmem:[#allocation2 + $0x160] sm:$0xff] %vm264, 0.0
        %310 = vst.msk [vmem:[#allocation2 + $0x168] sm:$0xff] %vm264, 0.0
        %311 = vst.msk [vmem:[#allocation2 + $0x170] sm:$0xff] %vm264, 0.0
        %312 = vst.msk [vmem:[#allocation2 + $0x178] sm:$0xff] %vm264, 0.0
        %313 = vst.msk [vmem:[#allocation2 + $0x180] sm:$0xff] %vm264, 0.0
        %314 = vst.msk [vmem:[#allocation2 + $0x188] sm:$0xff] %vm264, 0.0
        %315 = vst.msk [vmem:[#allocation2 + $0x190] sm:$0xff] %vm264, 0.0
        %316 = vst.msk [vmem:[#allocation2 + $0x198] sm:$0xff] %vm264, 0.0
        %317 = vst.msk [vmem:[#allocation2 + $0x1a0] sm:$0xff] %vm264, 0.0
        %318 = vst.msk [vmem:[#allocation2 + $0x1a8] sm:$0xff] %vm264, 0.0
        %319 = vst.msk [vmem:[#allocation2 + $0x1b0] sm:$0xff] %vm264, 0.0
        %320 = vst.msk [vmem:[#allocation2 + $0x1b8] sm:$0xff] %vm264, 0.0
        %321 = vst.msk [vmem:[#allocation2 + $0x1c0] sm:$0xff] %vm264, 0.0
        %322 = vst.msk [vmem:[#allocation2 + $0x1c8] sm:$0xff] %vm264, 0.0
        %323 = vst.msk [vmem:[#allocation2 + $0x1d0] sm:$0xff] %vm264, 0.0
        %324 = vst.msk [vmem:[#allocation2 + $0x1d8] sm:$0xff] %vm264, 0.0
        %325 = vst.msk [vmem:[#allocation2 + $0x1e0] sm:$0xff] %vm264, 0.0
        %326 = vst.msk [vmem:[#allocation2 + $0x1e8] sm:$0xff] %vm264, 0.0
        %327 = vst.msk [vmem:[#allocation2 + $0x1f0] sm:$0xff] %vm264, 0.0
        %328 = vst.msk [vmem:[#allocation2 + $0x1f8] sm:$0xff] %vm264, 0.0
      $region36: #{discriminator_forward.8} parent=31 // pred_fallthru
        _
      %v329 = vld [vmem:[#allocation2] sm:$0xff]
      %v330 = vld [vmem:[#allocation2 + $0x8] sm:$0xff]
      %v331 = vld [vmem:[#allocation2 + $0x10] sm:$0xff]
      %v332 = vld [vmem:[#allocation2 + $0x18] sm:$0xff]
      %v333 = vld [vmem:[#allocation2 + $0x20] sm:$0xff]
      %v334 = vld [vmem:[#allocation2 + $0x28] sm:$0xff]
      %v335 = vld [vmem:[#allocation2 + $0x30] sm:$0xff]
      %v336 = vld [vmem:[#allocation2 + $0x38] sm:$0xff]
      %v337 = vld [vmem:[#allocation2 + $0x40] sm:$0xff]
      %v338 = vld [vmem:[#allocation2 + $0x48] sm:$0xff]
      %v339 = vld [vmem:[#allocation2 + $0x50] sm:$0xff]
      %v340 = vld [vmem:[#allocation2 + $0x58] sm:$0xff]
      %v341 = vld [vmem:[#allocation2 + $0x60] sm:$0xff]
      %v342 = vld [vmem:[#allocation2 + $0x68] sm:$0xff]
      %v343 = vld [vmem:[#allocation2 + $0x70] sm:$0xff]
      %v344 = vld [vmem:[#allocation2 + $0x78] sm:$0xff]
      %v345 = vld [vmem:[#allocation2 + $0x80] sm:$0xff]
      %v346 = vld [vmem:[#allocation2 + $0x88] sm:$0xff]
      %v347 = vld [vmem:[#allocation2 + $0x90] sm:$0xff]
      %v348 = vld [vmem:[#allocation2 + $0x98] sm:$0xff]
      %v349 = vld [vmem:[#allocation2 + $0xa0] sm:$0xff]
      %v350 = vld [vmem:[#allocation2 + $0xa8] sm:$0xff]
      %v351 = vld [vmem:[#allocation2 + $0xb0] sm:$0xff]
      %v352 = vld [vmem:[#allocation2 + $0xb8] sm:$0xff]
      %v353 = vld [vmem:[#allocation2 + $0xc0] sm:$0xff]
      %v354 = vld [vmem:[#allocation2 + $0xc8] sm:$0xff]
      %v355 = vld [vmem:[#allocation2 + $0xd0] sm:$0xff]
      %v356 = vld [vmem:[#allocation2 + $0xd8] sm:$0xff]
      %v357 = vld [vmem:[#allocation2 + $0xe0] sm:$0xff]
      %v358 = vld [vmem:[#allocation2 + $0xe8] sm:$0xff]
      %v359 = vld [vmem:[#allocation2 + $0xf0] sm:$0xff]
      %v360 = vld [vmem:[#allocation2 + $0xf8] sm:$0xff]
      %v361 = vld [vmem:[#allocation2 + $0x100] sm:$0xff]
      %v362 = vld [vmem:[#allocation2 + $0x108] sm:$0xff]
      %v363 = vld [vmem:[#allocation2 + $0x110] sm:$0xff]
      %v364 = vld [vmem:[#allocation2 + $0x118] sm:$0xff]
      %v365 = vld [vmem:[#allocation2 + $0x120] sm:$0xff]
      %v366 = vld [vmem:[#allocation2 + $0x128] sm:$0xff]
      %v367 = vld [vmem:[#allocation2 + $0x130] sm:$0xff]
      %v368 = vld [vmem:[#allocation2 + $0x138] sm:$0xff]
      %v369 = vld [vmem:[#allocation2 + $0x140] sm:$0xff]
      %v370 = vld [vmem:[#allocation2 + $0x148] sm:$0xff]
      %v371 = vld [vmem:[#allocation2 + $0x150] sm:$0xff]
      %v372 = vld [vmem:[#allocation2 + $0x158] sm:$0xff]
      %v373 = vld [vmem:[#allocation2 + $0x160] sm:$0xff]
      %v374 = vld [vmem:[#allocation2 + $0x168] sm:$0xff]
      %v375 = vld [vmem:[#allocation2 + $0x170] sm:$0xff]
      %v376 = vld [vmem:[#allocation2 + $0x178] sm:$0xff]
      %v377 = vld [vmem:[#allocation2 + $0x180] sm:$0xff]
      %v378 = vld [vmem:[#allocation2 + $0x188] sm:$0xff]
      %v379 = vld [vmem:[#allocation2 + $0x190] sm:$0xff]
      %v380 = vld [vmem:[#allocation2 + $0x198] sm:$0xff]
      %v381 = vld [vmem:[#allocation2 + $0x1a0] sm:$0xff]
      %v382 = vld [vmem:[#allocation2 + $0x1a8] sm:$0xff]
      %v383 = vld [vmem:[#allocation2 + $0x1b0] sm:$0xff]
      %v384 = vld [vmem:[#allocation2 + $0x1b8] sm:$0xff]
      %v385 = vld [vmem:[#allocation2 + $0x1c0] sm:$0xff]
      %v386 = vld [vmem:[#allocation2 + $0x1c8] sm:$0xff]
      %v387 = vld [vmem:[#allocation2 + $0x1d0] sm:$0xff]
      %v388 = vld [vmem:[#allocation2 + $0x1d8] sm:$0xff]
      %v389 = vld [vmem:[#allocation2 + $0x1e0] sm:$0xff]
      %v390 = vld [vmem:[#allocation2 + $0x1e8] sm:$0xff]
      %v391 = vld [vmem:[#allocation2 + $0x1f0] sm:$0xff]
      %v392 = vld [vmem:[#allocation2 + $0x1f8] sm:$0xff]
      %v393 = vld [vmem:[%s236] sm:$0xf]
      %v394 = vld [vmem:[%s236 + $0x4] sm:$0xf]
      %v395 = vld [vmem:[%s236 + $0x8] sm:$0xf]
      %v396 = vld [vmem:[%s236 + $0xc] sm:$0xf]
      %v397 = vld [vmem:[%s236 + $0x10] sm:$0xf]
      %v398 = vld [vmem:[%s236 + $0x14] sm:$0xf]
      %v399 = vld [vmem:[%s236 + $0x18] sm:$0xf]
      %v400 = vld [vmem:[%s236 + $0x1c] sm:$0xf]
      %v401 = vld [vmem:[%s236 + $0x20] sm:$0xf]
      %v402 = vld [vmem:[%s236 + $0x24] sm:$0xf]
      %v403 = vld [vmem:[%s236 + $0x28] sm:$0xf]
      %v404 = vld [vmem:[%s236 + $0x2c] sm:$0xf]
      %v405 = vld [vmem:[%s236 + $0x30] sm:$0xf]
      %v406 = vld [vmem:[%s236 + $0x34] sm:$0xf]
      %v407 = vld [vmem:[%s236 + $0x38] sm:$0xf]
      %v408 = vld [vmem:[%s236 + $0x3c] sm:$0xf]
      %v409 = vld [vmem:[%s236 + $0x40] sm:$0xf]
      %v410 = vld [vmem:[%s236 + $0x44] sm:$0xf]
      %v411 = vld [vmem:[%s236 + $0x48] sm:$0xf]
      %v412 = vld [vmem:[%s236 + $0x4c] sm:$0xf]
      %v413 = vld [vmem:[%s236 + $0x50] sm:$0xf]
      %v414 = vld [vmem:[%s236 + $0x54] sm:$0xf]
      %v415 = vld [vmem:[%s236 + $0x58] sm:$0xf]
      %v416 = vld [vmem:[%s236 + $0x5c] sm:$0xf]
      %v417 = vld [vmem:[%s236 + $0x60] sm:$0xf]
      %v418 = vld [vmem:[%s236 + $0x64] sm:$0xf]
      %v419 = vld [vmem:[%s236 + $0x68] sm:$0xf]
      %v420 = vld [vmem:[%s236 + $0x6c] sm:$0xf]
      %v421 = vld [vmem:[%s236 + $0x70] sm:$0xf]
      %v422 = vld [vmem:[%s236 + $0x74] sm:$0xf]
      %v423 = vld [vmem:[%s236 + $0x78] sm:$0xf]
      %v424 = vld [vmem:[%s236 + $0x7c] sm:$0xf]
      %v425 = vld [vmem:[%s236 + $0x80] sm:$0xf]
      %v426 = vld [vmem:[%s236 + $0x84] sm:$0xf]
      %v427 = vld [vmem:[%s236 + $0x88] sm:$0xf]
      %v428 = vld [vmem:[%s236 + $0x8c] sm:$0xf]
      %v429 = vld [vmem:[%s236 + $0x90] sm:$0xf]
      %v430 = vld [vmem:[%s236 + $0x94] sm:$0xf]
      %v431 = vld [vmem:[%s236 + $0x98] sm:$0xf]
      %v432 = vld [vmem:[%s236 + $0x9c] sm:$0xf]
      %v433 = vld [vmem:[%s236 + $0xa0] sm:$0xf]
      %v434 = vld [vmem:[%s236 + $0xa4] sm:$0xf]
      %v435 = vld [vmem:[%s236 + $0xa8] sm:$0xf]
      %v436 = vld [vmem:[%s236 + $0xac] sm:$0xf]
      %v437 = vld [vmem:[%s236 + $0xb0] sm:$0xf]
      %v438 = vld [vmem:[%s236 + $0xb4] sm:$0xf]
      %v439 = vld [vmem:[%s236 + $0xb8] sm:$0xf]
      %v440 = vld [vmem:[%s236 + $0xbc] sm:$0xf]
      %v441 = vld [vmem:[%s236 + $0xc0] sm:$0xf]
      %v442 = vld [vmem:[%s236 + $0xc4] sm:$0xf]
      %v443 = vld [vmem:[%s236 + $0xc8] sm:$0xf]
      %v444 = vld [vmem:[%s236 + $0xcc] sm:$0xf]
      %v445 = vld [vmem:[%s236 + $0xd0] sm:$0xf]
      %v446 = vld [vmem:[%s236 + $0xd4] sm:$0xf]
      %v447 = vld [vmem:[%s236 + $0xd8] sm:$0xf]
      %v448 = vld [vmem:[%s236 + $0xdc] sm:$0xf]
      %v449 = vld [vmem:[%s236 + $0xe0] sm:$0xf]
      %v450 = vld [vmem:[%s236 + $0xe4] sm:$0xf]
      %v451 = vld [vmem:[%s236 + $0xe8] sm:$0xf]
      %v452 = vld [vmem:[%s236 + $0xec] sm:$0xf]
      %v453 = vld [vmem:[%s236 + $0xf0] sm:$0xf]
      %v454 = vld [vmem:[%s236 + $0xf4] sm:$0xf]
      %v455 = vld [vmem:[%s236 + $0xf8] sm:$0xf]
      %v456 = vld [vmem:[%s236 + $0xfc] sm:$0xf]
      %v457 = vld [vmem:[%s245] sm:$0xf]
      %v458 = vld [vmem:[%s245 + $0x4] sm:$0xf]
      %v459 = vld [vmem:[%s245 + $0x8] sm:$0xf]
      %v460 = vld [vmem:[%s245 + $0xc] sm:$0xf]
      %v461 = vld [vmem:[%s245 + $0x10] sm:$0xf]
      %v462 = vld [vmem:[%s245 + $0x14] sm:$0xf]
      %v527 = vunpack.c.l.b16 %v393
      %v528 = vunpack.c.l.b16 %v394
      %v529 = vunpack.c.l.b16 %v395
      %v530 = vunpack.c.l.b16 %v396
      %v531 = vunpack.c.l.b16 %v397
      %v532 = vunpack.c.l.b16 %v398
      %v533 = vunpack.c.l.b16 %v399
      %v534 = vunpack.c.l.b16 %v400
      %v535 = vunpack.c.l.b16 %v401
      %v536 = vunpack.c.l.b16 %v402
      %v537 = vunpack.c.l.b16 %v403
      %v538 = vunpack.c.l.b16 %v404
      %v539 = vunpack.c.l.b16 %v405
      %v540 = vunpack.c.l.b16 %v406
      %v541 = vunpack.c.l.b16 %v407
      %v542 = vunpack.c.l.b16 %v408
      %v543 = vunpack.c.l.b16 %v409
      %v544 = vunpack.c.l.b16 %v410
      %v545 = vunpack.c.l.b16 %v411
      %v546 = vunpack.c.l.b16 %v412
      %v547 = vunpack.c.l.b16 %v413
      %v548 = vunpack.c.l.b16 %v414
      %v549 = vunpack.c.l.b16 %v415
      %v550 = vunpack.c.l.b16 %v416
      %v551 = vunpack.c.l.b16 %v417
      %v552 = vunpack.c.l.b16 %v418
      %v553 = vunpack.c.l.b16 %v419
      %v554 = vunpack.c.l.b16 %v420
      %v555 = vunpack.c.l.b16 %v421
      %v556 = vunpack.c.l.b16 %v422
      %v557 = vunpack.c.l.b16 %v423
      %v558 = vunpack.c.l.b16 %v424
      %v559 = vunpack.c.l.b16 %v425
      %v560 = vunpack.c.l.b16 %v426
      %v561 = vunpack.c.l.b16 %v427
      %v562 = vunpack.c.l.b16 %v428
      %v563 = vunpack.c.l.b16 %v429
      %v564 = vunpack.c.l.b16 %v430
      %v565 = vunpack.c.l.b16 %v431
      %v566 = vunpack.c.l.b16 %v432
      %v567 = vunpack.c.l.b16 %v433
      %v568 = vunpack.c.l.b16 %v434
      %v569 = vunpack.c.l.b16 %v435
      %v570 = vunpack.c.l.b16 %v436
      %v571 = vunpack.c.l.b16 %v437
      %v572 = vunpack.c.l.b16 %v438
      %v573 = vunpack.c.l.b16 %v439
      %v574 = vunpack.c.l.b16 %v440
      %v575 = vunpack.c.l.b16 %v441
      %v576 = vunpack.c.l.b16 %v442
      %v577 = vunpack.c.l.b16 %v443
      %v578 = vunpack.c.l.b16 %v444
      %v579 = vunpack.c.l.b16 %v445
      %v580 = vunpack.c.l.b16 %v446
      %v581 = vunpack.c.l.b16 %v447
      %v582 = vunpack.c.l.b16 %v448
      %v583 = vunpack.c.l.b16 %v449
      %v584 = vunpack.c.l.b16 %v450
      %v585 = vunpack.c.l.b16 %v451
      %v586 = vunpack.c.l.b16 %v452
      %v587 = vunpack.c.l.b16 %v453
      %v588 = vunpack.c.l.b16 %v454
      %v589 = vunpack.c.l.b16 %v455
      %v590 = vunpack.c.l.b16 %v456
      %v591 = vpack.c.b16 %v528, %v527
      %v592 = vpack.c.b16 %v530, %v529
      %v593 = vpack.c.b16 %v532, %v531
      %v594 = vpack.c.b16 %v534, %v533
      %v595 = vpack.c.b16 %v536, %v535
      %v596 = vpack.c.b16 %v538, %v537
      %v597 = vpack.c.b16 %v540, %v539
      %v598 = vpack.c.b16 %v542, %v541
      %v599 = vpack.c.b16 %v544, %v543
      %v600 = vpack.c.b16 %v546, %v545
      %v601 = vpack.c.b16 %v548, %v547
      %v602 = vpack.c.b16 %v550, %v549
      %v603 = vpack.c.b16 %v552, %v551
      %v604 = vpack.c.b16 %v554, %v553
      %v605 = vpack.c.b16 %v556, %v555
      %v606 = vpack.c.b16 %v558, %v557
      %v607 = vpack.c.b16 %v560, %v559
      %v608 = vpack.c.b16 %v562, %v561
      %v609 = vpack.c.b16 %v564, %v563
      %v610 = vpack.c.b16 %v566, %v565
      %v611 = vpack.c.b16 %v568, %v567
      %v612 = vpack.c.b16 %v570, %v569
      %v613 = vpack.c.b16 %v572, %v571
      %v614 = vpack.c.b16 %v574, %v573
      %v615 = vpack.c.b16 %v576, %v575
      %v616 = vpack.c.b16 %v578, %v577
      %v617 = vpack.c.b16 %v580, %v579
      %v618 = vpack.c.b16 %v582, %v581
      %v619 = vpack.c.b16 %v584, %v583
      %v620 = vpack.c.b16 %v586, %v585
      %v621 = vpack.c.b16 %v588, %v587
      %v622 = vpack.c.b16 %v590, %v589
      %v629 = vunpack.c.l.b16 %v457
      %v630 = vunpack.c.l.b16 %v458
      %v631 = vunpack.c.l.b16 %v459
      %v632 = vunpack.c.l.b16 %v460
      %v633 = vunpack.c.l.b16 %v461
      %v634 = vunpack.c.l.b16 %v462
      %v635 = vpack.c.b16 %v630, %v629
      %v636 = vpack.c.b16 %v632, %v631
      %v637 = vpack.c.b16 %v634, %v633
      %vm641 = vcmask 392192
      %v643 = vsel %vm641, %v591, 0
      %v646 = vsel %vm641, %v592, 0
      %v649 = vsel %vm641, %v593, 0
      %v652 = vsel %vm641, %v594, 0
      %v655 = vsel %vm641, %v595, 0
      %v658 = vsel %vm641, %v596, 0
      %v661 = vsel %vm641, %v597, 0
      %v664 = vsel %vm641, %v598, 0
      %v667 = vsel %vm641, %v599, 0
      %v670 = vsel %vm641, %v600, 0
      %v673 = vsel %vm641, %v601, 0
      %v676 = vsel %vm641, %v602, 0
      %v679 = vsel %vm641, %v603, 0
      %v682 = vsel %vm641, %v604, 0
      %v685 = vsel %vm641, %v605, 0
      %v688 = vsel %vm641, %v606, 0
      %v691 = vsel %vm641, %v607, 0
      %v694 = vsel %vm641, %v608, 0
      %v697 = vsel %vm641, %v609, 0
      %v700 = vsel %vm641, %v610, 0
      %v703 = vsel %vm641, %v611, 0
      %v706 = vsel %vm641, %v612, 0
      %v709 = vsel %vm641, %v613, 0
      %v712 = vsel %vm641, %v614, 0
      %v715 = vsel %vm641, %v615, 0
      %v718 = vsel %vm641, %v616, 0
      %v721 = vsel %vm641, %v617, 0
      %v724 = vsel %vm641, %v618, 0
      %v727 = vsel %vm641, %v619, 0
      %v730 = vsel %vm641, %v620, 0
      %v733 = vsel %vm641, %v621, 0
      %v736 = vsel %vm641, %v622, 0
      %738 = vmatpush.bf16.msra.mxu0 0
      %739 = vmatpush.bf16.msra.mxu0 0
      %740 = vmatpush.bf16.msra.mxu0 0
      %741 = vmatpush.bf16.msra.mxu0 0
      %742 = vmatpush.bf16.msra.mxu0 0
      %743 = vmatpush.bf16.msra.mxu0 %v637
      %744 = vmatpush.bf16.msra.mxu0 %v636
      %745 = vmatpush.bf16.msra.mxu0 %v635
      %746 = vmatmul.bf16.gmra.mxu0 %v643
      %v747 = vpop.f32.mrf.mxu0
      %v748 = vadd.f32 0.0, %v747
      %v749 = vpop.f32.mrf.mxu0
      %v750 = vadd.f32 0.0, %v749
      %751 = vmatmul.bf16.gmra.mxu0 %v646
      %v752 = vpop.f32.mrf.mxu0
      %v753 = vadd.f32 0.0, %v752
      %v754 = vpop.f32.mrf.mxu0
      %v755 = vadd.f32 0.0, %v754
      %756 = vmatmul.bf16.gmra.mxu0 %v649
      %v757 = vpop.f32.mrf.mxu0
      %v758 = vadd.f32 0.0, %v757
      %v759 = vpop.f32.mrf.mxu0
      %v760 = vadd.f32 0.0, %v759
      %761 = vmatmul.bf16.gmra.mxu0 %v652
      %v762 = vpop.f32.mrf.mxu0
      %v763 = vadd.f32 0.0, %v762
      %v764 = vpop.f32.mrf.mxu0
      %v765 = vadd.f32 0.0, %v764
      %766 = vmatmul.bf16.gmra.mxu0 %v655
      %v767 = vpop.f32.mrf.mxu0
      %v768 = vadd.f32 0.0, %v767
      %v769 = vpop.f32.mrf.mxu0
      %v770 = vadd.f32 0.0, %v769
      %771 = vmatmul.bf16.gmra.mxu0 %v658
      %v772 = vpop.f32.mrf.mxu0
      %v773 = vadd.f32 0.0, %v772
      %v774 = vpop.f32.mrf.mxu0
      %v775 = vadd.f32 0.0, %v774
      %776 = vmatmul.bf16.gmra.mxu0 %v661
      %v777 = vpop.f32.mrf.mxu0
      %v778 = vadd.f32 0.0, %v777
      %v779 = vpop.f32.mrf.mxu0
      %v780 = vadd.f32 0.0, %v779
      %781 = vmatmul.bf16.gmra.mxu0 %v664
      %v782 = vpop.f32.mrf.mxu0
      %v783 = vadd.f32 0.0, %v782
      %v784 = vpop.f32.mrf.mxu0
      %v785 = vadd.f32 0.0, %v784
      %786 = vmatmul.bf16.gmra.mxu0 %v667
      %v787 = vpop.f32.mrf.mxu0
      %v788 = vadd.f32 0.0, %v787
      %v789 = vpop.f32.mrf.mxu0
      %v790 = vadd.f32 0.0, %v789
      %791 = vmatmul.bf16.gmra.mxu0 %v670
      %v792 = vpop.f32.mrf.mxu0
      %v793 = vadd.f32 0.0, %v792
      %v794 = vpop.f32.mrf.mxu0
      %v795 = vadd.f32 0.0, %v794
      %796 = vmatmul.bf16.gmra.mxu0 %v673
      %v797 = vpop.f32.mrf.mxu0
      %v798 = vadd.f32 0.0, %v797
      %v799 = vpop.f32.mrf.mxu0
      %v800 = vadd.f32 0.0, %v799
      %801 = vmatmul.bf16.gmra.mxu0 %v676
      %v802 = vpop.f32.mrf.mxu0
      %v803 = vadd.f32 0.0, %v802
      %v804 = vpop.f32.mrf.mxu0
      %v805 = vadd.f32 0.0, %v804
      %806 = vmatmul.bf16.gmra.mxu0 %v679
      %v807 = vpop.f32.mrf.mxu0
      %v808 = vadd.f32 0.0, %v807
      %v809 = vpop.f32.mrf.mxu0
      %v810 = vadd.f32 0.0, %v809
      %811 = vmatmul.bf16.gmra.mxu0 %v682
      %v812 = vpop.f32.mrf.mxu0
      %v813 = vadd.f32 0.0, %v812
      %v814 = vpop.f32.mrf.mxu0
      %v815 = vadd.f32 0.0, %v814
      %816 = vmatmul.bf16.gmra.mxu0 %v685
      %v817 = vpop.f32.mrf.mxu0
      %v818 = vadd.f32 0.0, %v817
      %v819 = vpop.f32.mrf.mxu0
      %v820 = vadd.f32 0.0, %v819
      %821 = vmatmul.bf16.gmra.mxu0 %v688
      %v822 = vpop.f32.mrf.mxu0
      %v823 = vadd.f32 0.0, %v822
      %v824 = vpop.f32.mrf.mxu0
      %v825 = vadd.f32 0.0, %v824
      %826 = vmatmul.bf16.gmra.mxu0 %v691
      %v827 = vpop.f32.mrf.mxu0
      %v828 = vadd.f32 0.0, %v827
      %v829 = vpop.f32.mrf.mxu0
      %v830 = vadd.f32 0.0, %v829
      %831 = vmatmul.bf16.gmra.mxu0 %v694
      %v832 = vpop.f32.mrf.mxu0
      %v833 = vadd.f32 0.0, %v832
      %v834 = vpop.f32.mrf.mxu0
      %v835 = vadd.f32 0.0, %v834
      %836 = vmatmul.bf16.gmra.mxu0 %v697
      %v837 = vpop.f32.mrf.mxu0
      %v838 = vadd.f32 0.0, %v837
      %v839 = vpop.f32.mrf.mxu0
      %v840 = vadd.f32 0.0, %v839
      %841 = vmatmul.bf16.gmra.mxu0 %v700
      %v842 = vpop.f32.mrf.mxu0
      %v843 = vadd.f32 0.0, %v842
      %v844 = vpop.f32.mrf.mxu0
      %v845 = vadd.f32 0.0, %v844
      %846 = vmatmul.bf16.gmra.mxu0 %v703
      %v847 = vpop.f32.mrf.mxu0
      %v848 = vadd.f32 0.0, %v847
      %v849 = vpop.f32.mrf.mxu0
      %v850 = vadd.f32 0.0, %v849
      %851 = vmatmul.bf16.gmra.mxu0 %v706
      %v852 = vpop.f32.mrf.mxu0
      %v853 = vadd.f32 0.0, %v852
      %v854 = vpop.f32.mrf.mxu0
      %v855 = vadd.f32 0.0, %v854
      %856 = vmatmul.bf16.gmra.mxu0 %v709
      %v857 = vpop.f32.mrf.mxu0
      %v858 = vadd.f32 0.0, %v857
      %v859 = vpop.f32.mrf.mxu0
      %v860 = vadd.f32 0.0, %v859
      %861 = vmatmul.bf16.gmra.mxu0 %v712
      %v862 = vpop.f32.mrf.mxu0
      %v863 = vadd.f32 0.0, %v862
      %v864 = vpop.f32.mrf.mxu0
      %v865 = vadd.f32 0.0, %v864
      %866 = vmatmul.bf16.gmra.mxu0 %v715
      %v867 = vpop.f32.mrf.mxu0
      %v868 = vadd.f32 0.0, %v867
      %v869 = vpop.f32.mrf.mxu0
      %v870 = vadd.f32 0.0, %v869
      %871 = vmatmul.bf16.gmra.mxu0 %v718
      %v872 = vpop.f32.mrf.mxu0
      %v873 = vadd.f32 0.0, %v872
      %v874 = vpop.f32.mrf.mxu0
      %v875 = vadd.f32 0.0, %v874
      %876 = vmatmul.bf16.gmra.mxu0 %v721
      %v877 = vpop.f32.mrf.mxu0
      %v878 = vadd.f32 0.0, %v877
      %v879 = vpop.f32.mrf.mxu0
      %v880 = vadd.f32 0.0, %v879
      %881 = vmatmul.bf16.gmra.mxu0 %v724
      %v882 = vpop.f32.mrf.mxu0
      %v883 = vadd.f32 0.0, %v882
      %v884 = vpop.f32.mrf.mxu0
      %v885 = vadd.f32 0.0, %v884
      %886 = vmatmul.bf16.gmra.mxu0 %v727
      %v887 = vpop.f32.mrf.mxu0
      %v888 = vadd.f32 0.0, %v887
      %v889 = vpop.f32.mrf.mxu0
      %v890 = vadd.f32 0.0, %v889
      %891 = vmatmul.bf16.gmra.mxu0 %v730
      %v892 = vpop.f32.mrf.mxu0
      %v893 = vadd.f32 0.0, %v892
      %v894 = vpop.f32.mrf.mxu0
      %v895 = vadd.f32 0.0, %v894
      %896 = vmatmul.bf16.gmra.mxu0 %v733
      %v897 = vpop.f32.mrf.mxu0
      %v898 = vadd.f32 0.0, %v897
      %v899 = vpop.f32.mrf.mxu0
      %v900 = vadd.f32 0.0, %v899
      %901 = vmatmul.bf16.gmra.mxu0 %v736
      %v902 = vpop.f32.mrf.mxu0
      %v903 = vadd.f32 0.0, %v902
      %v904 = vpop.f32.mrf.mxu0
      %v905 = vadd.f32 0.0, %v904
      %906 = vdwg.mxu0
      %v907 = vadd.f32 %v329, %v748
      %v908 = vadd.f32 %v330, %v750
      %v909 = vadd.f32 %v331, %v753
      %v910 = vadd.f32 %v332, %v755
      %v911 = vadd.f32 %v333, %v758
      %v912 = vadd.f32 %v334, %v760
      %v913 = vadd.f32 %v335, %v763
      %v914 = vadd.f32 %v336, %v765
      %v915 = vadd.f32 %v337, %v768
      %v916 = vadd.f32 %v338, %v770
      %v917 = vadd.f32 %v339, %v773
      %v918 = vadd.f32 %v340, %v775
      %v919 = vadd.f32 %v341, %v778
      %v920 = vadd.f32 %v342, %v780
      %v921 = vadd.f32 %v343, %v783
      %v922 = vadd.f32 %v344, %v785
      %v923 = vadd.f32 %v345, %v788
      %v924 = vadd.f32 %v346, %v790
      %v925 = vadd.f32 %v347, %v793
      %v926 = vadd.f32 %v348, %v795
      %v927 = vadd.f32 %v349, %v798
      %v928 = vadd.f32 %v350, %v800
      %v929 = vadd.f32 %v351, %v803
      %v930 = vadd.f32 %v352, %v805
      %v931 = vadd.f32 %v353, %v808
      %v932 = vadd.f32 %v354, %v810
      %v933 = vadd.f32 %v355, %v813
      %v934 = vadd.f32 %v356, %v815
      %v935 = vadd.f32 %v357, %v818
      %v936 = vadd.f32 %v358, %v820
      %v937 = vadd.f32 %v359, %v823
      %v938 = vadd.f32 %v360, %v825
      %v939 = vadd.f32 %v361, %v828
      %v940 = vadd.f32 %v362, %v830
      %v941 = vadd.f32 %v363, %v833
      %v942 = vadd.f32 %v364, %v835
      %v943 = vadd.f32 %v365, %v838
      %v944 = vadd.f32 %v366, %v840
      %v945 = vadd.f32 %v367, %v843
      %v946 = vadd.f32 %v368, %v845
      %v947 = vadd.f32 %v369, %v848
      %v948 = vadd.f32 %v370, %v850
      %v949 = vadd.f32 %v371, %v853
      %v950 = vadd.f32 %v372, %v855
      %v951 = vadd.f32 %v373, %v858
      %v952 = vadd.f32 %v374, %v860
      %v953 = vadd.f32 %v375, %v863
      %v954 = vadd.f32 %v376, %v865
      %v955 = vadd.f32 %v377, %v868
      %v956 = vadd.f32 %v378, %v870
      %v957 = vadd.f32 %v379, %v873
      %v958 = vadd.f32 %v380, %v875
      %v959 = vadd.f32 %v381, %v878
      %v960 = vadd.f32 %v382, %v880
      %v961 = vadd.f32 %v383, %v883
      %v962 = vadd.f32 %v384, %v885
      %v963 = vadd.f32 %v385, %v888
      %v964 = vadd.f32 %v386, %v890
      %v965 = vadd.f32 %v387, %v893
      %v966 = vadd.f32 %v388, %v895
      %v967 = vadd.f32 %v389, %v898
      %v968 = vadd.f32 %v390, %v900
      %v969 = vadd.f32 %v391, %v903
      %v970 = vadd.f32 %v392, %v905
      %vm971 = vcmask 130048
      %972 = vst.msk [vmem:[#allocation2] sm:$0xff] %vm971, %v907
      %973 = vst.msk [vmem:[#allocation2 + $0x8] sm:$0xff] %vm971, %v908
      %974 = vst.msk [vmem:[#allocation2 + $0x10] sm:$0xff] %vm971, %v909
      %975 = vst.msk [vmem:[#allocation2 + $0x18] sm:$0xff] %vm971, %v910
      %976 = vst.msk [vmem:[#allocation2 + $0x20] sm:$0xff] %vm971, %v911
      %977 = vst.msk [vmem:[#allocation2 + $0x28] sm:$0xff] %vm971, %v912
      %978 = vst.msk [vmem:[#allocation2 + $0x30] sm:$0xff] %vm971, %v913
      %979 = vst.msk [vmem:[#allocation2 + $0x38] sm:$0xff] %vm971, %v914
      %980 = vst.msk [vmem:[#allocation2 + $0x40] sm:$0xff] %vm971, %v915
      %981 = vst.msk [vmem:[#allocation2 + $0x48] sm:$0xff] %vm971, %v916
      %982 = vst.msk [vmem:[#allocation2 + $0x50] sm:$0xff] %vm971, %v917
      %983 = vst.msk [vmem:[#allocation2 + $0x58] sm:$0xff] %vm971, %v918
      %984 = vst.msk [vmem:[#allocation2 + $0x60] sm:$0xff] %vm971, %v919
      %985 = vst.msk [vmem:[#allocation2 + $0x68] sm:$0xff] %vm971, %v920
      %986 = vst.msk [vmem:[#allocation2 + $0x70] sm:$0xff] %vm971, %v921
      %987 = vst.msk [vmem:[#allocation2 + $0x78] sm:$0xff] %vm971, %v922
      %988 = vst.msk [vmem:[#allocation2 + $0x80] sm:$0xff] %vm971, %v923
      %989 = vst.msk [vmem:[#allocation2 + $0x88] sm:$0xff] %vm971, %v924
      %990 = vst.msk [vmem:[#allocation2 + $0x90] sm:$0xff] %vm971, %v925
      %991 = vst.msk [vmem:[#allocation2 + $0x98] sm:$0xff] %vm971, %v926
      %992 = vst.msk [vmem:[#allocation2 + $0xa0] sm:$0xff] %vm971, %v927
      %993 = vst.msk [vmem:[#allocation2 + $0xa8] sm:$0xff] %vm971, %v928
      %994 = vst.msk [vmem:[#allocation2 + $0xb0] sm:$0xff] %vm971, %v929
      %995 = vst.msk [vmem:[#allocation2 + $0xb8] sm:$0xff] %vm971, %v930
      %996 = vst.msk [vmem:[#allocation2 + $0xc0] sm:$0xff] %vm971, %v931
      %997 = vst.msk [vmem:[#allocation2 + $0xc8] sm:$0xff] %vm971, %v932
      %998 = vst.msk [vmem:[#allocation2 + $0xd0] sm:$0xff] %vm971, %v933
      %999 = vst.msk [vmem:[#allocation2 + $0xd8] sm:$0xff] %vm971, %v934
      %1000 = vst.msk [vmem:[#allocation2 + $0xe0] sm:$0xff] %vm971, %v935
      %1001 = vst.msk [vmem:[#allocation2 + $0xe8] sm:$0xff] %vm971, %v936
      %1002 = vst.msk [vmem:[#allocation2 + $0xf0] sm:$0xff] %vm971, %v937
      %1003 = vst.msk [vmem:[#allocation2 + $0xf8] sm:$0xff] %vm971, %v938
      %1004 = vst.msk [vmem:[#allocation2 + $0x100] sm:$0xff] %vm971, %v939
      %1005 = vst.msk [vmem:[#allocation2 + $0x108] sm:$0xff] %vm971, %v940
      %1006 = vst.msk [vmem:[#allocation2 + $0x110] sm:$0xff] %vm971, %v941
      %1007 = vst.msk [vmem:[#allocation2 + $0x118] sm:$0xff] %vm971, %v942
      %1008 = vst.msk [vmem:[#allocation2 + $0x120] sm:$0xff] %vm971, %v943
      %1009 = vst.msk [vmem:[#allocation2 + $0x128] sm:$0xff] %vm971, %v944
      %1010 = vst.msk [vmem:[#allocation2 + $0x130] sm:$0xff] %vm971, %v945
      %1011 = vst.msk [vmem:[#allocation2 + $0x138] sm:$0xff] %vm971, %v946
      %1012 = vst.msk [vmem:[#allocation2 + $0x140] sm:$0xff] %vm971, %v947
      %1013 = vst.msk [vmem:[#allocation2 + $0x148] sm:$0xff] %vm971, %v948
      %1014 = vst.msk [vmem:[#allocation2 + $0x150] sm:$0xff] %vm971, %v949
      %1015 = vst.msk [vmem:[#allocation2 + $0x158] sm:$0xff] %vm971, %v950
      %1016 = vst.msk [vmem:[#allocation2 + $0x160] sm:$0xff] %vm971, %v951
      %1017 = vst.msk [vmem:[#allocation2 + $0x168] sm:$0xff] %vm971, %v952
      %1018 = vst.msk [vmem:[#allocation2 + $0x170] sm:$0xff] %vm971, %v953
      %1019 = vst.msk [vmem:[#allocation2 + $0x178] sm:$0xff] %vm971, %v954
      %1020 = vst.msk [vmem:[#allocation2 + $0x180] sm:$0xff] %vm971, %v955
      %1021 = vst.msk [vmem:[#allocation2 + $0x188] sm:$0xff] %vm971, %v956
      %1022 = vst.msk [vmem:[#allocation2 + $0x190] sm:$0xff] %vm971, %v957
      %1023 = vst.msk [vmem:[#allocation2 + $0x198] sm:$0xff] %vm971, %v958
      %1024 = vst.msk [vmem:[#allocation2 + $0x1a0] sm:$0xff] %vm971, %v959
      %1025 = vst.msk [vmem:[#allocation2 + $0x1a8] sm:$0xff] %vm971, %v960
      %1026 = vst.msk [vmem:[#allocation2 + $0x1b0] sm:$0xff] %vm971, %v961
      %1027 = vst.msk [vmem:[#allocation2 + $0x1b8] sm:$0xff] %vm971, %v962
      %1028 = vst.msk [vmem:[#allocation2 + $0x1c0] sm:$0xff] %vm971, %v963
      %1029 = vst.msk [vmem:[#allocation2 + $0x1c8] sm:$0xff] %vm971, %v964
      %1030 = vst.msk [vmem:[#allocation2 + $0x1d0] sm:$0xff] %vm971, %v965
      %1031 = vst.msk [vmem:[#allocation2 + $0x1d8] sm:$0xff] %vm971, %v966
      %1032 = vst.msk [vmem:[#allocation2 + $0x1e0] sm:$0xff] %vm971, %v967
      %1033 = vst.msk [vmem:[#allocation2 + $0x1e8] sm:$0xff] %vm971, %v968
      %1034 = vst.msk [vmem:[#allocation2 + $0x1f0] sm:$0xff] %vm971, %v969
      %1035 = vst.msk [vmem:[#allocation2 + $0x1f8] sm:$0xff] %vm971, %v970
      // Predicated region
      $region37: #{discriminator_forward.8} parent=31 // pred_check
        %p1036 = pneg %p260
      $region38: #{discriminator_forward.8} parent=31 // pred_check_branch
        %1038 = sbr.rel (%p1036) target = $region40
      $region39: #{discriminator_forward.8} parent=31 // pred_region
        %v1039 = vld [vmem:[#allocation2] sm:$0xff]
        %v1040 = vld [vmem:[#allocation2 + $0x8] sm:$0xff]
        %v1041 = vld [vmem:[#allocation2 + $0x10] sm:$0xff]
        %v1042 = vld [vmem:[#allocation2 + $0x18] sm:$0xff]
        %v1043 = vld [vmem:[#allocation2 + $0x20] sm:$0xff]
        %v1044 = vld [vmem:[#allocation2 + $0x28] sm:$0xff]
        %v1045 = vld [vmem:[#allocation2 + $0x30] sm:$0xff]
        %v1046 = vld [vmem:[#allocation2 + $0x38] sm:$0xff]
        %v1047 = vld [vmem:[#allocation2 + $0x40] sm:$0xff]
        %v1048 = vld [vmem:[#allocation2 + $0x48] sm:$0xff]
        %v1049 = vld [vmem:[#allocation2 + $0x50] sm:$0xff]
        %v1050 = vld [vmem:[#allocation2 + $0x58] sm:$0xff]
        %v1051 = vld [vmem:[#allocation2 + $0x60] sm:$0xff]
        %v1052 = vld [vmem:[#allocation2 + $0x68] sm:$0xff]
        %v1053 = vld [vmem:[#allocation2 + $0x70] sm:$0xff]
        %v1054 = vld [vmem:[#allocation2 + $0x78] sm:$0xff]
        %v1055 = vld [vmem:[#allocation2 + $0x80] sm:$0xff]
        %v1056 = vld [vmem:[#allocation2 + $0x88] sm:$0xff]
        %v1057 = vld [vmem:[#allocation2 + $0x90] sm:$0xff]
        %v1058 = vld [vmem:[#allocation2 + $0x98] sm:$0xff]
        %v1059 = vld [vmem:[#allocation2 + $0xa0] sm:$0xff]
        %v1060 = vld [vmem:[#allocation2 + $0xa8] sm:$0xff]
        %v1061 = vld [vmem:[#allocation2 + $0xb0] sm:$0xff]
        %v1062 = vld [vmem:[#allocation2 + $0xb8] sm:$0xff]
        %v1063 = vld [vmem:[#allocation2 + $0xc0] sm:$0xff]
        %v1064 = vld [vmem:[#allocation2 + $0xc8] sm:$0xff]
        %v1065 = vld [vmem:[#allocation2 + $0xd0] sm:$0xff]
        %v1066 = vld [vmem:[#allocation2 + $0xd8] sm:$0xff]
        %v1067 = vld [vmem:[#allocation2 + $0xe0] sm:$0xff]
        %v1068 = vld [vmem:[#allocation2 + $0xe8] sm:$0xff]
        %v1069 = vld [vmem:[#allocation2 + $0xf0] sm:$0xff]
        %v1070 = vld [vmem:[#allocation2 + $0xf8] sm:$0xff]
        %v1071 = vld [vmem:[#allocation2 + $0x100] sm:$0xff]
        %v1072 = vld [vmem:[#allocation2 + $0x108] sm:$0xff]
        %v1073 = vld [vmem:[#allocation2 + $0x110] sm:$0xff]
        %v1074 = vld [vmem:[#allocation2 + $0x118] sm:$0xff]
        %v1075 = vld [vmem:[#allocation2 + $0x120] sm:$0xff]
        %v1076 = vld [vmem:[#allocation2 + $0x128] sm:$0xff]
        %v1077 = vld [vmem:[#allocation2 + $0x130] sm:$0xff]
        %v1078 = vld [vmem:[#allocation2 + $0x138] sm:$0xff]
        %v1079 = vld [vmem:[#allocation2 + $0x140] sm:$0xff]
        %v1080 = vld [vmem:[#allocation2 + $0x148] sm:$0xff]
        %v1081 = vld [vmem:[#allocation2 + $0x150] sm:$0xff]
        %v1082 = vld [vmem:[#allocation2 + $0x158] sm:$0xff]
        %v1083 = vld [vmem:[#allocation2 + $0x160] sm:$0xff]
        %v1084 = vld [vmem:[#allocation2 + $0x168] sm:$0xff]
        %v1085 = vld [vmem:[#allocation2 + $0x170] sm:$0xff]
        %v1086 = vld [vmem:[#allocation2 + $0x178] sm:$0xff]
        %v1087 = vld [vmem:[#allocation2 + $0x180] sm:$0xff]
        %v1088 = vld [vmem:[#allocation2 + $0x188] sm:$0xff]
        %v1089 = vld [vmem:[#allocation2 + $0x190] sm:$0xff]
        %v1090 = vld [vmem:[#allocation2 + $0x198] sm:$0xff]
        %v1091 = vld [vmem:[#allocation2 + $0x1a0] sm:$0xff]
        %v1092 = vld [vmem:[#allocation2 + $0x1a8] sm:$0xff]
        %v1093 = vld [vmem:[#allocation2 + $0x1b0] sm:$0xff]
        %v1094 = vld [vmem:[#allocation2 + $0x1b8] sm:$0xff]
        %v1095 = vld [vmem:[#allocation2 + $0x1c0] sm:$0xff]
        %v1096 = vld [vmem:[#allocation2 + $0x1c8] sm:$0xff]
        %v1097 = vld [vmem:[#allocation2 + $0x1d0] sm:$0xff]
        %v1098 = vld [vmem:[#allocation2 + $0x1d8] sm:$0xff]
        %v1099 = vld [vmem:[#allocation2 + $0x1e0] sm:$0xff]
        %v1100 = vld [vmem:[#allocation2 + $0x1e8] sm:$0xff]
        %v1101 = vld [vmem:[#allocation2 + $0x1f0] sm:$0xff]
        %v1102 = vld [vmem:[#allocation2 + $0x1f8] sm:$0xff]
        %v1103 = vld [vmem:[%s249] sm:$0x1]
        %v1105 = vperm.slane %v1103, 0
        %v1107 = vadd.f32 %v1039, %v1105
        %v1108 = vadd.f32 %v1040, %v1105
        %v1109 = vadd.f32 %v1041, %v1105
        %v1110 = vadd.f32 %v1042, %v1105
        %v1111 = vadd.f32 %v1043, %v1105
        %v1112 = vadd.f32 %v1044, %v1105
        %v1113 = vadd.f32 %v1045, %v1105
        %v1114 = vadd.f32 %v1046, %v1105
        %v1115 = vadd.f32 %v1047, %v1105
        %v1116 = vadd.f32 %v1048, %v1105
        %v1117 = vadd.f32 %v1049, %v1105
        %v1118 = vadd.f32 %v1050, %v1105
        %v1119 = vadd.f32 %v1051, %v1105
        %v1120 = vadd.f32 %v1052, %v1105
        %v1121 = vadd.f32 %v1053, %v1105
        %v1122 = vadd.f32 %v1054, %v1105
        %v1123 = vadd.f32 %v1055, %v1105
        %v1124 = vadd.f32 %v1056, %v1105
        %v1125 = vadd.f32 %v1057, %v1105
        %v1126 = vadd.f32 %v1058, %v1105
        %v1127 = vadd.f32 %v1059, %v1105
        %v1128 = vadd.f32 %v1060, %v1105
        %v1129 = vadd.f32 %v1061, %v1105
        %v1130 = vadd.f32 %v1062, %v1105
        %v1131 = vadd.f32 %v1063, %v1105
        %v1132 = vadd.f32 %v1064, %v1105
        %v1133 = vadd.f32 %v1065, %v1105
        %v1134 = vadd.f32 %v1066, %v1105
        %v1135 = vadd.f32 %v1067, %v1105
        %v1136 = vadd.f32 %v1068, %v1105
        %v1137 = vadd.f32 %v1069, %v1105
        %v1138 = vadd.f32 %v1070, %v1105
        %v1139 = vadd.f32 %v1071, %v1105
        %v1140 = vadd.f32 %v1072, %v1105
        %v1141 = vadd.f32 %v1073, %v1105
        %v1142 = vadd.f32 %v1074, %v1105
        %v1143 = vadd.f32 %v1075, %v1105
        %v1144 = vadd.f32 %v1076, %v1105
        %v1145 = vadd.f32 %v1077, %v1105
        %v1146 = vadd.f32 %v1078, %v1105
        %v1147 = vadd.f32 %v1079, %v1105
        %v1148 = vadd.f32 %v1080, %v1105
        %v1149 = vadd.f32 %v1081, %v1105
        %v1150 = vadd.f32 %v1082, %v1105
        %v1151 = vadd.f32 %v1083, %v1105
        %v1152 = vadd.f32 %v1084, %v1105
        %v1153 = vadd.f32 %v1085, %v1105
        %v1154 = vadd.f32 %v1086, %v1105
        %v1155 = vadd.f32 %v1087, %v1105
        %v1156 = vadd.f32 %v1088, %v1105
        %v1157 = vadd.f32 %v1089, %v1105
        %v1158 = vadd.f32 %v1090, %v1105
        %v1159 = vadd.f32 %v1091, %v1105
        %v1160 = vadd.f32 %v1092, %v1105
        %v1161 = vadd.f32 %v1093, %v1105
        %v1162 = vadd.f32 %v1094, %v1105
        %v1163 = vadd.f32 %v1095, %v1105
        %v1164 = vadd.f32 %v1096, %v1105
        %v1165 = vadd.f32 %v1097, %v1105
        %v1166 = vadd.f32 %v1098, %v1105
        %v1167 = vadd.f32 %v1099, %v1105
        %v1168 = vadd.f32 %v1100, %v1105
        %v1169 = vadd.f32 %v1101, %v1105
        %v1170 = vadd.f32 %v1102, %v1105
        %vm1171 = vcmp.gt.f32.partialorder %v1107, 0.0
        %vm1172 = vcmp.gt.f32.partialorder %v1108, 0.0
        %vm1173 = vcmp.gt.f32.partialorder %v1109, 0.0
        %vm1174 = vcmp.gt.f32.partialorder %v1110, 0.0
        %vm1175 = vcmp.gt.f32.partialorder %v1111, 0.0
        %vm1176 = vcmp.gt.f32.partialorder %v1112, 0.0
        %vm1177 = vcmp.gt.f32.partialorder %v1113, 0.0
        %vm1178 = vcmp.gt.f32.partialorder %v1114, 0.0
        %vm1179 = vcmp.gt.f32.partialorder %v1115, 0.0
        %vm1180 = vcmp.gt.f32.partialorder %v1116, 0.0
        %vm1181 = vcmp.gt.f32.partialorder %v1117, 0.0
        %vm1182 = vcmp.gt.f32.partialorder %v1118, 0.0
        %vm1183 = vcmp.gt.f32.partialorder %v1119, 0.0
        %vm1184 = vcmp.gt.f32.partialorder %v1120, 0.0
        %vm1185 = vcmp.gt.f32.partialorder %v1121, 0.0
        %vm1186 = vcmp.gt.f32.partialorder %v1122, 0.0
        %vm1187 = vcmp.gt.f32.partialorder %v1123, 0.0
        %vm1188 = vcmp.gt.f32.partialorder %v1124, 0.0
        %vm1189 = vcmp.gt.f32.partialorder %v1125, 0.0
        %vm1190 = vcmp.gt.f32.partialorder %v1126, 0.0
        %vm1191 = vcmp.gt.f32.partialorder %v1127, 0.0
        %vm1192 = vcmp.gt.f32.partialorder %v1128, 0.0
        %vm1193 = vcmp.gt.f32.partialorder %v1129, 0.0
        %vm1194 = vcmp.gt.f32.partialorder %v1130, 0.0
        %vm1195 = vcmp.gt.f32.partialorder %v1131, 0.0
        %vm1196 = vcmp.gt.f32.partialorder %v1132, 0.0
        %vm1197 = vcmp.gt.f32.partialorder %v1133, 0.0
        %vm1198 = vcmp.gt.f32.partialorder %v1134, 0.0
        %vm1199 = vcmp.gt.f32.partialorder %v1135, 0.0
        %vm1200 = vcmp.gt.f32.partialorder %v1136, 0.0
        %vm1201 = vcmp.gt.f32.partialorder %v1137, 0.0
        %vm1202 = vcmp.gt.f32.partialorder %v1138, 0.0
        %vm1203 = vcmp.gt.f32.partialorder %v1139, 0.0
        %vm1204 = vcmp.gt.f32.partialorder %v1140, 0.0
        %vm1205 = vcmp.gt.f32.partialorder %v1141, 0.0
        %vm1206 = vcmp.gt.f32.partialorder %v1142, 0.0
        %vm1207 = vcmp.gt.f32.partialorder %v1143, 0.0
        %vm1208 = vcmp.gt.f32.partialorder %v1144, 0.0
        %vm1209 = vcmp.gt.f32.partialorder %v1145, 0.0
        %vm1210 = vcmp.gt.f32.partialorder %v1146, 0.0
        %vm1211 = vcmp.gt.f32.partialorder %v1147, 0.0
        %vm1212 = vcmp.gt.f32.partialorder %v1148, 0.0
        %vm1213 = vcmp.gt.f32.partialorder %v1149, 0.0
        %vm1214 = vcmp.gt.f32.partialorder %v1150, 0.0
        %vm1215 = vcmp.gt.f32.partialorder %v1151, 0.0
        %vm1216 = vcmp.gt.f32.partialorder %v1152, 0.0
        %vm1217 = vcmp.gt.f32.partialorder %v1153, 0.0
        %vm1218 = vcmp.gt.f32.partialorder %v1154, 0.0
        %vm1219 = vcmp.gt.f32.partialorder %v1155, 0.0
        %vm1220 = vcmp.gt.f32.partialorder %v1156, 0.0
        %vm1221 = vcmp.gt.f32.partialorder %v1157, 0.0
        %vm1222 = vcmp.gt.f32.partialorder %v1158, 0.0
        %vm1223 = vcmp.gt.f32.partialorder %v1159, 0.0
        %vm1224 = vcmp.gt.f32.partialorder %v1160, 0.0
        %vm1225 = vcmp.gt.f32.partialorder %v1161, 0.0
        %vm1226 = vcmp.gt.f32.partialorder %v1162, 0.0
        %vm1227 = vcmp.gt.f32.partialorder %v1163, 0.0
        %vm1228 = vcmp.gt.f32.partialorder %v1164, 0.0
        %vm1229 = vcmp.gt.f32.partialorder %v1165, 0.0
        %vm1230 = vcmp.gt.f32.partialorder %v1166, 0.0
        %vm1231 = vcmp.gt.f32.partialorder %v1167, 0.0
        %vm1232 = vcmp.gt.f32.partialorder %v1168, 0.0
        %vm1233 = vcmp.gt.f32.partialorder %v1169, 0.0
        %vm1234 = vcmp.gt.f32.partialorder %v1170, 0.0
        %v1235 = vmul.f32 %v1107, 0.2
        %v1236 = vmul.f32 %v1108, 0.2
        %v1237 = vmul.f32 %v1109, 0.2
        %v1238 = vmul.f32 %v1110, 0.2
        %v1239 = vmul.f32 %v1111, 0.2
        %v1240 = vmul.f32 %v1112, 0.2
        %v1241 = vmul.f32 %v1113, 0.2
        %v1242 = vmul.f32 %v1114, 0.2
        %v1243 = vmul.f32 %v1115, 0.2
        %v1244 = vmul.f32 %v1116, 0.2
        %v1245 = vmul.f32 %v1117, 0.2
        %v1246 = vmul.f32 %v1118, 0.2
        %v1247 = vmul.f32 %v1119, 0.2
        %v1248 = vmul.f32 %v1120, 0.2
        %v1249 = vmul.f32 %v1121, 0.2
        %v1250 = vmul.f32 %v1122, 0.2
        %v1251 = vmul.f32 %v1123, 0.2
        %v1252 = vmul.f32 %v1124, 0.2
        %v1253 = vmul.f32 %v1125, 0.2
        %v1254 = vmul.f32 %v1126, 0.2
        %v1255 = vmul.f32 %v1127, 0.2
        %v1256 = vmul.f32 %v1128, 0.2
        %v1257 = vmul.f32 %v1129, 0.2
        %v1258 = vmul.f32 %v1130, 0.2
        %v1259 = vmul.f32 %v1131, 0.2
        %v1260 = vmul.f32 %v1132, 0.2
        %v1261 = vmul.f32 %v1133, 0.2
        %v1262 = vmul.f32 %v1134, 0.2
        %v1263 = vmul.f32 %v1135, 0.2
        %v1264 = vmul.f32 %v1136, 0.2
        %v1265 = vmul.f32 %v1137, 0.2
        %v1266 = vmul.f32 %v1138, 0.2
        %v1267 = vmul.f32 %v1139, 0.2
        %v1268 = vmul.f32 %v1140, 0.2
        %v1269 = vmul.f32 %v1141, 0.2
        %v1270 = vmul.f32 %v1142, 0.2
        %v1271 = vmul.f32 %v1143, 0.2
        %v1272 = vmul.f32 %v1144, 0.2
        %v1273 = vmul.f32 %v1145, 0.2
        %v1274 = vmul.f32 %v1146, 0.2
        %v1275 = vmul.f32 %v1147, 0.2
        %v1276 = vmul.f32 %v1148, 0.2
        %v1277 = vmul.f32 %v1149, 0.2
        %v1278 = vmul.f32 %v1150, 0.2
        %v1279 = vmul.f32 %v1151, 0.2
        %v1280 = vmul.f32 %v1152, 0.2
        %v1281 = vmul.f32 %v1153, 0.2
        %v1282 = vmul.f32 %v1154, 0.2
        %v1283 = vmul.f32 %v1155, 0.2
        %v1284 = vmul.f32 %v1156, 0.2
        %v1285 = vmul.f32 %v1157, 0.2
        %v1286 = vmul.f32 %v1158, 0.2
        %v1287 = vmul.f32 %v1159, 0.2
        %v1288 = vmul.f32 %v1160, 0.2
        %v1289 = vmul.f32 %v1161, 0.2
        %v1290 = vmul.f32 %v1162, 0.2
        %v1291 = vmul.f32 %v1163, 0.2
        %v1292 = vmul.f32 %v1164, 0.2
        %v1293 = vmul.f32 %v1165, 0.2
        %v1294 = vmul.f32 %v1166, 0.2
        %v1295 = vmul.f32 %v1167, 0.2
        %v1296 = vmul.f32 %v1168, 0.2
        %v1297 = vmul.f32 %v1169, 0.2
        %v1298 = vmul.f32 %v1170, 0.2
        %v1299 = vsel %vm1171, %v1107, %v1235
        %v1300 = vsel %vm1172, %v1108, %v1236
        %v1301 = vsel %vm1173, %v1109, %v1237
        %v1302 = vsel %vm1174, %v1110, %v1238
        %v1303 = vsel %vm1175, %v1111, %v1239
        %v1304 = vsel %vm1176, %v1112, %v1240
        %v1305 = vsel %vm1177, %v1113, %v1241
        %v1306 = vsel %vm1178, %v1114, %v1242
        %v1307 = vsel %vm1179, %v1115, %v1243
        %v1308 = vsel %vm1180, %v1116, %v1244
        %v1309 = vsel %vm1181, %v1117, %v1245
        %v1310 = vsel %vm1182, %v1118, %v1246
        %v1311 = vsel %vm1183, %v1119, %v1247
        %v1312 = vsel %vm1184, %v1120, %v1248
        %v1313 = vsel %vm1185, %v1121, %v1249
        %v1314 = vsel %vm1186, %v1122, %v1250
        %v1315 = vsel %vm1187, %v1123, %v1251
        %v1316 = vsel %vm1188, %v1124, %v1252
        %v1317 = vsel %vm1189, %v1125, %v1253
        %v1318 = vsel %vm1190, %v1126, %v1254
        %v1319 = vsel %vm1191, %v1127, %v1255
        %v1320 = vsel %vm1192, %v1128, %v1256
        %v1321 = vsel %vm1193, %v1129, %v1257
        %v1322 = vsel %vm1194, %v1130, %v1258
        %v1323 = vsel %vm1195, %v1131, %v1259
        %v1324 = vsel %vm1196, %v1132, %v1260
        %v1325 = vsel %vm1197, %v1133, %v1261
        %v1326 = vsel %vm1198, %v1134, %v1262
        %v1327 = vsel %vm1199, %v1135, %v1263
        %v1328 = vsel %vm1200, %v1136, %v1264
        %v1329 = vsel %vm1201, %v1137, %v1265
        %v1330 = vsel %vm1202, %v1138, %v1266
        %v1331 = vsel %vm1203, %v1139, %v1267
        %v1332 = vsel %vm1204, %v1140, %v1268
        %v1333 = vsel %vm1205, %v1141, %v1269
        %v1334 = vsel %vm1206, %v1142, %v1270
        %v1335 = vsel %vm1207, %v1143, %v1271
        %v1336 = vsel %vm1208, %v1144, %v1272
        %v1337 = vsel %vm1209, %v1145, %v1273
        %v1338 = vsel %vm1210, %v1146, %v1274
        %v1339 = vsel %vm1211, %v1147, %v1275
        %v1340 = vsel %vm1212, %v1148, %v1276
        %v1341 = vsel %vm1213, %v1149, %v1277
        %v1342 = vsel %vm1214, %v1150, %v1278
        %v1343 = vsel %vm1215, %v1151, %v1279
        %v1344 = vsel %vm1216, %v1152, %v1280
        %v1345 = vsel %vm1217, %v1153, %v1281
        %v1346 = vsel %vm1218, %v1154, %v1282
        %v1347 = vsel %vm1219, %v1155, %v1283
        %v1348 = vsel %vm1220, %v1156, %v1284
        %v1349 = vsel %vm1221, %v1157, %v1285
        %v1350 = vsel %vm1222, %v1158, %v1286
        %v1351 = vsel %vm1223, %v1159, %v1287
        %v1352 = vsel %vm1224, %v1160, %v1288
        %v1353 = vsel %vm1225, %v1161, %v1289
        %v1354 = vsel %vm1226, %v1162, %v1290
        %v1355 = vsel %vm1227, %v1163, %v1291
        %v1356 = vsel %vm1228, %v1164, %v1292
        %v1357 = vsel %vm1229, %v1165, %v1293
        %v1358 = vsel %vm1230, %v1166, %v1294
        %v1359 = vsel %vm1231, %v1167, %v1295
        %v1360 = vsel %vm1232, %v1168, %v1296
        %v1361 = vsel %vm1233, %v1169, %v1297
        %v1362 = vsel %vm1234, %v1170, %v1298
        %v1363 = vpack.c.bf16 %v1299, %v1299
        %v1364 = vpack.c.bf16 %v1300, %v1300
        %v1365 = vpack.c.bf16 %v1301, %v1301
        %v1366 = vpack.c.bf16 %v1302, %v1302
        %v1367 = vpack.c.bf16 %v1303, %v1303
        %v1368 = vpack.c.bf16 %v1304, %v1304
        %v1369 = vpack.c.bf16 %v1305, %v1305
        %v1370 = vpack.c.bf16 %v1306, %v1306
        %v1371 = vpack.c.bf16 %v1307, %v1307
        %v1372 = vpack.c.bf16 %v1308, %v1308
        %v1373 = vpack.c.bf16 %v1309, %v1309
        %v1374 = vpack.c.bf16 %v1310, %v1310
        %v1375 = vpack.c.bf16 %v1311, %v1311
        %v1376 = vpack.c.bf16 %v1312, %v1312
        %v1377 = vpack.c.bf16 %v1313, %v1313
        %v1378 = vpack.c.bf16 %v1314, %v1314
        %v1379 = vpack.c.bf16 %v1315, %v1315
        %v1380 = vpack.c.bf16 %v1316, %v1316
        %v1381 = vpack.c.bf16 %v1317, %v1317
        %v1382 = vpack.c.bf16 %v1318, %v1318
        %v1383 = vpack.c.bf16 %v1319, %v1319
        %v1384 = vpack.c.bf16 %v1320, %v1320
        %v1385 = vpack.c.bf16 %v1321, %v1321
        %v1386 = vpack.c.bf16 %v1322, %v1322
        %v1387 = vpack.c.bf16 %v1323, %v1323
        %v1388 = vpack.c.bf16 %v1324, %v1324
        %v1389 = vpack.c.bf16 %v1325, %v1325
        %v1390 = vpack.c.bf16 %v1326, %v1326
        %v1391 = vpack.c.bf16 %v1327, %v1327
        %v1392 = vpack.c.bf16 %v1328, %v1328
        %v1393 = vpack.c.bf16 %v1329, %v1329
        %v1394 = vpack.c.bf16 %v1330, %v1330
        %v1395 = vpack.c.bf16 %v1331, %v1331
        %v1396 = vpack.c.bf16 %v1332, %v1332
        %v1397 = vpack.c.bf16 %v1333, %v1333
        %v1398 = vpack.c.bf16 %v1334, %v1334
        %v1399 = vpack.c.bf16 %v1335, %v1335
        %v1400 = vpack.c.bf16 %v1336, %v1336
        %v1401 = vpack.c.bf16 %v1337, %v1337
        %v1402 = vpack.c.bf16 %v1338, %v1338
        %v1403 = vpack.c.bf16 %v1339, %v1339
        %v1404 = vpack.c.bf16 %v1340, %v1340
        %v1405 = vpack.c.bf16 %v1341, %v1341
        %v1406 = vpack.c.bf16 %v1342, %v1342
        %v1407 = vpack.c.bf16 %v1343, %v1343
        %v1408 = vpack.c.bf16 %v1344, %v1344
        %v1409 = vpack.c.bf16 %v1345, %v1345
        %v1410 = vpack.c.bf16 %v1346, %v1346
        %v1411 = vpack.c.bf16 %v1347, %v1347
        %v1412 = vpack.c.bf16 %v1348, %v1348
        %v1413 = vpack.c.bf16 %v1349, %v1349
        %v1414 = vpack.c.bf16 %v1350, %v1350
        %v1415 = vpack.c.bf16 %v1351, %v1351
        %v1416 = vpack.c.bf16 %v1352, %v1352
        %v1417 = vpack.c.bf16 %v1353, %v1353
        %v1418 = vpack.c.bf16 %v1354, %v1354
        %v1419 = vpack.c.bf16 %v1355, %v1355
        %v1420 = vpack.c.bf16 %v1356, %v1356
        %v1421 = vpack.c.bf16 %v1357, %v1357
        %v1422 = vpack.c.bf16 %v1358, %v1358
        %v1423 = vpack.c.bf16 %v1359, %v1359
        %v1424 = vpack.c.bf16 %v1360, %v1360
        %v1425 = vpack.c.bf16 %v1361, %v1361
        %v1426 = vpack.c.bf16 %v1362, %v1362
        %vm1427 = vcmask 125952
        %1428 = vst.msk [vmem:[%s257] sm:$0xf] %vm1427, %v1363
        %1429 = vst.msk [vmem:[%s257 + $0x4] sm:$0xf] %vm1427, %v1364
        %1430 = vst.msk [vmem:[%s257 + $0x8] sm:$0xf] %vm1427, %v1365
        %1431 = vst.msk [vmem:[%s257 + $0xc] sm:$0xf] %vm1427, %v1366
        %1432 = vst.msk [vmem:[%s257 + $0x10] sm:$0xf] %vm1427, %v1367
        %1433 = vst.msk [vmem:[%s257 + $0x14] sm:$0xf] %vm1427, %v1368
        %1434 = vst.msk [vmem:[%s257 + $0x18] sm:$0xf] %vm1427, %v1369
        %1435 = vst.msk [vmem:[%s257 + $0x1c] sm:$0xf] %vm1427, %v1370
        %1436 = vst.msk [vmem:[%s257 + $0x20] sm:$0xf] %vm1427, %v1371
        %1437 = vst.msk [vmem:[%s257 + $0x24] sm:$0xf] %vm1427, %v1372
        %1438 = vst.msk [vmem:[%s257 + $0x28] sm:$0xf] %vm1427, %v1373
        %1439 = vst.msk [vmem:[%s257 + $0x2c] sm:$0xf] %vm1427, %v1374
        %1440 = vst.msk [vmem:[%s257 + $0x30] sm:$0xf] %vm1427, %v1375
        %1441 = vst.msk [vmem:[%s257 + $0x34] sm:$0xf] %vm1427, %v1376
        %1442 = vst.msk [vmem:[%s257 + $0x38] sm:$0xf] %vm1427, %v1377
        %1443 = vst.msk [vmem:[%s257 + $0x3c] sm:$0xf] %vm1427, %v1378
        %1444 = vst.msk [vmem:[%s257 + $0x40] sm:$0xf] %vm1427, %v1379
        %1445 = vst.msk [vmem:[%s257 + $0x44] sm:$0xf] %vm1427, %v1380
        %1446 = vst.msk [vmem:[%s257 + $0x48] sm:$0xf] %vm1427, %v1381
        %1447 = vst.msk [vmem:[%s257 + $0x4c] sm:$0xf] %vm1427, %v1382
        %1448 = vst.msk [vmem:[%s257 + $0x50] sm:$0xf] %vm1427, %v1383
        %1449 = vst.msk [vmem:[%s257 + $0x54] sm:$0xf] %vm1427, %v1384
        %1450 = vst.msk [vmem:[%s257 + $0x58] sm:$0xf] %vm1427, %v1385
        %1451 = vst.msk [vmem:[%s257 + $0x5c] sm:$0xf] %vm1427, %v1386
        %1452 = vst.msk [vmem:[%s257 + $0x60] sm:$0xf] %vm1427, %v1387
        %1453 = vst.msk [vmem:[%s257 + $0x64] sm:$0xf] %vm1427, %v1388
        %1454 = vst.msk [vmem:[%s257 + $0x68] sm:$0xf] %vm1427, %v1389
        %1455 = vst.msk [vmem:[%s257 + $0x6c] sm:$0xf] %vm1427, %v1390
        %1456 = vst.msk [vmem:[%s257 + $0x70] sm:$0xf] %vm1427, %v1391
        %1457 = vst.msk [vmem:[%s257 + $0x74] sm:$0xf] %vm1427, %v1392
        %1458 = vst.msk [vmem:[%s257 + $0x78] sm:$0xf] %vm1427, %v1393
        %1459 = vst.msk [vmem:[%s257 + $0x7c] sm:$0xf] %vm1427, %v1394
        %1460 = vst.msk [vmem:[%s257 + $0x80] sm:$0xf] %vm1427, %v1395
        %1461 = vst.msk [vmem:[%s257 + $0x84] sm:$0xf] %vm1427, %v1396
        %1462 = vst.msk [vmem:[%s257 + $0x88] sm:$0xf] %vm1427, %v1397
        %1463 = vst.msk [vmem:[%s257 + $0x8c] sm:$0xf] %vm1427, %v1398
        %1464 = vst.msk [vmem:[%s257 + $0x90] sm:$0xf] %vm1427, %v1399
        %1465 = vst.msk [vmem:[%s257 + $0x94] sm:$0xf] %vm1427, %v1400
        %1466 = vst.msk [vmem:[%s257 + $0x98] sm:$0xf] %vm1427, %v1401
        %1467 = vst.msk [vmem:[%s257 + $0x9c] sm:$0xf] %vm1427, %v1402
        %1468 = vst.msk [vmem:[%s257 + $0xa0] sm:$0xf] %vm1427, %v1403
        %1469 = vst.msk [vmem:[%s257 + $0xa4] sm:$0xf] %vm1427, %v1404
        %1470 = vst.msk [vmem:[%s257 + $0xa8] sm:$0xf] %vm1427, %v1405
        %1471 = vst.msk [vmem:[%s257 + $0xac] sm:$0xf] %vm1427, %v1406
        %1472 = vst.msk [vmem:[%s257 + $0xb0] sm:$0xf] %vm1427, %v1407
        %1473 = vst.msk [vmem:[%s257 + $0xb4] sm:$0xf] %vm1427, %v1408
        %1474 = vst.msk [vmem:[%s257 + $0xb8] sm:$0xf] %vm1427, %v1409
        %1475 = vst.msk [vmem:[%s257 + $0xbc] sm:$0xf] %vm1427, %v1410
        %1476 = vst.msk [vmem:[%s257 + $0xc0] sm:$0xf] %vm1427, %v1411
        %1477 = vst.msk [vmem:[%s257 + $0xc4] sm:$0xf] %vm1427, %v1412
        %1478 = vst.msk [vmem:[%s257 + $0xc8] sm:$0xf] %vm1427, %v1413
        %1479 = vst.msk [vmem:[%s257 + $0xcc] sm:$0xf] %vm1427, %v1414
        %1480 = vst.msk [vmem:[%s257 + $0xd0] sm:$0xf] %vm1427, %v1415
        %1481 = vst.msk [vmem:[%s257 + $0xd4] sm:$0xf] %vm1427, %v1416
        %1482 = vst.msk [vmem:[%s257 + $0xd8] sm:$0xf] %vm1427, %v1417
        %1483 = vst.msk [vmem:[%s257 + $0xdc] sm:$0xf] %vm1427, %v1418
        %1484 = vst.msk [vmem:[%s257 + $0xe0] sm:$0xf] %vm1427, %v1419
        %1485 = vst.msk [vmem:[%s257 + $0xe4] sm:$0xf] %vm1427, %v1420
        %1486 = vst.msk [vmem:[%s257 + $0xe8] sm:$0xf] %vm1427, %v1421
        %1487 = vst.msk [vmem:[%s257 + $0xec] sm:$0xf] %vm1427, %v1422
        %1488 = vst.msk [vmem:[%s257 + $0xf0] sm:$0xf] %vm1427, %v1423
        %1489 = vst.msk [vmem:[%s257 + $0xf4] sm:$0xf] %vm1427, %v1424
        %1490 = vst.msk [vmem:[%s257 + $0xf8] sm:$0xf] %vm1427, %v1425
        %1491 = vst.msk [vmem:[%s257 + $0xfc] sm:$0xf] %vm1427, %v1426
      $region40: #{discriminator_forward.8} parent=31 // pred_fallthru
        _
      %s1492 = smul.u32 64, %s19
      %p1493 = scmp.lt.s32.totalorder %s1492, 255
      %s1494 = scalar_select %p1493, %s1492, 255
      %p1495 = scmp.lt.s32.totalorder %s20, 0
      %s1496 = scalar_select %p1495, %s20, 0
      %s1497 = sadd.s32 %s1496, %s1494
      %s1498 = smul.addr %s1497, 4
      %s1499 = scalar_lea.vmem %s3, %s1498
      // Predicated region
      $region41: #{discriminator_forward.8} parent=31 // pred_check
        %p1500 = pneg %p135
      $region42: #{discriminator_forward.8} parent=31 // pred_check_branch
        %1502 = sbr.rel (%p1500) target = $region44
      $region43: #{discriminator_forward.8} parent=31 // pred_region
        %s1503 = smul.u32 64, %s19
      $region44: #{discriminator_forward.8} parent=31 // pred_fallthru
        _
    $region32: #{discriminator_forward.8} parent=5 // pred_fallthru
      _
    %p1504 = scmp.le.s32.totalorder 2, %s9
    // Predicated region
    $region45: #{discriminator_forward.8} parent=5 // pred_check
      %p1505 = pneg %p1504
    $region46: #{discriminator_forward.8} parent=5 // pred_check_branch
      %1507 = sbr.rel (%p1505) target = $region48
    $region47: #{discriminator_forward.8} parent=5 // pred_region
      %s1508 = ssub.s32 %s9, 2
      // Predicated region
      $region49: #{discriminator_forward.8} parent=47 // pred_check
        %p1509 = pneg %p141
      $region50: #{discriminator_forward.8} parent=47 // pred_check_branch
        %1511 = sbr.rel (%p1509) target = $region52
      $region51: #{discriminator_forward.8} parent=47 // pred_region
        %s1512 = smul.u32 64, %s22
        %p1513 = scmp.lt.s32.totalorder %s1512, 255
        %s1514 = scalar_select %p1513, %s1512, 255
        %p1515 = scmp.lt.s32.totalorder %s23, 0
        %s1516 = scalar_select %p1515, %s23, 0
        %s1517 = sadd.s32 %s1516, %s1514
        %s1518 = smul.addr %s1517, 4
        %s1519 = scalar_lea.vmem %s3, %s1518
      $region52: #{discriminator_forward.8} parent=47 // pred_fallthru
        _
    $region48: #{discriminator_forward.8} parent=5 // pred_fallthru
      _
  $region6: #{discriminator_forward.8} parent=0 // loop_footer
    %s13 = sadd.s32 1, %s9
  $region7: #{discriminator_forward.8} parent=0 // loop_footer_branch
    %8 = sbr.rel target = $region3
  $region8: #{discriminator_forward.8} parent=0 // loop_exit
    _

// kernel: discriminator_forward.9
$region0: #{discriminator_forward.9}
  #allocation0 [shape = 'u32[]', space=smem, size = 0x4, offset = 0x4, fixed_abs, tag = 'smem constant byte address 0x4 - core index']
  #allocation1 [shape = 'u32[72,128]{1,0:T(1,128)}', space=vmem, size = 0x9000, scoped, tag = 'internal scratch']
  #allocation2 [shape = 'f32[512,32]{1,0:T(8,128)}', space=vmem, size = 0x40000, scoped, tag = 'scratch operand']
  %s0 = inlined_call_operand.vmem [shape: bf16[512,256], index: 0, kind: input, shape index: {}]
  %s1 = inlined_call_operand.vmem [shape: bf16[256,32], index: 1, kind: input, shape index: {}]
  %s2 = inlined_call_operand.vmem [shape: bf16[512,32], index: 2, kind: output, shape index: {0}]
  %s3 = inlined_call_operand.vmem [shape: f32[1,2,32], index: 3, kind: output, shape index: {1}]
  %4 = xla_tuple %s2, %s3
  %s5 = sld [smem:[#allocation0]]
  $region34: #{discriminator_forward.9} parent=0
    _
  %s7 = ssub.s32 1, %s5
  %s8 = scalar_select 0, %s7, %s5
  // Predicated region
  $region2: #{discriminator_forward.9} parent=0 // pred_check
    _
  $region3: #{discriminator_forward.9} parent=0 // pred_check_branch
    %10 = sbr.rel (0) target = $region5
  $region4: #{discriminator_forward.9} parent=0 // pred_region
    _
  $region5: #{discriminator_forward.9} parent=0 // pred_fallthru
    _
  // Predicated region
  $region6: #{discriminator_forward.9} parent=0 // pred_check
    _
  $region7: #{discriminator_forward.9} parent=0 // pred_check_branch
    %12 = sbr.rel (0) target = $region9
  $region8: #{discriminator_forward.9} parent=0 // pred_region
    _
  $region9: #{discriminator_forward.9} parent=0 // pred_fallthru
    _
  %p13 = scmp.eq.s32.totalorder 0, 0
  // Predicated region
  $region10: #{discriminator_forward.9} parent=0 // pred_check
    %p14 = pneg %p13
  $region11: #{discriminator_forward.9} parent=0 // pred_check_branch
    %16 = sbr.rel (%p14) target = $region13
  $region12: #{discriminator_forward.9} parent=0 // pred_region
    %vm17 = vcmask 261120
    %18 = vst.msk [vmem:[#allocation2] sm:$0xff] %vm17, 0.0
    %19 = vst.msk [vmem:[#allocation2 + $0x8] sm:$0xff] %vm17, 0.0
    %20 = vst.msk [vmem:[#allocation2 + $0x10] sm:$0xff] %vm17, 0.0
    %21 = vst.msk [vmem:[#allocation2 + $0x18] sm:$0xff] %vm17, 0.0
    %22 = vst.msk [vmem:[#allocation2 + $0x20] sm:$0xff] %vm17, 0.0
    %23 = vst.msk [vmem:[#allocation2 + $0x28] sm:$0xff] %vm17, 0.0
    %24 = vst.msk [vmem:[#allocation2 + $0x30] sm:$0xff] %vm17, 0.0
    %25 = vst.msk [vmem:[#allocation2 + $0x38] sm:$0xff] %vm17, 0.0
    %26 = vst.msk [vmem:[#allocation2 + $0x40] sm:$0xff] %vm17, 0.0
    %27 = vst.msk [vmem:[#allocation2 + $0x48] sm:$0xff] %vm17, 0.0
    %28 = vst.msk [vmem:[#allocation2 + $0x50] sm:$0xff] %vm17, 0.0
    %29 = vst.msk [vmem:[#allocation2 + $0x58] sm:$0xff] %vm17, 0.0
    %30 = vst.msk [vmem:[#allocation2 + $0x60] sm:$0xff] %vm17, 0.0
    %31 = vst.msk [vmem:[#allocation2 + $0x68] sm:$0xff] %vm17, 0.0
    %32 = vst.msk [vmem:[#allocation2 + $0x70] sm:$0xff] %vm17, 0.0
    %33 = vst.msk [vmem:[#allocation2 + $0x78] sm:$0xff] %vm17, 0.0
    %34 = vst.msk [vmem:[#allocation2 + $0x80] sm:$0xff] %vm17, 0.0
    %35 = vst.msk [vmem:[#allocation2 + $0x88] sm:$0xff] %vm17, 0.0
    %36 = vst.msk [vmem:[#allocation2 + $0x90] sm:$0xff] %vm17, 0.0
    %37 = vst.msk [vmem:[#allocation2 + $0x98] sm:$0xff] %vm17, 0.0
    %38 = vst.msk [vmem:[#allocation2 + $0xa0] sm:$0xff] %vm17, 0.0
    %39 = vst.msk [vmem:[#allocation2 + $0xa8] sm:$0xff] %vm17, 0.0
    %40 = vst.msk [vmem:[#allocation2 + $0xb0] sm:$0xff] %vm17, 0.0
    %41 = vst.msk [vmem:[#allocation2 + $0xb8] sm:$0xff] %vm17, 0.0
    %42 = vst.msk [vmem:[#allocation2 + $0xc0] sm:$0xff] %vm17, 0.0
    %43 = vst.msk [vmem:[#allocation2 + $0xc8] sm:$0xff] %vm17, 0.0
    %44 = vst.msk [vmem:[#allocation2 + $0xd0] sm:$0xff] %vm17, 0.0
    %45 = vst.msk [vmem:[#allocation2 + $0xd8] sm:$0xff] %vm17, 0.0
    %46 = vst.msk [vmem:[#allocation2 + $0xe0] sm:$0xff] %vm17, 0.0
    %47 = vst.msk [vmem:[#allocation2 + $0xe8] sm:$0xff] %vm17, 0.0
    %48 = vst.msk [vmem:[#allocation2 + $0xf0] sm:$0xff] %vm17, 0.0
    %49 = vst.msk [vmem:[#allocation2 + $0xf8] sm:$0xff] %vm17, 0.0
    %50 = vst.msk [vmem:[#allocation2 + $0x100] sm:$0xff] %vm17, 0.0
    %51 = vst.msk [vmem:[#allocation2 + $0x108] sm:$0xff] %vm17, 0.0
    %52 = vst.msk [vmem:[#allocation2 + $0x110] sm:$0xff] %vm17, 0.0
    %53 = vst.msk [vmem:[#allocation2 + $0x118] sm:$0xff] %vm17, 0.0
    %54 = vst.msk [vmem:[#allocation2 + $0x120] sm:$0xff] %vm17, 0.0
    %55 = vst.msk [vmem:[#allocation2 + $0x128] sm:$0xff] %vm17, 0.0
    %56 = vst.msk [vmem:[#allocation2 + $0x130] sm:$0xff] %vm17, 0.0
    %57 = vst.msk [vmem:[#allocation2 + $0x138] sm:$0xff] %vm17, 0.0
    %58 = vst.msk [vmem:[#allocation2 + $0x140] sm:$0xff] %vm17, 0.0
    %59 = vst.msk [vmem:[#allocation2 + $0x148] sm:$0xff] %vm17, 0.0
    %60 = vst.msk [vmem:[#allocation2 + $0x150] sm:$0xff] %vm17, 0.0
    %61 = vst.msk [vmem:[#allocation2 + $0x158] sm:$0xff] %vm17, 0.0
    %62 = vst.msk [vmem:[#allocation2 + $0x160] sm:$0xff] %vm17, 0.0
    %63 = vst.msk [vmem:[#allocation2 + $0x168] sm:$0xff] %vm17, 0.0
    %64 = vst.msk [vmem:[#allocation2 + $0x170] sm:$0xff] %vm17, 0.0
    %65 = vst.msk [vmem:[#allocation2 + $0x178] sm:$0xff] %vm17, 0.0
    %66 = vst.msk [vmem:[#allocation2 + $0x180] sm:$0xff] %vm17, 0.0
    %67 = vst.msk [vmem:[#allocation2 + $0x188] sm:$0xff] %vm17, 0.0
    %68 = vst.msk [vmem:[#allocation2 + $0x190] sm:$0xff] %vm17, 0.0
    %69 = vst.msk [vmem:[#allocation2 + $0x198] sm:$0xff] %vm17, 0.0
    %70 = vst.msk [vmem:[#allocation2 + $0x1a0] sm:$0xff] %vm17, 0.0
    %71 = vst.msk [vmem:[#allocation2 + $0x1a8] sm:$0xff] %vm17, 0.0
    %72 = vst.msk [vmem:[#allocation2 + $0x1b0] sm:$0xff] %vm17, 0.0
    %73 = vst.msk [vmem:[#allocation2 + $0x1b8] sm:$0xff] %vm17, 0.0
    %74 = vst.msk [vmem:[#allocation2 + $0x1c0] sm:$0xff] %vm17, 0.0
    %75 = vst.msk [vmem:[#allocation2 + $0x1c8] sm:$0xff] %vm17, 0.0
    %76 = vst.msk [vmem:[#allocation2 + $0x1d0] sm:$0xff] %vm17, 0.0
    %77 = vst.msk [vmem:[#allocation2 + $0x1d8] sm:$0xff] %vm17, 0.0
    %78 = vst.msk [vmem:[#allocation2 + $0x1e0] sm:$0xff] %vm17, 0.0
    %79 = vst.msk [vmem:[#allocation2 + $0x1e8] sm:$0xff] %vm17, 0.0
    %80 = vst.msk [vmem:[#allocation2 + $0x1f0] sm:$0xff] %vm17, 0.0
    %81 = vst.msk [vmem:[#allocation2 + $0x1f8] sm:$0xff] %vm17, 0.0
  $region13: #{discriminator_forward.9} parent=0 // pred_fallthru
    _
  %v82 = vld [vmem:[#allocation2] sm:$0xff]
  %v83 = vld [vmem:[#allocation2 + $0x8] sm:$0xff]
  %v84 = vld [vmem:[#allocation2 + $0x10] sm:$0xff]
  %v85 = vld [vmem:[#allocation2 + $0x18] sm:$0xff]
  %v86 = vld [vmem:[#allocation2 + $0x20] sm:$0xff]
  %v87 = vld [vmem:[#allocation2 + $0x28] sm:$0xff]
  %v88 = vld [vmem:[#allocation2 + $0x30] sm:$0xff]
  %v89 = vld [vmem:[#allocation2 + $0x38] sm:$0xff]
  %v90 = vld [vmem:[#allocation2 + $0x40] sm:$0xff]
  %v91 = vld [vmem:[#allocation2 + $0x48] sm:$0xff]
  %v92 = vld [vmem:[#allocation2 + $0x50] sm:$0xff]
  %v93 = vld [vmem:[#allocation2 + $0x58] sm:$0xff]
  %v94 = vld [vmem:[#allocation2 + $0x60] sm:$0xff]
  %v95 = vld [vmem:[#allocation2 + $0x68] sm:$0xff]
  %v96 = vld [vmem:[#allocation2 + $0x70] sm:$0xff]
  %v97 = vld [vmem:[#allocation2 + $0x78] sm:$0xff]
  %v98 = vld [vmem:[#allocation2 + $0x80] sm:$0xff]
  %v99 = vld [vmem:[#allocation2 + $0x88] sm:$0xff]
  %v100 = vld [vmem:[#allocation2 + $0x90] sm:$0xff]
  %v101 = vld [vmem:[#allocation2 + $0x98] sm:$0xff]
  %v102 = vld [vmem:[#allocation2 + $0xa0] sm:$0xff]
  %v103 = vld [vmem:[#allocation2 + $0xa8] sm:$0xff]
  %v104 = vld [vmem:[#allocation2 + $0xb0] sm:$0xff]
  %v105 = vld [vmem:[#allocation2 + $0xb8] sm:$0xff]
  %v106 = vld [vmem:[#allocation2 + $0xc0] sm:$0xff]
  %v107 = vld [vmem:[#allocation2 + $0xc8] sm:$0xff]
  %v108 = vld [vmem:[#allocation2 + $0xd0] sm:$0xff]
  %v109 = vld [vmem:[#allocation2 + $0xd8] sm:$0xff]
  %v110 = vld [vmem:[#allocation2 + $0xe0] sm:$0xff]
  %v111 = vld [vmem:[#allocation2 + $0xe8] sm:$0xff]
  %v112 = vld [vmem:[#allocation2 + $0xf0] sm:$0xff]
  %v113 = vld [vmem:[#allocation2 + $0xf8] sm:$0xff]
  %v114 = vld [vmem:[#allocation2 + $0x100] sm:$0xff]
  %v115 = vld [vmem:[#allocation2 + $0x108] sm:$0xff]
  %v116 = vld [vmem:[#allocation2 + $0x110] sm:$0xff]
  %v117 = vld [vmem:[#allocation2 + $0x118] sm:$0xff]
  %v118 = vld [vmem:[#allocation2 + $0x120] sm:$0xff]
  %v119 = vld [vmem:[#allocation2 + $0x128] sm:$0xff]
  %v120 = vld [vmem:[#allocation2 + $0x130] sm:$0xff]
  %v121 = vld [vmem:[#allocation2 + $0x138] sm:$0xff]
  %v122 = vld [vmem:[#allocation2 + $0x140] sm:$0xff]
  %v123 = vld [vmem:[#allocation2 + $0x148] sm:$0xff]
  %v124 = vld [vmem:[#allocation2 + $0x150] sm:$0xff]
  %v125 = vld [vmem:[#allocation2 + $0x158] sm:$0xff]
  %v126 = vld [vmem:[#allocation2 + $0x160] sm:$0xff]
  %v127 = vld [vmem:[#allocation2 + $0x168] sm:$0xff]
  %v128 = vld [vmem:[#allocation2 + $0x170] sm:$0xff]
  %v129 = vld [vmem:[#allocation2 + $0x178] sm:$0xff]
  %v130 = vld [vmem:[#allocation2 + $0x180] sm:$0xff]
  %v131 = vld [vmem:[#allocation2 + $0x188] sm:$0xff]
  %v132 = vld [vmem:[#allocation2 + $0x190] sm:$0xff]
  %v133 = vld [vmem:[#allocation2 + $0x198] sm:$0xff]
  %v134 = vld [vmem:[#allocation2 + $0x1a0] sm:$0xff]
  %v135 = vld [vmem:[#allocation2 + $0x1a8] sm:$0xff]
  %v136 = vld [vmem:[#allocation2 + $0x1b0] sm:$0xff]
  %v137 = vld [vmem:[#allocation2 + $0x1b8] sm:$0xff]
  %v138 = vld [vmem:[#allocation2 + $0x1c0] sm:$0xff]
  %v139 = vld [vmem:[#allocation2 + $0x1c8] sm:$0xff]
  %v140 = vld [vmem:[#allocation2 + $0x1d0] sm:$0xff]
  %v141 = vld [vmem:[#allocation2 + $0x1d8] sm:$0xff]
  %v142 = vld [vmem:[#allocation2 + $0x1e0] sm:$0xff]
  %v143 = vld [vmem:[#allocation2 + $0x1e8] sm:$0xff]
  %v144 = vld [vmem:[#allocation2 + $0x1f0] sm:$0xff]
  %v145 = vld [vmem:[#allocation2 + $0x1f8] sm:$0xff]
  %v146 = vld [vmem:[%s0] sm:$0xff]
  %v147 = vld [vmem:[%s0 + $0x8] sm:$0xff]
  %v148 = vld [vmem:[%s0 + $0x10] sm:$0xff]
  %v149 = vld [vmem:[%s0 + $0x18] sm:$0xff]
  %v150 = vld [vmem:[%s0 + $0x20] sm:$0xff]
  %v151 = vld [vmem:[%s0 + $0x28] sm:$0xff]
  %v152 = vld [vmem:[%s0 + $0x30] sm:$0xff]
  %v153 = vld [vmem:[%s0 + $0x38] sm:$0xff]
  %v154 = vld [vmem:[%s0 + $0x40] sm:$0xff]
  %v155 = vld [vmem:[%s0 + $0x48] sm:$0xff]
  %v156 = vld [vmem:[%s0 + $0x50] sm:$0xff]
  %v157 = vld [vmem:[%s0 + $0x58] sm:$0xff]
  %v158 = vld [vmem:[%s0 + $0x60] sm:$0xff]
  %v159 = vld [vmem:[%s0 + $0x68] sm:$0xff]
  %v160 = vld [vmem:[%s0 + $0x70] sm:$0xff]
  %v161 = vld [vmem:[%s0 + $0x78] sm:$0xff]
  %v162 = vld [vmem:[%s0 + $0x80] sm:$0xff]
  %v163 = vld [vmem:[%s0 + $0x88] sm:$0xff]
  %v164 = vld [vmem:[%s0 + $0x90] sm:$0xff]
  %v165 = vld [vmem:[%s0 + $0x98] sm:$0xff]
  %v166 = vld [vmem:[%s0 + $0xa0] sm:$0xff]
  %v167 = vld [vmem:[%s0 + $0xa8] sm:$0xff]
  %v168 = vld [vmem:[%s0 + $0xb0] sm:$0xff]
  %v169 = vld [vmem:[%s0 + $0xb8] sm:$0xff]
  %v170 = vld [vmem:[%s0 + $0xc0] sm:$0xff]
  %v171 = vld [vmem:[%s0 + $0xc8] sm:$0xff]
  %v172 = vld [vmem:[%s0 + $0xd0] sm:$0xff]
  %v173 = vld [vmem:[%s0 + $0xd8] sm:$0xff]
  %v174 = vld [vmem:[%s0 + $0xe0] sm:$0xff]
  %v175 = vld [vmem:[%s0 + $0xe8] sm:$0xff]
  %v176 = vld [vmem:[%s0 + $0xf0] sm:$0xff]
  %v177 = vld [vmem:[%s0 + $0xf8] sm:$0xff]
  %v178 = vld [vmem:[%s0 + $0x100] sm:$0xff]
  %v179 = vld [vmem:[%s0 + $0x108] sm:$0xff]
  %v180 = vld [vmem:[%s0 + $0x110] sm:$0xff]
  %v181 = vld [vmem:[%s0 + $0x118] sm:$0xff]
  %v182 = vld [vmem:[%s0 + $0x120] sm:$0xff]
  %v183 = vld [vmem:[%s0 + $0x128] sm:$0xff]
  %v184 = vld [vmem:[%s0 + $0x130] sm:$0xff]
  %v185 = vld [vmem:[%s0 + $0x138] sm:$0xff]
  %v186 = vld [vmem:[%s0 + $0x140] sm:$0xff]
  %v187 = vld [vmem:[%s0 + $0x148] sm:$0xff]
  %v188 = vld [vmem:[%s0 + $0x150] sm:$0xff]
  %v189 = vld [vmem:[%s0 + $0x158] sm:$0xff]
  %v190 = vld [vmem:[%s0 + $0x160] sm:$0xff]
  %v191 = vld [vmem:[%s0 + $0x168] sm:$0xff]
  %v192 = vld [vmem:[%s0 + $0x170] sm:$0xff]
  %v193 = vld [vmem:[%s0 + $0x178] sm:$0xff]
  %v194 = vld [vmem:[%s0 + $0x180] sm:$0xff]
  %v195 = vld [vmem:[%s0 + $0x188] sm:$0xff]
  %v196 = vld [vmem:[%s0 + $0x190] sm:$0xff]
  %v197 = vld [vmem:[%s0 + $0x198] sm:$0xff]
  %v198 = vld [vmem:[%s0 + $0x1a0] sm:$0xff]
  %v199 = vld [vmem:[%s0 + $0x1a8] sm:$0xff]
  %v200 = vld [vmem:[%s0 + $0x1b0] sm:$0xff]
  %v201 = vld [vmem:[%s0 + $0x1b8] sm:$0xff]
  %v202 = vld [vmem:[%s0 + $0x1c0] sm:$0xff]
  %v203 = vld [vmem:[%s0 + $0x1c8] sm:$0xff]
  %v204 = vld [vmem:[%s0 + $0x1d0] sm:$0xff]
  %v205 = vld [vmem:[%s0 + $0x1d8] sm:$0xff]
  %v206 = vld [vmem:[%s0 + $0x1e0] sm:$0xff]
  %v207 = vld [vmem:[%s0 + $0x1e8] sm:$0xff]
  %v208 = vld [vmem:[%s0 + $0x1f0] sm:$0xff]
  %v209 = vld [vmem:[%s0 + $0x1f8] sm:$0xff]
  %v210 = vld [vmem:[%s1] sm:$0xf]
  %v211 = vld [vmem:[%s1 + $0x4] sm:$0xf]
  %v212 = vld [vmem:[%s1 + $0x8] sm:$0xf]
  %v213 = vld [vmem:[%s1 + $0xc] sm:$0xf]
  %v214 = vld [vmem:[%s1 + $0x10] sm:$0xf]
  %v215 = vld [vmem:[%s1 + $0x14] sm:$0xf]
  %v216 = vld [vmem:[%s1 + $0x18] sm:$0xf]
  %v217 = vld [vmem:[%s1 + $0x1c] sm:$0xf]
  %v218 = vld [vmem:[%s1 + $0x20] sm:$0xf]
  %v219 = vld [vmem:[%s1 + $0x24] sm:$0xf]
  %v220 = vld [vmem:[%s1 + $0x28] sm:$0xf]
  %v221 = vld [vmem:[%s1 + $0x2c] sm:$0xf]
  %v222 = vld [vmem:[%s1 + $0x30] sm:$0xf]
  %v223 = vld [vmem:[%s1 + $0x34] sm:$0xf]
  %v224 = vld [vmem:[%s1 + $0x38] sm:$0xf]
  %v225 = vld [vmem:[%s1 + $0x3c] sm:$0xf]
  %v226 = vld [vmem:[%s1 + $0x40] sm:$0xf]
  %v227 = vld [vmem:[%s1 + $0x44] sm:$0xf]
  %v228 = vld [vmem:[%s1 + $0x48] sm:$0xf]
  %v229 = vld [vmem:[%s1 + $0x4c] sm:$0xf]
  %v230 = vld [vmem:[%s1 + $0x50] sm:$0xf]
  %v231 = vld [vmem:[%s1 + $0x54] sm:$0xf]
  %v232 = vld [vmem:[%s1 + $0x58] sm:$0xf]
  %v233 = vld [vmem:[%s1 + $0x5c] sm:$0xf]
  %v234 = vld [vmem:[%s1 + $0x60] sm:$0xf]
  %v235 = vld [vmem:[%s1 + $0x64] sm:$0xf]
  %v236 = vld [vmem:[%s1 + $0x68] sm:$0xf]
  %v237 = vld [vmem:[%s1 + $0x6c] sm:$0xf]
  %v238 = vld [vmem:[%s1 + $0x70] sm:$0xf]
  %v239 = vld [vmem:[%s1 + $0x74] sm:$0xf]
  %v240 = vld [vmem:[%s1 + $0x78] sm:$0xf]
  %v241 = vld [vmem:[%s1 + $0x7c] sm:$0xf]
  %v306 = vunpack.c.l.b16 %v146
  %v307 = vunpack.c.h.b16 %v146
  %v308 = vunpack.c.l.b16 %v147
  %v309 = vunpack.c.h.b16 %v147
  %v310 = vunpack.c.l.b16 %v148
  %v311 = vunpack.c.h.b16 %v148
  %v312 = vunpack.c.l.b16 %v149
  %v313 = vunpack.c.h.b16 %v149
  %v314 = vunpack.c.l.b16 %v150
  %v315 = vunpack.c.h.b16 %v150
  %v316 = vunpack.c.l.b16 %v151
  %v317 = vunpack.c.h.b16 %v151
  %v318 = vunpack.c.l.b16 %v152
  %v319 = vunpack.c.h.b16 %v152
  %v320 = vunpack.c.l.b16 %v153
  %v321 = vunpack.c.h.b16 %v153
  %v322 = vunpack.c.l.b16 %v154
  %v323 = vunpack.c.h.b16 %v154
  %v324 = vunpack.c.l.b16 %v155
  %v325 = vunpack.c.h.b16 %v155
  %v326 = vunpack.c.l.b16 %v156
  %v327 = vunpack.c.h.b16 %v156
  %v328 = vunpack.c.l.b16 %v157
  %v329 = vunpack.c.h.b16 %v157
  %v330 = vunpack.c.l.b16 %v158
  %v331 = vunpack.c.h.b16 %v158
  %v332 = vunpack.c.l.b16 %v159
  %v333 = vunpack.c.h.b16 %v159
  %v334 = vunpack.c.l.b16 %v160
  %v335 = vunpack.c.h.b16 %v160
  %v336 = vunpack.c.l.b16 %v161
  %v337 = vunpack.c.h.b16 %v161
  %v338 = vunpack.c.l.b16 %v162
  %v339 = vunpack.c.h.b16 %v162
  %v340 = vunpack.c.l.b16 %v163
  %v341 = vunpack.c.h.b16 %v163
  %v342 = vunpack.c.l.b16 %v164
  %v343 = vunpack.c.h.b16 %v164
  %v344 = vunpack.c.l.b16 %v165
  %v345 = vunpack.c.h.b16 %v165
  %v346 = vunpack.c.l.b16 %v166
  %v347 = vunpack.c.h.b16 %v166
  %v348 = vunpack.c.l.b16 %v167
  %v349 = vunpack.c.h.b16 %v167
  %v350 = vunpack.c.l.b16 %v168
  %v351 = vunpack.c.h.b16 %v168
  %v352 = vunpack.c.l.b16 %v169
  %v353 = vunpack.c.h.b16 %v169
  %v354 = vunpack.c.l.b16 %v170
  %v355 = vunpack.c.h.b16 %v170
  %v356 = vunpack.c.l.b16 %v171
  %v357 = vunpack.c.h.b16 %v171
  %v358 = vunpack.c.l.b16 %v172
  %v359 = vunpack.c.h.b16 %v172
  %v360 = vunpack.c.l.b16 %v173
  %v361 = vunpack.c.h.b16 %v173
  %v362 = vunpack.c.l.b16 %v174
  %v363 = vunpack.c.h.b16 %v174
  %v364 = vunpack.c.l.b16 %v175
  %v365 = vunpack.c.h.b16 %v175
  %v366 = vunpack.c.l.b16 %v176
  %v367 = vunpack.c.h.b16 %v176
  %v368 = vunpack.c.l.b16 %v177
  %v369 = vunpack.c.h.b16 %v177
  %v370 = vunpack.c.l.b16 %v178
  %v371 = vunpack.c.h.b16 %v178
  %v372 = vunpack.c.l.b16 %v179
  %v373 = vunpack.c.h.b16 %v179
  %v374 = vunpack.c.l.b16 %v180
  %v375 = vunpack.c.h.b16 %v180
  %v376 = vunpack.c.l.b16 %v181
  %v377 = vunpack.c.h.b16 %v181
  %v378 = vunpack.c.l.b16 %v182
  %v379 = vunpack.c.h.b16 %v182
  %v380 = vunpack.c.l.b16 %v183
  %v381 = vunpack.c.h.b16 %v183
  %v382 = vunpack.c.l.b16 %v184
  %v383 = vunpack.c.h.b16 %v184
  %v384 = vunpack.c.l.b16 %v185
  %v385 = vunpack.c.h.b16 %v185
  %v386 = vunpack.c.l.b16 %v186
  %v387 = vunpack.c.h.b16 %v186
  %v388 = vunpack.c.l.b16 %v187
  %v389 = vunpack.c.h.b16 %v187
  %v390 = vunpack.c.l.b16 %v188
  %v391 = vunpack.c.h.b16 %v188
  %v392 = vunpack.c.l.b16 %v189
  %v393 = vunpack.c.h.b16 %v189
  %v394 = vunpack.c.l.b16 %v190
  %v395 = vunpack.c.h.b16 %v190
  %v396 = vunpack.c.l.b16 %v191
  %v397 = vunpack.c.h.b16 %v191
  %v398 = vunpack.c.l.b16 %v192
  %v399 = vunpack.c.h.b16 %v192
  %v400 = vunpack.c.l.b16 %v193
  %v401 = vunpack.c.h.b16 %v193
  %v402 = vunpack.c.l.b16 %v194
  %v403 = vunpack.c.h.b16 %v194
  %v404 = vunpack.c.l.b16 %v195
  %v405 = vunpack.c.h.b16 %v195
  %v406 = vunpack.c.l.b16 %v196
  %v407 = vunpack.c.h.b16 %v196
  %v408 = vunpack.c.l.b16 %v197
  %v409 = vunpack.c.h.b16 %v197
  %v410 = vunpack.c.l.b16 %v198
  %v411 = vunpack.c.h.b16 %v198
  %v412 = vunpack.c.l.b16 %v199
  %v413 = vunpack.c.h.b16 %v199
  %v414 = vunpack.c.l.b16 %v200
  %v415 = vunpack.c.h.b16 %v200
  %v416 = vunpack.c.l.b16 %v201
  %v417 = vunpack.c.h.b16 %v201
  %v418 = vunpack.c.l.b16 %v202
  %v419 = vunpack.c.h.b16 %v202
  %v420 = vunpack.c.l.b16 %v203
  %v421 = vunpack.c.h.b16 %v203
  %v422 = vunpack.c.l.b16 %v204
  %v423 = vunpack.c.h.b16 %v204
  %v424 = vunpack.c.l.b16 %v205
  %v425 = vunpack.c.h.b16 %v205
  %v426 = vunpack.c.l.b16 %v206
  %v427 = vunpack.c.h.b16 %v206
  %v428 = vunpack.c.l.b16 %v207
  %v429 = vunpack.c.h.b16 %v207
  %v430 = vunpack.c.l.b16 %v208
  %v431 = vunpack.c.h.b16 %v208
  %v432 = vunpack.c.l.b16 %v209
  %v433 = vunpack.c.h.b16 %v209
  %v434 = vpack.c.b16 %v308, %v306
  %v435 = vpack.c.b16 %v309, %v307
  %v436 = vpack.c.b16 %v312, %v310
  %v437 = vpack.c.b16 %v313, %v311
  %v438 = vpack.c.b16 %v316, %v314
  %v439 = vpack.c.b16 %v317, %v315
  %v440 = vpack.c.b16 %v320, %v318
  %v441 = vpack.c.b16 %v321, %v319
  %v442 = vpack.c.b16 %v324, %v322
  %v443 = vpack.c.b16 %v325, %v323
  %v444 = vpack.c.b16 %v328, %v326
  %v445 = vpack.c.b16 %v329, %v327
  %v446 = vpack.c.b16 %v332, %v330
  %v447 = vpack.c.b16 %v333, %v331
  %v448 = vpack.c.b16 %v336, %v334
  %v449 = vpack.c.b16 %v337, %v335
  %v450 = vpack.c.b16 %v340, %v338
  %v451 = vpack.c.b16 %v341, %v339
  %v452 = vpack.c.b16 %v344, %v342
  %v453 = vpack.c.b16 %v345, %v343
  %v454 = vpack.c.b16 %v348, %v346
  %v455 = vpack.c.b16 %v349, %v347
  %v456 = vpack.c.b16 %v352, %v350
  %v457 = vpack.c.b16 %v353, %v351
  %v458 = vpack.c.b16 %v356, %v354
  %v459 = vpack.c.b16 %v357, %v355
  %v460 = vpack.c.b16 %v360, %v358
  %v461 = vpack.c.b16 %v361, %v359
  %v462 = vpack.c.b16 %v364, %v362
  %v463 = vpack.c.b16 %v365, %v363
  %v464 = vpack.c.b16 %v368, %v366
  %v465 = vpack.c.b16 %v369, %v367
  %v466 = vpack.c.b16 %v372, %v370
  %v467 = vpack.c.b16 %v373, %v371
  %v468 = vpack.c.b16 %v376, %v374
  %v469 = vpack.c.b16 %v377, %v375
  %v470 = vpack.c.b16 %v380, %v378
  %v471 = vpack.c.b16 %v381, %v379
  %v472 = vpack.c.b16 %v384, %v382
  %v473 = vpack.c.b16 %v385, %v383
  %v474 = vpack.c.b16 %v388, %v386
  %v475 = vpack.c.b16 %v389, %v387
  %v476 = vpack.c.b16 %v392, %v390
  %v477 = vpack.c.b16 %v393, %v391
  %v478 = vpack.c.b16 %v396, %v394
  %v479 = vpack.c.b16 %v397, %v395
  %v480 = vpack.c.b16 %v400, %v398
  %v481 = vpack.c.b16 %v401, %v399
  %v482 = vpack.c.b16 %v404, %v402
  %v483 = vpack.c.b16 %v405, %v403
  %v484 = vpack.c.b16 %v408, %v406
  %v485 = vpack.c.b16 %v409, %v407
  %v486 = vpack.c.b16 %v412, %v410
  %v487 = vpack.c.b16 %v413, %v411
  %v488 = vpack.c.b16 %v416, %v414
  %v489 = vpack.c.b16 %v417, %v415
  %v490 = vpack.c.b16 %v420, %v418
  %v491 = vpack.c.b16 %v421, %v419
  %v492 = vpack.c.b16 %v424, %v422
  %v493 = vpack.c.b16 %v425, %v423
  %v494 = vpack.c.b16 %v428, %v426
  %v495 = vpack.c.b16 %v429, %v427
  %v496 = vpack.c.b16 %v432, %v430
  %v497 = vpack.c.b16 %v433, %v431
  %v594 = vunpack.c.l.b16 %v210
  %v595 = vunpack.c.l.b16 %v211
  %v596 = vunpack.c.l.b16 %v212
  %v597 = vunpack.c.l.b16 %v213
  %v598 = vunpack.c.l.b16 %v214
  %v599 = vunpack.c.l.b16 %v215
  %v600 = vunpack.c.l.b16 %v216
  %v601 = vunpack.c.l.b16 %v217
  %v602 = vunpack.c.l.b16 %v218
  %v603 = vunpack.c.l.b16 %v219
  %v604 = vunpack.c.l.b16 %v220
  %v605 = vunpack.c.l.b16 %v221
  %v606 = vunpack.c.l.b16 %v222
  %v607 = vunpack.c.l.b16 %v223
  %v608 = vunpack.c.l.b16 %v224
  %v609 = vunpack.c.l.b16 %v225
  %v610 = vunpack.c.l.b16 %v226
  %v611 = vunpack.c.l.b16 %v227
  %v612 = vunpack.c.l.b16 %v228
  %v613 = vunpack.c.l.b16 %v229
  %v614 = vunpack.c.l.b16 %v230
  %v615 = vunpack.c.l.b16 %v231
  %v616 = vunpack.c.l.b16 %v232
  %v617 = vunpack.c.l.b16 %v233
  %v618 = vunpack.c.l.b16 %v234
  %v619 = vunpack.c.l.b16 %v235
  %v620 = vunpack.c.l.b16 %v236
  %v621 = vunpack.c.l.b16 %v237
  %v622 = vunpack.c.l.b16 %v238
  %v623 = vunpack.c.l.b16 %v239
  %v624 = vunpack.c.l.b16 %v240
  %v625 = vunpack.c.l.b16 %v241
  %v626 = vpack.c.b16 %v595, %v594
  %v627 = vpack.c.b16 %v597, %v596
  %v628 = vpack.c.b16 %v599, %v598
  %v629 = vpack.c.b16 %v601, %v600
  %v630 = vpack.c.b16 %v603, %v602
  %v631 = vpack.c.b16 %v605, %v604
  %v632 = vpack.c.b16 %v607, %v606
  %v633 = vpack.c.b16 %v609, %v608
  %v634 = vpack.c.b16 %v611, %v610
  %v635 = vpack.c.b16 %v613, %v612
  %v636 = vpack.c.b16 %v615, %v614
  %v637 = vpack.c.b16 %v617, %v616
  %v638 = vpack.c.b16 %v619, %v618
  %v639 = vpack.c.b16 %v621, %v620
  %v640 = vpack.c.b16 %v623, %v622
  %v641 = vpack.c.b16 %v625, %v624
  %658 = vmatpush.bf16.msra.mxu0 %v633
  %659 = vmatpush.bf16.msra.mxu0 %v632
  %660 = vmatpush.bf16.msra.mxu0 %v631
  %661 = vmatpush.bf16.msra.mxu0 %v630
  %662 = vmatpush.bf16.msra.mxu0 %v629
  %663 = vmatpush.bf16.msra.mxu0 %v628
  %664 = vmatpush.bf16.msra.mxu0 %v627
  %665 = vmatpush.bf16.msra.mxu0 %v626
  %666 = vmatmul.bf16.gmra.mxu0 %v434
  %v667 = vpop.f32.mrf.mxu0
  %v668 = vadd.f32 0.0, %v667
  %v669 = vpop.f32.mrf.mxu0
  %v670 = vadd.f32 0.0, %v669
  %671 = vmatmul.bf16.gmra.mxu0 %v436
  %v672 = vpop.f32.mrf.mxu0
  %v673 = vadd.f32 0.0, %v672
  %v674 = vpop.f32.mrf.mxu0
  %v675 = vadd.f32 0.0, %v674
  %676 = vmatmul.bf16.gmra.mxu0 %v438
  %v677 = vpop.f32.mrf.mxu0
  %v678 = vadd.f32 0.0, %v677
  %v679 = vpop.f32.mrf.mxu0
  %v680 = vadd.f32 0.0, %v679
  %681 = vmatmul.bf16.gmra.mxu0 %v440
  %v682 = vpop.f32.mrf.mxu0
  %v683 = vadd.f32 0.0, %v682
  %v684 = vpop.f32.mrf.mxu0
  %v685 = vadd.f32 0.0, %v684
  %686 = vmatmul.bf16.gmra.mxu0 %v442
  %v687 = vpop.f32.mrf.mxu0
  %v688 = vadd.f32 0.0, %v687
  %v689 = vpop.f32.mrf.mxu0
  %v690 = vadd.f32 0.0, %v689
  %691 = vmatmul.bf16.gmra.mxu0 %v444
  %v692 = vpop.f32.mrf.mxu0
  %v693 = vadd.f32 0.0, %v692
  %v694 = vpop.f32.mrf.mxu0
  %v695 = vadd.f32 0.0, %v694
  %696 = vmatmul.bf16.gmra.mxu0 %v446
  %v697 = vpop.f32.mrf.mxu0
  %v698 = vadd.f32 0.0, %v697
  %v699 = vpop.f32.mrf.mxu0
  %v700 = vadd.f32 0.0, %v699
  %701 = vmatmul.bf16.gmra.mxu0 %v448
  %v702 = vpop.f32.mrf.mxu0
  %v703 = vadd.f32 0.0, %v702
  %v704 = vpop.f32.mrf.mxu0
  %v705 = vadd.f32 0.0, %v704
  %706 = vmatmul.bf16.gmra.mxu0 %v450
  %v707 = vpop.f32.mrf.mxu0
  %v708 = vadd.f32 0.0, %v707
  %v709 = vpop.f32.mrf.mxu0
  %v710 = vadd.f32 0.0, %v709
  %711 = vmatmul.bf16.gmra.mxu0 %v452
  %v712 = vpop.f32.mrf.mxu0
  %v713 = vadd.f32 0.0, %v712
  %v714 = vpop.f32.mrf.mxu0
  %v715 = vadd.f32 0.0, %v714
  %716 = vmatmul.bf16.gmra.mxu0 %v454
  %v717 = vpop.f32.mrf.mxu0
  %v718 = vadd.f32 0.0, %v717
  %v719 = vpop.f32.mrf.mxu0
  %v720 = vadd.f32 0.0, %v719
  %721 = vmatmul.bf16.gmra.mxu0 %v456
  %v722 = vpop.f32.mrf.mxu0
  %v723 = vadd.f32 0.0, %v722
  %v724 = vpop.f32.mrf.mxu0
  %v725 = vadd.f32 0.0, %v724
  %726 = vmatmul.bf16.gmra.mxu0 %v458
  %v727 = vpop.f32.mrf.mxu0
  %v728 = vadd.f32 0.0, %v727
  %v729 = vpop.f32.mrf.mxu0
  %v730 = vadd.f32 0.0, %v729
  %731 = vmatmul.bf16.gmra.mxu0 %v460
  %v732 = vpop.f32.mrf.mxu0
  %v733 = vadd.f32 0.0, %v732
  %v734 = vpop.f32.mrf.mxu0
  %v735 = vadd.f32 0.0, %v734
  %736 = vmatmul.bf16.gmra.mxu0 %v462
  %v737 = vpop.f32.mrf.mxu0
  %v738 = vadd.f32 0.0, %v737
  %v739 = vpop.f32.mrf.mxu0
  %v740 = vadd.f32 0.0, %v739
  %741 = vmatmul.bf16.gmra.mxu0 %v464
  %v742 = vpop.f32.mrf.mxu0
  %v743 = vadd.f32 0.0, %v742
  %v744 = vpop.f32.mrf.mxu0
  %v745 = vadd.f32 0.0, %v744
  %746 = vmatmul.bf16.gmra.mxu0 %v466
  %v747 = vpop.f32.mrf.mxu0
  %v748 = vadd.f32 0.0, %v747
  %v749 = vpop.f32.mrf.mxu0
  %v750 = vadd.f32 0.0, %v749
  %751 = vmatmul.bf16.gmra.mxu0 %v468
  %v752 = vpop.f32.mrf.mxu0
  %v753 = vadd.f32 0.0, %v752
  %v754 = vpop.f32.mrf.mxu0
  %v755 = vadd.f32 0.0, %v754
  %756 = vmatmul.bf16.gmra.mxu0 %v470
  %v757 = vpop.f32.mrf.mxu0
  %v758 = vadd.f32 0.0, %v757
  %v759 = vpop.f32.mrf.mxu0
  %v760 = vadd.f32 0.0, %v759
  %761 = vmatmul.bf16.gmra.mxu0 %v472
  %v762 = vpop.f32.mrf.mxu0
  %v763 = vadd.f32 0.0, %v762
  %v764 = vpop.f32.mrf.mxu0
  %v765 = vadd.f32 0.0, %v764
  %766 = vmatmul.bf16.gmra.mxu0 %v474
  %v767 = vpop.f32.mrf.mxu0
  %v768 = vadd.f32 0.0, %v767
  %v769 = vpop.f32.mrf.mxu0
  %v770 = vadd.f32 0.0, %v769
  %771 = vmatmul.bf16.gmra.mxu0 %v476
  %v772 = vpop.f32.mrf.mxu0
  %v773 = vadd.f32 0.0, %v772
  %v774 = vpop.f32.mrf.mxu0
  %v775 = vadd.f32 0.0, %v774
  %776 = vmatmul.bf16.gmra.mxu0 %v478
  %v777 = vpop.f32.mrf.mxu0
  %v778 = vadd.f32 0.0, %v777
  %v779 = vpop.f32.mrf.mxu0
  %v780 = vadd.f32 0.0, %v779
  %781 = vmatmul.bf16.gmra.mxu0 %v480
  %v782 = vpop.f32.mrf.mxu0
  %v783 = vadd.f32 0.0, %v782
  %v784 = vpop.f32.mrf.mxu0
  %v785 = vadd.f32 0.0, %v784
  %786 = vmatmul.bf16.gmra.mxu0 %v482
  %v787 = vpop.f32.mrf.mxu0
  %v788 = vadd.f32 0.0, %v787
  %v789 = vpop.f32.mrf.mxu0
  %v790 = vadd.f32 0.0, %v789
  %791 = vmatmul.bf16.gmra.mxu0 %v484
  %v792 = vpop.f32.mrf.mxu0
  %v793 = vadd.f32 0.0, %v792
  %v794 = vpop.f32.mrf.mxu0
  %v795 = vadd.f32 0.0, %v794
  %796 = vmatmul.bf16.gmra.mxu0 %v486
  %v797 = vpop.f32.mrf.mxu0
  %v798 = vadd.f32 0.0, %v797
  %v799 = vpop.f32.mrf.mxu0
  %v800 = vadd.f32 0.0, %v799
  %801 = vmatmul.bf16.gmra.mxu0 %v488
  %v802 = vpop.f32.mrf.mxu0
  %v803 = vadd.f32 0.0, %v802
  %v804 = vpop.f32.mrf.mxu0
  %v805 = vadd.f32 0.0, %v804
  %806 = vmatmul.bf16.gmra.mxu0 %v490
  %v807 = vpop.f32.mrf.mxu0
  %v808 = vadd.f32 0.0, %v807
  %v809 = vpop.f32.mrf.mxu0
  %v810 = vadd.f32 0.0, %v809
  %811 = vmatmul.bf16.gmra.mxu0 %v492
  %v812 = vpop.f32.mrf.mxu0
  %v813 = vadd.f32 0.0, %v812
  %v814 = vpop.f32.mrf.mxu0
  %v815 = vadd.f32 0.0, %v814
  %816 = vmatmul.bf16.gmra.mxu0 %v494
  %v817 = vpop.f32.mrf.mxu0
  %v818 = vadd.f32 0.0, %v817
  %v819 = vpop.f32.mrf.mxu0
  %v820 = vadd.f32 0.0, %v819
  %821 = vmatmul.bf16.gmra.mxu0 %v496
  %v822 = vpop.f32.mrf.mxu0
  %v823 = vadd.f32 0.0, %v822
  %v824 = vpop.f32.mrf.mxu0
  %v825 = vadd.f32 0.0, %v824
  %826 = vdwg.mxu0
  %827 = vmatpush.bf16.msra.mxu0 %v641
  %828 = vmatpush.bf16.msra.mxu0 %v640
  %829 = vmatpush.bf16.msra.mxu0 %v639
  %830 = vmatpush.bf16.msra.mxu0 %v638
  %831 = vmatpush.bf16.msra.mxu0 %v637
  %832 = vmatpush.bf16.msra.mxu0 %v636
  %833 = vmatpush.bf16.msra.mxu0 %v635
  %834 = vmatpush.bf16.msra.mxu0 %v634
  %835 = vmatmul.bf16.gmra.mxu0 %v435
  %v836 = vpop.f32.mrf.mxu0
  %v837 = vadd.f32 %v668, %v836
  %v838 = vpop.f32.mrf.mxu0
  %v839 = vadd.f32 %v670, %v838
  %840 = vmatmul.bf16.gmra.mxu0 %v437
  %v841 = vpop.f32.mrf.mxu0
  %v842 = vadd.f32 %v673, %v841
  %v843 = vpop.f32.mrf.mxu0
  %v844 = vadd.f32 %v675, %v843
  %845 = vmatmul.bf16.gmra.mxu0 %v439
  %v846 = vpop.f32.mrf.mxu0
  %v847 = vadd.f32 %v678, %v846
  %v848 = vpop.f32.mrf.mxu0
  %v849 = vadd.f32 %v680, %v848
  %850 = vmatmul.bf16.gmra.mxu0 %v441
  %v851 = vpop.f32.mrf.mxu0
  %v852 = vadd.f32 %v683, %v851
  %v853 = vpop.f32.mrf.mxu0
  %v854 = vadd.f32 %v685, %v853
  %855 = vmatmul.bf16.gmra.mxu0 %v443
  %v856 = vpop.f32.mrf.mxu0
  %v857 = vadd.f32 %v688, %v856
  %v858 = vpop.f32.mrf.mxu0
  %v859 = vadd.f32 %v690, %v858
  %860 = vmatmul.bf16.gmra.mxu0 %v445
  %v861 = vpop.f32.mrf.mxu0
  %v862 = vadd.f32 %v693, %v861
  %v863 = vpop.f32.mrf.mxu0
  %v864 = vadd.f32 %v695, %v863
  %865 = vmatmul.bf16.gmra.mxu0 %v447
  %v866 = vpop.f32.mrf.mxu0
  %v867 = vadd.f32 %v698, %v866
  %v868 = vpop.f32.mrf.mxu0
  %v869 = vadd.f32 %v700, %v868
  %870 = vmatmul.bf16.gmra.mxu0 %v449
  %v871 = vpop.f32.mrf.mxu0
  %v872 = vadd.f32 %v703, %v871
  %v873 = vpop.f32.mrf.mxu0
  %v874 = vadd.f32 %v705, %v873
  %875 = vmatmul.bf16.gmra.mxu0 %v451
  %v876 = vpop.f32.mrf.mxu0
  %v877 = vadd.f32 %v708, %v876
  %v878 = vpop.f32.mrf.mxu0
  %v879 = vadd.f32 %v710, %v878
  %880 = vmatmul.bf16.gmra.mxu0 %v453
  %v881 = vpop.f32.mrf.mxu0
  %v882 = vadd.f32 %v713, %v881
  %v883 = vpop.f32.mrf.mxu0
  %v884 = vadd.f32 %v715, %v883
  %885 = vmatmul.bf16.gmra.mxu0 %v455
  %v886 = vpop.f32.mrf.mxu0
  %v887 = vadd.f32 %v718, %v886
  %v888 = vpop.f32.mrf.mxu0
  %v889 = vadd.f32 %v720, %v888
  %890 = vmatmul.bf16.gmra.mxu0 %v457
  %v891 = vpop.f32.mrf.mxu0
  %v892 = vadd.f32 %v723, %v891
  %v893 = vpop.f32.mrf.mxu0
  %v894 = vadd.f32 %v725, %v893
  %895 = vmatmul.bf16.gmra.mxu0 %v459
  %v896 = vpop.f32.mrf.mxu0
  %v897 = vadd.f32 %v728, %v896
  %v898 = vpop.f32.mrf.mxu0
  %v899 = vadd.f32 %v730, %v898
  %900 = vmatmul.bf16.gmra.mxu0 %v461
  %v901 = vpop.f32.mrf.mxu0
  %v902 = vadd.f32 %v733, %v901
  %v903 = vpop.f32.mrf.mxu0
  %v904 = vadd.f32 %v735, %v903
  %905 = vmatmul.bf16.gmra.mxu0 %v463
  %v906 = vpop.f32.mrf.mxu0
  %v907 = vadd.f32 %v738, %v906
  %v908 = vpop.f32.mrf.mxu0
  %v909 = vadd.f32 %v740, %v908
  %910 = vmatmul.bf16.gmra.mxu0 %v465
  %v911 = vpop.f32.mrf.mxu0
  %v912 = vadd.f32 %v743, %v911
  %v913 = vpop.f32.mrf.mxu0
  %v914 = vadd.f32 %v745, %v913
  %915 = vmatmul.bf16.gmra.mxu0 %v467
  %v916 = vpop.f32.mrf.mxu0
  %v917 = vadd.f32 %v748, %v916
  %v918 = vpop.f32.mrf.mxu0
  %v919 = vadd.f32 %v750, %v918
  %920 = vmatmul.bf16.gmra.mxu0 %v469
  %v921 = vpop.f32.mrf.mxu0
  %v922 = vadd.f32 %v753, %v921
  %v923 = vpop.f32.mrf.mxu0
  %v924 = vadd.f32 %v755, %v923
  %925 = vmatmul.bf16.gmra.mxu0 %v471
  %v926 = vpop.f32.mrf.mxu0
  %v927 = vadd.f32 %v758, %v926
  %v928 = vpop.f32.mrf.mxu0
  %v929 = vadd.f32 %v760, %v928
  %930 = vmatmul.bf16.gmra.mxu0 %v473
  %v931 = vpop.f32.mrf.mxu0
  %v932 = vadd.f32 %v763, %v931
  %v933 = vpop.f32.mrf.mxu0
  %v934 = vadd.f32 %v765, %v933
  %935 = vmatmul.bf16.gmra.mxu0 %v475
  %v936 = vpop.f32.mrf.mxu0
  %v937 = vadd.f32 %v768, %v936
  %v938 = vpop.f32.mrf.mxu0
  %v939 = vadd.f32 %v770, %v938
  %940 = vmatmul.bf16.gmra.mxu0 %v477
  %v941 = vpop.f32.mrf.mxu0
  %v942 = vadd.f32 %v773, %v941
  %v943 = vpop.f32.mrf.mxu0
  %v944 = vadd.f32 %v775, %v943
  %945 = vmatmul.bf16.gmra.mxu0 %v479
  %v946 = vpop.f32.mrf.mxu0
  %v947 = vadd.f32 %v778, %v946
  %v948 = vpop.f32.mrf.mxu0
  %v949 = vadd.f32 %v780, %v948
  %950 = vmatmul.bf16.gmra.mxu0 %v481
  %v951 = vpop.f32.mrf.mxu0
  %v952 = vadd.f32 %v783, %v951
  %v953 = vpop.f32.mrf.mxu0
  %v954 = vadd.f32 %v785, %v953
  %955 = vmatmul.bf16.gmra.mxu0 %v483
  %v956 = vpop.f32.mrf.mxu0
  %v957 = vadd.f32 %v788, %v956
  %v958 = vpop.f32.mrf.mxu0
  %v959 = vadd.f32 %v790, %v958
  %960 = vmatmul.bf16.gmra.mxu0 %v485
  %v961 = vpop.f32.mrf.mxu0
  %v962 = vadd.f32 %v793, %v961
  %v963 = vpop.f32.mrf.mxu0
  %v964 = vadd.f32 %v795, %v963
  %965 = vmatmul.bf16.gmra.mxu0 %v487
  %v966 = vpop.f32.mrf.mxu0
  %v967 = vadd.f32 %v798, %v966
  %v968 = vpop.f32.mrf.mxu0
  %v969 = vadd.f32 %v800, %v968
  %970 = vmatmul.bf16.gmra.mxu0 %v489
  %v971 = vpop.f32.mrf.mxu0
  %v972 = vadd.f32 %v803, %v971
  %v973 = vpop.f32.mrf.mxu0
  %v974 = vadd.f32 %v805, %v973
  %975 = vmatmul.bf16.gmra.mxu0 %v491
  %v976 = vpop.f32.mrf.mxu0
  %v977 = vadd.f32 %v808, %v976
  %v978 = vpop.f32.mrf.mxu0
  %v979 = vadd.f32 %v810, %v978
  %980 = vmatmul.bf16.gmra.mxu0 %v493
  %v981 = vpop.f32.mrf.mxu0
  %v982 = vadd.f32 %v813, %v981
  %v983 = vpop.f32.mrf.mxu0
  %v984 = vadd.f32 %v815, %v983
  %985 = vmatmul.bf16.gmra.mxu0 %v495
  %v986 = vpop.f32.mrf.mxu0
  %v987 = vadd.f32 %v818, %v986
  %v988 = vpop.f32.mrf.mxu0
  %v989 = vadd.f32 %v820, %v988
  %990 = vmatmul.bf16.gmra.mxu0 %v497
  %v991 = vpop.f32.mrf.mxu0
  %v992 = vadd.f32 %v823, %v991
  %v993 = vpop.f32.mrf.mxu0
  %v994 = vadd.f32 %v825, %v993
  %995 = vdwg.mxu0
  %v996 = vadd.f32 %v82, %v837
  %v997 = vadd.f32 %v83, %v839
  %v998 = vadd.f32 %v84, %v842
  %v999 = vadd.f32 %v85, %v844
  %v1000 = vadd.f32 %v86, %v847
  %v1001 = vadd.f32 %v87, %v849
  %v1002 = vadd.f32 %v88, %v852
  %v1003 = vadd.f32 %v89, %v854
  %v1004 = vadd.f32 %v90, %v857
  %v1005 = vadd.f32 %v91, %v859
  %v1006 = vadd.f32 %v92, %v862
  %v1007 = vadd.f32 %v93, %v864
  %v1008 = vadd.f32 %v94, %v867
  %v1009 = vadd.f32 %v95, %v869
  %v1010 = vadd.f32 %v96, %v872
  %v1011 = vadd.f32 %v97, %v874
  %v1012 = vadd.f32 %v98, %v877
  %v1013 = vadd.f32 %v99, %v879
  %v1014 = vadd.f32 %v100, %v882
  %v1015 = vadd.f32 %v101, %v884
  %v1016 = vadd.f32 %v102, %v887
  %v1017 = vadd.f32 %v103, %v889
  %v1018 = vadd.f32 %v104, %v892
  %v1019 = vadd.f32 %v105, %v894
  %v1020 = vadd.f32 %v106, %v897
  %v1021 = vadd.f32 %v107, %v899
  %v1022 = vadd.f32 %v108, %v902
  %v1023 = vadd.f32 %v109, %v904
  %v1024 = vadd.f32 %v110, %v907
  %v1025 = vadd.f32 %v111, %v909
  %v1026 = vadd.f32 %v112, %v912
  %v1027 = vadd.f32 %v113, %v914
  %v1028 = vadd.f32 %v114, %v917
  %v1029 = vadd.f32 %v115, %v919
  %v1030 = vadd.f32 %v116, %v922
  %v1031 = vadd.f32 %v117, %v924
  %v1032 = vadd.f32 %v118, %v927
  %v1033 = vadd.f32 %v119, %v929
  %v1034 = vadd.f32 %v120, %v932
  %v1035 = vadd.f32 %v121, %v934
  %v1036 = vadd.f32 %v122, %v937
  %v1037 = vadd.f32 %v123, %v939
  %v1038 = vadd.f32 %v124, %v942
  %v1039 = vadd.f32 %v125, %v944
  %v1040 = vadd.f32 %v126, %v947
  %v1041 = vadd.f32 %v127, %v949
  %v1042 = vadd.f32 %v128, %v952
  %v1043 = vadd.f32 %v129, %v954
  %v1044 = vadd.f32 %v130, %v957
  %v1045 = vadd.f32 %v131, %v959
  %v1046 = vadd.f32 %v132, %v962
  %v1047 = vadd.f32 %v133, %v964
  %v1048 = vadd.f32 %v134, %v967
  %v1049 = vadd.f32 %v135, %v969
  %v1050 = vadd.f32 %v136, %v972
  %v1051 = vadd.f32 %v137, %v974
  %v1052 = vadd.f32 %v138, %v977
  %v1053 = vadd.f32 %v139, %v979
  %v1054 = vadd.f32 %v140, %v982
  %v1055 = vadd.f32 %v141, %v984
  %v1056 = vadd.f32 %v142, %v987
  %v1057 = vadd.f32 %v143, %v989
  %v1058 = vadd.f32 %v144, %v992
  %v1059 = vadd.f32 %v145, %v994
  %vm1060 = vcmask 261120
  %1061 = vst.msk [vmem:[#allocation2] sm:$0xff] %vm1060, %v996
  %1062 = vst.msk [vmem:[#allocation2 + $0x8] sm:$0xff] %vm1060, %v997
  %1063 = vst.msk [vmem:[#allocation2 + $0x10] sm:$0xff] %vm1060, %v998
  %1064 = vst.msk [vmem:[#allocation2 + $0x18] sm:$0xff] %vm1060, %v999
  %1065 = vst.msk [vmem:[#allocation2 + $0x20] sm:$0xff] %vm1060, %v1000
  %1066 = vst.msk [vmem:[#allocation2 + $0x28] sm:$0xff] %vm1060, %v1001
  %1067 = vst.msk [vmem:[#allocation2 + $0x30] sm:$0xff] %vm1060, %v1002
  %1068 = vst.msk [vmem:[#allocation2 + $0x38] sm:$0xff] %vm1060, %v1003
  %1069 = vst.msk [vmem:[#allocation2 + $0x40] sm:$0xff] %vm1060, %v1004
  %1070 = vst.msk [vmem:[#allocation2 + $0x48] sm:$0xff] %vm1060, %v1005
  %1071 = vst.msk [vmem:[#allocation2 + $0x50] sm:$0xff] %vm1060, %v1006
  %1072 = vst.msk [vmem:[#allocation2 + $0x58] sm:$0xff] %vm1060, %v1007
  %1073 = vst.msk [vmem:[#allocation2 + $0x60] sm:$0xff] %vm1060, %v1008
  %1074 = vst.msk [vmem:[#allocation2 + $0x68] sm:$0xff] %vm1060, %v1009
  %1075 = vst.msk [vmem:[#allocation2 + $0x70] sm:$0xff] %vm1060, %v1010
  %1076 = vst.msk [vmem:[#allocation2 + $0x78] sm:$0xff] %vm1060, %v1011
  %1077 = vst.msk [vmem:[#allocation2 + $0x80] sm:$0xff] %vm1060, %v1012
  %1078 = vst.msk [vmem:[#allocation2 + $0x88] sm:$0xff] %vm1060, %v1013
  %1079 = vst.msk [vmem:[#allocation2 + $0x90] sm:$0xff] %vm1060, %v1014
  %1080 = vst.msk [vmem:[#allocation2 + $0x98] sm:$0xff] %vm1060, %v1015
  %1081 = vst.msk [vmem:[#allocation2 + $0xa0] sm:$0xff] %vm1060, %v1016
  %1082 = vst.msk [vmem:[#allocation2 + $0xa8] sm:$0xff] %vm1060, %v1017
  %1083 = vst.msk [vmem:[#allocation2 + $0xb0] sm:$0xff] %vm1060, %v1018
  %1084 = vst.msk [vmem:[#allocation2 + $0xb8] sm:$0xff] %vm1060, %v1019
  %1085 = vst.msk [vmem:[#allocation2 + $0xc0] sm:$0xff] %vm1060, %v1020
  %1086 = vst.msk [vmem:[#allocation2 + $0xc8] sm:$0xff] %vm1060, %v1021
  %1087 = vst.msk [vmem:[#allocation2 + $0xd0] sm:$0xff] %vm1060, %v1022
  %1088 = vst.msk [vmem:[#allocation2 + $0xd8] sm:$0xff] %vm1060, %v1023
  %1089 = vst.msk [vmem:[#allocation2 + $0xe0] sm:$0xff] %vm1060, %v1024
  %1090 = vst.msk [vmem:[#allocation2 + $0xe8] sm:$0xff] %vm1060, %v1025
  %1091 = vst.msk [vmem:[#allocation2 + $0xf0] sm:$0xff] %vm1060, %v1026
  %1092 = vst.msk [vmem:[#allocation2 + $0xf8] sm:$0xff] %vm1060, %v1027
  %1093 = vst.msk [vmem:[#allocation2 + $0x100] sm:$0xff] %vm1060, %v1028
  %1094 = vst.msk [vmem:[#allocation2 + $0x108] sm:$0xff] %vm1060, %v1029
  %1095 = vst.msk [vmem:[#allocation2 + $0x110] sm:$0xff] %vm1060, %v1030
  %1096 = vst.msk [vmem:[#allocation2 + $0x118] sm:$0xff] %vm1060, %v1031
  %1097 = vst.msk [vmem:[#allocation2 + $0x120] sm:$0xff] %vm1060, %v1032
  %1098 = vst.msk [vmem:[#allocation2 + $0x128] sm:$0xff] %vm1060, %v1033
  %1099 = vst.msk [vmem:[#allocation2 + $0x130] sm:$0xff] %vm1060, %v1034
  %1100 = vst.msk [vmem:[#allocation2 + $0x138] sm:$0xff] %vm1060, %v1035
  %1101 = vst.msk [vmem:[#allocation2 + $0x140] sm:$0xff] %vm1060, %v1036
  %1102 = vst.msk [vmem:[#allocation2 + $0x148] sm:$0xff] %vm1060, %v1037
  %1103 = vst.msk [vmem:[#allocation2 + $0x150] sm:$0xff] %vm1060, %v1038
  %1104 = vst.msk [vmem:[#allocation2 + $0x158] sm:$0xff] %vm1060, %v1039
  %1105 = vst.msk [vmem:[#allocation2 + $0x160] sm:$0xff] %vm1060, %v1040
  %1106 = vst.msk [vmem:[#allocation2 + $0x168] sm:$0xff] %vm1060, %v1041
  %1107 = vst.msk [vmem:[#allocation2 + $0x170] sm:$0xff] %vm1060, %v1042
  %1108 = vst.msk [vmem:[#allocation2 + $0x178] sm:$0xff] %vm1060, %v1043
  %1109 = vst.msk [vmem:[#allocation2 + $0x180] sm:$0xff] %vm1060, %v1044
  %1110 = vst.msk [vmem:[#allocation2 + $0x188] sm:$0xff] %vm1060, %v1045
  %1111 = vst.msk [vmem:[#allocation2 + $0x190] sm:$0xff] %vm1060, %v1046
  %1112 = vst.msk [vmem:[#allocation2 + $0x198] sm:$0xff] %vm1060, %v1047
  %1113 = vst.msk [vmem:[#allocation2 + $0x1a0] sm:$0xff] %vm1060, %v1048
  %1114 = vst.msk [vmem:[#allocation2 + $0x1a8] sm:$0xff] %vm1060, %v1049
  %1115 = vst.msk [vmem:[#allocation2 + $0x1b0] sm:$0xff] %vm1060, %v1050
  %1116 = vst.msk [vmem:[#allocation2 + $0x1b8] sm:$0xff] %vm1060, %v1051
  %1117 = vst.msk [vmem:[#allocation2 + $0x1c0] sm:$0xff] %vm1060, %v1052
  %1118 = vst.msk [vmem:[#allocation2 + $0x1c8] sm:$0xff] %vm1060, %v1053
  %1119 = vst.msk [vmem:[#allocation2 + $0x1d0] sm:$0xff] %vm1060, %v1054
  %1120 = vst.msk [vmem:[#allocation2 + $0x1d8] sm:$0xff] %vm1060, %v1055
  %1121 = vst.msk [vmem:[#allocation2 + $0x1e0] sm:$0xff] %vm1060, %v1056
  %1122 = vst.msk [vmem:[#allocation2 + $0x1e8] sm:$0xff] %vm1060, %v1057
  %1123 = vst.msk [vmem:[#allocation2 + $0x1f0] sm:$0xff] %vm1060, %v1058
  %1124 = vst.msk [vmem:[#allocation2 + $0x1f8] sm:$0xff] %vm1060, %v1059
  // Predicated region
  $region14: #{discriminator_forward.9} parent=0 // pred_check
    %p1125 = pneg %p13
  $region15: #{discriminator_forward.9} parent=0 // pred_check_branch
    %1127 = sbr.rel (%p1125) target = $region17
  $region16: #{discriminator_forward.9} parent=0 // pred_region
    %v1128 = vld [vmem:[#allocation2] sm:$0xff]
    %v1129 = vld [vmem:[#allocation2 + $0x8] sm:$0xff]
    %v1130 = vld [vmem:[#allocation2 + $0x10] sm:$0xff]
    %v1131 = vld [vmem:[#allocation2 + $0x18] sm:$0xff]
    %v1132 = vld [vmem:[#allocation2 + $0x20] sm:$0xff]
    %v1133 = vld [vmem:[#allocation2 + $0x28] sm:$0xff]
    %v1134 = vld [vmem:[#allocation2 + $0x30] sm:$0xff]
    %v1135 = vld [vmem:[#allocation2 + $0x38] sm:$0xff]
    %v1136 = vld [vmem:[#allocation2 + $0x40] sm:$0xff]
    %v1137 = vld [vmem:[#allocation2 + $0x48] sm:$0xff]
    %v1138 = vld [vmem:[#allocation2 + $0x50] sm:$0xff]
    %v1139 = vld [vmem:[#allocation2 + $0x58] sm:$0xff]
    %v1140 = vld [vmem:[#allocation2 + $0x60] sm:$0xff]
    %v1141 = vld [vmem:[#allocation2 + $0x68] sm:$0xff]
    %v1142 = vld [vmem:[#allocation2 + $0x70] sm:$0xff]
    %v1143 = vld [vmem:[#allocation2 + $0x78] sm:$0xff]
    %v1144 = vld [vmem:[#allocation2 + $0x80] sm:$0xff]
    %v1145 = vld [vmem:[#allocation2 + $0x88] sm:$0xff]
    %v1146 = vld [vmem:[#allocation2 + $0x90] sm:$0xff]
    %v1147 = vld [vmem:[#allocation2 + $0x98] sm:$0xff]
    %v1148 = vld [vmem:[#allocation2 + $0xa0] sm:$0xff]
    %v1149 = vld [vmem:[#allocation2 + $0xa8] sm:$0xff]
    %v1150 = vld [vmem:[#allocation2 + $0xb0] sm:$0xff]
    %v1151 = vld [vmem:[#allocation2 + $0xb8] sm:$0xff]
    %v1152 = vld [vmem:[#allocation2 + $0xc0] sm:$0xff]
    %v1153 = vld [vmem:[#allocation2 + $0xc8] sm:$0xff]
    %v1154 = vld [vmem:[#allocation2 + $0xd0] sm:$0xff]
    %v1155 = vld [vmem:[#allocation2 + $0xd8] sm:$0xff]
    %v1156 = vld [vmem:[#allocation2 + $0xe0] sm:$0xff]
    %v1157 = vld [vmem:[#allocation2 + $0xe8] sm:$0xff]
    %v1158 = vld [vmem:[#allocation2 + $0xf0] sm:$0xff]
    %v1159 = vld [vmem:[#allocation2 + $0xf8] sm:$0xff]
    %v1160 = vld [vmem:[#allocation2 + $0x100] sm:$0xff]
    %v1161 = vld [vmem:[#allocation2 + $0x108] sm:$0xff]
    %v1162 = vld [vmem:[#allocation2 + $0x110] sm:$0xff]
    %v1163 = vld [vmem:[#allocation2 + $0x118] sm:$0xff]
    %v1164 = vld [vmem:[#allocation2 + $0x120] sm:$0xff]
    %v1165 = vld [vmem:[#allocation2 + $0x128] sm:$0xff]
    %v1166 = vld [vmem:[#allocation2 + $0x130] sm:$0xff]
    %v1167 = vld [vmem:[#allocation2 + $0x138] sm:$0xff]
    %v1168 = vld [vmem:[#allocation2 + $0x140] sm:$0xff]
    %v1169 = vld [vmem:[#allocation2 + $0x148] sm:$0xff]
    %v1170 = vld [vmem:[#allocation2 + $0x150] sm:$0xff]
    %v1171 = vld [vmem:[#allocation2 + $0x158] sm:$0xff]
    %v1172 = vld [vmem:[#allocation2 + $0x160] sm:$0xff]
    %v1173 = vld [vmem:[#allocation2 + $0x168] sm:$0xff]
    %v1174 = vld [vmem:[#allocation2 + $0x170] sm:$0xff]
    %v1175 = vld [vmem:[#allocation2 + $0x178] sm:$0xff]
    %v1176 = vld [vmem:[#allocation2 + $0x180] sm:$0xff]
    %v1177 = vld [vmem:[#allocation2 + $0x188] sm:$0xff]
    %v1178 = vld [vmem:[#allocation2 + $0x190] sm:$0xff]
    %v1179 = vld [vmem:[#allocation2 + $0x198] sm:$0xff]
    %v1180 = vld [vmem:[#allocation2 + $0x1a0] sm:$0xff]
    %v1181 = vld [vmem:[#allocation2 + $0x1a8] sm:$0xff]
    %v1182 = vld [vmem:[#allocation2 + $0x1b0] sm:$0xff]
    %v1183 = vld [vmem:[#allocation2 + $0x1b8] sm:$0xff]
    %v1184 = vld [vmem:[#allocation2 + $0x1c0] sm:$0xff]
    %v1185 = vld [vmem:[#allocation2 + $0x1c8] sm:$0xff]
    %v1186 = vld [vmem:[#allocation2 + $0x1d0] sm:$0xff]
    %v1187 = vld [vmem:[#allocation2 + $0x1d8] sm:$0xff]
    %v1188 = vld [vmem:[#allocation2 + $0x1e0] sm:$0xff]
    %v1189 = vld [vmem:[#allocation2 + $0x1e8] sm:$0xff]
    %v1190 = vld [vmem:[#allocation2 + $0x1f0] sm:$0xff]
    %v1191 = vld [vmem:[#allocation2 + $0x1f8] sm:$0xff]
    %v1192 = vsel %vm1060, %v1128, 0.0
    %v1193 = vsel %vm1060, %v1129, 0.0
    %v1194 = vadd.f32 %v1192, %v1193
    %v1195 = vsel %vm1060, %v1130, 0.0
    %v1196 = vadd.f32 %v1194, %v1195
    %v1197 = vsel %vm1060, %v1131, 0.0
    %v1198 = vadd.f32 %v1196, %v1197
    %v1199 = vsel %vm1060, %v1132, 0.0
    %v1200 = vadd.f32 %v1198, %v1199
    %v1201 = vsel %vm1060, %v1133, 0.0
    %v1202 = vadd.f32 %v1200, %v1201
    %v1203 = vsel %vm1060, %v1134, 0.0
    %v1204 = vadd.f32 %v1202, %v1203
    %v1205 = vsel %vm1060, %v1135, 0.0
    %v1206 = vadd.f32 %v1204, %v1205
    %v1207 = vsel %vm1060, %v1136, 0.0
    %v1208 = vadd.f32 %v1206, %v1207
    %v1209 = vsel %vm1060, %v1137, 0.0
    %v1210 = vadd.f32 %v1208, %v1209
    %v1211 = vsel %vm1060, %v1138, 0.0
    %v1212 = vadd.f32 %v1210, %v1211
    %v1213 = vsel %vm1060, %v1139, 0.0
    %v1214 = vadd.f32 %v1212, %v1213
    %v1215 = vsel %vm1060, %v1140, 0.0
    %v1216 = vadd.f32 %v1214, %v1215
    %v1217 = vsel %vm1060, %v1141, 0.0
    %v1218 = vadd.f32 %v1216, %v1217
    %v1219 = vsel %vm1060, %v1142, 0.0
    %v1220 = vadd.f32 %v1218, %v1219
    %v1221 = vsel %vm1060, %v1143, 0.0
    %v1222 = vadd.f32 %v1220, %v1221
    %v1223 = vsel %vm1060, %v1144, 0.0
    %v1224 = vadd.f32 %v1222, %v1223
    %v1225 = vsel %vm1060, %v1145, 0.0
    %v1226 = vadd.f32 %v1224, %v1225
    %v1227 = vsel %vm1060, %v1146, 0.0
    %v1228 = vadd.f32 %v1226, %v1227
    %v1229 = vsel %vm1060, %v1147, 0.0
    %v1230 = vadd.f32 %v1228, %v1229
    %v1231 = vsel %vm1060, %v1148, 0.0
    %v1232 = vadd.f32 %v1230, %v1231
    %v1233 = vsel %vm1060, %v1149, 0.0
    %v1234 = vadd.f32 %v1232, %v1233
    %v1235 = vsel %vm1060, %v1150, 0.0
    %v1236 = vadd.f32 %v1234, %v1235
    %v1237 = vsel %vm1060, %v1151, 0.0
    %v1238 = vadd.f32 %v1236, %v1237
    %v1239 = vsel %vm1060, %v1152, 0.0
    %v1240 = vadd.f32 %v1238, %v1239
    %v1241 = vsel %vm1060, %v1153, 0.0
    %v1242 = vadd.f32 %v1240, %v1241
    %v1243 = vsel %vm1060, %v1154, 0.0
    %v1244 = vadd.f32 %v1242, %v1243
    %v1245 = vsel %vm1060, %v1155, 0.0
    %v1246 = vadd.f32 %v1244, %v1245
    %v1247 = vsel %vm1060, %v1156, 0.0
    %v1248 = vadd.f32 %v1246, %v1247
    %v1249 = vsel %vm1060, %v1157, 0.0
    %v1250 = vadd.f32 %v1248, %v1249
    %v1251 = vsel %vm1060, %v1158, 0.0
    %v1252 = vadd.f32 %v1250, %v1251
    %v1253 = vsel %vm1060, %v1159, 0.0
    %v1254 = vadd.f32 %v1252, %v1253
    %v1255 = vsel %vm1060, %v1160, 0.0
    %v1256 = vadd.f32 %v1254, %v1255
    %v1257 = vsel %vm1060, %v1161, 0.0
    %v1258 = vadd.f32 %v1256, %v1257
    %v1259 = vsel %vm1060, %v1162, 0.0
    %v1260 = vadd.f32 %v1258, %v1259
    %v1261 = vsel %vm1060, %v1163, 0.0
    %v1262 = vadd.f32 %v1260, %v1261
    %v1263 = vsel %vm1060, %v1164, 0.0
    %v1264 = vadd.f32 %v1262, %v1263
    %v1265 = vsel %vm1060, %v1165, 0.0
    %v1266 = vadd.f32 %v1264, %v1265
    %v1267 = vsel %vm1060, %v1166, 0.0
    %v1268 = vadd.f32 %v1266, %v1267
    %v1269 = vsel %vm1060, %v1167, 0.0
    %v1270 = vadd.f32 %v1268, %v1269
    %v1271 = vsel %vm1060, %v1168, 0.0
    %v1272 = vadd.f32 %v1270, %v1271
    %v1273 = vsel %vm1060, %v1169, 0.0
    %v1274 = vadd.f32 %v1272, %v1273
    %v1275 = vsel %vm1060, %v1170, 0.0
    %v1276 = vadd.f32 %v1274, %v1275
    %v1277 = vsel %vm1060, %v1171, 0.0
    %v1278 = vadd.f32 %v1276, %v1277
    %v1279 = vsel %vm1060, %v1172, 0.0
    %v1280 = vadd.f32 %v1278, %v1279
    %v1281 = vsel %vm1060, %v1173, 0.0
    %v1282 = vadd.f32 %v1280, %v1281
    %v1283 = vsel %vm1060, %v1174, 0.0
    %v1284 = vadd.f32 %v1282, %v1283
    %v1285 = vsel %vm1060, %v1175, 0.0
    %v1286 = vadd.f32 %v1284, %v1285
    %v1287 = vsel %vm1060, %v1176, 0.0
    %v1288 = vadd.f32 %v1286, %v1287
    %v1289 = vsel %vm1060, %v1177, 0.0
    %v1290 = vadd.f32 %v1288, %v1289
    %v1291 = vsel %vm1060, %v1178, 0.0
    %v1292 = vadd.f32 %v1290, %v1291
    %v1293 = vsel %vm1060, %v1179, 0.0
    %v1294 = vadd.f32 %v1292, %v1293
    %v1295 = vsel %vm1060, %v1180, 0.0
    %v1296 = vadd.f32 %v1294, %v1295
    %v1297 = vsel %vm1060, %v1181, 0.0
    %v1298 = vadd.f32 %v1296, %v1297
    %v1299 = vsel %vm1060, %v1182, 0.0
    %v1300 = vadd.f32 %v1298, %v1299
    %v1301 = vsel %vm1060, %v1183, 0.0
    %v1302 = vadd.f32 %v1300, %v1301
    %v1303 = vsel %vm1060, %v1184, 0.0
    %v1304 = vadd.f32 %v1302, %v1303
    %v1305 = vsel %vm1060, %v1185, 0.0
    %v1306 = vadd.f32 %v1304, %v1305
    %v1307 = vsel %vm1060, %v1186, 0.0
    %v1308 = vadd.f32 %v1306, %v1307
    %v1309 = vsel %vm1060, %v1187, 0.0
    %v1310 = vadd.f32 %v1308, %v1309
    %v1311 = vsel %vm1060, %v1188, 0.0
    %v1312 = vadd.f32 %v1310, %v1311
    %v1313 = vsel %vm1060, %v1189, 0.0
    %v1314 = vadd.f32 %v1312, %v1313
    %v1315 = vsel %vm1060, %v1190, 0.0
    %v1316 = vadd.f32 %v1314, %v1315
    %v1317 = vsel %vm1060, %v1191, 0.0
    %v1318 = vadd.f32 %v1316, %v1317
    %v1319 = vrot.slane %v1318, 4
    %v1320 = vadd.f32 %v1318, %v1319
    %v1321 = vrot.slane %v1320, 2
    %v1322 = vadd.f32 %v1320, %v1321
    %v1323 = vrot.slane %v1322, 1
    %v1324 = vadd.f32 %v1322, %v1323
    %v1325 = vmul.f32 %v1128, %v1128
    %v1326 = vmul.f32 %v1129, %v1129
    %v1327 = vmul.f32 %v1130, %v1130
    %v1328 = vmul.f32 %v1131, %v1131
    %v1329 = vmul.f32 %v1132, %v1132
    %v1330 = vmul.f32 %v1133, %v1133
    %v1331 = vmul.f32 %v1134, %v1134
    %v1332 = vmul.f32 %v1135, %v1135
    %v1333 = vmul.f32 %v1136, %v1136
    %v1334 = vmul.f32 %v1137, %v1137
    %v1335 = vmul.f32 %v1138, %v1138
    %v1336 = vmul.f32 %v1139, %v1139
    %v1337 = vmul.f32 %v1140, %v1140
    %v1338 = vmul.f32 %v1141, %v1141
    %v1339 = vmul.f32 %v1142, %v1142
    %v1340 = vmul.f32 %v1143, %v1143
    %v1341 = vmul.f32 %v1144, %v1144
    %v1342 = vmul.f32 %v1145, %v1145
    %v1343 = vmul.f32 %v1146, %v1146
    %v1344 = vmul.f32 %v1147, %v1147
    %v1345 = vmul.f32 %v1148, %v1148
    %v1346 = vmul.f32 %v1149, %v1149
    %v1347 = vmul.f32 %v1150, %v1150
    %v1348 = vmul.f32 %v1151, %v1151
    %v1349 = vmul.f32 %v1152, %v1152
    %v1350 = vmul.f32 %v1153, %v1153
    %v1351 = vmul.f32 %v1154, %v1154
    %v1352 = vmul.f32 %v1155, %v1155
    %v1353 = vmul.f32 %v1156, %v1156
    %v1354 = vmul.f32 %v1157, %v1157
    %v1355 = vmul.f32 %v1158, %v1158
    %v1356 = vmul.f32 %v1159, %v1159
    %v1357 = vmul.f32 %v1160, %v1160
    %v1358 = vmul.f32 %v1161, %v1161
    %v1359 = vmul.f32 %v1162, %v1162
    %v1360 = vmul.f32 %v1163, %v1163
    %v1361 = vmul.f32 %v1164, %v1164
    %v1362 = vmul.f32 %v1165, %v1165
    %v1363 = vmul.f32 %v1166, %v1166
    %v1364 = vmul.f32 %v1167, %v1167
    %v1365 = vmul.f32 %v1168, %v1168
    %v1366 = vmul.f32 %v1169, %v1169
    %v1367 = vmul.f32 %v1170, %v1170
    %v1368 = vmul.f32 %v1171, %v1171
    %v1369 = vmul.f32 %v1172, %v1172
    %v1370 = vmul.f32 %v1173, %v1173
    %v1371 = vmul.f32 %v1174, %v1174
    %v1372 = vmul.f32 %v1175, %v1175
    %v1373 = vmul.f32 %v1176, %v1176
    %v1374 = vmul.f32 %v1177, %v1177
    %v1375 = vmul.f32 %v1178, %v1178
    %v1376 = vmul.f32 %v1179, %v1179
    %v1377 = vmul.f32 %v1180, %v1180
    %v1378 = vmul.f32 %v1181, %v1181
    %v1379 = vmul.f32 %v1182, %v1182
    %v1380 = vmul.f32 %v1183, %v1183
    %v1381 = vmul.f32 %v1184, %v1184
    %v1382 = vmul.f32 %v1185, %v1185
    %v1383 = vmul.f32 %v1186, %v1186
    %v1384 = vmul.f32 %v1187, %v1187
    %v1385 = vmul.f32 %v1188, %v1188
    %v1386 = vmul.f32 %v1189, %v1189
    %v1387 = vmul.f32 %v1190, %v1190
    %v1388 = vmul.f32 %v1191, %v1191
    %v1389 = vsel %vm1060, %v1325, 0.0
    %v1390 = vsel %vm1060, %v1326, 0.0
    %v1391 = vadd.f32 %v1389, %v1390
    %v1392 = vsel %vm1060, %v1327, 0.0
    %v1393 = vadd.f32 %v1391, %v1392
    %v1394 = vsel %vm1060, %v1328, 0.0
    %v1395 = vadd.f32 %v1393, %v1394
    %v1396 = vsel %vm1060, %v1329, 0.0
    %v1397 = vadd.f32 %v1395, %v1396
    %v1398 = vsel %vm1060, %v1330, 0.0
    %v1399 = vadd.f32 %v1397, %v1398
    %v1400 = vsel %vm1060, %v1331, 0.0
    %v1401 = vadd.f32 %v1399, %v1400
    %v1402 = vsel %vm1060, %v1332, 0.0
    %v1403 = vadd.f32 %v1401, %v1402
    %v1404 = vsel %vm1060, %v1333, 0.0
    %v1405 = vadd.f32 %v1403, %v1404
    %v1406 = vsel %vm1060, %v1334, 0.0
    %v1407 = vadd.f32 %v1405, %v1406
    %v1408 = vsel %vm1060, %v1335, 0.0
    %v1409 = vadd.f32 %v1407, %v1408
    %v1410 = vsel %vm1060, %v1336, 0.0
    %v1411 = vadd.f32 %v1409, %v1410
    %v1412 = vsel %vm1060, %v1337, 0.0
    %v1413 = vadd.f32 %v1411, %v1412
    %v1414 = vsel %vm1060, %v1338, 0.0
    %v1415 = vadd.f32 %v1413, %v1414
    %v1416 = vsel %vm1060, %v1339, 0.0
    %v1417 = vadd.f32 %v1415, %v1416
    %v1418 = vsel %vm1060, %v1340, 0.0
    %v1419 = vadd.f32 %v1417, %v1418
    %v1420 = vsel %vm1060, %v1341, 0.0
    %v1421 = vadd.f32 %v1419, %v1420
    %v1422 = vsel %vm1060, %v1342, 0.0
    %v1423 = vadd.f32 %v1421, %v1422
    %v1424 = vsel %vm1060, %v1343, 0.0
    %v1425 = vadd.f32 %v1423, %v1424
    %v1426 = vsel %vm1060, %v1344, 0.0
    %v1427 = vadd.f32 %v1425, %v1426
    %v1428 = vsel %vm1060, %v1345, 0.0
    %v1429 = vadd.f32 %v1427, %v1428
    %v1430 = vsel %vm1060, %v1346, 0.0
    %v1431 = vadd.f32 %v1429, %v1430
    %v1432 = vsel %vm1060, %v1347, 0.0
    %v1433 = vadd.f32 %v1431, %v1432
    %v1434 = vsel %vm1060, %v1348, 0.0
    %v1435 = vadd.f32 %v1433, %v1434
    %v1436 = vsel %vm1060, %v1349, 0.0
    %v1437 = vadd.f32 %v1435, %v1436
    %v1438 = vsel %vm1060, %v1350, 0.0
    %v1439 = vadd.f32 %v1437, %v1438
    %v1440 = vsel %vm1060, %v1351, 0.0
    %v1441 = vadd.f32 %v1439, %v1440
    %v1442 = vsel %vm1060, %v1352, 0.0
    %v1443 = vadd.f32 %v1441, %v1442
    %v1444 = vsel %vm1060, %v1353, 0.0
    %v1445 = vadd.f32 %v1443, %v1444
    %v1446 = vsel %vm1060, %v1354, 0.0
    %v1447 = vadd.f32 %v1445, %v1446
    %v1448 = vsel %vm1060, %v1355, 0.0
    %v1449 = vadd.f32 %v1447, %v1448
    %v1450 = vsel %vm1060, %v1356, 0.0
    %v1451 = vadd.f32 %v1449, %v1450
    %v1452 = vsel %vm1060, %v1357, 0.0
    %v1453 = vadd.f32 %v1451, %v1452
    %v1454 = vsel %vm1060, %v1358, 0.0
    %v1455 = vadd.f32 %v1453, %v1454
    %v1456 = vsel %vm1060, %v1359, 0.0
    %v1457 = vadd.f32 %v1455, %v1456
    %v1458 = vsel %vm1060, %v1360, 0.0
    %v1459 = vadd.f32 %v1457, %v1458
    %v1460 = vsel %vm1060, %v1361, 0.0
    %v1461 = vadd.f32 %v1459, %v1460
    %v1462 = vsel %vm1060, %v1362, 0.0
    %v1463 = vadd.f32 %v1461, %v1462
    %v1464 = vsel %vm1060, %v1363, 0.0
    %v1465 = vadd.f32 %v1463, %v1464
    %v1466 = vsel %vm1060, %v1364, 0.0
    %v1467 = vadd.f32 %v1465, %v1466
    %v1468 = vsel %vm1060, %v1365, 0.0
    %v1469 = vadd.f32 %v1467, %v1468
    %v1470 = vsel %vm1060, %v1366, 0.0
    %v1471 = vadd.f32 %v1469, %v1470
    %v1472 = vsel %vm1060, %v1367, 0.0
    %v1473 = vadd.f32 %v1471, %v1472
    %v1474 = vsel %vm1060, %v1368, 0.0
    %v1475 = vadd.f32 %v1473, %v1474
    %v1476 = vsel %vm1060, %v1369, 0.0
    %v1477 = vadd.f32 %v1475, %v1476
    %v1478 = vsel %vm1060, %v1370, 0.0
    %v1479 = vadd.f32 %v1477, %v1478
    %v1480 = vsel %vm1060, %v1371, 0.0
    %v1481 = vadd.f32 %v1479, %v1480
    %v1482 = vsel %vm1060, %v1372, 0.0
    %v1483 = vadd.f32 %v1481, %v1482
    %v1484 = vsel %vm1060, %v1373, 0.0
    %v1485 = vadd.f32 %v1483, %v1484
    %v1486 = vsel %vm1060, %v1374, 0.0
    %v1487 = vadd.f32 %v1485, %v1486
    %v1488 = vsel %vm1060, %v1375, 0.0
    %v1489 = vadd.f32 %v1487, %v1488
    %v1490 = vsel %vm1060, %v1376, 0.0
    %v1491 = vadd.f32 %v1489, %v1490
    %v1492 = vsel %vm1060, %v1377, 0.0
    %v1493 = vadd.f32 %v1491, %v1492
    %v1494 = vsel %vm1060, %v1378, 0.0
    %v1495 = vadd.f32 %v1493, %v1494
    %v1496 = vsel %vm1060, %v1379, 0.0
    %v1497 = vadd.f32 %v1495, %v1496
    %v1498 = vsel %vm1060, %v1380, 0.0
    %v1499 = vadd.f32 %v1497, %v1498
    %v1500 = vsel %vm1060, %v1381, 0.0
    %v1501 = vadd.f32 %v1499, %v1500
    %v1502 = vsel %vm1060, %v1382, 0.0
    %v1503 = vadd.f32 %v1501, %v1502
    %v1504 = vsel %vm1060, %v1383, 0.0
    %v1505 = vadd.f32 %v1503, %v1504
    %v1506 = vsel %vm1060, %v1384, 0.0
    %v1507 = vadd.f32 %v1505, %v1506
    %v1508 = vsel %vm1060, %v1385, 0.0
    %v1509 = vadd.f32 %v1507, %v1508
    %v1510 = vsel %vm1060, %v1386, 0.0
    %v1511 = vadd.f32 %v1509, %v1510
    %v1512 = vsel %vm1060, %v1387, 0.0
    %v1513 = vadd.f32 %v1511, %v1512
    %v1514 = vsel %vm1060, %v1388, 0.0
    %v1515 = vadd.f32 %v1513, %v1514
    %v1516 = vrot.slane %v1515, 4
    %v1517 = vadd.f32 %v1515, %v1516
    %v1518 = vrot.slane %v1517, 2
    %v1519 = vadd.f32 %v1517, %v1518
    %v1520 = vrot.slane %v1519, 1
    %v1521 = vadd.f32 %v1519, %v1520
    %vm1522 = vcmask 1040384
    %v1523 = vsel %vm1522, %v1324, %v1521
    %vm1524 = vcmask 254976
    %1525 = vst.msk [vmem:[%s3] sm:$0x3] %vm1524, %v1523
    %v1526 = vpack.c.bf16 %v1128, %v1128
    %v1527 = vpack.c.bf16 %v1129, %v1129
    %v1528 = vpack.c.bf16 %v1130, %v1130
    %v1529 = vpack.c.bf16 %v1131, %v1131
    %v1530 = vpack.c.bf16 %v1132, %v1132
    %v1531 = vpack.c.bf16 %v1133, %v1133
    %v1532 = vpack.c.bf16 %v1134, %v1134
    %v1533 = vpack.c.bf16 %v1135, %v1135
    %v1534 = vpack.c.bf16 %v1136, %v1136
    %v1535 = vpack.c.bf16 %v1137, %v1137
    %v1536 = vpack.c.bf16 %v1138, %v1138
    %v1537 = vpack.c.bf16 %v1139, %v1139
    %v1538 = vpack.c.bf16 %v1140, %v1140
    %v1539 = vpack.c.bf16 %v1141, %v1141
    %v1540 = vpack.c.bf16 %v1142, %v1142
    %v1541 = vpack.c.bf16 %v1143, %v1143
    %v1542 = vpack.c.bf16 %v1144, %v1144
    %v1543 = vpack.c.bf16 %v1145, %v1145
    %v1544 = vpack.c.bf16 %v1146, %v1146
    %v1545 = vpack.c.bf16 %v1147, %v1147
    %v1546 = vpack.c.bf16 %v1148, %v1148
    %v1547 = vpack.c.bf16 %v1149, %v1149
    %v1548 = vpack.c.bf16 %v1150, %v1150
    %v1549 = vpack.c.bf16 %v1151, %v1151
    %v1550 = vpack.c.bf16 %v1152, %v1152
    %v1551 = vpack.c.bf16 %v1153, %v1153
    %v1552 = vpack.c.bf16 %v1154, %v1154
    %v1553 = vpack.c.bf16 %v1155, %v1155
    %v1554 = vpack.c.bf16 %v1156, %v1156
    %v1555 = vpack.c.bf16 %v1157, %v1157
    %v1556 = vpack.c.bf16 %v1158, %v1158
    %v1557 = vpack.c.bf16 %v1159, %v1159
    %v1558 = vpack.c.bf16 %v1160, %v1160
    %v1559 = vpack.c.bf16 %v1161, %v1161
    %v1560 = vpack.c.bf16 %v1162, %v1162
    %v1561 = vpack.c.bf16 %v1163, %v1163
    %v1562 = vpack.c.bf16 %v1164, %v1164
    %v1563 = vpack.c.bf16 %v1165, %v1165
    %v1564 = vpack.c.bf16 %v1166, %v1166
    %v1565 = vpack.c.bf16 %v1167, %v1167
    %v1566 = vpack.c.bf16 %v1168, %v1168
    %v1567 = vpack.c.bf16 %v1169, %v1169
    %v1568 = vpack.c.bf16 %v1170, %v1170
    %v1569 = vpack.c.bf16 %v1171, %v1171
    %v1570 = vpack.c.bf16 %v1172, %v1172
    %v1571 = vpack.c.bf16 %v1173, %v1173
    %v1572 = vpack.c.bf16 %v1174, %v1174
    %v1573 = vpack.c.bf16 %v1175, %v1175
    %v1574 = vpack.c.bf16 %v1176, %v1176
    %v1575 = vpack.c.bf16 %v1177, %v1177
    %v1576 = vpack.c.bf16 %v1178, %v1178
    %v1577 = vpack.c.bf16 %v1179, %v1179
    %v1578 = vpack.c.bf16 %v1180, %v1180
    %v1579 = vpack.c.bf16 %v1181, %v1181
    %v1580 = vpack.c.bf16 %v1182, %v1182
    %v1581 = vpack.c.bf16 %v1183, %v1183
    %v1582 = vpack.c.bf16 %v1184, %v1184
    %v1583 = vpack.c.bf16 %v1185, %v1185
    %v1584 = vpack.c.bf16 %v1186, %v1186
    %v1585 = vpack.c.bf16 %v1187, %v1187
    %v1586 = vpack.c.bf16 %v1188, %v1188
    %v1587 = vpack.c.bf16 %v1189, %v1189
    %v1588 = vpack.c.bf16 %v1190, %v1190
    %v1589 = vpack.c.bf16 %v1191, %v1191
    %vm1590 = vcmask 257024
    %1591 = vst.msk [vmem:[%s2] sm:$0xf] %vm1590, %v1526
    %1592 = vst.msk [vmem:[%s2 + $0x4] sm:$0xf] %vm1590, %v1527
    %1593 = vst.msk [vmem:[%s2 + $0x8] sm:$0xf] %vm1590, %v1528
    %1594 = vst.msk [vmem:[%s2 + $0xc] sm:$0xf] %vm1590, %v1529
    %1595 = vst.msk [vmem:[%s2 + $0x10] sm:$0xf] %vm1590, %v1530
    %1596 = vst.msk [vmem:[%s2 + $0x14] sm:$0xf] %vm1590, %v1531
    %1597 = vst.msk [vmem:[%s2 + $0x18] sm:$0xf] %vm1590, %v1532
    %1598 = vst.msk [vmem:[%s2 + $0x1c] sm:$0xf] %vm1590, %v1533
    %1599 = vst.msk [vmem:[%s2 + $0x20] sm:$0xf] %vm1590, %v1534
    %1600 = vst.msk [vmem:[%s2 + $0x24] sm:$0xf] %vm1590, %v1535
    %1601 = vst.msk [vmem:[%s2 + $0x28] sm:$0xf] %vm1590, %v1536
    %1602 = vst.msk [vmem:[%s2 + $0x2c] sm:$0xf] %vm1590, %v1537
    %1603 = vst.msk [vmem:[%s2 + $0x30] sm:$0xf] %vm1590, %v1538
    %1604 = vst.msk [vmem:[%s2 + $0x34] sm:$0xf] %vm1590, %v1539
    %1605 = vst.msk [vmem:[%s2 + $0x38] sm:$0xf] %vm1590, %v1540
    %1606 = vst.msk [vmem:[%s2 + $0x3c] sm:$0xf] %vm1590, %v1541
    %1607 = vst.msk [vmem:[%s2 + $0x40] sm:$0xf] %vm1590, %v1542
    %1608 = vst.msk [vmem:[%s2 + $0x44] sm:$0xf] %vm1590, %v1543
    %1609 = vst.msk [vmem:[%s2 + $0x48] sm:$0xf] %vm1590, %v1544
    %1610 = vst.msk [vmem:[%s2 + $0x4c] sm:$0xf] %vm1590, %v1545
    %1611 = vst.msk [vmem:[%s2 + $0x50] sm:$0xf] %vm1590, %v1546
    %1612 = vst.msk [vmem:[%s2 + $0x54] sm:$0xf] %vm1590, %v1547
    %1613 = vst.msk [vmem:[%s2 + $0x58] sm:$0xf] %vm1590, %v1548
    %1614 = vst.msk [vmem:[%s2 + $0x5c] sm:$0xf] %vm1590, %v1549
    %1615 = vst.msk [vmem:[%s2 + $0x60] sm:$0xf] %vm1590, %v1550
    %1616 = vst.msk [vmem:[%s2 + $0x64] sm:$0xf] %vm1590, %v1551
    %1617 = vst.msk [vmem:[%s2 + $0x68] sm:$0xf] %vm1590, %v1552
    %1618 = vst.msk [vmem:[%s2 + $0x6c] sm:$0xf] %vm1590, %v1553
    %1619 = vst.msk [vmem:[%s2 + $0x70] sm:$0xf] %vm1590, %v1554
    %1620 = vst.msk [vmem:[%s2 + $0x74] sm:$0xf] %vm1590, %v1555
    %1621 = vst.msk [vmem:[%s2 + $0x78] sm:$0xf] %vm1590, %v1556
    %1622 = vst.msk [vmem:[%s2 + $0x7c] sm:$0xf] %vm1590, %v1557
    %1623 = vst.msk [vmem:[%s2 + $0x80] sm:$0xf] %vm1590, %v1558
    %1624 = vst.msk [vmem:[%s2 + $0x84] sm:$0xf] %vm1590, %v1559
    %1625 = vst.msk [vmem:[%s2 + $0x88] sm:$0xf] %vm1590, %v1560
    %1626 = vst.msk [vmem:[%s2 + $0x8c] sm:$0xf] %vm1590, %v1561
    %1627 = vst.msk [vmem:[%s2 + $0x90] sm:$0xf] %vm1590, %v1562
    %1628 = vst.msk [vmem:[%s2 + $0x94] sm:$0xf] %vm1590, %v1563
    %1629 = vst.msk [vmem:[%s2 + $0x98] sm:$0xf] %vm1590, %v1564
    %1630 = vst.msk [vmem:[%s2 + $0x9c] sm:$0xf] %vm1590, %v1565
    %1631 = vst.msk [vmem:[%s2 + $0xa0] sm:$0xf] %vm1590, %v1566
    %1632 = vst.msk [vmem:[%s2 + $0xa4] sm:$0xf] %vm1590, %v1567
    %1633 = vst.msk [vmem:[%s2 + $0xa8] sm:$0xf] %vm1590, %v1568
    %1634 = vst.msk [vmem:[%s2 + $0xac] sm:$0xf] %vm1590, %v1569
    %1635 = vst.msk [vmem:[%s2 + $0xb0] sm:$0xf] %vm1590, %v1570
    %1636 = vst.msk [vmem:[%s2 + $0xb4] sm:$0xf] %vm1590, %v1571
    %1637 = vst.msk [vmem:[%s2 + $0xb8] sm:$0xf] %vm1590, %v1572
    %1638 = vst.msk [vmem:[%s2 + $0xbc] sm:$0xf] %vm1590, %v1573
    %1639 = vst.msk [vmem:[%s2 + $0xc0] sm:$0xf] %vm1590, %v1574
    %1640 = vst.msk [vmem:[%s2 + $0xc4] sm:$0xf] %vm1590, %v1575
    %1641 = vst.msk [vmem:[%s2 + $0xc8] sm:$0xf] %vm1590, %v1576
    %1642 = vst.msk [vmem:[%s2 + $0xcc] sm:$0xf] %vm1590, %v1577
    %1643 = vst.msk [vmem:[%s2 + $0xd0] sm:$0xf] %vm1590, %v1578
    %1644 = vst.msk [vmem:[%s2 + $0xd4] sm:$0xf] %vm1590, %v1579
    %1645 = vst.msk [vmem:[%s2 + $0xd8] sm:$0xf] %vm1590, %v1580
    %1646 = vst.msk [vmem:[%s2 + $0xdc] sm:$0xf] %vm1590, %v1581
    %1647 = vst.msk [vmem:[%s2 + $0xe0] sm:$0xf] %vm1590, %v1582
    %1648 = vst.msk [vmem:[%s2 + $0xe4] sm:$0xf] %vm1590, %v1583
    %1649 = vst.msk [vmem:[%s2 + $0xe8] sm:$0xf] %vm1590, %v1584
    %1650 = vst.msk [vmem:[%s2 + $0xec] sm:$0xf] %vm1590, %v1585
    %1651 = vst.msk [vmem:[%s2 + $0xf0] sm:$0xf] %vm1590, %v1586
    %1652 = vst.msk [vmem:[%s2 + $0xf4] sm:$0xf] %vm1590, %v1587
    %1653 = vst.msk [vmem:[%s2 + $0xf8] sm:$0xf] %vm1590, %v1588
    %1654 = vst.msk [vmem:[%s2 + $0xfc] sm:$0xf] %vm1590, %v1589
  $region17: #{discriminator_forward.9} parent=0 // pred_fallthru
    _
  // Predicated region
  $region18: #{discriminator_forward.9} parent=0 // pred_check
    _
  $region19: #{discriminator_forward.9} parent=0 // pred_check_branch
    %1656 = sbr.rel (0) target = $region21
  $region20: #{discriminator_forward.9} parent=0 // pred_region
    _
  $region21: #{discriminator_forward.9} parent=0 // pred_fallthru
    _
  // Predicated region
  $region22: #{discriminator_forward.9} parent=0 // pred_check
    _
  $region23: #{discriminator_forward.9} parent=0 // pred_check_branch
    %1658 = sbr.rel (0) target = $region25
  $region24: #{discriminator_forward.9} parent=0 // pred_region
    _
  $region25: #{discriminator_forward.9} parent=0 // pred_fallthru
    _
  // Predicated region
  $region26: #{discriminator_forward.9} parent=0 // pred_check
    _
  $region27: #{discriminator_forward.9} parent=0 // pred_check_branch
    %1660 = sbr.rel (0) target = $region29
  $region28: #{discriminator_forward.9} parent=0 // pred_region
    _
  $region29: #{discriminator_forward.9} parent=0 // pred_fallthru
    _
  // Predicated region
  $region30: #{discriminator_forward.9} parent=0 // pred_check
    _
  $region31: #{discriminator_forward.9} parent=0 // pred_check_branch
    %1662 = sbr.rel (0) target = $region33
  $region32: #{discriminator_forward.9} parent=0 // pred_region
    _
  $region33: #{discriminator_forward.9} parent=0 // pred_fallthru
    _

// kernel: discriminator_forward.10
$region0: #{discriminator_forward.10}
  #allocation0 [shape = 'u32[]', space=smem, size = 0x4, offset = 0x4, fixed_abs, tag = 'smem constant byte address 0x4 - core index']
  #allocation1 [shape = 'u32[72,128]{1,0:T(1,128)}', space=vmem, size = 0x9000, scoped, tag = 'internal scratch']
  %s0 = inlined_call_operand.vmem [shape: bf16[512,32], index: 0, kind: input, shape index: {}]
  %s1 = inlined_call_operand.vmem [shape: f32[1,32], index: 1, kind: input, shape index: {}]
  %s2 = inlined_call_operand.vmem [shape: f32[1,32], index: 2, kind: input, shape index: {}]
  %s3 = inlined_call_operand.vmem [shape: bf16[512,32], index: 3, kind: output, shape index: {}]
  %s4 = sld [smem:[#allocation0]]
  $region22: #{discriminator_forward.10} parent=0
    _
  %s6 = ssub.s32 1, %s4
  %s7 = scalar_select 0, %s6, %s4
  // Predicated region
  $region2: #{discriminator_forward.10} parent=0 // pred_check
    _
  $region3: #{discriminator_forward.10} parent=0 // pred_check_branch
    %9 = sbr.rel (0) target = $region5
  $region4: #{discriminator_forward.10} parent=0 // pred_region
    _
  $region5: #{discriminator_forward.10} parent=0 // pred_fallthru
    _
  // Predicated region
  $region6: #{discriminator_forward.10} parent=0 // pred_check
    _
  $region7: #{discriminator_forward.10} parent=0 // pred_check_branch
    %11 = sbr.rel (0) target = $region9
  $region8: #{discriminator_forward.10} parent=0 // pred_region
    _
  $region9: #{discriminator_forward.10} parent=0 // pred_fallthru
    _
  // Predicated region
  $region10: #{discriminator_forward.10} parent=0 // pred_check
    _
  $region11: #{discriminator_forward.10} parent=0 // pred_check_branch
    %13 = sbr.rel (0) target = $region13
  $region12: #{discriminator_forward.10} parent=0 // pred_region
    _
  $region13: #{discriminator_forward.10} parent=0 // pred_fallthru
    _
  %v14 = vld [vmem:[%s0] sm:$0xf]
  %v15 = vld [vmem:[%s0 + $0x4] sm:$0xf]
  %v16 = vld [vmem:[%s0 + $0x8] sm:$0xf]
  %v17 = vld [vmem:[%s0 + $0xc] sm:$0xf]
  %v18 = vld [vmem:[%s0 + $0x10] sm:$0xf]
  %v19 = vld [vmem:[%s0 + $0x14] sm:$0xf]
  %v20 = vld [vmem:[%s0 + $0x18] sm:$0xf]
  %v21 = vld [vmem:[%s0 + $0x1c] sm:$0xf]
  %v22 = vld [vmem:[%s0 + $0x20] sm:$0xf]
  %v23 = vld [vmem:[%s0 + $0x24] sm:$0xf]
  %v24 = vld [vmem:[%s0 + $0x28] sm:$0xf]
  %v25 = vld [vmem:[%s0 + $0x2c] sm:$0xf]
  %v26 = vld [vmem:[%s0 + $0x30] sm:$0xf]
  %v27 = vld [vmem:[%s0 + $0x34] sm:$0xf]
  %v28 = vld [vmem:[%s0 + $0x38] sm:$0xf]
  %v29 = vld [vmem:[%s0 + $0x3c] sm:$0xf]
  %v30 = vld [vmem:[%s0 + $0x40] sm:$0xf]
  %v31 = vld [vmem:[%s0 + $0x44] sm:$0xf]
  %v32 = vld [vmem:[%s0 + $0x48] sm:$0xf]
  %v33 = vld [vmem:[%s0 + $0x4c] sm:$0xf]
  %v34 = vld [vmem:[%s0 + $0x50] sm:$0xf]
  %v35 = vld [vmem:[%s0 + $0x54] sm:$0xf]
  %v36 = vld [vmem:[%s0 + $0x58] sm:$0xf]
  %v37 = vld [vmem:[%s0 + $0x5c] sm:$0xf]
  %v38 = vld [vmem:[%s0 + $0x60] sm:$0xf]
  %v39 = vld [vmem:[%s0 + $0x64] sm:$0xf]
  %v40 = vld [vmem:[%s0 + $0x68] sm:$0xf]
  %v41 = vld [vmem:[%s0 + $0x6c] sm:$0xf]
  %v42 = vld [vmem:[%s0 + $0x70] sm:$0xf]
  %v43 = vld [vmem:[%s0 + $0x74] sm:$0xf]
  %v44 = vld [vmem:[%s0 + $0x78] sm:$0xf]
  %v45 = vld [vmem:[%s0 + $0x7c] sm:$0xf]
  %v46 = vld [vmem:[%s0 + $0x80] sm:$0xf]
  %v47 = vld [vmem:[%s0 + $0x84] sm:$0xf]
  %v48 = vld [vmem:[%s0 + $0x88] sm:$0xf]
  %v49 = vld [vmem:[%s0 + $0x8c] sm:$0xf]
  %v50 = vld [vmem:[%s0 + $0x90] sm:$0xf]
  %v51 = vld [vmem:[%s0 + $0x94] sm:$0xf]
  %v52 = vld [vmem:[%s0 + $0x98] sm:$0xf]
  %v53 = vld [vmem:[%s0 + $0x9c] sm:$0xf]
  %v54 = vld [vmem:[%s0 + $0xa0] sm:$0xf]
  %v55 = vld [vmem:[%s0 + $0xa4] sm:$0xf]
  %v56 = vld [vmem:[%s0 + $0xa8] sm:$0xf]
  %v57 = vld [vmem:[%s0 + $0xac] sm:$0xf]
  %v58 = vld [vmem:[%s0 + $0xb0] sm:$0xf]
  %v59 = vld [vmem:[%s0 + $0xb4] sm:$0xf]
  %v60 = vld [vmem:[%s0 + $0xb8] sm:$0xf]
  %v61 = vld [vmem:[%s0 + $0xbc] sm:$0xf]
  %v62 = vld [vmem:[%s0 + $0xc0] sm:$0xf]
  %v63 = vld [vmem:[%s0 + $0xc4] sm:$0xf]
  %v64 = vld [vmem:[%s0 + $0xc8] sm:$0xf]
  %v65 = vld [vmem:[%s0 + $0xcc] sm:$0xf]
  %v66 = vld [vmem:[%s0 + $0xd0] sm:$0xf]
  %v67 = vld [vmem:[%s0 + $0xd4] sm:$0xf]
  %v68 = vld [vmem:[%s0 + $0xd8] sm:$0xf]
  %v69 = vld [vmem:[%s0 + $0xdc] sm:$0xf]
  %v70 = vld [vmem:[%s0 + $0xe0] sm:$0xf]
  %v71 = vld [vmem:[%s0 + $0xe4] sm:$0xf]
  %v72 = vld [vmem:[%s0 + $0xe8] sm:$0xf]
  %v73 = vld [vmem:[%s0 + $0xec] sm:$0xf]
  %v74 = vld [vmem:[%s0 + $0xf0] sm:$0xf]
  %v75 = vld [vmem:[%s0 + $0xf4] sm:$0xf]
  %v76 = vld [vmem:[%s0 + $0xf8] sm:$0xf]
  %v77 = vld [vmem:[%s0 + $0xfc] sm:$0xf]
  %v78 = vunpack.c.l.bf16 %v14
  %v79 = vunpack.c.l.bf16 %v15
  %v80 = vunpack.c.l.bf16 %v16
  %v81 = vunpack.c.l.bf16 %v17
  %v82 = vunpack.c.l.bf16 %v18
  %v83 = vunpack.c.l.bf16 %v19
  %v84 = vunpack.c.l.bf16 %v20
  %v85 = vunpack.c.l.bf16 %v21
  %v86 = vunpack.c.l.bf16 %v22
  %v87 = vunpack.c.l.bf16 %v23
  %v88 = vunpack.c.l.bf16 %v24
  %v89 = vunpack.c.l.bf16 %v25
  %v90 = vunpack.c.l.bf16 %v26
  %v91 = vunpack.c.l.bf16 %v27
  %v92 = vunpack.c.l.bf16 %v28
  %v93 = vunpack.c.l.bf16 %v29
  %v94 = vunpack.c.l.bf16 %v30
  %v95 = vunpack.c.l.bf16 %v31
  %v96 = vunpack.c.l.bf16 %v32
  %v97 = vunpack.c.l.bf16 %v33
  %v98 = vunpack.c.l.bf16 %v34
  %v99 = vunpack.c.l.bf16 %v35
  %v100 = vunpack.c.l.bf16 %v36
  %v101 = vunpack.c.l.bf16 %v37
  %v102 = vunpack.c.l.bf16 %v38
  %v103 = vunpack.c.l.bf16 %v39
  %v104 = vunpack.c.l.bf16 %v40
  %v105 = vunpack.c.l.bf16 %v41
  %v106 = vunpack.c.l.bf16 %v42
  %v107 = vunpack.c.l.bf16 %v43
  %v108 = vunpack.c.l.bf16 %v44
  %v109 = vunpack.c.l.bf16 %v45
  %v110 = vunpack.c.l.bf16 %v46
  %v111 = vunpack.c.l.bf16 %v47
  %v112 = vunpack.c.l.bf16 %v48
  %v113 = vunpack.c.l.bf16 %v49
  %v114 = vunpack.c.l.bf16 %v50
  %v115 = vunpack.c.l.bf16 %v51
  %v116 = vunpack.c.l.bf16 %v52
  %v117 = vunpack.c.l.bf16 %v53
  %v118 = vunpack.c.l.bf16 %v54
  %v119 = vunpack.c.l.bf16 %v55
  %v120 = vunpack.c.l.bf16 %v56
  %v121 = vunpack.c.l.bf16 %v57
  %v122 = vunpack.c.l.bf16 %v58
  %v123 = vunpack.c.l.bf16 %v59
  %v124 = vunpack.c.l.bf16 %v60
  %v125 = vunpack.c.l.bf16 %v61
  %v126 = vunpack.c.l.bf16 %v62
  %v127 = vunpack.c.l.bf16 %v63
  %v128 = vunpack.c.l.bf16 %v64
  %v129 = vunpack.c.l.bf16 %v65
  %v130 = vunpack.c.l.bf16 %v66
  %v131 = vunpack.c.l.bf16 %v67
  %v132 = vunpack.c.l.bf16 %v68
  %v133 = vunpack.c.l.bf16 %v69
  %v134 = vunpack.c.l.bf16 %v70
  %v135 = vunpack.c.l.bf16 %v71
  %v136 = vunpack.c.l.bf16 %v72
  %v137 = vunpack.c.l.bf16 %v73
  %v138 = vunpack.c.l.bf16 %v74
  %v139 = vunpack.c.l.bf16 %v75
  %v140 = vunpack.c.l.bf16 %v76
  %v141 = vunpack.c.l.bf16 %v77
  %v142 = vld [vmem:[%s1] sm:$0x1]
  %v144 = vperm.slane %v142, 0
  %v146 = vmul.f32 %v78, %v144
  %v147 = vmul.f32 %v79, %v144
  %v148 = vmul.f32 %v80, %v144
  %v149 = vmul.f32 %v81, %v144
  %v150 = vmul.f32 %v82, %v144
  %v151 = vmul.f32 %v83, %v144
  %v152 = vmul.f32 %v84, %v144
  %v153 = vmul.f32 %v85, %v144
  %v154 = vmul.f32 %v86, %v144
  %v155 = vmul.f32 %v87, %v144
  %v156 = vmul.f32 %v88, %v144
  %v157 = vmul.f32 %v89, %v144
  %v158 = vmul.f32 %v90, %v144
  %v159 = vmul.f32 %v91, %v144
  %v160 = vmul.f32 %v92, %v144
  %v161 = vmul.f32 %v93, %v144
  %v162 = vmul.f32 %v94, %v144
  %v163 = vmul.f32 %v95, %v144
  %v164 = vmul.f32 %v96, %v144
  %v165 = vmul.f32 %v97, %v144
  %v166 = vmul.f32 %v98, %v144
  %v167 = vmul.f32 %v99, %v144
  %v168 = vmul.f32 %v100, %v144
  %v169 = vmul.f32 %v101, %v144
  %v170 = vmul.f32 %v102, %v144
  %v171 = vmul.f32 %v103, %v144
  %v172 = vmul.f32 %v104, %v144
  %v173 = vmul.f32 %v105, %v144
  %v174 = vmul.f32 %v106, %v144
  %v175 = vmul.f32 %v107, %v144
  %v176 = vmul.f32 %v108, %v144
  %v177 = vmul.f32 %v109, %v144
  %v178 = vmul.f32 %v110, %v144
  %v179 = vmul.f32 %v111, %v144
  %v180 = vmul.f32 %v112, %v144
  %v181 = vmul.f32 %v113, %v144
  %v182 = vmul.f32 %v114, %v144
  %v183 = vmul.f32 %v115, %v144
  %v184 = vmul.f32 %v116, %v144
  %v185 = vmul.f32 %v117, %v144
  %v186 = vmul.f32 %v118, %v144
  %v187 = vmul.f32 %v119, %v144
  %v188 = vmul.f32 %v120, %v144
  %v189 = vmul.f32 %v121, %v144
  %v190 = vmul.f32 %v122, %v144
  %v191 = vmul.f32 %v123, %v144
  %v192 = vmul.f32 %v124, %v144
  %v193 = vmul.f32 %v125, %v144
  %v194 = vmul.f32 %v126, %v144
  %v195 = vmul.f32 %v127, %v144
  %v196 = vmul.f32 %v128, %v144
  %v197 = vmul.f32 %v129, %v144
  %v198 = vmul.f32 %v130, %v144
  %v199 = vmul.f32 %v131, %v144
  %v200 = vmul.f32 %v132, %v144
  %v201 = vmul.f32 %v133, %v144
  %v202 = vmul.f32 %v134, %v144
  %v203 = vmul.f32 %v135, %v144
  %v204 = vmul.f32 %v136, %v144
  %v205 = vmul.f32 %v137, %v144
  %v206 = vmul.f32 %v138, %v144
  %v207 = vmul.f32 %v139, %v144
  %v208 = vmul.f32 %v140, %v144
  %v209 = vmul.f32 %v141, %v144
  %v210 = vld [vmem:[%s2] sm:$0x1]
  %v212 = vperm.slane %v210, 0
  %v214 = vadd.f32 %v146, %v212
  %v215 = vadd.f32 %v147, %v212
  %v216 = vadd.f32 %v148, %v212
  %v217 = vadd.f32 %v149, %v212
  %v218 = vadd.f32 %v150, %v212
  %v219 = vadd.f32 %v151, %v212
  %v220 = vadd.f32 %v152, %v212
  %v221 = vadd.f32 %v153, %v212
  %v222 = vadd.f32 %v154, %v212
  %v223 = vadd.f32 %v155, %v212
  %v224 = vadd.f32 %v156, %v212
  %v225 = vadd.f32 %v157, %v212
  %v226 = vadd.f32 %v158, %v212
  %v227 = vadd.f32 %v159, %v212
  %v228 = vadd.f32 %v160, %v212
  %v229 = vadd.f32 %v161, %v212
  %v230 = vadd.f32 %v162, %v212
  %v231 = vadd.f32 %v163, %v212
  %v232 = vadd.f32 %v164, %v212
  %v233 = vadd.f32 %v165, %v212
  %v234 = vadd.f32 %v166, %v212
  %v235 = vadd.f32 %v167, %v212
  %v236 = vadd.f32 %v168, %v212
  %v237 = vadd.f32 %v169, %v212
  %v238 = vadd.f32 %v170, %v212
  %v239 = vadd.f32 %v171, %v212
  %v240 = vadd.f32 %v172, %v212
  %v241 = vadd.f32 %v173, %v212
  %v242 = vadd.f32 %v174, %v212
  %v243 = vadd.f32 %v175, %v212
  %v244 = vadd.f32 %v176, %v212
  %v245 = vadd.f32 %v177, %v212
  %v246 = vadd.f32 %v178, %v212
  %v247 = vadd.f32 %v179, %v212
  %v248 = vadd.f32 %v180, %v212
  %v249 = vadd.f32 %v181, %v212
  %v250 = vadd.f32 %v182, %v212
  %v251 = vadd.f32 %v183, %v212
  %v252 = vadd.f32 %v184, %v212
  %v253 = vadd.f32 %v185, %v212
  %v254 = vadd.f32 %v186, %v212
  %v255 = vadd.f32 %v187, %v212
  %v256 = vadd.f32 %v188, %v212
  %v257 = vadd.f32 %v189, %v212
  %v258 = vadd.f32 %v190, %v212
  %v259 = vadd.f32 %v191, %v212
  %v260 = vadd.f32 %v192, %v212
  %v261 = vadd.f32 %v193, %v212
  %v262 = vadd.f32 %v194, %v212
  %v263 = vadd.f32 %v195, %v212
  %v264 = vadd.f32 %v196, %v212
  %v265 = vadd.f32 %v197, %v212
  %v266 = vadd.f32 %v198, %v212
  %v267 = vadd.f32 %v199, %v212
  %v268 = vadd.f32 %v200, %v212
  %v269 = vadd.f32 %v201, %v212
  %v270 = vadd.f32 %v202, %v212
  %v271 = vadd.f32 %v203, %v212
  %v272 = vadd.f32 %v204, %v212
  %v273 = vadd.f32 %v205, %v212
  %v274 = vadd.f32 %v206, %v212
  %v275 = vadd.f32 %v207, %v212
  %v276 = vadd.f32 %v208, %v212
  %v277 = vadd.f32 %v209, %v212
  %vm278 = vcmp.gt.f32.partialorder %v214, 0.0
  %vm279 = vcmp.gt.f32.partialorder %v215, 0.0
  %vm280 = vcmp.gt.f32.partialorder %v216, 0.0
  %vm281 = vcmp.gt.f32.partialorder %v217, 0.0
  %vm282 = vcmp.gt.f32.partialorder %v218, 0.0
  %vm283 = vcmp.gt.f32.partialorder %v219, 0.0
  %vm284 = vcmp.gt.f32.partialorder %v220, 0.0
  %vm285 = vcmp.gt.f32.partialorder %v221, 0.0
  %vm286 = vcmp.gt.f32.partialorder %v222, 0.0
  %vm287 = vcmp.gt.f32.partialorder %v223, 0.0
  %vm288 = vcmp.gt.f32.partialorder %v224, 0.0
  %vm289 = vcmp.gt.f32.partialorder %v225, 0.0
  %vm290 = vcmp.gt.f32.partialorder %v226, 0.0
  %vm291 = vcmp.gt.f32.partialorder %v227, 0.0
  %vm292 = vcmp.gt.f32.partialorder %v228, 0.0
  %vm293 = vcmp.gt.f32.partialorder %v229, 0.0
  %vm294 = vcmp.gt.f32.partialorder %v230, 0.0
  %vm295 = vcmp.gt.f32.partialorder %v231, 0.0
  %vm296 = vcmp.gt.f32.partialorder %v232, 0.0
  %vm297 = vcmp.gt.f32.partialorder %v233, 0.0
  %vm298 = vcmp.gt.f32.partialorder %v234, 0.0
  %vm299 = vcmp.gt.f32.partialorder %v235, 0.0
  %vm300 = vcmp.gt.f32.partialorder %v236, 0.0
  %vm301 = vcmp.gt.f32.partialorder %v237, 0.0
  %vm302 = vcmp.gt.f32.partialorder %v238, 0.0
  %vm303 = vcmp.gt.f32.partialorder %v239, 0.0
  %vm304 = vcmp.gt.f32.partialorder %v240, 0.0
  %vm305 = vcmp.gt.f32.partialorder %v241, 0.0
  %vm306 = vcmp.gt.f32.partialorder %v242, 0.0
  %vm307 = vcmp.gt.f32.partialorder %v243, 0.0
  %vm308 = vcmp.gt.f32.partialorder %v244, 0.0
  %vm309 = vcmp.gt.f32.partialorder %v245, 0.0
  %vm310 = vcmp.gt.f32.partialorder %v246, 0.0
  %vm311 = vcmp.gt.f32.partialorder %v247, 0.0
  %vm312 = vcmp.gt.f32.partialorder %v248, 0.0
  %vm313 = vcmp.gt.f32.partialorder %v249, 0.0
  %vm314 = vcmp.gt.f32.partialorder %v250, 0.0
  %vm315 = vcmp.gt.f32.partialorder %v251, 0.0
  %vm316 = vcmp.gt.f32.partialorder %v252, 0.0
  %vm317 = vcmp.gt.f32.partialorder %v253, 0.0
  %vm318 = vcmp.gt.f32.partialorder %v254, 0.0
  %vm319 = vcmp.gt.f32.partialorder %v255, 0.0
  %vm320 = vcmp.gt.f32.partialorder %v256, 0.0
  %vm321 = vcmp.gt.f32.partialorder %v257, 0.0
  %vm322 = vcmp.gt.f32.partialorder %v258, 0.0
  %vm323 = vcmp.gt.f32.partialorder %v259, 0.0
  %vm324 = vcmp.gt.f32.partialorder %v260, 0.0
  %vm325 = vcmp.gt.f32.partialorder %v261, 0.0
  %vm326 = vcmp.gt.f32.partialorder %v262, 0.0
  %vm327 = vcmp.gt.f32.partialorder %v263, 0.0
  %vm328 = vcmp.gt.f32.partialorder %v264, 0.0
  %vm329 = vcmp.gt.f32.partialorder %v265, 0.0
  %vm330 = vcmp.gt.f32.partialorder %v266, 0.0
  %vm331 = vcmp.gt.f32.partialorder %v267, 0.0
  %vm332 = vcmp.gt.f32.partialorder %v268, 0.0
  %vm333 = vcmp.gt.f32.partialorder %v269, 0.0
  %vm334 = vcmp.gt.f32.partialorder %v270, 0.0
  %vm335 = vcmp.gt.f32.partialorder %v271, 0.0
  %vm336 = vcmp.gt.f32.partialorder %v272, 0.0
  %vm337 = vcmp.gt.f32.partialorder %v273, 0.0
  %vm338 = vcmp.gt.f32.partialorder %v274, 0.0
  %vm339 = vcmp.gt.f32.partialorder %v275, 0.0
  %vm340 = vcmp.gt.f32.partialorder %v276, 0.0
  %vm341 = vcmp.gt.f32.partialorder %v277, 0.0
  %v342 = vmul.f32 %v214, 0.2
  %v343 = vmul.f32 %v215, 0.2
  %v344 = vmul.f32 %v216, 0.2
  %v345 = vmul.f32 %v217, 0.2
  %v346 = vmul.f32 %v218, 0.2
  %v347 = vmul.f32 %v219, 0.2
  %v348 = vmul.f32 %v220, 0.2
  %v349 = vmul.f32 %v221, 0.2
  %v350 = vmul.f32 %v222, 0.2
  %v351 = vmul.f32 %v223, 0.2
  %v352 = vmul.f32 %v224, 0.2
  %v353 = vmul.f32 %v225, 0.2
  %v354 = vmul.f32 %v226, 0.2
  %v355 = vmul.f32 %v227, 0.2
  %v356 = vmul.f32 %v228, 0.2
  %v357 = vmul.f32 %v229, 0.2
  %v358 = vmul.f32 %v230, 0.2
  %v359 = vmul.f32 %v231, 0.2
  %v360 = vmul.f32 %v232, 0.2
  %v361 = vmul.f32 %v233, 0.2
  %v362 = vmul.f32 %v234, 0.2
  %v363 = vmul.f32 %v235, 0.2
  %v364 = vmul.f32 %v236, 0.2
  %v365 = vmul.f32 %v237, 0.2
  %v366 = vmul.f32 %v238, 0.2
  %v367 = vmul.f32 %v239, 0.2
  %v368 = vmul.f32 %v240, 0.2
  %v369 = vmul.f32 %v241, 0.2
  %v370 = vmul.f32 %v242, 0.2
  %v371 = vmul.f32 %v243, 0.2
  %v372 = vmul.f32 %v244, 0.2
  %v373 = vmul.f32 %v245, 0.2
  %v374 = vmul.f32 %v246, 0.2
  %v375 = vmul.f32 %v247, 0.2
  %v376 = vmul.f32 %v248, 0.2
  %v377 = vmul.f32 %v249, 0.2
  %v378 = vmul.f32 %v250, 0.2
  %v379 = vmul.f32 %v251, 0.2
  %v380 = vmul.f32 %v252, 0.2
  %v381 = vmul.f32 %v253, 0.2
  %v382 = vmul.f32 %v254, 0.2
  %v383 = vmul.f32 %v255, 0.2
  %v384 = vmul.f32 %v256, 0.2
  %v385 = vmul.f32 %v257, 0.2
  %v386 = vmul.f32 %v258, 0.2
  %v387 = vmul.f32 %v259, 0.2
  %v388 = vmul.f32 %v260, 0.2
  %v389 = vmul.f32 %v261, 0.2
  %v390 = vmul.f32 %v262, 0.2
  %v391 = vmul.f32 %v263, 0.2
  %v392 = vmul.f32 %v264, 0.2
  %v393 = vmul.f32 %v265, 0.2
  %v394 = vmul.f32 %v266, 0.2
  %v395 = vmul.f32 %v267, 0.2
  %v396 = vmul.f32 %v268, 0.2
  %v397 = vmul.f32 %v269, 0.2
  %v398 = vmul.f32 %v270, 0.2
  %v399 = vmul.f32 %v271, 0.2
  %v400 = vmul.f32 %v272, 0.2
  %v401 = vmul.f32 %v273, 0.2
  %v402 = vmul.f32 %v274, 0.2
  %v403 = vmul.f32 %v275, 0.2
  %v404 = vmul.f32 %v276, 0.2
  %v405 = vmul.f32 %v277, 0.2
  %v406 = vsel %vm278, %v214, %v342
  %v407 = vsel %vm279, %v215, %v343
  %v408 = vsel %vm280, %v216, %v344
  %v409 = vsel %vm281, %v217, %v345
  %v410 = vsel %vm282, %v218, %v346
  %v411 = vsel %vm283, %v219, %v347
  %v412 = vsel %vm284, %v220, %v348
  %v413 = vsel %vm285, %v221, %v349
  %v414 = vsel %vm286, %v222, %v350
  %v415 = vsel %vm287, %v223, %v351
  %v416 = vsel %vm288, %v224, %v352
  %v417 = vsel %vm289, %v225, %v353
  %v418 = vsel %vm290, %v226, %v354
  %v419 = vsel %vm291, %v227, %v355
  %v420 = vsel %vm292, %v228, %v356
  %v421 = vsel %vm293, %v229, %v357
  %v422 = vsel %vm294, %v230, %v358
  %v423 = vsel %vm295, %v231, %v359
  %v424 = vsel %vm296, %v232, %v360
  %v425 = vsel %vm297, %v233, %v361
  %v426 = vsel %vm298, %v234, %v362
  %v427 = vsel %vm299, %v235, %v363
  %v428 = vsel %vm300, %v236, %v364
  %v429 = vsel %vm301, %v237, %v365
  %v430 = vsel %vm302, %v238, %v366
  %v431 = vsel %vm303, %v239, %v367
  %v432 = vsel %vm304, %v240, %v368
  %v433 = vsel %vm305, %v241, %v369
  %v434 = vsel %vm306, %v242, %v370
  %v435 = vsel %vm307, %v243, %v371
  %v436 = vsel %vm308, %v244, %v372
  %v437 = vsel %vm309, %v245, %v373
  %v438 = vsel %vm310, %v246, %v374
  %v439 = vsel %vm311, %v247, %v375
  %v440 = vsel %vm312, %v248, %v376
  %v441 = vsel %vm313, %v249, %v377
  %v442 = vsel %vm314, %v250, %v378
  %v443 = vsel %vm315, %v251, %v379
  %v444 = vsel %vm316, %v252, %v380
  %v445 = vsel %vm317, %v253, %v381
  %v446 = vsel %vm318, %v254, %v382
  %v447 = vsel %vm319, %v255, %v383
  %v448 = vsel %vm320, %v256, %v384
  %v449 = vsel %vm321, %v257, %v385
  %v450 = vsel %vm322, %v258, %v386
  %v451 = vsel %vm323, %v259, %v387
  %v452 = vsel %vm324, %v260, %v388
  %v453 = vsel %vm325, %v261, %v389
  %v454 = vsel %vm326, %v262, %v390
  %v455 = vsel %vm327, %v263, %v391
  %v456 = vsel %vm328, %v264, %v392
  %v457 = vsel %vm329, %v265, %v393
  %v458 = vsel %vm330, %v266, %v394
  %v459 = vsel %vm331, %v267, %v395
  %v460 = vsel %vm332, %v268, %v396
  %v461 = vsel %vm333, %v269, %v397
  %v462 = vsel %vm334, %v270, %v398
  %v463 = vsel %vm335, %v271, %v399
  %v464 = vsel %vm336, %v272, %v400
  %v465 = vsel %vm337, %v273, %v401
  %v466 = vsel %vm338, %v274, %v402
  %v467 = vsel %vm339, %v275, %v403
  %v468 = vsel %vm340, %v276, %v404
  %v469 = vsel %vm341, %v277, %v405
  %v470 = vpack.c.bf16 %v406, %v406
  %v471 = vpack.c.bf16 %v407, %v407
  %v472 = vpack.c.bf16 %v408, %v408
  %v473 = vpack.c.bf16 %v409, %v409
  %v474 = vpack.c.bf16 %v410, %v410
  %v475 = vpack.c.bf16 %v411, %v411
  %v476 = vpack.c.bf16 %v412, %v412
  %v477 = vpack.c.bf16 %v413, %v413
  %v478 = vpack.c.bf16 %v414, %v414
  %v479 = vpack.c.bf16 %v415, %v415
  %v480 = vpack.c.bf16 %v416, %v416
  %v481 = vpack.c.bf16 %v417, %v417
  %v482 = vpack.c.bf16 %v418, %v418
  %v483 = vpack.c.bf16 %v419, %v419
  %v484 = vpack.c.bf16 %v420, %v420
  %v485 = vpack.c.bf16 %v421, %v421
  %v486 = vpack.c.bf16 %v422, %v422
  %v487 = vpack.c.bf16 %v423, %v423
  %v488 = vpack.c.bf16 %v424, %v424
  %v489 = vpack.c.bf16 %v425, %v425
  %v490 = vpack.c.bf16 %v426, %v426
  %v491 = vpack.c.bf16 %v427, %v427
  %v492 = vpack.c.bf16 %v428, %v428
  %v493 = vpack.c.bf16 %v429, %v429
  %v494 = vpack.c.bf16 %v430, %v430
  %v495 = vpack.c.bf16 %v431, %v431
  %v496 = vpack.c.bf16 %v432, %v432
  %v497 = vpack.c.bf16 %v433, %v433
  %v498 = vpack.c.bf16 %v434, %v434
  %v499 = vpack.c.bf16 %v435, %v435
  %v500 = vpack.c.bf16 %v436, %v436
  %v501 = vpack.c.bf16 %v437, %v437
  %v502 = vpack.c.bf16 %v438, %v438
  %v503 = vpack.c.bf16 %v439, %v439
  %v504 = vpack.c.bf16 %v440, %v440
  %v505 = vpack.c.bf16 %v441, %v441
  %v506 = vpack.c.bf16 %v442, %v442
  %v507 = vpack.c.bf16 %v443, %v443
  %v508 = vpack.c.bf16 %v444, %v444
  %v509 = vpack.c.bf16 %v445, %v445
  %v510 = vpack.c.bf16 %v446, %v446
  %v511 = vpack.c.bf16 %v447, %v447
  %v512 = vpack.c.bf16 %v448, %v448
  %v513 = vpack.c.bf16 %v449, %v449
  %v514 = vpack.c.bf16 %v450, %v450
  %v515 = vpack.c.bf16 %v451, %v451
  %v516 = vpack.c.bf16 %v452, %v452
  %v517 = vpack.c.bf16 %v453, %v453
  %v518 = vpack.c.bf16 %v454, %v454
  %v519 = vpack.c.bf16 %v455, %v455
  %v520 = vpack.c.bf16 %v456, %v456
  %v521 = vpack.c.bf16 %v457, %v457
  %v522 = vpack.c.bf16 %v458, %v458
  %v523 = vpack.c.bf16 %v459, %v459
  %v524 = vpack.c.bf16 %v460, %v460
  %v525 = vpack.c.bf16 %v461, %v461
  %v526 = vpack.c.bf16 %v462, %v462
  %v527 = vpack.c.bf16 %v463, %v463
  %v528 = vpack.c.bf16 %v464, %v464
  %v529 = vpack.c.bf16 %v465, %v465
  %v530 = vpack.c.bf16 %v466, %v466
  %v531 = vpack.c.bf16 %v467, %v467
  %v532 = vpack.c.bf16 %v468, %v468
  %v533 = vpack.c.bf16 %v469, %v469
  %vm534 = vcmask 257024
  %535 = vst.msk [vmem:[%s3] sm:$0xf] %vm534, %v470
  %536 = vst.msk [vmem:[%s3 + $0x4] sm:$0xf] %vm534, %v471
  %537 = vst.msk [vmem:[%s3 + $0x8] sm:$0xf] %vm534, %v472
  %538 = vst.msk [vmem:[%s3 + $0xc] sm:$0xf] %vm534, %v473
  %539 = vst.msk [vmem:[%s3 + $0x10] sm:$0xf] %vm534, %v474
  %540 = vst.msk [vmem:[%s3 + $0x14] sm:$0xf] %vm534, %v475
  %541 = vst.msk [vmem:[%s3 + $0x18] sm:$0xf] %vm534, %v476
  %542 = vst.msk [vmem:[%s3 + $0x1c] sm:$0xf] %vm534, %v477
  %543 = vst.msk [vmem:[%s3 + $0x20] sm:$0xf] %vm534, %v478
  %544 = vst.msk [vmem:[%s3 + $0x24] sm:$0xf] %vm534, %v479
  %545 = vst.msk [vmem:[%s3 + $0x28] sm:$0xf] %vm534, %v480
  %546 = vst.msk [vmem:[%s3 + $0x2c] sm:$0xf] %vm534, %v481
  %547 = vst.msk [vmem:[%s3 + $0x30] sm:$0xf] %vm534, %v482
  %548 = vst.msk [vmem:[%s3 + $0x34] sm:$0xf] %vm534, %v483
  %549 = vst.msk [vmem:[%s3 + $0x38] sm:$0xf] %vm534, %v484
  %550 = vst.msk [vmem:[%s3 + $0x3c] sm:$0xf] %vm534, %v485
  %551 = vst.msk [vmem:[%s3 + $0x40] sm:$0xf] %vm534, %v486
  %552 = vst.msk [vmem:[%s3 + $0x44] sm:$0xf] %vm534, %v487
  %553 = vst.msk [vmem:[%s3 + $0x48] sm:$0xf] %vm534, %v488
  %554 = vst.msk [vmem:[%s3 + $0x4c] sm:$0xf] %vm534, %v489
  %555 = vst.msk [vmem:[%s3 + $0x50] sm:$0xf] %vm534, %v490
  %556 = vst.msk [vmem:[%s3 + $0x54] sm:$0xf] %vm534, %v491
  %557 = vst.msk [vmem:[%s3 + $0x58] sm:$0xf] %vm534, %v492
  %558 = vst.msk [vmem:[%s3 + $0x5c] sm:$0xf] %vm534, %v493
  %559 = vst.msk [vmem:[%s3 + $0x60] sm:$0xf] %vm534, %v494
  %560 = vst.msk [vmem:[%s3 + $0x64] sm:$0xf] %vm534, %v495
  %561 = vst.msk [vmem:[%s3 + $0x68] sm:$0xf] %vm534, %v496
  %562 = vst.msk [vmem:[%s3 + $0x6c] sm:$0xf] %vm534, %v497
  %563 = vst.msk [vmem:[%s3 + $0x70] sm:$0xf] %vm534, %v498
  %564 = vst.msk [vmem:[%s3 + $0x74] sm:$0xf] %vm534, %v499
  %565 = vst.msk [vmem:[%s3 + $0x78] sm:$0xf] %vm534, %v500
  %566 = vst.msk [vmem:[%s3 + $0x7c] sm:$0xf] %vm534, %v501
  %567 = vst.msk [vmem:[%s3 + $0x80] sm:$0xf] %vm534, %v502
  %568 = vst.msk [vmem:[%s3 + $0x84] sm:$0xf] %vm534, %v503
  %569 = vst.msk [vmem:[%s3 + $0x88] sm:$0xf] %vm534, %v504
  %570 = vst.msk [vmem:[%s3 + $0x8c] sm:$0xf] %vm534, %v505
  %571 = vst.msk [vmem:[%s3 + $0x90] sm:$0xf] %vm534, %v506
  %572 = vst.msk [vmem:[%s3 + $0x94] sm:$0xf] %vm534, %v507
  %573 = vst.msk [vmem:[%s3 + $0x98] sm:$0xf] %vm534, %v508
  %574 = vst.msk [vmem:[%s3 + $0x9c] sm:$0xf] %vm534, %v509
  %575 = vst.msk [vmem:[%s3 + $0xa0] sm:$0xf] %vm534, %v510
  %576 = vst.msk [vmem:[%s3 + $0xa4] sm:$0xf] %vm534, %v511
  %577 = vst.msk [vmem:[%s3 + $0xa8] sm:$0xf] %vm534, %v512
  %578 = vst.msk [vmem:[%s3 + $0xac] sm:$0xf] %vm534, %v513
  %579 = vst.msk [vmem:[%s3 + $0xb0] sm:$0xf] %vm534, %v514
  %580 = vst.msk [vmem:[%s3 + $0xb4] sm:$0xf] %vm534, %v515
  %581 = vst.msk [vmem:[%s3 + $0xb8] sm:$0xf] %vm534, %v516
  %582 = vst.msk [vmem:[%s3 + $0xbc] sm:$0xf] %vm534, %v517
  %583 = vst.msk [vmem:[%s3 + $0xc0] sm:$0xf] %vm534, %v518
  %584 = vst.msk [vmem:[%s3 + $0xc4] sm:$0xf] %vm534, %v519
  %585 = vst.msk [vmem:[%s3 + $0xc8] sm:$0xf] %vm534, %v520
  %586 = vst.msk [vmem:[%s3 + $0xcc] sm:$0xf] %vm534, %v521
  %587 = vst.msk [vmem:[%s3 + $0xd0] sm:$0xf] %vm534, %v522
  %588 = vst.msk [vmem:[%s3 + $0xd4] sm:$0xf] %vm534, %v523
  %589 = vst.msk [vmem:[%s3 + $0xd8] sm:$0xf] %vm534, %v524
  %590 = vst.msk [vmem:[%s3 + $0xdc] sm:$0xf] %vm534, %v525
  %591 = vst.msk [vmem:[%s3 + $0xe0] sm:$0xf] %vm534, %v526
  %592 = vst.msk [vmem:[%s3 + $0xe4] sm:$0xf] %vm534, %v527
  %593 = vst.msk [vmem:[%s3 + $0xe8] sm:$0xf] %vm534, %v528
  %594 = vst.msk [vmem:[%s3 + $0xec] sm:$0xf] %vm534, %v529
  %595 = vst.msk [vmem:[%s3 + $0xf0] sm:$0xf] %vm534, %v530
  %596 = vst.msk [vmem:[%s3 + $0xf4] sm:$0xf] %vm534, %v531
  %597 = vst.msk [vmem:[%s3 + $0xf8] sm:$0xf] %vm534, %v532
  %598 = vst.msk [vmem:[%s3 + $0xfc] sm:$0xf] %vm534, %v533
  // Predicated region
  $region14: #{discriminator_forward.10} parent=0 // pred_check
    _
  $region15: #{discriminator_forward.10} parent=0 // pred_check_branch
    %600 = sbr.rel (0) target = $region17
  $region16: #{discriminator_forward.10} parent=0 // pred_region
    _
  $region17: #{discriminator_forward.10} parent=0 // pred_fallthru
    _
  // Predicated region
  $region18: #{discriminator_forward.10} parent=0 // pred_check
    _
  $region19: #{discriminator_forward.10} parent=0 // pred_check_branch
    %602 = sbr.rel (0) target = $region21
  $region20: #{discriminator_forward.10} parent=0 // pred_region
    _
  $region21: #{discriminator_forward.10} parent=0 // pred_fallthru
    _

// kernel: discriminator_forward.11
$region0: #{discriminator_forward.11}
  #allocation0 [shape = 'u32[]', space=smem, size = 0x4, offset = 0x4, fixed_abs, tag = 'smem constant byte address 0x4 - core index']
  #allocation1 [shape = 'u32[72,128]{1,0:T(1,128)}', space=vmem, size = 0x9000, scoped, tag = 'internal scratch']
  #allocation2 [shape = 'f32[128,64]{1,0:T(8,128)}', space=vmem, size = 0x10000, scoped, tag = 'scratch operand']
  %s0 = inlined_call_operand.vmem [shape: bf16[128,512], index: 0, kind: input, shape index: {}]
  %s1 = inlined_call_operand.vmem [shape: bf16[512,64], index: 1, kind: input, shape index: {}]
  %s2 = inlined_call_operand.vmem [shape: bf16[128,64], index: 2, kind: output, shape index: {0}]
  %s3 = inlined_call_operand.vmem [shape: f32[1,2,64], index: 3, kind: output, shape index: {1}]
  %4 = xla_tuple %s2, %s3
  %s5 = sld [smem:[#allocation0]]
  $region34: #{discriminator_forward.11} parent=0
    _
  %s7 = ssub.s32 1, %s5
  %s8 = scalar_select 0, %s7, %s5
  // Predicated region
  $region2: #{discriminator_forward.11} parent=0 // pred_check
    _
  $region3: #{discriminator_forward.11} parent=0 // pred_check_branch
    %10 = sbr.rel (0) target = $region5
  $region4: #{discriminator_forward.11} parent=0 // pred_region
    _
  $region5: #{discriminator_forward.11} parent=0 // pred_fallthru
    _
  // Predicated region
  $region6: #{discriminator_forward.11} parent=0 // pred_check
    _
  $region7: #{discriminator_forward.11} parent=0 // pred_check_branch
    %12 = sbr.rel (0) target = $region9
  $region8: #{discriminator_forward.11} parent=0 // pred_region
    _
  $region9: #{discriminator_forward.11} parent=0 // pred_fallthru
    _
  %p13 = scmp.eq.s32.totalorder 0, 0
  // Predicated region
  $region10: #{discriminator_forward.11} parent=0 // pred_check
    %p14 = pneg %p13
  $region11: #{discriminator_forward.11} parent=0 // pred_check_branch
    %16 = sbr.rel (%p14) target = $region13
  $region12: #{discriminator_forward.11} parent=0 // pred_region
    %vm17 = vcmask 523264
    %18 = vst.msk [vmem:[#allocation2] sm:$0xff] %vm17, 0.0
    %19 = vst.msk [vmem:[#allocation2 + $0x8] sm:$0xff] %vm17, 0.0
    %20 = vst.msk [vmem:[#allocation2 + $0x10] sm:$0xff] %vm17, 0.0
    %21 = vst.msk [vmem:[#allocation2 + $0x18] sm:$0xff] %vm17, 0.0
    %22 = vst.msk [vmem:[#allocation2 + $0x20] sm:$0xff] %vm17, 0.0
    %23 = vst.msk [vmem:[#allocation2 + $0x28] sm:$0xff] %vm17, 0.0
    %24 = vst.msk [vmem:[#allocation2 + $0x30] sm:$0xff] %vm17, 0.0
    %25 = vst.msk [vmem:[#allocation2 + $0x38] sm:$0xff] %vm17, 0.0
    %26 = vst.msk [vmem:[#allocation2 + $0x40] sm:$0xff] %vm17, 0.0
    %27 = vst.msk [vmem:[#allocation2 + $0x48] sm:$0xff] %vm17, 0.0
    %28 = vst.msk [vmem:[#allocation2 + $0x50] sm:$0xff] %vm17, 0.0
    %29 = vst.msk [vmem:[#allocation2 + $0x58] sm:$0xff] %vm17, 0.0
    %30 = vst.msk [vmem:[#allocation2 + $0x60] sm:$0xff] %vm17, 0.0
    %31 = vst.msk [vmem:[#allocation2 + $0x68] sm:$0xff] %vm17, 0.0
    %32 = vst.msk [vmem:[#allocation2 + $0x70] sm:$0xff] %vm17, 0.0
    %33 = vst.msk [vmem:[#allocation2 + $0x78] sm:$0xff] %vm17, 0.0
  $region13: #{discriminator_forward.11} parent=0 // pred_fallthru
    _
  %v34 = vld [vmem:[#allocation2] sm:$0xff]
  %v35 = vld [vmem:[#allocation2 + $0x8] sm:$0xff]
  %v36 = vld [vmem:[#allocation2 + $0x10] sm:$0xff]
  %v37 = vld [vmem:[#allocation2 + $0x18] sm:$0xff]
  %v38 = vld [vmem:[#allocation2 + $0x20] sm:$0xff]
  %v39 = vld [vmem:[#allocation2 + $0x28] sm:$0xff]
  %v40 = vld [vmem:[#allocation2 + $0x30] sm:$0xff]
  %v41 = vld [vmem:[#allocation2 + $0x38] sm:$0xff]
  %v42 = vld [vmem:[#allocation2 + $0x40] sm:$0xff]
  %v43 = vld [vmem:[#allocation2 + $0x48] sm:$0xff]
  %v44 = vld [vmem:[#allocation2 + $0x50] sm:$0xff]
  %v45 = vld [vmem:[#allocation2 + $0x58] sm:$0xff]
  %v46 = vld [vmem:[#allocation2 + $0x60] sm:$0xff]
  %v47 = vld [vmem:[#allocation2 + $0x68] sm:$0xff]
  %v48 = vld [vmem:[#allocation2 + $0x70] sm:$0xff]
  %v49 = vld [vmem:[#allocation2 + $0x78] sm:$0xff]
  %v50 = vld [vmem:[%s0] sm:$0xff]
  %v51 = vld [vmem:[%s0 + $0x8] sm:$0xff]
  %v52 = vld [vmem:[%s0 + $0x10] sm:$0xff]
  %v53 = vld [vmem:[%s0 + $0x18] sm:$0xff]
  %v54 = vld [vmem:[%s0 + $0x20] sm:$0xff]
  %v55 = vld [vmem:[%s0 + $0x28] sm:$0xff]
  %v56 = vld [vmem:[%s0 + $0x30] sm:$0xff]
  %v57 = vld [vmem:[%s0 + $0x38] sm:$0xff]
  %v58 = vld [vmem:[%s0 + $0x40] sm:$0xff]
  %v59 = vld [vmem:[%s0 + $0x48] sm:$0xff]
  %v60 = vld [vmem:[%s0 + $0x50] sm:$0xff]
  %v61 = vld [vmem:[%s0 + $0x58] sm:$0xff]
  %v62 = vld [vmem:[%s0 + $0x60] sm:$0xff]
  %v63 = vld [vmem:[%s0 + $0x68] sm:$0xff]
  %v64 = vld [vmem:[%s0 + $0x70] sm:$0xff]
  %v65 = vld [vmem:[%s0 + $0x78] sm:$0xff]
  %v66 = vld [vmem:[%s0 + $0x80] sm:$0xff]
  %v67 = vld [vmem:[%s0 + $0x88] sm:$0xff]
  %v68 = vld [vmem:[%s0 + $0x90] sm:$0xff]
  %v69 = vld [vmem:[%s0 + $0x98] sm:$0xff]
  %v70 = vld [vmem:[%s0 + $0xa0] sm:$0xff]
  %v71 = vld [vmem:[%s0 + $0xa8] sm:$0xff]
  %v72 = vld [vmem:[%s0 + $0xb0] sm:$0xff]
  %v73 = vld [vmem:[%s0 + $0xb8] sm:$0xff]
  %v74 = vld [vmem:[%s0 + $0xc0] sm:$0xff]
  %v75 = vld [vmem:[%s0 + $0xc8] sm:$0xff]
  %v76 = vld [vmem:[%s0 + $0xd0] sm:$0xff]
  %v77 = vld [vmem:[%s0 + $0xd8] sm:$0xff]
  %v78 = vld [vmem:[%s0 + $0xe0] sm:$0xff]
  %v79 = vld [vmem:[%s0 + $0xe8] sm:$0xff]
  %v80 = vld [vmem:[%s0 + $0xf0] sm:$0xff]
  %v81 = vld [vmem:[%s0 + $0xf8] sm:$0xff]
  %v82 = vld [vmem:[%s1] sm:$0xf]
  %v83 = vld [vmem:[%s1 + $0x4] sm:$0xf]
  %v84 = vld [vmem:[%s1 + $0x8] sm:$0xf]
  %v85 = vld [vmem:[%s1 + $0xc] sm:$0xf]
  %v86 = vld [vmem:[%s1 + $0x10] sm:$0xf]
  %v87 = vld [vmem:[%s1 + $0x14] sm:$0xf]
  %v88 = vld [vmem:[%s1 + $0x18] sm:$0xf]
  %v89 = vld [vmem:[%s1 + $0x1c] sm:$0xf]
  %v90 = vld [vmem:[%s1 + $0x20] sm:$0xf]
  %v91 = vld [vmem:[%s1 + $0x24] sm:$0xf]
  %v92 = vld [vmem:[%s1 + $0x28] sm:$0xf]
  %v93 = vld [vmem:[%s1 + $0x2c] sm:$0xf]
  %v94 = vld [vmem:[%s1 + $0x30] sm:$0xf]
  %v95 = vld [vmem:[%s1 + $0x34] sm:$0xf]
  %v96 = vld [vmem:[%s1 + $0x38] sm:$0xf]
  %v97 = vld [vmem:[%s1 + $0x3c] sm:$0xf]
  %v98 = vld [vmem:[%s1 + $0x40] sm:$0xf]
  %v99 = vld [vmem:[%s1 + $0x44] sm:$0xf]
  %v100 = vld [vmem:[%s1 + $0x48] sm:$0xf]
  %v101 = vld [vmem:[%s1 + $0x4c] sm:$0xf]
  %v102 = vld [vmem:[%s1 + $0x50] sm:$0xf]
  %v103 = vld [vmem:[%s1 + $0x54] sm:$0xf]
  %v104 = vld [vmem:[%s1 + $0x58] sm:$0xf]
  %v105 = vld [vmem:[%s1 + $0x5c] sm:$0xf]
  %v106 = vld [vmem:[%s1 + $0x60] sm:$0xf]
  %v107 = vld [vmem:[%s1 + $0x64] sm:$0xf]
  %v108 = vld [vmem:[%s1 + $0x68] sm:$0xf]
  %v109 = vld [vmem:[%s1 + $0x6c] sm:$0xf]
  %v110 = vld [vmem:[%s1 + $0x70] sm:$0xf]
  %v111 = vld [vmem:[%s1 + $0x74] sm:$0xf]
  %v112 = vld [vmem:[%s1 + $0x78] sm:$0xf]
  %v113 = vld [vmem:[%s1 + $0x7c] sm:$0xf]
  %v114 = vld [vmem:[%s1 + $0x80] sm:$0xf]
  %v115 = vld [vmem:[%s1 + $0x84] sm:$0xf]
  %v116 = vld [vmem:[%s1 + $0x88] sm:$0xf]
  %v117 = vld [vmem:[%s1 + $0x8c] sm:$0xf]
  %v118 = vld [vmem:[%s1 + $0x90] sm:$0xf]
  %v119 = vld [vmem:[%s1 + $0x94] sm:$0xf]
  %v120 = vld [vmem:[%s1 + $0x98] sm:$0xf]
  %v121 = vld [vmem:[%s1 + $0x9c] sm:$0xf]
  %v122 = vld [vmem:[%s1 + $0xa0] sm:$0xf]
  %v123 = vld [vmem:[%s1 + $0xa4] sm:$0xf]
  %v124 = vld [vmem:[%s1 + $0xa8] sm:$0xf]
  %v125 = vld [vmem:[%s1 + $0xac] sm:$0xf]
  %v126 = vld [vmem:[%s1 + $0xb0] sm:$0xf]
  %v127 = vld [vmem:[%s1 + $0xb4] sm:$0xf]
  %v128 = vld [vmem:[%s1 + $0xb8] sm:$0xf]
  %v129 = vld [vmem:[%s1 + $0xbc] sm:$0xf]
  %v130 = vld [vmem:[%s1 + $0xc0] sm:$0xf]
  %v131 = vld [vmem:[%s1 + $0xc4] sm:$0xf]
  %v132 = vld [vmem:[%s1 + $0xc8] sm:$0xf]
  %v133 = vld [vmem:[%s1 + $0xcc] sm:$0xf]
  %v134 = vld [vmem:[%s1 + $0xd0] sm:$0xf]
  %v135 = vld [vmem:[%s1 + $0xd4] sm:$0xf]
  %v136 = vld [vmem:[%s1 + $0xd8] sm:$0xf]
  %v137 = vld [vmem:[%s1 + $0xdc] sm:$0xf]
  %v138 = vld [vmem:[%s1 + $0xe0] sm:$0xf]
  %v139 = vld [vmem:[%s1 + $0xe4] sm:$0xf]
  %v140 = vld [vmem:[%s1 + $0xe8] sm:$0xf]
  %v141 = vld [vmem:[%s1 + $0xec] sm:$0xf]
  %v142 = vld [vmem:[%s1 + $0xf0] sm:$0xf]
  %v143 = vld [vmem:[%s1 + $0xf4] sm:$0xf]
  %v144 = vld [vmem:[%s1 + $0xf8] sm:$0xf]
  %v145 = vld [vmem:[%s1 + $0xfc] sm:$0xf]
  %v178 = vunpack.c.l.b16 %v50
  %v179 = vunpack.c.h.b16 %v50
  %v180 = vunpack.c.l.b16 %v51
  %v181 = vunpack.c.h.b16 %v51
  %v182 = vunpack.c.l.b16 %v52
  %v183 = vunpack.c.h.b16 %v52
  %v184 = vunpack.c.l.b16 %v53
  %v185 = vunpack.c.h.b16 %v53
  %v186 = vunpack.c.l.b16 %v54
  %v187 = vunpack.c.h.b16 %v54
  %v188 = vunpack.c.l.b16 %v55
  %v189 = vunpack.c.h.b16 %v55
  %v190 = vunpack.c.l.b16 %v56
  %v191 = vunpack.c.h.b16 %v56
  %v192 = vunpack.c.l.b16 %v57
  %v193 = vunpack.c.h.b16 %v57
  %v194 = vunpack.c.l.b16 %v58
  %v195 = vunpack.c.h.b16 %v58
  %v196 = vunpack.c.l.b16 %v59
  %v197 = vunpack.c.h.b16 %v59
  %v198 = vunpack.c.l.b16 %v60
  %v199 = vunpack.c.h.b16 %v60
  %v200 = vunpack.c.l.b16 %v61
  %v201 = vunpack.c.h.b16 %v61
  %v202 = vunpack.c.l.b16 %v62
  %v203 = vunpack.c.h.b16 %v62
  %v204 = vunpack.c.l.b16 %v63
  %v205 = vunpack.c.h.b16 %v63
  %v206 = vunpack.c.l.b16 %v64
  %v207 = vunpack.c.h.b16 %v64
  %v208 = vunpack.c.l.b16 %v65
  %v209 = vunpack.c.h.b16 %v65
  %v210 = vunpack.c.l.b16 %v66
  %v211 = vunpack.c.h.b16 %v66
  %v212 = vunpack.c.l.b16 %v67
  %v213 = vunpack.c.h.b16 %v67
  %v214 = vunpack.c.l.b16 %v68
  %v215 = vunpack.c.h.b16 %v68
  %v216 = vunpack.c.l.b16 %v69
  %v217 = vunpack.c.h.b16 %v69
  %v218 = vunpack.c.l.b16 %v70
  %v219 = vunpack.c.h.b16 %v70
  %v220 = vunpack.c.l.b16 %v71
  %v221 = vunpack.c.h.b16 %v71
  %v222 = vunpack.c.l.b16 %v72
  %v223 = vunpack.c.h.b16 %v72
  %v224 = vunpack.c.l.b16 %v73
  %v225 = vunpack.c.h.b16 %v73
  %v226 = vunpack.c.l.b16 %v74
  %v227 = vunpack.c.h.b16 %v74
  %v228 = vunpack.c.l.b16 %v75
  %v229 = vunpack.c.h.b16 %v75
  %v230 = vunpack.c.l.b16 %v76
  %v231 = vunpack.c.h.b16 %v76
  %v232 = vunpack.c.l.b16 %v77
  %v233 = vunpack.c.h.b16 %v77
  %v234 = vunpack.c.l.b16 %v78
  %v235 = vunpack.c.h.b16 %v78
  %v236 = vunpack.c.l.b16 %v79
  %v237 = vunpack.c.h.b16 %v79
  %v238 = vunpack.c.l.b16 %v80
  %v239 = vunpack.c.h.b16 %v80
  %v240 = vunpack.c.l.b16 %v81
  %v241 = vunpack.c.h.b16 %v81
  %v242 = vpack.c.b16 %v182, %v178
  %v243 = vpack.c.b16 %v183, %v179
  %v244 = vpack.c.b16 %v184, %v180
  %v245 = vpack.c.b16 %v185, %v181
  %v246 = vpack.c.b16 %v190, %v186
  %v247 = vpack.c.b16 %v191, %v187
  %v248 = vpack.c.b16 %v192, %v188
  %v249 = vpack.c.b16 %v193, %v189
  %v250 = vpack.c.b16 %v198, %v194
  %v251 = vpack.c.b16 %v199, %v195
  %v252 = vpack.c.b16 %v200, %v196
  %v253 = vpack.c.b16 %v201, %v197
  %v254 = vpack.c.b16 %v206, %v202
  %v255 = vpack.c.b16 %v207, %v203
  %v256 = vpack.c.b16 %v208, %v204
  %v257 = vpack.c.b16 %v209, %v205
  %v258 = vpack.c.b16 %v214, %v210
  %v259 = vpack.c.b16 %v215, %v211
  %v260 = vpack.c.b16 %v216, %v212
  %v261 = vpack.c.b16 %v217, %v213
  %v262 = vpack.c.b16 %v222, %v218
  %v263 = vpack.c.b16 %v223, %v219
  %v264 = vpack.c.b16 %v224, %v220
  %v265 = vpack.c.b16 %v225, %v221
  %v266 = vpack.c.b16 %v230, %v226
  %v267 = vpack.c.b16 %v231, %v227
  %v268 = vpack.c.b16 %v232, %v228
  %v269 = vpack.c.b16 %v233, %v229
  %v270 = vpack.c.b16 %v238, %v234
  %v271 = vpack.c.b16 %v239, %v235
  %v272 = vpack.c.b16 %v240, %v236
  %v273 = vpack.c.b16 %v241, %v237
  %v370 = vunpack.c.l.b16 %v82
  %v371 = vunpack.c.l.b16 %v83
  %v372 = vunpack.c.l.b16 %v84
  %v373 = vunpack.c.l.b16 %v85
  %v374 = vunpack.c.l.b16 %v86
  %v375 = vunpack.c.l.b16 %v87
  %v376 = vunpack.c.l.b16 %v88
  %v377 = vunpack.c.l.b16 %v89
  %v378 = vunpack.c.l.b16 %v90
  %v379 = vunpack.c.l.b16 %v91
  %v380 = vunpack.c.l.b16 %v92
  %v381 = vunpack.c.l.b16 %v93
  %v382 = vunpack.c.l.b16 %v94
  %v383 = vunpack.c.l.b16 %v95
  %v384 = vunpack.c.l.b16 %v96
  %v385 = vunpack.c.l.b16 %v97
  %v386 = vunpack.c.l.b16 %v98
  %v387 = vunpack.c.l.b16 %v99
  %v388 = vunpack.c.l.b16 %v100
  %v389 = vunpack.c.l.b16 %v101
  %v390 = vunpack.c.l.b16 %v102
  %v391 = vunpack.c.l.b16 %v103
  %v392 = vunpack.c.l.b16 %v104
  %v393 = vunpack.c.l.b16 %v105
  %v394 = vunpack.c.l.b16 %v106
  %v395 = vunpack.c.l.b16 %v107
  %v396 = vunpack.c.l.b16 %v108
  %v397 = vunpack.c.l.b16 %v109
  %v398 = vunpack.c.l.b16 %v110
  %v399 = vunpack.c.l.b16 %v111
  %v400 = vunpack.c.l.b16 %v112
  %v401 = vunpack.c.l.b16 %v113
  %v402 = vunpack.c.l.b16 %v114
  %v403 = vunpack.c.l.b16 %v115
  %v404 = vunpack.c.l.b16 %v116
  %v405 = vunpack.c.l.b16 %v117
  %v406 = vunpack.c.l.b16 %v118
  %v407 = vunpack.c.l.b16 %v119
  %v408 = vunpack.c.l.b16 %v120
  %v409 = vunpack.c.l.b16 %v121
  %v410 = vunpack.c.l.b16 %v122
  %v411 = vunpack.c.l.b16 %v123
  %v412 = vunpack.c.l.b16 %v124
  %v413 = vunpack.c.l.b16 %v125
  %v414 = vunpack.c.l.b16 %v126
  %v415 = vunpack.c.l.b16 %v127
  %v416 = vunpack.c.l.b16 %v128
  %v417 = vunpack.c.l.b16 %v129
  %v418 = vunpack.c.l.b16 %v130
  %v419 = vunpack.c.l.b16 %v131
  %v420 = vunpack.c.l.b16 %v132
  %v421 = vunpack.c.l.b16 %v133
  %v422 = vunpack.c.l.b16 %v134
  %v423 = vunpack.c.l.b16 %v135
  %v424 = vunpack.c.l.b16 %v136
  %v425 = vunpack.c.l.b16 %v137
  %v426 = vunpack.c.l.b16 %v138
  %v427 = vunpack.c.l.b16 %v139
  %v428 = vunpack.c.l.b16 %v140
  %v429 = vunpack.c.l.b16 %v141
  %v430 = vunpack.c.l.b16 %v142
  %v431 = vunpack.c.l.b16 %v143
  %v432 = vunpack.c.l.b16 %v144
  %v433 = vunpack.c.l.b16 %v145
  %v434 = vpack.c.b16 %v371, %v370
  %v435 = vpack.c.b16 %v373, %v372
  %v436 = vpack.c.b16 %v375, %v374
  %v437 = vpack.c.b16 %v377, %v376
  %v438 = vpack.c.b16 %v379, %v378
  %v439 = vpack.c.b16 %v381, %v380
  %v440 = vpack.c.b16 %v383, %v382
  %v441 = vpack.c.b16 %v385, %v384
  %v442 = vpack.c.b16 %v387, %v386
  %v443 = vpack.c.b16 %v389, %v388
  %v444 = vpack.c.b16 %v391, %v390
  %v445 = vpack.c.b16 %v393, %v392
  %v446 = vpack.c.b16 %v395, %v394
  %v447 = vpack.c.b16 %v397, %v396
  %v448 = vpack.c.b16 %v399, %v398
  %v449 = vpack.c.b16 %v401, %v400
  %v450 = vpack.c.b16 %v403, %v402
  %v451 = vpack.c.b16 %v405, %v404
  %v452 = vpack.c.b16 %v407, %v406
  %v453 = vpack.c.b16 %v409, %v408
  %v454 = vpack.c.b16 %v411, %v410
  %v455 = vpack.c.b16 %v413, %v412
  %v456 = vpack.c.b16 %v415, %v414
  %v457 = vpack.c.b16 %v417, %v416
  %v458 = vpack.c.b16 %v419, %v418
  %v459 = vpack.c.b16 %v421, %v420
  %v460 = vpack.c.b16 %v423, %v422
  %v461 = vpack.c.b16 %v425, %v424
  %v462 = vpack.c.b16 %v427, %v426
  %v463 = vpack.c.b16 %v429, %v428
  %v464 = vpack.c.b16 %v431, %v430
  %v465 = vpack.c.b16 %v433, %v432
  %498 = vmatpush.bf16.msra.mxu0 %v441
  %499 = vmatpush.bf16.msra.mxu0 %v440
  %500 = vmatpush.bf16.msra.mxu0 %v439
  %501 = vmatpush.bf16.msra.mxu0 %v438
  %502 = vmatpush.bf16.msra.mxu0 %v437
  %503 = vmatpush.bf16.msra.mxu0 %v436
  %504 = vmatpush.bf16.msra.mxu0 %v435
  %505 = vmatpush.bf16.msra.mxu0 %v434
  %506 = vmatmul.bf16.gmra.mxu0 %v242
  %v507 = vpop.f32.mrf.mxu0
  %v508 = vadd.f32 0.0, %v507
  %v509 = vpop.f32.mrf.mxu0
  %v510 = vadd.f32 0.0, %v509
  %511 = vmatmul.bf16.gmra.mxu0 %v246
  %v512 = vpop.f32.mrf.mxu0
  %v513 = vadd.f32 0.0, %v512
  %v514 = vpop.f32.mrf.mxu0
  %v515 = vadd.f32 0.0, %v514
  %516 = vmatmul.bf16.gmra.mxu0 %v250
  %v517 = vpop.f32.mrf.mxu0
  %v518 = vadd.f32 0.0, %v517
  %v519 = vpop.f32.mrf.mxu0
  %v520 = vadd.f32 0.0, %v519
  %521 = vmatmul.bf16.gmra.mxu0 %v254
  %v522 = vpop.f32.mrf.mxu0
  %v523 = vadd.f32 0.0, %v522
  %v524 = vpop.f32.mrf.mxu0
  %v525 = vadd.f32 0.0, %v524
  %526 = vmatmul.bf16.gmra.mxu0 %v258
  %v527 = vpop.f32.mrf.mxu0
  %v528 = vadd.f32 0.0, %v527
  %v529 = vpop.f32.mrf.mxu0
  %v530 = vadd.f32 0.0, %v529
  %531 = vmatmul.bf16.gmra.mxu0 %v262
  %v532 = vpop.f32.mrf.mxu0
  %v533 = vadd.f32 0.0, %v532
  %v534 = vpop.f32.mrf.mxu0
  %v535 = vadd.f32 0.0, %v534
  %536 = vmatmul.bf16.gmra.mxu0 %v266
  %v537 = vpop.f32.mrf.mxu0
  %v538 = vadd.f32 0.0, %v537
  %v539 = vpop.f32.mrf.mxu0
  %v540 = vadd.f32 0.0, %v539
  %541 = vmatmul.bf16.gmra.mxu0 %v270
  %v542 = vpop.f32.mrf.mxu0
  %v543 = vadd.f32 0.0, %v542
  %v544 = vpop.f32.mrf.mxu0
  %v545 = vadd.f32 0.0, %v544
  %546 = vdwg.mxu0
  %547 = vmatpush.bf16.msra.mxu0 %v449
  %548 = vmatpush.bf16.msra.mxu0 %v448
  %549 = vmatpush.bf16.msra.mxu0 %v447
  %550 = vmatpush.bf16.msra.mxu0 %v446
  %551 = vmatpush.bf16.msra.mxu0 %v445
  %552 = vmatpush.bf16.msra.mxu0 %v444
  %553 = vmatpush.bf16.msra.mxu0 %v443
  %554 = vmatpush.bf16.msra.mxu0 %v442
  %555 = vmatmul.bf16.gmra.mxu0 %v243
  %v556 = vpop.f32.mrf.mxu0
  %v557 = vadd.f32 %v508, %v556
  %v558 = vpop.f32.mrf.mxu0
  %v559 = vadd.f32 %v510, %v558
  %560 = vmatmul.bf16.gmra.mxu0 %v247
  %v561 = vpop.f32.mrf.mxu0
  %v562 = vadd.f32 %v513, %v561
  %v563 = vpop.f32.mrf.mxu0
  %v564 = vadd.f32 %v515, %v563
  %565 = vmatmul.bf16.gmra.mxu0 %v251
  %v566 = vpop.f32.mrf.mxu0
  %v567 = vadd.f32 %v518, %v566
  %v568 = vpop.f32.mrf.mxu0
  %v569 = vadd.f32 %v520, %v568
  %570 = vmatmul.bf16.gmra.mxu0 %v255
  %v571 = vpop.f32.mrf.mxu0
  %v572 = vadd.f32 %v523, %v571
  %v573 = vpop.f32.mrf.mxu0
  %v574 = vadd.f32 %v525, %v573
  %575 = vmatmul.bf16.gmra.mxu0 %v259
  %v576 = vpop.f32.mrf.mxu0
  %v577 = vadd.f32 %v528, %v576
  %v578 = vpop.f32.mrf.mxu0
  %v579 = vadd.f32 %v530, %v578
  %580 = vmatmul.bf16.gmra.mxu0 %v263
  %v581 = vpop.f32.mrf.mxu0
  %v582 = vadd.f32 %v533, %v581
  %v583 = vpop.f32.mrf.mxu0
  %v584 = vadd.f32 %v535, %v583
  %585 = vmatmul.bf16.gmra.mxu0 %v267
  %v586 = vpop.f32.mrf.mxu0
  %v587 = vadd.f32 %v538, %v586
  %v588 = vpop.f32.mrf.mxu0
  %v589 = vadd.f32 %v540, %v588
  %590 = vmatmul.bf16.gmra.mxu0 %v271
  %v591 = vpop.f32.mrf.mxu0
  %v592 = vadd.f32 %v543, %v591
  %v593 = vpop.f32.mrf.mxu0
  %v594 = vadd.f32 %v545, %v593
  %595 = vdwg.mxu0
  %596 = vmatpush.bf16.msra.mxu0 %v457
  %597 = vmatpush.bf16.msra.mxu0 %v456
  %598 = vmatpush.bf16.msra.mxu0 %v455
  %599 = vmatpush.bf16.msra.mxu0 %v454
  %600 = vmatpush.bf16.msra.mxu0 %v453
  %601 = vmatpush.bf16.msra.mxu0 %v452
  %602 = vmatpush.bf16.msra.mxu0 %v451
  %603 = vmatpush.bf16.msra.mxu0 %v450
  %604 = vmatmul.bf16.gmra.mxu0 %v244
  %v605 = vpop.f32.mrf.mxu0
  %v606 = vadd.f32 %v557, %v605
  %v607 = vpop.f32.mrf.mxu0
  %v608 = vadd.f32 %v559, %v607
  %609 = vmatmul.bf16.gmra.mxu0 %v248
  %v610 = vpop.f32.mrf.mxu0
  %v611 = vadd.f32 %v562, %v610
  %v612 = vpop.f32.mrf.mxu0
  %v613 = vadd.f32 %v564, %v612
  %614 = vmatmul.bf16.gmra.mxu0 %v252
  %v615 = vpop.f32.mrf.mxu0
  %v616 = vadd.f32 %v567, %v615
  %v617 = vpop.f32.mrf.mxu0
  %v618 = vadd.f32 %v569, %v617
  %619 = vmatmul.bf16.gmra.mxu0 %v256
  %v620 = vpop.f32.mrf.mxu0
  %v621 = vadd.f32 %v572, %v620
  %v622 = vpop.f32.mrf.mxu0
  %v623 = vadd.f32 %v574, %v622
  %624 = vmatmul.bf16.gmra.mxu0 %v260
  %v625 = vpop.f32.mrf.mxu0
  %v626 = vadd.f32 %v577, %v625
  %v627 = vpop.f32.mrf.mxu0
  %v628 = vadd.f32 %v579, %v627
  %629 = vmatmul.bf16.gmra.mxu0 %v264
  %v630 = vpop.f32.mrf.mxu0
  %v631 = vadd.f32 %v582, %v630
  %v632 = vpop.f32.mrf.mxu0
  %v633 = vadd.f32 %v584, %v632
  %634 = vmatmul.bf16.gmra.mxu0 %v268
  %v635 = vpop.f32.mrf.mxu0
  %v636 = vadd.f32 %v587, %v635
  %v637 = vpop.f32.mrf.mxu0
  %v638 = vadd.f32 %v589, %v637
  %639 = vmatmul.bf16.gmra.mxu0 %v272
  %v640 = vpop.f32.mrf.mxu0
  %v641 = vadd.f32 %v592, %v640
  %v642 = vpop.f32.mrf.mxu0
  %v643 = vadd.f32 %v594, %v642
  %644 = vdwg.mxu0
  %645 = vmatpush.bf16.msra.mxu0 %v465
  %646 = vmatpush.bf16.msra.mxu0 %v464
  %647 = vmatpush.bf16.msra.mxu0 %v463
  %648 = vmatpush.bf16.msra.mxu0 %v462
  %649 = vmatpush.bf16.msra.mxu0 %v461
  %650 = vmatpush.bf16.msra.mxu0 %v460
  %651 = vmatpush.bf16.msra.mxu0 %v459
  %652 = vmatpush.bf16.msra.mxu0 %v458
  %653 = vmatmul.bf16.gmra.mxu0 %v245
  %v654 = vpop.f32.mrf.mxu0
  %v655 = vadd.f32 %v606, %v654
  %v656 = vpop.f32.mrf.mxu0
  %v657 = vadd.f32 %v608, %v656
  %658 = vmatmul.bf16.gmra.mxu0 %v249
  %v659 = vpop.f32.mrf.mxu0
  %v660 = vadd.f32 %v611, %v659
  %v661 = vpop.f32.mrf.mxu0
  %v662 = vadd.f32 %v613, %v661
  %663 = vmatmul.bf16.gmra.mxu0 %v253
  %v664 = vpop.f32.mrf.mxu0
  %v665 = vadd.f32 %v616, %v664
  %v666 = vpop.f32.mrf.mxu0
  %v667 = vadd.f32 %v618, %v666
  %668 = vmatmul.bf16.gmra.mxu0 %v257
  %v669 = vpop.f32.mrf.mxu0
  %v670 = vadd.f32 %v621, %v669
  %v671 = vpop.f32.mrf.mxu0
  %v672 = vadd.f32 %v623, %v671
  %673 = vmatmul.bf16.gmra.mxu0 %v261
  %v674 = vpop.f32.mrf.mxu0
  %v675 = vadd.f32 %v626, %v674
  %v676 = vpop.f32.mrf.mxu0
  %v677 = vadd.f32 %v628, %v676
  %678 = vmatmul.bf16.gmra.mxu0 %v265
  %v679 = vpop.f32.mrf.mxu0
  %v680 = vadd.f32 %v631, %v679
  %v681 = vpop.f32.mrf.mxu0
  %v682 = vadd.f32 %v633, %v681
  %683 = vmatmul.bf16.gmra.mxu0 %v269
  %v684 = vpop.f32.mrf.mxu0
  %v685 = vadd.f32 %v636, %v684
  %v686 = vpop.f32.mrf.mxu0
  %v687 = vadd.f32 %v638, %v686
  %688 = vmatmul.bf16.gmra.mxu0 %v273
  %v689 = vpop.f32.mrf.mxu0
  %v690 = vadd.f32 %v641, %v689
  %v691 = vpop.f32.mrf.mxu0
  %v692 = vadd.f32 %v643, %v691
  %693 = vdwg.mxu0
  %v694 = vadd.f32 %v34, %v655
  %v695 = vadd.f32 %v35, %v657
  %v696 = vadd.f32 %v36, %v660
  %v697 = vadd.f32 %v37, %v662
  %v698 = vadd.f32 %v38, %v665
  %v699 = vadd.f32 %v39, %v667
  %v700 = vadd.f32 %v40, %v670
  %v701 = vadd.f32 %v41, %v672
  %v702 = vadd.f32 %v42, %v675
  %v703 = vadd.f32 %v43, %v677
  %v704 = vadd.f32 %v44, %v680
  %v705 = vadd.f32 %v45, %v682
  %v706 = vadd.f32 %v46, %v685
  %v707 = vadd.f32 %v47, %v687
  %v708 = vadd.f32 %v48, %v690
  %v709 = vadd.f32 %v49, %v692
  %vm710 = vcmask 523264
  %711 = vst.msk [vmem:[#allocation2] sm:$0xff] %vm710, %v694
  %712 = vst.msk [vmem:[#allocation2 + $0x8] sm:$0xff] %vm710, %v695
  %713 = vst.msk [vmem:[#allocation2 + $0x10] sm:$0xff] %vm710, %v696
  %714 = vst.msk [vmem:[#allocation2 + $0x18] sm:$0xff] %vm710, %v697
  %715 = vst.msk [vmem:[#allocation2 + $0x20] sm:$0xff] %vm710, %v698
  %716 = vst.msk [vmem:[#allocation2 + $0x28] sm:$0xff] %vm710, %v699
  %717 = vst.msk [vmem:[#allocation2 + $0x30] sm:$0xff] %vm710, %v700
  %718 = vst.msk [vmem:[#allocation2 + $0x38] sm:$0xff] %vm710, %v701
  %719 = vst.msk [vmem:[#allocation2 + $0x40] sm:$0xff] %vm710, %v702
  %720 = vst.msk [vmem:[#allocation2 + $0x48] sm:$0xff] %vm710, %v703
  %721 = vst.msk [vmem:[#allocation2 + $0x50] sm:$0xff] %vm710, %v704
  %722 = vst.msk [vmem:[#allocation2 + $0x58] sm:$0xff] %vm710, %v705
  %723 = vst.msk [vmem:[#allocation2 + $0x60] sm:$0xff] %vm710, %v706
  %724 = vst.msk [vmem:[#allocation2 + $0x68] sm:$0xff] %vm710, %v707
  %725 = vst.msk [vmem:[#allocation2 + $0x70] sm:$0xff] %vm710, %v708
  %726 = vst.msk [vmem:[#allocation2 + $0x78] sm:$0xff] %vm710, %v709
  // Predicated region
  $region14: #{discriminator_forward.11} parent=0 // pred_check
    %p727 = pneg %p13
  $region15: #{discriminator_forward.11} parent=0 // pred_check_branch
    %729 = sbr.rel (%p727) target = $region17
  $region16: #{discriminator_forward.11} parent=0 // pred_region
    %v730 = vld [vmem:[#allocation2] sm:$0xff]
    %v731 = vld [vmem:[#allocation2 + $0x8] sm:$0xff]
    %v732 = vld [vmem:[#allocation2 + $0x10] sm:$0xff]
    %v733 = vld [vmem:[#allocation2 + $0x18] sm:$0xff]
    %v734 = vld [vmem:[#allocation2 + $0x20] sm:$0xff]
    %v735 = vld [vmem:[#allocation2 + $0x28] sm:$0xff]
    %v736 = vld [vmem:[#allocation2 + $0x30] sm:$0xff]
    %v737 = vld [vmem:[#allocation2 + $0x38] sm:$0xff]
    %v738 = vld [vmem:[#allocation2 + $0x40] sm:$0xff]
    %v739 = vld [vmem:[#allocation2 + $0x48] sm:$0xff]
    %v740 = vld [vmem:[#allocation2 + $0x50] sm:$0xff]
    %v741 = vld [vmem:[#allocation2 + $0x58] sm:$0xff]
    %v742 = vld [vmem:[#allocation2 + $0x60] sm:$0xff]
    %v743 = vld [vmem:[#allocation2 + $0x68] sm:$0xff]
    %v744 = vld [vmem:[#allocation2 + $0x70] sm:$0xff]
    %v745 = vld [vmem:[#allocation2 + $0x78] sm:$0xff]
    %v746 = vsel %vm710, %v730, 0.0
    %v747 = vsel %vm710, %v731, 0.0
    %v748 = vadd.f32 %v746, %v747
    %v749 = vsel %vm710, %v732, 0.0
    %v750 = vadd.f32 %v748, %v749
    %v751 = vsel %vm710, %v733, 0.0
    %v752 = vadd.f32 %v750, %v751
    %v753 = vsel %vm710, %v734, 0.0
    %v754 = vadd.f32 %v752, %v753
    %v755 = vsel %vm710, %v735, 0.0
    %v756 = vadd.f32 %v754, %v755
    %v757 = vsel %vm710, %v736, 0.0
    %v758 = vadd.f32 %v756, %v757
    %v759 = vsel %vm710, %v737, 0.0
    %v760 = vadd.f32 %v758, %v759
    %v761 = vsel %vm710, %v738, 0.0
    %v762 = vadd.f32 %v760, %v761
    %v763 = vsel %vm710, %v739, 0.0
    %v764 = vadd.f32 %v762, %v763
    %v765 = vsel %vm710, %v740, 0.0
    %v766 = vadd.f32 %v764, %v765
    %v767 = vsel %vm710, %v741, 0.0
    %v768 = vadd.f32 %v766, %v767
    %v769 = vsel %vm710, %v742, 0.0
    %v770 = vadd.f32 %v768, %v769
    %v771 = vsel %vm710, %v743, 0.0
    %v772 = vadd.f32 %v770, %v771
    %v773 = vsel %vm710, %v744, 0.0
    %v774 = vadd.f32 %v772, %v773
    %v775 = vsel %vm710, %v745, 0.0
    %v776 = vadd.f32 %v774, %v775
    %v777 = vrot.slane %v776, 4
    %v778 = vadd.f32 %v776, %v777
    %v779 = vrot.slane %v778, 2
    %v780 = vadd.f32 %v778, %v779
    %v781 = vrot.slane %v780, 1
    %v782 = vadd.f32 %v780, %v781
    %v783 = vmul.f32 %v730, %v730
    %v784 = vmul.f32 %v731, %v731
    %v785 = vmul.f32 %v732, %v732
    %v786 = vmul.f32 %v733, %v733
    %v787 = vmul.f32 %v734, %v734
    %v788 = vmul.f32 %v735, %v735
    %v789 = vmul.f32 %v736, %v736
    %v790 = vmul.f32 %v737, %v737
    %v791 = vmul.f32 %v738, %v738
    %v792 = vmul.f32 %v739, %v739
    %v793 = vmul.f32 %v740, %v740
    %v794 = vmul.f32 %v741, %v741
    %v795 = vmul.f32 %v742, %v742
    %v796 = vmul.f32 %v743, %v743
    %v797 = vmul.f32 %v744, %v744
    %v798 = vmul.f32 %v745, %v745
    %v799 = vsel %vm710, %v783, 0.0
    %v800 = vsel %vm710, %v784, 0.0
    %v801 = vadd.f32 %v799, %v800
    %v802 = vsel %vm710, %v785, 0.0
    %v803 = vadd.f32 %v801, %v802
    %v804 = vsel %vm710, %v786, 0.0
    %v805 = vadd.f32 %v803, %v804
    %v806 = vsel %vm710, %v787, 0.0
    %v807 = vadd.f32 %v805, %v806
    %v808 = vsel %vm710, %v788, 0.0
    %v809 = vadd.f32 %v807, %v808
    %v810 = vsel %vm710, %v789, 0.0
    %v811 = vadd.f32 %v809, %v810
    %v812 = vsel %vm710, %v790, 0.0
    %v813 = vadd.f32 %v811, %v812
    %v814 = vsel %vm710, %v791, 0.0
    %v815 = vadd.f32 %v813, %v814
    %v816 = vsel %vm710, %v792, 0.0
    %v817 = vadd.f32 %v815, %v816
    %v818 = vsel %vm710, %v793, 0.0
    %v819 = vadd.f32 %v817, %v818
    %v820 = vsel %vm710, %v794, 0.0
    %v821 = vadd.f32 %v819, %v820
    %v822 = vsel %vm710, %v795, 0.0
    %v823 = vadd.f32 %v821, %v822
    %v824 = vsel %vm710, %v796, 0.0
    %v825 = vadd.f32 %v823, %v824
    %v826 = vsel %vm710, %v797, 0.0
    %v827 = vadd.f32 %v825, %v826
    %v828 = vsel %vm710, %v798, 0.0
    %v829 = vadd.f32 %v827, %v828
    %v830 = vrot.slane %v829, 4
    %v831 = vadd.f32 %v829, %v830
    %v832 = vrot.slane %v831, 2
    %v833 = vadd.f32 %v831, %v832
    %v834 = vrot.slane %v833, 1
    %v835 = vadd.f32 %v833, %v834
    %vm836 = vcmask 1040384
    %v837 = vsel %vm836, %v782, %v835
    %vm838 = vcmask 517120
    %839 = vst.msk [vmem:[%s3] sm:$0x3] %vm838, %v837
    %v840 = vpack.c.bf16 %v730, %v730
    %v841 = vpack.c.bf16 %v731, %v731
    %v842 = vpack.c.bf16 %v732, %v732
    %v843 = vpack.c.bf16 %v733, %v733
    %v844 = vpack.c.bf16 %v734, %v734
    %v845 = vpack.c.bf16 %v735, %v735
    %v846 = vpack.c.bf16 %v736, %v736
    %v847 = vpack.c.bf16 %v737, %v737
    %v848 = vpack.c.bf16 %v738, %v738
    %v849 = vpack.c.bf16 %v739, %v739
    %v850 = vpack.c.bf16 %v740, %v740
    %v851 = vpack.c.bf16 %v741, %v741
    %v852 = vpack.c.bf16 %v742, %v742
    %v853 = vpack.c.bf16 %v743, %v743
    %v854 = vpack.c.bf16 %v744, %v744
    %v855 = vpack.c.bf16 %v745, %v745
    %vm856 = vcmask 519168
    %857 = vst.msk [vmem:[%s2] sm:$0xf] %vm856, %v840
    %858 = vst.msk [vmem:[%s2 + $0x4] sm:$0xf] %vm856, %v841
    %859 = vst.msk [vmem:[%s2 + $0x8] sm:$0xf] %vm856, %v842
    %860 = vst.msk [vmem:[%s2 + $0xc] sm:$0xf] %vm856, %v843
    %861 = vst.msk [vmem:[%s2 + $0x10] sm:$0xf] %vm856, %v844
    %862 = vst.msk [vmem:[%s2 + $0x14] sm:$0xf] %vm856, %v845
    %863 = vst.msk [vmem:[%s2 + $0x18] sm:$0xf] %vm856, %v846
    %864 = vst.msk [vmem:[%s2 + $0x1c] sm:$0xf] %vm856, %v847
    %865 = vst.msk [vmem:[%s2 + $0x20] sm:$0xf] %vm856, %v848
    %866 = vst.msk [vmem:[%s2 + $0x24] sm:$0xf] %vm856, %v849
    %867 = vst.msk [vmem:[%s2 + $0x28] sm:$0xf] %vm856, %v850
    %868 = vst.msk [vmem:[%s2 + $0x2c] sm:$0xf] %vm856, %v851
    %869 = vst.msk [vmem:[%s2 + $0x30] sm:$0xf] %vm856, %v852
    %870 = vst.msk [vmem:[%s2 + $0x34] sm:$0xf] %vm856, %v853
    %871 = vst.msk [vmem:[%s2 + $0x38] sm:$0xf] %vm856, %v854
    %872 = vst.msk [vmem:[%s2 + $0x3c] sm:$0xf] %vm856, %v855
  $region17: #{discriminator_forward.11} parent=0 // pred_fallthru
    _
  // Predicated region
  $region18: #{discriminator_forward.11} parent=0 // pred_check
    _
  $region19: #{discriminator_forward.11} parent=0 // pred_check_branch
    %874 = sbr.rel (0) target = $region21
  $region20: #{discriminator_forward.11} parent=0 // pred_region
    _
  $region21: #{discriminator_forward.11} parent=0 // pred_fallthru
    _
  // Predicated region
  $region22: #{discriminator_forward.11} parent=0 // pred_check
    _
  $region23: #{discriminator_forward.11} parent=0 // pred_check_branch
    %876 = sbr.rel (0) target = $region25
  $region24: #{discriminator_forward.11} parent=0 // pred_region
    _
  $region25: #{discriminator_forward.11} parent=0 // pred_fallthru
    _
  // Predicated region
  $region26: #{discriminator_forward.11} parent=0 // pred_check
    _
  $region27: #{discriminator_forward.11} parent=0 // pred_check_branch
    %878 = sbr.rel (0) target = $region29
  $region28: #{discriminator_forward.11} parent=0 // pred_region
    _
  $region29: #{discriminator_forward.11} parent=0 // pred_fallthru
    _
  // Predicated region
  $region30: #{discriminator_forward.11} parent=0 // pred_check
    _
  $region31: #{discriminator_forward.11} parent=0 // pred_check_branch
    %880 = sbr.rel (0) target = $region33
  $region32: #{discriminator_forward.11} parent=0 // pred_region
    _
  $region33: #{discriminator_forward.11} parent=0 // pred_fallthru
    _

// kernel: discriminator_forward.12
$region0: #{discriminator_forward.12}
  #allocation0 [shape = 'u32[]', space=smem, size = 0x4, offset = 0x4, fixed_abs, tag = 'smem constant byte address 0x4 - core index']
  #allocation1 [shape = 'u32[72,128]{1,0:T(1,128)}', space=vmem, size = 0x9000, scoped, tag = 'internal scratch']
  %s0 = inlined_call_operand.vmem [shape: bf16[128,64], index: 0, kind: input, shape index: {}]
  %s1 = inlined_call_operand.vmem [shape: f32[1,64], index: 1, kind: input, shape index: {}]
  %s2 = inlined_call_operand.vmem [shape: f32[1,64], index: 2, kind: input, shape index: {}]
  %s3 = inlined_call_operand.vmem [shape: bf16[128,64], index: 3, kind: output, shape index: {}]
  %s4 = sld [smem:[#allocation0]]
  $region22: #{discriminator_forward.12} parent=0
    _
  %s6 = ssub.s32 1, %s4
  %s7 = scalar_select 0, %s6, %s4
  // Predicated region
  $region2: #{discriminator_forward.12} parent=0 // pred_check
    _
  $region3: #{discriminator_forward.12} parent=0 // pred_check_branch
    %9 = sbr.rel (0) target = $region5
  $region4: #{discriminator_forward.12} parent=0 // pred_region
    _
  $region5: #{discriminator_forward.12} parent=0 // pred_fallthru
    _
  // Predicated region
  $region6: #{discriminator_forward.12} parent=0 // pred_check
    _
  $region7: #{discriminator_forward.12} parent=0 // pred_check_branch
    %11 = sbr.rel (0) target = $region9
  $region8: #{discriminator_forward.12} parent=0 // pred_region
    _
  $region9: #{discriminator_forward.12} parent=0 // pred_fallthru
    _
  // Predicated region
  $region10: #{discriminator_forward.12} parent=0 // pred_check
    _
  $region11: #{discriminator_forward.12} parent=0 // pred_check_branch
    %13 = sbr.rel (0) target = $region13
  $region12: #{discriminator_forward.12} parent=0 // pred_region
    _
  $region13: #{discriminator_forward.12} parent=0 // pred_fallthru
    _
  %v14 = vld [vmem:[%s0] sm:$0xf]
  %v15 = vld [vmem:[%s0 + $0x4] sm:$0xf]
  %v16 = vld [vmem:[%s0 + $0x8] sm:$0xf]
  %v17 = vld [vmem:[%s0 + $0xc] sm:$0xf]
  %v18 = vld [vmem:[%s0 + $0x10] sm:$0xf]
  %v19 = vld [vmem:[%s0 + $0x14] sm:$0xf]
  %v20 = vld [vmem:[%s0 + $0x18] sm:$0xf]
  %v21 = vld [vmem:[%s0 + $0x1c] sm:$0xf]
  %v22 = vld [vmem:[%s0 + $0x20] sm:$0xf]
  %v23 = vld [vmem:[%s0 + $0x24] sm:$0xf]
  %v24 = vld [vmem:[%s0 + $0x28] sm:$0xf]
  %v25 = vld [vmem:[%s0 + $0x2c] sm:$0xf]
  %v26 = vld [vmem:[%s0 + $0x30] sm:$0xf]
  %v27 = vld [vmem:[%s0 + $0x34] sm:$0xf]
  %v28 = vld [vmem:[%s0 + $0x38] sm:$0xf]
  %v29 = vld [vmem:[%s0 + $0x3c] sm:$0xf]
  %v30 = vunpack.c.l.bf16 %v14
  %v31 = vunpack.c.l.bf16 %v15
  %v32 = vunpack.c.l.bf16 %v16
  %v33 = vunpack.c.l.bf16 %v17
  %v34 = vunpack.c.l.bf16 %v18
  %v35 = vunpack.c.l.bf16 %v19
  %v36 = vunpack.c.l.bf16 %v20
  %v37 = vunpack.c.l.bf16 %v21
  %v38 = vunpack.c.l.bf16 %v22
  %v39 = vunpack.c.l.bf16 %v23
  %v40 = vunpack.c.l.bf16 %v24
  %v41 = vunpack.c.l.bf16 %v25
  %v42 = vunpack.c.l.bf16 %v26
  %v43 = vunpack.c.l.bf16 %v27
  %v44 = vunpack.c.l.bf16 %v28
  %v45 = vunpack.c.l.bf16 %v29
  %v46 = vld [vmem:[%s1] sm:$0x1]
  %v48 = vperm.slane %v46, 0
  %v50 = vmul.f32 %v30, %v48
  %v51 = vmul.f32 %v31, %v48
  %v52 = vmul.f32 %v32, %v48
  %v53 = vmul.f32 %v33, %v48
  %v54 = vmul.f32 %v34, %v48
  %v55 = vmul.f32 %v35, %v48
  %v56 = vmul.f32 %v36, %v48
  %v57 = vmul.f32 %v37, %v48
  %v58 = vmul.f32 %v38, %v48
  %v59 = vmul.f32 %v39, %v48
  %v60 = vmul.f32 %v40, %v48
  %v61 = vmul.f32 %v41, %v48
  %v62 = vmul.f32 %v42, %v48
  %v63 = vmul.f32 %v43, %v48
  %v64 = vmul.f32 %v44, %v48
  %v65 = vmul.f32 %v45, %v48
  %v66 = vld [vmem:[%s2] sm:$0x1]
  %v68 = vperm.slane %v66, 0
  %v70 = vadd.f32 %v50, %v68
  %v71 = vadd.f32 %v51, %v68
  %v72 = vadd.f32 %v52, %v68
  %v73 = vadd.f32 %v53, %v68
  %v74 = vadd.f32 %v54, %v68
  %v75 = vadd.f32 %v55, %v68
  %v76 = vadd.f32 %v56, %v68
  %v77 = vadd.f32 %v57, %v68
  %v78 = vadd.f32 %v58, %v68
  %v79 = vadd.f32 %v59, %v68
  %v80 = vadd.f32 %v60, %v68
  %v81 = vadd.f32 %v61, %v68
  %v82 = vadd.f32 %v62, %v68
  %v83 = vadd.f32 %v63, %v68
  %v84 = vadd.f32 %v64, %v68
  %v85 = vadd.f32 %v65, %v68
  %vm86 = vcmp.gt.f32.partialorder %v70, 0.0
  %vm87 = vcmp.gt.f32.partialorder %v71, 0.0
  %vm88 = vcmp.gt.f32.partialorder %v72, 0.0
  %vm89 = vcmp.gt.f32.partialorder %v73, 0.0
  %vm90 = vcmp.gt.f32.partialorder %v74, 0.0
  %vm91 = vcmp.gt.f32.partialorder %v75, 0.0
  %vm92 = vcmp.gt.f32.partialorder %v76, 0.0
  %vm93 = vcmp.gt.f32.partialorder %v77, 0.0
  %vm94 = vcmp.gt.f32.partialorder %v78, 0.0
  %vm95 = vcmp.gt.f32.partialorder %v79, 0.0
  %vm96 = vcmp.gt.f32.partialorder %v80, 0.0
  %vm97 = vcmp.gt.f32.partialorder %v81, 0.0
  %vm98 = vcmp.gt.f32.partialorder %v82, 0.0
  %vm99 = vcmp.gt.f32.partialorder %v83, 0.0
  %vm100 = vcmp.gt.f32.partialorder %v84, 0.0
  %vm101 = vcmp.gt.f32.partialorder %v85, 0.0
  %v102 = vmul.f32 %v70, 0.2
  %v103 = vmul.f32 %v71, 0.2
  %v104 = vmul.f32 %v72, 0.2
  %v105 = vmul.f32 %v73, 0.2
  %v106 = vmul.f32 %v74, 0.2
  %v107 = vmul.f32 %v75, 0.2
  %v108 = vmul.f32 %v76, 0.2
  %v109 = vmul.f32 %v77, 0.2
  %v110 = vmul.f32 %v78, 0.2
  %v111 = vmul.f32 %v79, 0.2
  %v112 = vmul.f32 %v80, 0.2
  %v113 = vmul.f32 %v81, 0.2
  %v114 = vmul.f32 %v82, 0.2
  %v115 = vmul.f32 %v83, 0.2
  %v116 = vmul.f32 %v84, 0.2
  %v117 = vmul.f32 %v85, 0.2
  %v118 = vsel %vm86, %v70, %v102
  %v119 = vsel %vm87, %v71, %v103
  %v120 = vsel %vm88, %v72, %v104
  %v121 = vsel %vm89, %v73, %v105
  %v122 = vsel %vm90, %v74, %v106
  %v123 = vsel %vm91, %v75, %v107
  %v124 = vsel %vm92, %v76, %v108
  %v125 = vsel %vm93, %v77, %v109
  %v126 = vsel %vm94, %v78, %v110
  %v127 = vsel %vm95, %v79, %v111
  %v128 = vsel %vm96, %v80, %v112
  %v129 = vsel %vm97, %v81, %v113
  %v130 = vsel %vm98, %v82, %v114
  %v131 = vsel %vm99, %v83, %v115
  %v132 = vsel %vm100, %v84, %v116
  %v133 = vsel %vm101, %v85, %v117
  %v134 = vpack.c.bf16 %v118, %v118
  %v135 = vpack.c.bf16 %v119, %v119
  %v136 = vpack.c.bf16 %v120, %v120
  %v137 = vpack.c.bf16 %v121, %v121
  %v138 = vpack.c.bf16 %v122, %v122
  %v139 = vpack.c.bf16 %v123, %v123
  %v140 = vpack.c.bf16 %v124, %v124
  %v141 = vpack.c.bf16 %v125, %v125
  %v142 = vpack.c.bf16 %v126, %v126
  %v143 = vpack.c.bf16 %v127, %v127
  %v144 = vpack.c.bf16 %v128, %v128
  %v145 = vpack.c.bf16 %v129, %v129
  %v146 = vpack.c.bf16 %v130, %v130
  %v147 = vpack.c.bf16 %v131, %v131
  %v148 = vpack.c.bf16 %v132, %v132
  %v149 = vpack.c.bf16 %v133, %v133
  %vm150 = vcmask 519168
  %151 = vst.msk [vmem:[%s3] sm:$0xf] %vm150, %v134
  %152 = vst.msk [vmem:[%s3 + $0x4] sm:$0xf] %vm150, %v135
  %153 = vst.msk [vmem:[%s3 + $0x8] sm:$0xf] %vm150, %v136
  %154 = vst.msk [vmem:[%s3 + $0xc] sm:$0xf] %vm150, %v137
  %155 = vst.msk [vmem:[%s3 + $0x10] sm:$0xf] %vm150, %v138
  %156 = vst.msk [vmem:[%s3 + $0x14] sm:$0xf] %vm150, %v139
  %157 = vst.msk [vmem:[%s3 + $0x18] sm:$0xf] %vm150, %v140
  %158 = vst.msk [vmem:[%s3 + $0x1c] sm:$0xf] %vm150, %v141
  %159 = vst.msk [vmem:[%s3 + $0x20] sm:$0xf] %vm150, %v142
  %160 = vst.msk [vmem:[%s3 + $0x24] sm:$0xf] %vm150, %v143
  %161 = vst.msk [vmem:[%s3 + $0x28] sm:$0xf] %vm150, %v144
  %162 = vst.msk [vmem:[%s3 + $0x2c] sm:$0xf] %vm150, %v145
  %163 = vst.msk [vmem:[%s3 + $0x30] sm:$0xf] %vm150, %v146
  %164 = vst.msk [vmem:[%s3 + $0x34] sm:$0xf] %vm150, %v147
  %165 = vst.msk [vmem:[%s3 + $0x38] sm:$0xf] %vm150, %v148
  %166 = vst.msk [vmem:[%s3 + $0x3c] sm:$0xf] %vm150, %v149
  // Predicated region
  $region14: #{discriminator_forward.12} parent=0 // pred_check
    _
  $region15: #{discriminator_forward.12} parent=0 // pred_check_branch
    %168 = sbr.rel (0) target = $region17
  $region16: #{discriminator_forward.12} parent=0 // pred_region
    _
  $region17: #{discriminator_forward.12} parent=0 // pred_fallthru
    _
  // Predicated region
  $region18: #{discriminator_forward.12} parent=0 // pred_check
    _
  $region19: #{discriminator_forward.12} parent=0 // pred_check_branch
    %170 = sbr.rel (0) target = $region21
  $region20: #{discriminator_forward.12} parent=0 // pred_region
    _
  $region21: #{discriminator_forward.12} parent=0 // pred_fallthru
    _

// kernel: discriminator_forward.13
$region0: #{discriminator_forward.13}
  #allocation0 [shape = 'u32[]', space=smem, size = 0x4, offset = 0x4, fixed_abs, tag = 'smem constant byte address 0x4 - core index']
  #allocation1 [shape = 'u32[72,128]{1,0:T(1,128)}', space=vmem, size = 0x9000, scoped, tag = 'internal scratch']
  #allocation2 [shape = 'f32[32,128]{1,0:T(8,128)}', space=vmem, size = 0x4000, scoped, tag = 'scratch operand']
  %s0 = inlined_call_operand.vmem [shape: bf16[32,1024], index: 0, kind: input, shape index: {}]
  %s1 = inlined_call_operand.vmem [shape: bf16[1024,128], index: 1, kind: input, shape index: {}]
  %s2 = inlined_call_operand.vmem [shape: bf16[32,128], index: 2, kind: output, shape index: {0}]
  %s3 = inlined_call_operand.vmem [shape: f32[1,2,128], index: 3, kind: output, shape index: {1}]
  %4 = xla_tuple %s2, %s3
  %s5 = sld [smem:[#allocation0]]
  $region34: #{discriminator_forward.13} parent=0
    _
  %s7 = ssub.s32 1, %s5
  %s8 = scalar_select 0, %s7, %s5
  // Predicated region
  $region2: #{discriminator_forward.13} parent=0 // pred_check
    _
  $region3: #{discriminator_forward.13} parent=0 // pred_check_branch
    %10 = sbr.rel (0) target = $region5
  $region4: #{discriminator_forward.13} parent=0 // pred_region
    _
  $region5: #{discriminator_forward.13} parent=0 // pred_fallthru
    _
  // Predicated region
  $region6: #{discriminator_forward.13} parent=0 // pred_check
    _
  $region7: #{discriminator_forward.13} parent=0 // pred_check_branch
    %12 = sbr.rel (0) target = $region9
  $region8: #{discriminator_forward.13} parent=0 // pred_region
    _
  $region9: #{discriminator_forward.13} parent=0 // pred_fallthru
    _
  %p13 = scmp.eq.s32.totalorder 0, 0
  // Predicated region
  $region10: #{discriminator_forward.13} parent=0 // pred_check
    %p14 = pneg %p13
  $region11: #{discriminator_forward.13} parent=0 // pred_check_branch
    %16 = sbr.rel (%p14) target = $region13
  $region12: #{discriminator_forward.13} parent=0 // pred_region
    %17 = vst [vmem:[#allocation2] sm:$0xff] 0.0
    %18 = vst [vmem:[#allocation2 + $0x8] sm:$0xff] 0.0
    %19 = vst [vmem:[#allocation2 + $0x10] sm:$0xff] 0.0
    %20 = vst [vmem:[#allocation2 + $0x18] sm:$0xff] 0.0
  $region13: #{discriminator_forward.13} parent=0 // pred_fallthru
    _
  %v21 = vld [vmem:[#allocation2] sm:$0xff]
  %v22 = vld [vmem:[#allocation2 + $0x8] sm:$0xff]
  %v23 = vld [vmem:[#allocation2 + $0x10] sm:$0xff]
  %v24 = vld [vmem:[#allocation2 + $0x18] sm:$0xff]
  %v25 = vld [vmem:[%s0] sm:$0xff]
  %v26 = vld [vmem:[%s0 + $0x8] sm:$0xff]
  %v27 = vld [vmem:[%s0 + $0x10] sm:$0xff]
  %v28 = vld [vmem:[%s0 + $0x18] sm:$0xff]
  %v29 = vld [vmem:[%s0 + $0x20] sm:$0xff]
  %v30 = vld [vmem:[%s0 + $0x28] sm:$0xff]
  %v31 = vld [vmem:[%s0 + $0x30] sm:$0xff]
  %v32 = vld [vmem:[%s0 + $0x38] sm:$0xff]
  %v33 = vld [vmem:[%s0 + $0x40] sm:$0xff]
  %v34 = vld [vmem:[%s0 + $0x48] sm:$0xff]
  %v35 = vld [vmem:[%s0 + $0x50] sm:$0xff]
  %v36 = vld [vmem:[%s0 + $0x58] sm:$0xff]
  %v37 = vld [vmem:[%s0 + $0x60] sm:$0xff]
  %v38 = vld [vmem:[%s0 + $0x68] sm:$0xff]
  %v39 = vld [vmem:[%s0 + $0x70] sm:$0xff]
  %v40 = vld [vmem:[%s0 + $0x78] sm:$0xff]
  %v41 = vld [vmem:[%s1] sm:$0xf]
  %v42 = vld [vmem:[%s1 + $0x4] sm:$0xf]
  %v43 = vld [vmem:[%s1 + $0x8] sm:$0xf]
  %v44 = vld [vmem:[%s1 + $0xc] sm:$0xf]
  %v45 = vld [vmem:[%s1 + $0x10] sm:$0xf]
  %v46 = vld [vmem:[%s1 + $0x14] sm:$0xf]
  %v47 = vld [vmem:[%s1 + $0x18] sm:$0xf]
  %v48 = vld [vmem:[%s1 + $0x1c] sm:$0xf]
  %v49 = vld [vmem:[%s1 + $0x20] sm:$0xf]
  %v50 = vld [vmem:[%s1 + $0x24] sm:$0xf]
  %v51 = vld [vmem:[%s1 + $0x28] sm:$0xf]
  %v52 = vld [vmem:[%s1 + $0x2c] sm:$0xf]
  %v53 = vld [vmem:[%s1 + $0x30] sm:$0xf]
  %v54 = vld [vmem:[%s1 + $0x34] sm:$0xf]
  %v55 = vld [vmem:[%s1 + $0x38] sm:$0xf]
  %v56 = vld [vmem:[%s1 + $0x3c] sm:$0xf]
  %v57 = vld [vmem:[%s1 + $0x40] sm:$0xf]
  %v58 = vld [vmem:[%s1 + $0x44] sm:$0xf]
  %v59 = vld [vmem:[%s1 + $0x48] sm:$0xf]
  %v60 = vld [vmem:[%s1 + $0x4c] sm:$0xf]
  %v61 = vld [vmem:[%s1 + $0x50] sm:$0xf]
  %v62 = vld [vmem:[%s1 + $0x54] sm:$0xf]
  %v63 = vld [vmem:[%s1 + $0x58] sm:$0xf]
  %v64 = vld [vmem:[%s1 + $0x5c] sm:$0xf]
  %v65 = vld [vmem:[%s1 + $0x60] sm:$0xf]
  %v66 = vld [vmem:[%s1 + $0x64] sm:$0xf]
  %v67 = vld [vmem:[%s1 + $0x68] sm:$0xf]
  %v68 = vld [vmem:[%s1 + $0x6c] sm:$0xf]
  %v69 = vld [vmem:[%s1 + $0x70] sm:$0xf]
  %v70 = vld [vmem:[%s1 + $0x74] sm:$0xf]
  %v71 = vld [vmem:[%s1 + $0x78] sm:$0xf]
  %v72 = vld [vmem:[%s1 + $0x7c] sm:$0xf]
  %v73 = vld [vmem:[%s1 + $0x80] sm:$0xf]
  %v74 = vld [vmem:[%s1 + $0x84] sm:$0xf]
  %v75 = vld [vmem:[%s1 + $0x88] sm:$0xf]
  %v76 = vld [vmem:[%s1 + $0x8c] sm:$0xf]
  %v77 = vld [vmem:[%s1 + $0x90] sm:$0xf]
  %v78 = vld [vmem:[%s1 + $0x94] sm:$0xf]
  %v79 = vld [vmem:[%s1 + $0x98] sm:$0xf]
  %v80 = vld [vmem:[%s1 + $0x9c] sm:$0xf]
  %v81 = vld [vmem:[%s1 + $0xa0] sm:$0xf]
  %v82 = vld [vmem:[%s1 + $0xa4] sm:$0xf]
  %v83 = vld [vmem:[%s1 + $0xa8] sm:$0xf]
  %v84 = vld [vmem:[%s1 + $0xac] sm:$0xf]
  %v85 = vld [vmem:[%s1 + $0xb0] sm:$0xf]
  %v86 = vld [vmem:[%s1 + $0xb4] sm:$0xf]
  %v87 = vld [vmem:[%s1 + $0xb8] sm:$0xf]
  %v88 = vld [vmem:[%s1 + $0xbc] sm:$0xf]
  %v89 = vld [vmem:[%s1 + $0xc0] sm:$0xf]
  %v90 = vld [vmem:[%s1 + $0xc4] sm:$0xf]
  %v91 = vld [vmem:[%s1 + $0xc8] sm:$0xf]
  %v92 = vld [vmem:[%s1 + $0xcc] sm:$0xf]
  %v93 = vld [vmem:[%s1 + $0xd0] sm:$0xf]
  %v94 = vld [vmem:[%s1 + $0xd4] sm:$0xf]
  %v95 = vld [vmem:[%s1 + $0xd8] sm:$0xf]
  %v96 = vld [vmem:[%s1 + $0xdc] sm:$0xf]
  %v97 = vld [vmem:[%s1 + $0xe0] sm:$0xf]
  %v98 = vld [vmem:[%s1 + $0xe4] sm:$0xf]
  %v99 = vld [vmem:[%s1 + $0xe8] sm:$0xf]
  %v100 = vld [vmem:[%s1 + $0xec] sm:$0xf]
  %v101 = vld [vmem:[%s1 + $0xf0] sm:$0xf]
  %v102 = vld [vmem:[%s1 + $0xf4] sm:$0xf]
  %v103 = vld [vmem:[%s1 + $0xf8] sm:$0xf]
  %v104 = vld [vmem:[%s1 + $0xfc] sm:$0xf]
  %v105 = vld [vmem:[%s1 + $0x100] sm:$0xf]
  %v106 = vld [vmem:[%s1 + $0x104] sm:$0xf]
  %v107 = vld [vmem:[%s1 + $0x108] sm:$0xf]
  %v108 = vld [vmem:[%s1 + $0x10c] sm:$0xf]
  %v109 = vld [vmem:[%s1 + $0x110] sm:$0xf]
  %v110 = vld [vmem:[%s1 + $0x114] sm:$0xf]
  %v111 = vld [vmem:[%s1 + $0x118] sm:$0xf]
  %v112 = vld [vmem:[%s1 + $0x11c] sm:$0xf]
  %v113 = vld [vmem:[%s1 + $0x120] sm:$0xf]
  %v114 = vld [vmem:[%s1 + $0x124] sm:$0xf]
  %v115 = vld [vmem:[%s1 + $0x128] sm:$0xf]
  %v116 = vld [vmem:[%s1 + $0x12c] sm:$0xf]
  %v117 = vld [vmem:[%s1 + $0x130] sm:$0xf]
  %v118 = vld [vmem:[%s1 + $0x134] sm:$0xf]
  %v119 = vld [vmem:[%s1 + $0x138] sm:$0xf]
  %v120 = vld [vmem:[%s1 + $0x13c] sm:$0xf]
  %v121 = vld [vmem:[%s1 + $0x140] sm:$0xf]
  %v122 = vld [vmem:[%s1 + $0x144] sm:$0xf]
  %v123 = vld [vmem:[%s1 + $0x148] sm:$0xf]
  %v124 = vld [vmem:[%s1 + $0x14c] sm:$0xf]
  %v125 = vld [vmem:[%s1 + $0x150] sm:$0xf]
  %v126 = vld [vmem:[%s1 + $0x154] sm:$0xf]
  %v127 = vld [vmem:[%s1 + $0x158] sm:$0xf]
  %v128 = vld [vmem:[%s1 + $0x15c] sm:$0xf]
  %v129 = vld [vmem:[%s1 + $0x160] sm:$0xf]
  %v130 = vld [vmem:[%s1 + $0x164] sm:$0xf]
  %v131 = vld [vmem:[%s1 + $0x168] sm:$0xf]
  %v132 = vld [vmem:[%s1 + $0x16c] sm:$0xf]
  %v133 = vld [vmem:[%s1 + $0x170] sm:$0xf]
  %v134 = vld [vmem:[%s1 + $0x174] sm:$0xf]
  %v135 = vld [vmem:[%s1 + $0x178] sm:$0xf]
  %v136 = vld [vmem:[%s1 + $0x17c] sm:$0xf]
  %v137 = vld [vmem:[%s1 + $0x180] sm:$0xf]
  %v138 = vld [vmem:[%s1 + $0x184] sm:$0xf]
  %v139 = vld [vmem:[%s1 + $0x188] sm:$0xf]
  %v140 = vld [vmem:[%s1 + $0x18c] sm:$0xf]
  %v141 = vld [vmem:[%s1 + $0x190] sm:$0xf]
  %v142 = vld [vmem:[%s1 + $0x194] sm:$0xf]
  %v143 = vld [vmem:[%s1 + $0x198] sm:$0xf]
  %v144 = vld [vmem:[%s1 + $0x19c] sm:$0xf]
  %v145 = vld [vmem:[%s1 + $0x1a0] sm:$0xf]
  %v146 = vld [vmem:[%s1 + $0x1a4] sm:$0xf]
  %v147 = vld [vmem:[%s1 + $0x1a8] sm:$0xf]
  %v148 = vld [vmem:[%s1 + $0x1ac] sm:$0xf]
  %v149 = vld [vmem:[%s1 + $0x1b0] sm:$0xf]
  %v150 = vld [vmem:[%s1 + $0x1b4] sm:$0xf]
  %v151 = vld [vmem:[%s1 + $0x1b8] sm:$0xf]
  %v152 = vld [vmem:[%s1 + $0x1bc] sm:$0xf]
  %v153 = vld [vmem:[%s1 + $0x1c0] sm:$0xf]
  %v154 = vld [vmem:[%s1 + $0x1c4] sm:$0xf]
  %v155 = vld [vmem:[%s1 + $0x1c8] sm:$0xf]
  %v156 = vld [vmem:[%s1 + $0x1cc] sm:$0xf]
  %v157 = vld [vmem:[%s1 + $0x1d0] sm:$0xf]
  %v158 = vld [vmem:[%s1 + $0x1d4] sm:$0xf]
  %v159 = vld [vmem:[%s1 + $0x1d8] sm:$0xf]
  %v160 = vld [vmem:[%s1 + $0x1dc] sm:$0xf]
  %v161 = vld [vmem:[%s1 + $0x1e0] sm:$0xf]
  %v162 = vld [vmem:[%s1 + $0x1e4] sm:$0xf]
  %v163 = vld [vmem:[%s1 + $0x1e8] sm:$0xf]
  %v164 = vld [vmem:[%s1 + $0x1ec] sm:$0xf]
  %v165 = vld [vmem:[%s1 + $0x1f0] sm:$0xf]
  %v166 = vld [vmem:[%s1 + $0x1f4] sm:$0xf]
  %v167 = vld [vmem:[%s1 + $0x1f8] sm:$0xf]
  %v168 = vld [vmem:[%s1 + $0x1fc] sm:$0xf]
  %v185 = vunpack.c.l.b16 %v25
  %v186 = vunpack.c.h.b16 %v25
  %v187 = vunpack.c.l.b16 %v26
  %v188 = vunpack.c.h.b16 %v26
  %v189 = vunpack.c.l.b16 %v27
  %v190 = vunpack.c.h.b16 %v27
  %v191 = vunpack.c.l.b16 %v28
  %v192 = vunpack.c.h.b16 %v28
  %v193 = vunpack.c.l.b16 %v29
  %v194 = vunpack.c.h.b16 %v29
  %v195 = vunpack.c.l.b16 %v30
  %v196 = vunpack.c.h.b16 %v30
  %v197 = vunpack.c.l.b16 %v31
  %v198 = vunpack.c.h.b16 %v31
  %v199 = vunpack.c.l.b16 %v32
  %v200 = vunpack.c.h.b16 %v32
  %v201 = vunpack.c.l.b16 %v33
  %v202 = vunpack.c.h.b16 %v33
  %v203 = vunpack.c.l.b16 %v34
  %v204 = vunpack.c.h.b16 %v34
  %v205 = vunpack.c.l.b16 %v35
  %v206 = vunpack.c.h.b16 %v35
  %v207 = vunpack.c.l.b16 %v36
  %v208 = vunpack.c.h.b16 %v36
  %v209 = vunpack.c.l.b16 %v37
  %v210 = vunpack.c.h.b16 %v37
  %v211 = vunpack.c.l.b16 %v38
  %v212 = vunpack.c.h.b16 %v38
  %v213 = vunpack.c.l.b16 %v39
  %v214 = vunpack.c.h.b16 %v39
  %v215 = vunpack.c.l.b16 %v40
  %v216 = vunpack.c.h.b16 %v40
  %v217 = vpack.c.b16 %v193, %v185
  %v218 = vpack.c.b16 %v194, %v186
  %v219 = vpack.c.b16 %v195, %v187
  %v220 = vpack.c.b16 %v196, %v188
  %v221 = vpack.c.b16 %v197, %v189
  %v222 = vpack.c.b16 %v198, %v190
  %v223 = vpack.c.b16 %v199, %v191
  %v224 = vpack.c.b16 %v200, %v192
  %v225 = vpack.c.b16 %v209, %v201
  %v226 = vpack.c.b16 %v210, %v202
  %v227 = vpack.c.b16 %v211, %v203
  %v228 = vpack.c.b16 %v212, %v204
  %v229 = vpack.c.b16 %v213, %v205
  %v230 = vpack.c.b16 %v214, %v206
  %v231 = vpack.c.b16 %v215, %v207
  %v232 = vpack.c.b16 %v216, %v208
  %v377 = vunpack.c.l.b16 %v41
  %v378 = vunpack.c.l.b16 %v42
  %v379 = vunpack.c.l.b16 %v43
  %v380 = vunpack.c.l.b16 %v44
  %v381 = vunpack.c.l.b16 %v45
  %v382 = vunpack.c.l.b16 %v46
  %v383 = vunpack.c.l.b16 %v47
  %v384 = vunpack.c.l.b16 %v48
  %v385 = vunpack.c.l.b16 %v49
  %v386 = vunpack.c.l.b16 %v50
  %v387 = vunpack.c.l.b16 %v51
  %v388 = vunpack.c.l.b16 %v52
  %v389 = vunpack.c.l.b16 %v53
  %v390 = vunpack.c.l.b16 %v54
  %v391 = vunpack.c.l.b16 %v55
  %v392 = vunpack.c.l.b16 %v56
  %v393 = vunpack.c.l.b16 %v57
  %v394 = vunpack.c.l.b16 %v58
  %v395 = vunpack.c.l.b16 %v59
  %v396 = vunpack.c.l.b16 %v60
  %v397 = vunpack.c.l.b16 %v61
  %v398 = vunpack.c.l.b16 %v62
  %v399 = vunpack.c.l.b16 %v63
  %v400 = vunpack.c.l.b16 %v64
  %v401 = vunpack.c.l.b16 %v65
  %v402 = vunpack.c.l.b16 %v66
  %v403 = vunpack.c.l.b16 %v67
  %v404 = vunpack.c.l.b16 %v68
  %v405 = vunpack.c.l.b16 %v69
  %v406 = vunpack.c.l.b16 %v70
  %v407 = vunpack.c.l.b16 %v71
  %v408 = vunpack.c.l.b16 %v72
  %v409 = vunpack.c.l.b16 %v73
  %v410 = vunpack.c.l.b16 %v74
  %v411 = vunpack.c.l.b16 %v75
  %v412 = vunpack.c.l.b16 %v76
  %v413 = vunpack.c.l.b16 %v77
  %v414 = vunpack.c.l.b16 %v78
  %v415 = vunpack.c.l.b16 %v79
  %v416 = vunpack.c.l.b16 %v80
  %v417 = vunpack.c.l.b16 %v81
  %v418 = vunpack.c.l.b16 %v82
  %v419 = vunpack.c.l.b16 %v83
  %v420 = vunpack.c.l.b16 %v84
  %v421 = vunpack.c.l.b16 %v85
  %v422 = vunpack.c.l.b16 %v86
  %v423 = vunpack.c.l.b16 %v87
  %v424 = vunpack.c.l.b16 %v88
  %v425 = vunpack.c.l.b16 %v89
  %v426 = vunpack.c.l.b16 %v90
  %v427 = vunpack.c.l.b16 %v91
  %v428 = vunpack.c.l.b16 %v92
  %v429 = vunpack.c.l.b16 %v93
  %v430 = vunpack.c.l.b16 %v94
  %v431 = vunpack.c.l.b16 %v95
  %v432 = vunpack.c.l.b16 %v96
  %v433 = vunpack.c.l.b16 %v97
  %v434 = vunpack.c.l.b16 %v98
  %v435 = vunpack.c.l.b16 %v99
  %v436 = vunpack.c.l.b16 %v100
  %v437 = vunpack.c.l.b16 %v101
  %v438 = vunpack.c.l.b16 %v102
  %v439 = vunpack.c.l.b16 %v103
  %v440 = vunpack.c.l.b16 %v104
  %v441 = vunpack.c.l.b16 %v105
  %v442 = vunpack.c.l.b16 %v106
  %v443 = vunpack.c.l.b16 %v107
  %v444 = vunpack.c.l.b16 %v108
  %v445 = vunpack.c.l.b16 %v109
  %v446 = vunpack.c.l.b16 %v110
  %v447 = vunpack.c.l.b16 %v111
  %v448 = vunpack.c.l.b16 %v112
  %v449 = vunpack.c.l.b16 %v113
  %v450 = vunpack.c.l.b16 %v114
  %v451 = vunpack.c.l.b16 %v115
  %v452 = vunpack.c.l.b16 %v116
  %v453 = vunpack.c.l.b16 %v117
  %v454 = vunpack.c.l.b16 %v118
  %v455 = vunpack.c.l.b16 %v119
  %v456 = vunpack.c.l.b16 %v120
  %v457 = vunpack.c.l.b16 %v121
  %v458 = vunpack.c.l.b16 %v122
  %v459 = vunpack.c.l.b16 %v123
  %v460 = vunpack.c.l.b16 %v124
  %v461 = vunpack.c.l.b16 %v125
  %v462 = vunpack.c.l.b16 %v126
  %v463 = vunpack.c.l.b16 %v127
  %v464 = vunpack.c.l.b16 %v128
  %v465 = vunpack.c.l.b16 %v129
  %v466 = vunpack.c.l.b16 %v130
  %v467 = vunpack.c.l.b16 %v131
  %v468 = vunpack.c.l.b16 %v132
  %v469 = vunpack.c.l.b16 %v133
  %v470 = vunpack.c.l.b16 %v134
  %v471 = vunpack.c.l.b16 %v135
  %v472 = vunpack.c.l.b16 %v136
  %v473 = vunpack.c.l.b16 %v137
  %v474 = vunpack.c.l.b16 %v138
  %v475 = vunpack.c.l.b16 %v139
  %v476 = vunpack.c.l.b16 %v140
  %v477 = vunpack.c.l.b16 %v141
  %v478 = vunpack.c.l.b16 %v142
  %v479 = vunpack.c.l.b16 %v143
  %v480 = vunpack.c.l.b16 %v144
  %v481 = vunpack.c.l.b16 %v145
  %v482 = vunpack.c.l.b16 %v146
  %v483 = vunpack.c.l.b16 %v147
  %v484 = vunpack.c.l.b16 %v148
  %v485 = vunpack.c.l.b16 %v149
  %v486 = vunpack.c.l.b16 %v150
  %v487 = vunpack.c.l.b16 %v151
  %v488 = vunpack.c.l.b16 %v152
  %v489 = vunpack.c.l.b16 %v153
  %v490 = vunpack.c.l.b16 %v154
  %v491 = vunpack.c.l.b16 %v155
  %v492 = vunpack.c.l.b16 %v156
  %v493 = vunpack.c.l.b16 %v157
  %v494 = vunpack.c.l.b16 %v158
  %v495 = vunpack.c.l.b16 %v159
  %v496 = vunpack.c.l.b16 %v160
  %v497 = vunpack.c.l.b16 %v161
  %v498 = vunpack.c.l.b16 %v162
  %v499 = vunpack.c.l.b16 %v163
  %v500 = vunpack.c.l.b16 %v164
  %v501 = vunpack.c.l.b16 %v165
  %v502 = vunpack.c.l.b16 %v166
  %v503 = vunpack.c.l.b16 %v167
  %v504 = vunpack.c.l.b16 %v168
  %v505 = vpack.c.b16 %v378, %v377
  %v506 = vpack.c.b16 %v380, %v379
  %v507 = vpack.c.b16 %v382, %v381
  %v508 = vpack.c.b16 %v384, %v383
  %v509 = vpack.c.b16 %v386, %v385
  %v510 = vpack.c.b16 %v388, %v387
  %v511 = vpack.c.b16 %v390, %v389
  %v512 = vpack.c.b16 %v392, %v391
  %v513 = vpack.c.b16 %v394, %v393
  %v514 = vpack.c.b16 %v396, %v395
  %v515 = vpack.c.b16 %v398, %v397
  %v516 = vpack.c.b16 %v400, %v399
  %v517 = vpack.c.b16 %v402, %v401
  %v518 = vpack.c.b16 %v404, %v403
  %v519 = vpack.c.b16 %v406, %v405
  %v520 = vpack.c.b16 %v408, %v407
  %v521 = vpack.c.b16 %v410, %v409
  %v522 = vpack.c.b16 %v412, %v411
  %v523 = vpack.c.b16 %v414, %v413
  %v524 = vpack.c.b16 %v416, %v415
  %v525 = vpack.c.b16 %v418, %v417
  %v526 = vpack.c.b16 %v420, %v419
  %v527 = vpack.c.b16 %v422, %v421
  %v528 = vpack.c.b16 %v424, %v423
  %v529 = vpack.c.b16 %v426, %v425
  %v530 = vpack.c.b16 %v428, %v427
  %v531 = vpack.c.b16 %v430, %v429
  %v532 = vpack.c.b16 %v432, %v431
  %v533 = vpack.c.b16 %v434, %v433
  %v534 = vpack.c.b16 %v436, %v435
  %v535 = vpack.c.b16 %v438, %v437
  %v536 = vpack.c.b16 %v440, %v439
  %v537 = vpack.c.b16 %v442, %v441
  %v538 = vpack.c.b16 %v444, %v443
  %v539 = vpack.c.b16 %v446, %v445
  %v540 = vpack.c.b16 %v448, %v447
  %v541 = vpack.c.b16 %v450, %v449
  %v542 = vpack.c.b16 %v452, %v451
  %v543 = vpack.c.b16 %v454, %v453
  %v544 = vpack.c.b16 %v456, %v455
  %v545 = vpack.c.b16 %v458, %v457
  %v546 = vpack.c.b16 %v460, %v459
  %v547 = vpack.c.b16 %v462, %v461
  %v548 = vpack.c.b16 %v464, %v463
  %v549 = vpack.c.b16 %v466, %v465
  %v550 = vpack.c.b16 %v468, %v467
  %v551 = vpack.c.b16 %v470, %v469
  %v552 = vpack.c.b16 %v472, %v471
  %v553 = vpack.c.b16 %v474, %v473
  %v554 = vpack.c.b16 %v476, %v475
  %v555 = vpack.c.b16 %v478, %v477
  %v556 = vpack.c.b16 %v480, %v479
  %v557 = vpack.c.b16 %v482, %v481
  %v558 = vpack.c.b16 %v484, %v483
  %v559 = vpack.c.b16 %v486, %v485
  %v560 = vpack.c.b16 %v488, %v487
  %v561 = vpack.c.b16 %v490, %v489
  %v562 = vpack.c.b16 %v492, %v491
  %v563 = vpack.c.b16 %v494, %v493
  %v564 = vpack.c.b16 %v496, %v495
  %v565 = vpack.c.b16 %v498, %v497
  %v566 = vpack.c.b16 %v500, %v499
  %v567 = vpack.c.b16 %v502, %v501
  %v568 = vpack.c.b16 %v504, %v503
  %633 = vmatpush.bf16.msra.mxu0 %v512
  %634 = vmatpush.bf16.msra.mxu0 %v511
  %635 = vmatpush.bf16.msra.mxu0 %v510
  %636 = vmatpush.bf16.msra.mxu0 %v509
  %637 = vmatpush.bf16.msra.mxu0 %v508
  %638 = vmatpush.bf16.msra.mxu0 %v507
  %639 = vmatpush.bf16.msra.mxu0 %v506
  %640 = vmatpush.bf16.msra.mxu0 %v505
  %641 = vmatmul.bf16.gmra.mxu0 %v217
  %v642 = vpop.f32.mrf.mxu0
  %v643 = vadd.f32 0.0, %v642
  %v644 = vpop.f32.mrf.mxu0
  %v645 = vadd.f32 0.0, %v644
  %646 = vmatmul.bf16.gmra.mxu0 %v225
  %v647 = vpop.f32.mrf.mxu0
  %v648 = vadd.f32 0.0, %v647
  %v649 = vpop.f32.mrf.mxu0
  %v650 = vadd.f32 0.0, %v649
  %651 = vdwg.mxu0
  %652 = vmatpush.bf16.msra.mxu0 %v520
  %653 = vmatpush.bf16.msra.mxu0 %v519
  %654 = vmatpush.bf16.msra.mxu0 %v518
  %655 = vmatpush.bf16.msra.mxu0 %v517
  %656 = vmatpush.bf16.msra.mxu0 %v516
  %657 = vmatpush.bf16.msra.mxu0 %v515
  %658 = vmatpush.bf16.msra.mxu0 %v514
  %659 = vmatpush.bf16.msra.mxu0 %v513
  %660 = vmatmul.bf16.gmra.mxu0 %v218
  %v661 = vpop.f32.mrf.mxu0
  %v662 = vadd.f32 %v643, %v661
  %v663 = vpop.f32.mrf.mxu0
  %v664 = vadd.f32 %v645, %v663
  %665 = vmatmul.bf16.gmra.mxu0 %v226
  %v666 = vpop.f32.mrf.mxu0
  %v667 = vadd.f32 %v648, %v666
  %v668 = vpop.f32.mrf.mxu0
  %v669 = vadd.f32 %v650, %v668
  %670 = vdwg.mxu0
  %671 = vmatpush.bf16.msra.mxu0 %v528
  %672 = vmatpush.bf16.msra.mxu0 %v527
  %673 = vmatpush.bf16.msra.mxu0 %v526
  %674 = vmatpush.bf16.msra.mxu0 %v525
  %675 = vmatpush.bf16.msra.mxu0 %v524
  %676 = vmatpush.bf16.msra.mxu0 %v523
  %677 = vmatpush.bf16.msra.mxu0 %v522
  %678 = vmatpush.bf16.msra.mxu0 %v521
  %679 = vmatmul.bf16.gmra.mxu0 %v219
  %v680 = vpop.f32.mrf.mxu0
  %v681 = vadd.f32 %v662, %v680
  %v682 = vpop.f32.mrf.mxu0
  %v683 = vadd.f32 %v664, %v682
  %684 = vmatmul.bf16.gmra.mxu0 %v227
  %v685 = vpop.f32.mrf.mxu0
  %v686 = vadd.f32 %v667, %v685
  %v687 = vpop.f32.mrf.mxu0
  %v688 = vadd.f32 %v669, %v687
  %689 = vdwg.mxu0
  %690 = vmatpush.bf16.msra.mxu0 %v536
  %691 = vmatpush.bf16.msra.mxu0 %v535
  %692 = vmatpush.bf16.msra.mxu0 %v534
  %693 = vmatpush.bf16.msra.mxu0 %v533
  %694 = vmatpush.bf16.msra.mxu0 %v532
  %695 = vmatpush.bf16.msra.mxu0 %v531
  %696 = vmatpush.bf16.msra.mxu0 %v530
  %697 = vmatpush.bf16.msra.mxu0 %v529
  %698 = vmatmul.bf16.gmra.mxu0 %v220
  %v699 = vpop.f32.mrf.mxu0
  %v700 = vadd.f32 %v681, %v699
  %v701 = vpop.f32.mrf.mxu0
  %v702 = vadd.f32 %v683, %v701
  %703 = vmatmul.bf16.gmra.mxu0 %v228
  %v704 = vpop.f32.mrf.mxu0
  %v705 = vadd.f32 %v686, %v704
  %v706 = vpop.f32.mrf.mxu0
  %v707 = vadd.f32 %v688, %v706
  %708 = vdwg.mxu0
  %709 = vmatpush.bf16.msra.mxu0 %v544
  %710 = vmatpush.bf16.msra.mxu0 %v543
  %711 = vmatpush.bf16.msra.mxu0 %v542
  %712 = vmatpush.bf16.msra.mxu0 %v541
  %713 = vmatpush.bf16.msra.mxu0 %v540
  %714 = vmatpush.bf16.msra.mxu0 %v539
  %715 = vmatpush.bf16.msra.mxu0 %v538
  %716 = vmatpush.bf16.msra.mxu0 %v537
  %717 = vmatmul.bf16.gmra.mxu0 %v221
  %v718 = vpop.f32.mrf.mxu0
  %v719 = vadd.f32 %v700, %v718
  %v720 = vpop.f32.mrf.mxu0
  %v721 = vadd.f32 %v702, %v720
  %722 = vmatmul.bf16.gmra.mxu0 %v229
  %v723 = vpop.f32.mrf.mxu0
  %v724 = vadd.f32 %v705, %v723
  %v725 = vpop.f32.mrf.mxu0
  %v726 = vadd.f32 %v707, %v725
  %727 = vdwg.mxu0
  %728 = vmatpush.bf16.msra.mxu0 %v552
  %729 = vmatpush.bf16.msra.mxu0 %v551
  %730 = vmatpush.bf16.msra.mxu0 %v550
  %731 = vmatpush.bf16.msra.mxu0 %v549
  %732 = vmatpush.bf16.msra.mxu0 %v548
  %733 = vmatpush.bf16.msra.mxu0 %v547
  %734 = vmatpush.bf16.msra.mxu0 %v546
  %735 = vmatpush.bf16.msra.mxu0 %v545
  %736 = vmatmul.bf16.gmra.mxu0 %v222
  %v737 = vpop.f32.mrf.mxu0
  %v738 = vadd.f32 %v719, %v737
  %v739 = vpop.f32.mrf.mxu0
  %v740 = vadd.f32 %v721, %v739
  %741 = vmatmul.bf16.gmra.mxu0 %v230
  %v742 = vpop.f32.mrf.mxu0
  %v743 = vadd.f32 %v724, %v742
  %v744 = vpop.f32.mrf.mxu0
  %v745 = vadd.f32 %v726, %v744
  %746 = vdwg.mxu0
  %747 = vmatpush.bf16.msra.mxu0 %v560
  %748 = vmatpush.bf16.msra.mxu0 %v559
  %749 = vmatpush.bf16.msra.mxu0 %v558
  %750 = vmatpush.bf16.msra.mxu0 %v557
  %751 = vmatpush.bf16.msra.mxu0 %v556
  %752 = vmatpush.bf16.msra.mxu0 %v555
  %753 = vmatpush.bf16.msra.mxu0 %v554
  %754 = vmatpush.bf16.msra.mxu0 %v553
  %755 = vmatmul.bf16.gmra.mxu0 %v223
  %v756 = vpop.f32.mrf.mxu0
  %v757 = vadd.f32 %v738, %v756
  %v758 = vpop.f32.mrf.mxu0
  %v759 = vadd.f32 %v740, %v758
  %760 = vmatmul.bf16.gmra.mxu0 %v231
  %v761 = vpop.f32.mrf.mxu0
  %v762 = vadd.f32 %v743, %v761
  %v763 = vpop.f32.mrf.mxu0
  %v764 = vadd.f32 %v745, %v763
  %765 = vdwg.mxu0
  %766 = vmatpush.bf16.msra.mxu0 %v568
  %767 = vmatpush.bf16.msra.mxu0 %v567
  %768 = vmatpush.bf16.msra.mxu0 %v566
  %769 = vmatpush.bf16.msra.mxu0 %v565
  %770 = vmatpush.bf16.msra.mxu0 %v564
  %771 = vmatpush.bf16.msra.mxu0 %v563
  %772 = vmatpush.bf16.msra.mxu0 %v562
  %773 = vmatpush.bf16.msra.mxu0 %v561
  %774 = vmatmul.bf16.gmra.mxu0 %v224
  %v775 = vpop.f32.mrf.mxu0
  %v776 = vadd.f32 %v757, %v775
  %v777 = vpop.f32.mrf.mxu0
  %v778 = vadd.f32 %v759, %v777
  %779 = vmatmul.bf16.gmra.mxu0 %v232
  %v780 = vpop.f32.mrf.mxu0
  %v781 = vadd.f32 %v762, %v780
  %v782 = vpop.f32.mrf.mxu0
  %v783 = vadd.f32 %v764, %v782
  %784 = vdwg.mxu0
  %v785 = vadd.f32 %v21, %v776
  %v786 = vadd.f32 %v22, %v778
  %v787 = vadd.f32 %v23, %v781
  %v788 = vadd.f32 %v24, %v783
  %789 = vst [vmem:[#allocation2] sm:$0xff] %v785
  %790 = vst [vmem:[#allocation2 + $0x8] sm:$0xff] %v786
  %791 = vst [vmem:[#allocation2 + $0x10] sm:$0xff] %v787
  %792 = vst [vmem:[#allocation2 + $0x18] sm:$0xff] %v788
  // Predicated region
  $region14: #{discriminator_forward.13} parent=0 // pred_check
    %p793 = pneg %p13
  $region15: #{discriminator_forward.13} parent=0 // pred_check_branch
    %795 = sbr.rel (%p793) target = $region17
  $region16: #{discriminator_forward.13} parent=0 // pred_region
    %v796 = vld [vmem:[#allocation2] sm:$0xff]
    %v797 = vld [vmem:[#allocation2 + $0x8] sm:$0xff]
    %v798 = vld [vmem:[#allocation2 + $0x10] sm:$0xff]
    %v799 = vld [vmem:[#allocation2 + $0x18] sm:$0xff]
    %v800 = vadd.f32 %v796, %v797
    %v801 = vadd.f32 %v800, %v798
    %v802 = vadd.f32 %v801, %v799
    %v803 = vrot.slane %v802, 4
    %v804 = vadd.f32 %v802, %v803
    %v805 = vrot.slane %v804, 2
    %v806 = vadd.f32 %v804, %v805
    %v807 = vrot.slane %v806, 1
    %v808 = vadd.f32 %v806, %v807
    %v809 = vmul.f32 %v796, %v796
    %v810 = vmul.f32 %v797, %v797
    %v811 = vmul.f32 %v798, %v798
    %v812 = vmul.f32 %v799, %v799
    %v813 = vadd.f32 %v809, %v810
    %v814 = vadd.f32 %v813, %v811
    %v815 = vadd.f32 %v814, %v812
    %v816 = vrot.slane %v815, 4
    %v817 = vadd.f32 %v815, %v816
    %v818 = vrot.slane %v817, 2
    %v819 = vadd.f32 %v817, %v818
    %v820 = vrot.slane %v819, 1
    %v821 = vadd.f32 %v819, %v820
    %vm822 = vcmask 1040384
    %v823 = vsel %vm822, %v808, %v821
    %824 = vst [vmem:[%s3] sm:$0x3] %v823
    %v825 = vpack.c.bf16 %v796, %v796
    %v826 = vpack.c.bf16 %v797, %v797
    %v827 = vpack.c.bf16 %v798, %v798
    %v828 = vpack.c.bf16 %v799, %v799
    %829 = vst [vmem:[%s2] sm:$0xf] %v825
    %830 = vst [vmem:[%s2 + $0x4] sm:$0xf] %v826
    %831 = vst [vmem:[%s2 + $0x8] sm:$0xf] %v827
    %832 = vst [vmem:[%s2 + $0xc] sm:$0xf] %v828
  $region17: #{discriminator_forward.13} parent=0 // pred_fallthru
    _
  // Predicated region
  $region18: #{discriminator_forward.13} parent=0 // pred_check
    _
  $region19: #{discriminator_forward.13} parent=0 // pred_check_branch
    %834 = sbr.rel (0) target = $region21
  $region20: #{discriminator_forward.13} parent=0 // pred_region
    _
  $region21: #{discriminator_forward.13} parent=0 // pred_fallthru
    _
  // Predicated region
  $region22: #{discriminator_forward.13} parent=0 // pred_check
    _
  $region23: #{discriminator_forward.13} parent=0 // pred_check_branch
    %836 = sbr.rel (0) target = $region25
  $region24: #{discriminator_forward.13} parent=0 // pred_region
    _
  $region25: #{discriminator_forward.13} parent=0 // pred_fallthru
    _
  // Predicated region
  $region26: #{discriminator_forward.13} parent=0 // pred_check
    _
  $region27: #{discriminator_forward.13} parent=0 // pred_check_branch
    %838 = sbr.rel (0) target = $region29
  $region28: #{discriminator_forward.13} parent=0 // pred_region
    _
  $region29: #{discriminator_forward.13} parent=0 // pred_fallthru
    _
  // Predicated region
  $region30: #{discriminator_forward.13} parent=0 // pred_check
    _
  $region31: #{discriminator_forward.13} parent=0 // pred_check_branch
    %840 = sbr.rel (0) target = $region33
  $region32: #{discriminator_forward.13} parent=0 // pred_region
    _
  $region33: #{discriminator_forward.13} parent=0 // pred_fallthru
    _

// kernel: discriminator_forward.14
$region0: #{discriminator_forward.14}
  #allocation0 [shape = 'u32[]', space=smem, size = 0x4, offset = 0x4, fixed_abs, tag = 'smem constant byte address 0x4 - core index']
  #allocation1 [shape = 'u32[72,128]{1,0:T(1,128)}', space=vmem, size = 0x9000, scoped, tag = 'internal scratch']
  %s0 = inlined_call_operand.vmem [shape: bf16[32,128], index: 0, kind: input, shape index: {}]
  %s1 = inlined_call_operand.vmem [shape: f32[1,128], index: 1, kind: input, shape index: {}]
  %s2 = inlined_call_operand.vmem [shape: f32[1,128], index: 2, kind: input, shape index: {}]
  %s3 = inlined_call_operand.vmem [shape: bf16[32,128], index: 3, kind: output, shape index: {}]
  %s4 = sld [smem:[#allocation0]]
  $region22: #{discriminator_forward.14} parent=0
    _
  %s6 = ssub.s32 1, %s4
  %s7 = scalar_select 0, %s6, %s4
  // Predicated region
  $region2: #{discriminator_forward.14} parent=0 // pred_check
    _
  $region3: #{discriminator_forward.14} parent=0 // pred_check_branch
    %9 = sbr.rel (0) target = $region5
  $region4: #{discriminator_forward.14} parent=0 // pred_region
    _
  $region5: #{discriminator_forward.14} parent=0 // pred_fallthru
    _
  // Predicated region
  $region6: #{discriminator_forward.14} parent=0 // pred_check
    _
  $region7: #{discriminator_forward.14} parent=0 // pred_check_branch
    %11 = sbr.rel (0) target = $region9
  $region8: #{discriminator_forward.14} parent=0 // pred_region
    _
  $region9: #{discriminator_forward.14} parent=0 // pred_fallthru
    _
  // Predicated region
  $region10: #{discriminator_forward.14} parent=0 // pred_check
    _
  $region11: #{discriminator_forward.14} parent=0 // pred_check_branch
    %13 = sbr.rel (0) target = $region13
  $region12: #{discriminator_forward.14} parent=0 // pred_region
    _
  $region13: #{discriminator_forward.14} parent=0 // pred_fallthru
    _
  %v14 = vld [vmem:[%s0] sm:$0xf]
  %v15 = vld [vmem:[%s0 + $0x4] sm:$0xf]
  %v16 = vld [vmem:[%s0 + $0x8] sm:$0xf]
  %v17 = vld [vmem:[%s0 + $0xc] sm:$0xf]
  %v18 = vunpack.c.l.bf16 %v14
  %v19 = vunpack.c.l.bf16 %v15
  %v20 = vunpack.c.l.bf16 %v16
  %v21 = vunpack.c.l.bf16 %v17
  %v22 = vld [vmem:[%s1] sm:$0x1]
  %v24 = vperm.slane %v22, 0
  %v26 = vmul.f32 %v18, %v24
  %v27 = vmul.f32 %v19, %v24
  %v28 = vmul.f32 %v20, %v24
  %v29 = vmul.f32 %v21, %v24
  %v30 = vld [vmem:[%s2] sm:$0x1]
  %v32 = vperm.slane %v30, 0
  %v34 = vadd.f32 %v26, %v32
  %v35 = vadd.f32 %v27, %v32
  %v36 = vadd.f32 %v28, %v32
  %v37 = vadd.f32 %v29, %v32
  %vm38 = vcmp.gt.f32.partialorder %v34, 0.0
  %vm39 = vcmp.gt.f32.partialorder %v35, 0.0
  %vm40 = vcmp.gt.f32.partialorder %v36, 0.0
  %vm41 = vcmp.gt.f32.partialorder %v37, 0.0
  %v42 = vmul.f32 %v34, 0.2
  %v43 = vmul.f32 %v35, 0.2
  %v44 = vmul.f32 %v36, 0.2
  %v45 = vmul.f32 %v37, 0.2
  %v46 = vsel %vm38, %v34, %v42
  %v47 = vsel %vm39, %v35, %v43
  %v48 = vsel %vm40, %v36, %v44
  %v49 = vsel %vm41, %v37, %v45
  %v50 = vpack.c.bf16 %v46, %v46
  %v51 = vpack.c.bf16 %v47, %v47
  %v52 = vpack.c.bf16 %v48, %v48
  %v53 = vpack.c.bf16 %v49, %v49
  %54 = vst [vmem:[%s3] sm:$0xf] %v50
  %55 = vst [vmem:[%s3 + $0x4] sm:$0xf] %v51
  %56 = vst [vmem:[%s3 + $0x8] sm:$0xf] %v52
  %57 = vst [vmem:[%s3 + $0xc] sm:$0xf] %v53
  // Predicated region
  $region14: #{discriminator_forward.14} parent=0 // pred_check
    _
  $region15: #{discriminator_forward.14} parent=0 // pred_check_branch
    %59 = sbr.rel (0) target = $region17
  $region16: #{discriminator_forward.14} parent=0 // pred_region
    _
  $region17: #{discriminator_forward.14} parent=0 // pred_fallthru
    _
  // Predicated region
  $region18: #{discriminator_forward.14} parent=0 // pred_check
    _
  $region19: #{discriminator_forward.14} parent=0 // pred_check_branch
    %61 = sbr.rel (0) target = $region21
  $region20: #{discriminator_forward.14} parent=0 // pred_region
    _
  $region21: #{discriminator_forward.14} parent=0 // pred_fallthru
    _

// kernel: discriminator_forward.15
$region0: #{discriminator_forward.15}
  #allocation0 [shape = 'u32[]', space=smem, size = 0x4, offset = 0x4, fixed_abs, tag = 'smem constant byte address 0x4 - core index']
  #allocation1 [shape = 'u32[72,128]{1,0:T(1,128)}', space=vmem, size = 0x9000, scoped, tag = 'internal scratch']
  #allocation2 [shape = 'f32[2,1]{1,0:T(2,128)}', space=vmem, size = 0x400, scoped, tag = 'scratch operand']
  #allocation3 [shape = 'f32[1,1]{1,0:T(1,128)S(1)}', space=vmem, size = 0x200, scoped, tag = 'scoped memory for discriminator_forward.15']
  %s0 = inlined_call_operand.vmem [shape: bf16[2,2048], index: 0, kind: input, shape index: {}]
  %s1 = inlined_call_operand.vmem [shape: bf16[2048,1], index: 1, kind: input, shape index: {}]
  %s2 = inlined_call_operand.<no memory space> [shape: f32[1,1], index: 2, kind: input, shape index: {}]
  %s3 = inlined_call_operand.vmem [shape: f32[2,1], index: 3, kind: output, shape index: {}]
  %s4 = sld [smem:[#allocation0]]
  $region30: #{discriminator_forward.15} parent=0
    _
  %s6 = ssub.s32 1, %s4
  %s7 = scalar_select 0, %s6, %s4
  %v8 = vstv %s2
  %9 = vst [vmem:[#allocation3] sm:$0x1] %v8
  // Predicated region
  $region2: #{discriminator_forward.15} parent=0 // pred_check
    _
  $region3: #{discriminator_forward.15} parent=0 // pred_check_branch
    %11 = sbr.rel (0) target = $region5
  $region4: #{discriminator_forward.15} parent=0 // pred_region
    _
  $region5: #{discriminator_forward.15} parent=0 // pred_fallthru
    _
  // Predicated region
  $region6: #{discriminator_forward.15} parent=0 // pred_check
    _
  $region7: #{discriminator_forward.15} parent=0 // pred_check_branch
    %13 = sbr.rel (0) target = $region9
  $region8: #{discriminator_forward.15} parent=0 // pred_region
    _
  $region9: #{discriminator_forward.15} parent=0 // pred_fallthru
    _
  // Predicated region
  $region10: #{discriminator_forward.15} parent=0 // pred_check
    _
  $region11: #{discriminator_forward.15} parent=0 // pred_check_branch
    %15 = sbr.rel (0) target = $region13
  $region12: #{discriminator_forward.15} parent=0 // pred_region
    _
  $region13: #{discriminator_forward.15} parent=0 // pred_fallthru
    _
  %p16 = scmp.eq.s32.totalorder 0, 0
  // Predicated region
  $region14: #{discriminator_forward.15} parent=0 // pred_check
    %p17 = pneg %p16
  $region15: #{discriminator_forward.15} parent=0 // pred_check_branch
    %19 = sbr.rel (%p17) target = $region17
  $region16: #{discriminator_forward.15} parent=0 // pred_region
    %vm20 = vcmask 1024
    %21 = vst.msk [vmem:[#allocation2] sm:$0x3] %vm20, 0.0
  $region17: #{discriminator_forward.15} parent=0 // pred_fallthru
    _
  %v22 = vld [vmem:[#allocation2] sm:$0x3]
  %v23 = vld [vmem:[%s0] sm:$0xff]
  %v24 = vld [vmem:[%s0 + $0x8] sm:$0xff]
  %v25 = vld [vmem:[%s1] sm:$0xf]
  %v26 = vld [vmem:[%s1 + $0x4] sm:$0xf]
  %v27 = vld [vmem:[%s1 + $0x8] sm:$0xf]
  %v28 = vld [vmem:[%s1 + $0xc] sm:$0xf]
  %v29 = vld [vmem:[%s1 + $0x10] sm:$0xf]
  %v30 = vld [vmem:[%s1 + $0x14] sm:$0xf]
  %v31 = vld [vmem:[%s1 + $0x18] sm:$0xf]
  %v32 = vld [vmem:[%s1 + $0x1c] sm:$0xf]
  %v33 = vld [vmem:[%s1 + $0x20] sm:$0xf]
  %v34 = vld [vmem:[%s1 + $0x24] sm:$0xf]
  %v35 = vld [vmem:[%s1 + $0x28] sm:$0xf]
  %v36 = vld [vmem:[%s1 + $0x2c] sm:$0xf]
  %v37 = vld [vmem:[%s1 + $0x30] sm:$0xf]
  %v38 = vld [vmem:[%s1 + $0x34] sm:$0xf]
  %v39 = vld [vmem:[%s1 + $0x38] sm:$0xf]
  %v40 = vld [vmem:[%s1 + $0x3c] sm:$0xf]
  %v41 = vld [vmem:[%s1 + $0x40] sm:$0xf]
  %v42 = vld [vmem:[%s1 + $0x44] sm:$0xf]
  %v43 = vld [vmem:[%s1 + $0x48] sm:$0xf]
  %v44 = vld [vmem:[%s1 + $0x4c] sm:$0xf]
  %v45 = vld [vmem:[%s1 + $0x50] sm:$0xf]
  %v46 = vld [vmem:[%s1 + $0x54] sm:$0xf]
  %v47 = vld [vmem:[%s1 + $0x58] sm:$0xf]
  %v48 = vld [vmem:[%s1 + $0x5c] sm:$0xf]
  %v49 = vld [vmem:[%s1 + $0x60] sm:$0xf]
  %v50 = vld [vmem:[%s1 + $0x64] sm:$0xf]
  %v51 = vld [vmem:[%s1 + $0x68] sm:$0xf]
  %v52 = vld [vmem:[%s1 + $0x6c] sm:$0xf]
  %v53 = vld [vmem:[%s1 + $0x70] sm:$0xf]
  %v54 = vld [vmem:[%s1 + $0x74] sm:$0xf]
  %v55 = vld [vmem:[%s1 + $0x78] sm:$0xf]
  %v56 = vld [vmem:[%s1 + $0x7c] sm:$0xf]
  %v57 = vld [vmem:[%s1 + $0x80] sm:$0xf]
  %v58 = vld [vmem:[%s1 + $0x84] sm:$0xf]
  %v59 = vld [vmem:[%s1 + $0x88] sm:$0xf]
  %v60 = vld [vmem:[%s1 + $0x8c] sm:$0xf]
  %v61 = vld [vmem:[%s1 + $0x90] sm:$0xf]
  %v62 = vld [vmem:[%s1 + $0x94] sm:$0xf]
  %v63 = vld [vmem:[%s1 + $0x98] sm:$0xf]
  %v64 = vld [vmem:[%s1 + $0x9c] sm:$0xf]
  %v65 = vld [vmem:[%s1 + $0xa0] sm:$0xf]
  %v66 = vld [vmem:[%s1 + $0xa4] sm:$0xf]
  %v67 = vld [vmem:[%s1 + $0xa8] sm:$0xf]
  %v68 = vld [vmem:[%s1 + $0xac] sm:$0xf]
  %v69 = vld [vmem:[%s1 + $0xb0] sm:$0xf]
  %v70 = vld [vmem:[%s1 + $0xb4] sm:$0xf]
  %v71 = vld [vmem:[%s1 + $0xb8] sm:$0xf]
  %v72 = vld [vmem:[%s1 + $0xbc] sm:$0xf]
  %v73 = vld [vmem:[%s1 + $0xc0] sm:$0xf]
  %v74 = vld [vmem:[%s1 + $0xc4] sm:$0xf]
  %v75 = vld [vmem:[%s1 + $0xc8] sm:$0xf]
  %v76 = vld [vmem:[%s1 + $0xcc] sm:$0xf]
  %v77 = vld [vmem:[%s1 + $0xd0] sm:$0xf]
  %v78 = vld [vmem:[%s1 + $0xd4] sm:$0xf]
  %v79 = vld [vmem:[%s1 + $0xd8] sm:$0xf]
  %v80 = vld [vmem:[%s1 + $0xdc] sm:$0xf]
  %v81 = vld [vmem:[%s1 + $0xe0] sm:$0xf]
  %v82 = vld [vmem:[%s1 + $0xe4] sm:$0xf]
  %v83 = vld [vmem:[%s1 + $0xe8] sm:$0xf]
  %v84 = vld [vmem:[%s1 + $0xec] sm:$0xf]
  %v85 = vld [vmem:[%s1 + $0xf0] sm:$0xf]
  %v86 = vld [vmem:[%s1 + $0xf4] sm:$0xf]
  %v87 = vld [vmem:[%s1 + $0xf8] sm:$0xf]
  %v88 = vld [vmem:[%s1 + $0xfc] sm:$0xf]
  %v89 = vld [vmem:[%s1 + $0x100] sm:$0xf]
  %v90 = vld [vmem:[%s1 + $0x104] sm:$0xf]
  %v91 = vld [vmem:[%s1 + $0x108] sm:$0xf]
  %v92 = vld [vmem:[%s1 + $0x10c] sm:$0xf]
  %v93 = vld [vmem:[%s1 + $0x110] sm:$0xf]
  %v94 = vld [vmem:[%s1 + $0x114] sm:$0xf]
  %v95 = vld [vmem:[%s1 + $0x118] sm:$0xf]
  %v96 = vld [vmem:[%s1 + $0x11c] sm:$0xf]
  %v97 = vld [vmem:[%s1 + $0x120] sm:$0xf]
  %v98 = vld [vmem:[%s1 + $0x124] sm:$0xf]
  %v99 = vld [vmem:[%s1 + $0x128] sm:$0xf]
  %v100 = vld [vmem:[%s1 + $0x12c] sm:$0xf]
  %v101 = vld [vmem:[%s1 + $0x130] sm:$0xf]
  %v102 = vld [vmem:[%s1 + $0x134] sm:$0xf]
  %v103 = vld [vmem:[%s1 + $0x138] sm:$0xf]
  %v104 = vld [vmem:[%s1 + $0x13c] sm:$0xf]
  %v105 = vld [vmem:[%s1 + $0x140] sm:$0xf]
  %v106 = vld [vmem:[%s1 + $0x144] sm:$0xf]
  %v107 = vld [vmem:[%s1 + $0x148] sm:$0xf]
  %v108 = vld [vmem:[%s1 + $0x14c] sm:$0xf]
  %v109 = vld [vmem:[%s1 + $0x150] sm:$0xf]
  %v110 = vld [vmem:[%s1 + $0x154] sm:$0xf]
  %v111 = vld [vmem:[%s1 + $0x158] sm:$0xf]
  %v112 = vld [vmem:[%s1 + $0x15c] sm:$0xf]
  %v113 = vld [vmem:[%s1 + $0x160] sm:$0xf]
  %v114 = vld [vmem:[%s1 + $0x164] sm:$0xf]
  %v115 = vld [vmem:[%s1 + $0x168] sm:$0xf]
  %v116 = vld [vmem:[%s1 + $0x16c] sm:$0xf]
  %v117 = vld [vmem:[%s1 + $0x170] sm:$0xf]
  %v118 = vld [vmem:[%s1 + $0x174] sm:$0xf]
  %v119 = vld [vmem:[%s1 + $0x178] sm:$0xf]
  %v120 = vld [vmem:[%s1 + $0x17c] sm:$0xf]
  %v121 = vld [vmem:[%s1 + $0x180] sm:$0xf]
  %v122 = vld [vmem:[%s1 + $0x184] sm:$0xf]
  %v123 = vld [vmem:[%s1 + $0x188] sm:$0xf]
  %v124 = vld [vmem:[%s1 + $0x18c] sm:$0xf]
  %v125 = vld [vmem:[%s1 + $0x190] sm:$0xf]
  %v126 = vld [vmem:[%s1 + $0x194] sm:$0xf]
  %v127 = vld [vmem:[%s1 + $0x198] sm:$0xf]
  %v128 = vld [vmem:[%s1 + $0x19c] sm:$0xf]
  %v129 = vld [vmem:[%s1 + $0x1a0] sm:$0xf]
  %v130 = vld [vmem:[%s1 + $0x1a4] sm:$0xf]
  %v131 = vld [vmem:[%s1 + $0x1a8] sm:$0xf]
  %v132 = vld [vmem:[%s1 + $0x1ac] sm:$0xf]
  %v133 = vld [vmem:[%s1 + $0x1b0] sm:$0xf]
  %v134 = vld [vmem:[%s1 + $0x1b4] sm:$0xf]
  %v135 = vld [vmem:[%s1 + $0x1b8] sm:$0xf]
  %v136 = vld [vmem:[%s1 + $0x1bc] sm:$0xf]
  %v137 = vld [vmem:[%s1 + $0x1c0] sm:$0xf]
  %v138 = vld [vmem:[%s1 + $0x1c4] sm:$0xf]
  %v139 = vld [vmem:[%s1 + $0x1c8] sm:$0xf]
  %v140 = vld [vmem:[%s1 + $0x1cc] sm:$0xf]
  %v141 = vld [vmem:[%s1 + $0x1d0] sm:$0xf]
  %v142 = vld [vmem:[%s1 + $0x1d4] sm:$0xf]
  %v143 = vld [vmem:[%s1 + $0x1d8] sm:$0xf]
  %v144 = vld [vmem:[%s1 + $0x1dc] sm:$0xf]
  %v145 = vld [vmem:[%s1 + $0x1e0] sm:$0xf]
  %v146 = vld [vmem:[%s1 + $0x1e4] sm:$0xf]
  %v147 = vld [vmem:[%s1 + $0x1e8] sm:$0xf]
  %v148 = vld [vmem:[%s1 + $0x1ec] sm:$0xf]
  %v149 = vld [vmem:[%s1 + $0x1f0] sm:$0xf]
  %v150 = vld [vmem:[%s1 + $0x1f4] sm:$0xf]
  %v151 = vld [vmem:[%s1 + $0x1f8] sm:$0xf]
  %v152 = vld [vmem:[%s1 + $0x1fc] sm:$0xf]
  %v153 = vld [vmem:[%s1 + $0x200] sm:$0xf]
  %v154 = vld [vmem:[%s1 + $0x204] sm:$0xf]
  %v155 = vld [vmem:[%s1 + $0x208] sm:$0xf]
  %v156 = vld [vmem:[%s1 + $0x20c] sm:$0xf]
  %v157 = vld [vmem:[%s1 + $0x210] sm:$0xf]
  %v158 = vld [vmem:[%s1 + $0x214] sm:$0xf]
  %v159 = vld [vmem:[%s1 + $0x218] sm:$0xf]
  %v160 = vld [vmem:[%s1 + $0x21c] sm:$0xf]
  %v161 = vld [vmem:[%s1 + $0x220] sm:$0xf]
  %v162 = vld [vmem:[%s1 + $0x224] sm:$0xf]
  %v163 = vld [vmem:[%s1 + $0x228] sm:$0xf]
  %v164 = vld [vmem:[%s1 + $0x22c] sm:$0xf]
  %v165 = vld [vmem:[%s1 + $0x230] sm:$0xf]
  %v166 = vld [vmem:[%s1 + $0x234] sm:$0xf]
  %v167 = vld [vmem:[%s1 + $0x238] sm:$0xf]
  %v168 = vld [vmem:[%s1 + $0x23c] sm:$0xf]
  %v169 = vld [vmem:[%s1 + $0x240] sm:$0xf]
  %v170 = vld [vmem:[%s1 + $0x244] sm:$0xf]
  %v171 = vld [vmem:[%s1 + $0x248] sm:$0xf]
  %v172 = vld [vmem:[%s1 + $0x24c] sm:$0xf]
  %v173 = vld [vmem:[%s1 + $0x250] sm:$0xf]
  %v174 = vld [vmem:[%s1 + $0x254] sm:$0xf]
  %v175 = vld [vmem:[%s1 + $0x258] sm:$0xf]
  %v176 = vld [vmem:[%s1 + $0x25c] sm:$0xf]
  %v177 = vld [vmem:[%s1 + $0x260] sm:$0xf]
  %v178 = vld [vmem:[%s1 + $0x264] sm:$0xf]
  %v179 = vld [vmem:[%s1 + $0x268] sm:$0xf]
  %v180 = vld [vmem:[%s1 + $0x26c] sm:$0xf]
  %v181 = vld [vmem:[%s1 + $0x270] sm:$0xf]
  %v182 = vld [vmem:[%s1 + $0x274] sm:$0xf]
  %v183 = vld [vmem:[%s1 + $0x278] sm:$0xf]
  %v184 = vld [vmem:[%s1 + $0x27c] sm:$0xf]
  %v185 = vld [vmem:[%s1 + $0x280] sm:$0xf]
  %v186 = vld [vmem:[%s1 + $0x284] sm:$0xf]
  %v187 = vld [vmem:[%s1 + $0x288] sm:$0xf]
  %v188 = vld [vmem:[%s1 + $0x28c] sm:$0xf]
  %v189 = vld [vmem:[%s1 + $0x290] sm:$0xf]
  %v190 = vld [vmem:[%s1 + $0x294] sm:$0xf]
  %v191 = vld [vmem:[%s1 + $0x298] sm:$0xf]
  %v192 = vld [vmem:[%s1 + $0x29c] sm:$0xf]
  %v193 = vld [vmem:[%s1 + $0x2a0] sm:$0xf]
  %v194 = vld [vmem:[%s1 + $0x2a4] sm:$0xf]
  %v195 = vld [vmem:[%s1 + $0x2a8] sm:$0xf]
  %v196 = vld [vmem:[%s1 + $0x2ac] sm:$0xf]
  %v197 = vld [vmem:[%s1 + $0x2b0] sm:$0xf]
  %v198 = vld [vmem:[%s1 + $0x2b4] sm:$0xf]
  %v199 = vld [vmem:[%s1 + $0x2b8] sm:$0xf]
  %v200 = vld [vmem:[%s1 + $0x2bc] sm:$0xf]
  %v201 = vld [vmem:[%s1 + $0x2c0] sm:$0xf]
  %v202 = vld [vmem:[%s1 + $0x2c4] sm:$0xf]
  %v203 = vld [vmem:[%s1 + $0x2c8] sm:$0xf]
  %v204 = vld [vmem:[%s1 + $0x2cc] sm:$0xf]
  %v205 = vld [vmem:[%s1 + $0x2d0] sm:$0xf]
  %v206 = vld [vmem:[%s1 + $0x2d4] sm:$0xf]
  %v207 = vld [vmem:[%s1 + $0x2d8] sm:$0xf]
  %v208 = vld [vmem:[%s1 + $0x2dc] sm:$0xf]
  %v209 = vld [vmem:[%s1 + $0x2e0] sm:$0xf]
  %v210 = vld [vmem:[%s1 + $0x2e4] sm:$0xf]
  %v211 = vld [vmem:[%s1 + $0x2e8] sm:$0xf]
  %v212 = vld [vmem:[%s1 + $0x2ec] sm:$0xf]
  %v213 = vld [vmem:[%s1 + $0x2f0] sm:$0xf]
  %v214 = vld [vmem:[%s1 + $0x2f4] sm:$0xf]
  %v215 = vld [vmem:[%s1 + $0x2f8] sm:$0xf]
  %v216 = vld [vmem:[%s1 + $0x2fc] sm:$0xf]
  %v217 = vld [vmem:[%s1 + $0x300] sm:$0xf]
  %v218 = vld [vmem:[%s1 + $0x304] sm:$0xf]
  %v219 = vld [vmem:[%s1 + $0x308] sm:$0xf]
  %v220 = vld [vmem:[%s1 + $0x30c] sm:$0xf]
  %v221 = vld [vmem:[%s1 + $0x310] sm:$0xf]
  %v222 = vld [vmem:[%s1 + $0x314] sm:$0xf]
  %v223 = vld [vmem:[%s1 + $0x318] sm:$0xf]
  %v224 = vld [vmem:[%s1 + $0x31c] sm:$0xf]
  %v225 = vld [vmem:[%s1 + $0x320] sm:$0xf]
  %v226 = vld [vmem:[%s1 + $0x324] sm:$0xf]
  %v227 = vld [vmem:[%s1 + $0x328] sm:$0xf]
  %v228 = vld [vmem:[%s1 + $0x32c] sm:$0xf]
  %v229 = vld [vmem:[%s1 + $0x330] sm:$0xf]
  %v230 = vld [vmem:[%s1 + $0x334] sm:$0xf]
  %v231 = vld [vmem:[%s1 + $0x338] sm:$0xf]
  %v232 = vld [vmem:[%s1 + $0x33c] sm:$0xf]
  %v233 = vld [vmem:[%s1 + $0x340] sm:$0xf]
  %v234 = vld [vmem:[%s1 + $0x344] sm:$0xf]
  %v235 = vld [vmem:[%s1 + $0x348] sm:$0xf]
  %v236 = vld [vmem:[%s1 + $0x34c] sm:$0xf]
  %v237 = vld [vmem:[%s1 + $0x350] sm:$0xf]
  %v238 = vld [vmem:[%s1 + $0x354] sm:$0xf]
  %v239 = vld [vmem:[%s1 + $0x358] sm:$0xf]
  %v240 = vld [vmem:[%s1 + $0x35c] sm:$0xf]
  %v241 = vld [vmem:[%s1 + $0x360] sm:$0xf]
  %v242 = vld [vmem:[%s1 + $0x364] sm:$0xf]
  %v243 = vld [vmem:[%s1 + $0x368] sm:$0xf]
  %v244 = vld [vmem:[%s1 + $0x36c] sm:$0xf]
  %v245 = vld [vmem:[%s1 + $0x370] sm:$0xf]
  %v246 = vld [vmem:[%s1 + $0x374] sm:$0xf]
  %v247 = vld [vmem:[%s1 + $0x378] sm:$0xf]
  %v248 = vld [vmem:[%s1 + $0x37c] sm:$0xf]
  %v249 = vld [vmem:[%s1 + $0x380] sm:$0xf]
  %v250 = vld [vmem:[%s1 + $0x384] sm:$0xf]
  %v251 = vld [vmem:[%s1 + $0x388] sm:$0xf]
  %v252 = vld [vmem:[%s1 + $0x38c] sm:$0xf]
  %v253 = vld [vmem:[%s1 + $0x390] sm:$0xf]
  %v254 = vld [vmem:[%s1 + $0x394] sm:$0xf]
  %v255 = vld [vmem:[%s1 + $0x398] sm:$0xf]
  %v256 = vld [vmem:[%s1 + $0x39c] sm:$0xf]
  %v257 = vld [vmem:[%s1 + $0x3a0] sm:$0xf]
  %v258 = vld [vmem:[%s1 + $0x3a4] sm:$0xf]
  %v259 = vld [vmem:[%s1 + $0x3a8] sm:$0xf]
  %v260 = vld [vmem:[%s1 + $0x3ac] sm:$0xf]
  %v261 = vld [vmem:[%s1 + $0x3b0] sm:$0xf]
  %v262 = vld [vmem:[%s1 + $0x3b4] sm:$0xf]
  %v263 = vld [vmem:[%s1 + $0x3b8] sm:$0xf]
  %v264 = vld [vmem:[%s1 + $0x3bc] sm:$0xf]
  %v265 = vld [vmem:[%s1 + $0x3c0] sm:$0xf]
  %v266 = vld [vmem:[%s1 + $0x3c4] sm:$0xf]
  %v267 = vld [vmem:[%s1 + $0x3c8] sm:$0xf]
  %v268 = vld [vmem:[%s1 + $0x3cc] sm:$0xf]
  %v269 = vld [vmem:[%s1 + $0x3d0] sm:$0xf]
  %v270 = vld [vmem:[%s1 + $0x3d4] sm:$0xf]
  %v271 = vld [vmem:[%s1 + $0x3d8] sm:$0xf]
  %v272 = vld [vmem:[%s1 + $0x3dc] sm:$0xf]
  %v273 = vld [vmem:[%s1 + $0x3e0] sm:$0xf]
  %v274 = vld [vmem:[%s1 + $0x3e4] sm:$0xf]
  %v275 = vld [vmem:[%s1 + $0x3e8] sm:$0xf]
  %v276 = vld [vmem:[%s1 + $0x3ec] sm:$0xf]
  %v277 = vld [vmem:[%s1 + $0x3f0] sm:$0xf]
  %v278 = vld [vmem:[%s1 + $0x3f4] sm:$0xf]
  %v279 = vld [vmem:[%s1 + $0x3f8] sm:$0xf]
  %v280 = vld [vmem:[%s1 + $0x3fc] sm:$0xf]
  %282 = vst [vmem:[#allocation1] ss:$9 sm:$0xff] %v23
  %v283 = vld [vmem:[#allocation1] sm:$0xff]
  %v284 = vld [vmem:[#allocation1 + $0x9] sm:$0xff]
  %v285 = vld [vmem:[#allocation1 + $0x12] sm:$0xff]
  %v286 = vld [vmem:[#allocation1 + $0x1b] sm:$0xff]
  %v287 = vld [vmem:[#allocation1 + $0x24] sm:$0xff]
  %v288 = vld [vmem:[#allocation1 + $0x2d] sm:$0xff]
  %v289 = vld [vmem:[#allocation1 + $0x36] sm:$0xff]
  %v290 = vld [vmem:[#allocation1 + $0x3f] sm:$0xff]
  %292 = vst [vmem:[#allocation1] ss:$9 sm:$0xff] %v24
  %v293 = vld [vmem:[#allocation1] sm:$0xff]
  %v294 = vld [vmem:[#allocation1 + $0x9] sm:$0xff]
  %v295 = vld [vmem:[#allocation1 + $0x12] sm:$0xff]
  %v296 = vld [vmem:[#allocation1 + $0x1b] sm:$0xff]
  %v297 = vld [vmem:[#allocation1 + $0x24] sm:$0xff]
  %v298 = vld [vmem:[#allocation1 + $0x2d] sm:$0xff]
  %v299 = vld [vmem:[#allocation1 + $0x36] sm:$0xff]
  %v300 = vld [vmem:[#allocation1 + $0x3f] sm:$0xff]
  %v573 = vunpack.c.l.b16 %v25
  %v574 = vunpack.c.l.b16 %v26
  %v575 = vunpack.c.l.b16 %v27
  %v576 = vunpack.c.l.b16 %v28
  %v577 = vunpack.c.l.b16 %v29
  %v578 = vunpack.c.l.b16 %v30
  %v579 = vunpack.c.l.b16 %v31
  %v580 = vunpack.c.l.b16 %v32
  %v581 = vunpack.c.l.b16 %v33
  %v582 = vunpack.c.l.b16 %v34
  %v583 = vunpack.c.l.b16 %v35
  %v584 = vunpack.c.l.b16 %v36
  %v585 = vunpack.c.l.b16 %v37
  %v586 = vunpack.c.l.b16 %v38
  %v587 = vunpack.c.l.b16 %v39
  %v588 = vunpack.c.l.b16 %v40
  %v589 = vunpack.c.l.b16 %v41
  %v590 = vunpack.c.l.b16 %v42
  %v591 = vunpack.c.l.b16 %v43
  %v592 = vunpack.c.l.b16 %v44
  %v593 = vunpack.c.l.b16 %v45
  %v594 = vunpack.c.l.b16 %v46
  %v595 = vunpack.c.l.b16 %v47
  %v596 = vunpack.c.l.b16 %v48
  %v597 = vunpack.c.l.b16 %v49
  %v598 = vunpack.c.l.b16 %v50
  %v599 = vunpack.c.l.b16 %v51
  %v600 = vunpack.c.l.b16 %v52
  %v601 = vunpack.c.l.b16 %v53
  %v602 = vunpack.c.l.b16 %v54
  %v603 = vunpack.c.l.b16 %v55
  %v604 = vunpack.c.l.b16 %v56
  %v605 = vunpack.c.l.b16 %v57
  %v606 = vunpack.c.l.b16 %v58
  %v607 = vunpack.c.l.b16 %v59
  %v608 = vunpack.c.l.b16 %v60
  %v609 = vunpack.c.l.b16 %v61
  %v610 = vunpack.c.l.b16 %v62
  %v611 = vunpack.c.l.b16 %v63
  %v612 = vunpack.c.l.b16 %v64
  %v613 = vunpack.c.l.b16 %v65
  %v614 = vunpack.c.l.b16 %v66
  %v615 = vunpack.c.l.b16 %v67
  %v616 = vunpack.c.l.b16 %v68
  %v617 = vunpack.c.l.b16 %v69
  %v618 = vunpack.c.l.b16 %v70
  %v619 = vunpack.c.l.b16 %v71
  %v620 = vunpack.c.l.b16 %v72
  %v621 = vunpack.c.l.b16 %v73
  %v622 = vunpack.c.l.b16 %v74
  %v623 = vunpack.c.l.b16 %v75
  %v624 = vunpack.c.l.b16 %v76
  %v625 = vunpack.c.l.b16 %v77
  %v626 = vunpack.c.l.b16 %v78
  %v627 = vunpack.c.l.b16 %v79
  %v628 = vunpack.c.l.b16 %v80
  %v629 = vunpack.c.l.b16 %v81
  %v630 = vunpack.c.l.b16 %v82
  %v631 = vunpack.c.l.b16 %v83
  %v632 = vunpack.c.l.b16 %v84
  %v633 = vunpack.c.l.b16 %v85
  %v634 = vunpack.c.l.b16 %v86
  %v635 = vunpack.c.l.b16 %v87
  %v636 = vunpack.c.l.b16 %v88
  %v637 = vunpack.c.l.b16 %v89
  %v638 = vunpack.c.l.b16 %v90
  %v639 = vunpack.c.l.b16 %v91
  %v640 = vunpack.c.l.b16 %v92
  %v641 = vunpack.c.l.b16 %v93
  %v642 = vunpack.c.l.b16 %v94
  %v643 = vunpack.c.l.b16 %v95
  %v644 = vunpack.c.l.b16 %v96
  %v645 = vunpack.c.l.b16 %v97
  %v646 = vunpack.c.l.b16 %v98
  %v647 = vunpack.c.l.b16 %v99
  %v648 = vunpack.c.l.b16 %v100
  %v649 = vunpack.c.l.b16 %v101
  %v650 = vunpack.c.l.b16 %v102
  %v651 = vunpack.c.l.b16 %v103
  %v652 = vunpack.c.l.b16 %v104
  %v653 = vunpack.c.l.b16 %v105
  %v654 = vunpack.c.l.b16 %v106
  %v655 = vunpack.c.l.b16 %v107
  %v656 = vunpack.c.l.b16 %v108
  %v657 = vunpack.c.l.b16 %v109
  %v658 = vunpack.c.l.b16 %v110
  %v659 = vunpack.c.l.b16 %v111
  %v660 = vunpack.c.l.b16 %v112
  %v661 = vunpack.c.l.b16 %v113
  %v662 = vunpack.c.l.b16 %v114
  %v663 = vunpack.c.l.b16 %v115
  %v664 = vunpack.c.l.b16 %v116
  %v665 = vunpack.c.l.b16 %v117
  %v666 = vunpack.c.l.b16 %v118
  %v667 = vunpack.c.l.b16 %v119
  %v668 = vunpack.c.l.b16 %v120
  %v669 = vunpack.c.l.b16 %v121
  %v670 = vunpack.c.l.b16 %v122
  %v671 = vunpack.c.l.b16 %v123
  %v672 = vunpack.c.l.b16 %v124
  %v673 = vunpack.c.l.b16 %v125
  %v674 = vunpack.c.l.b16 %v126
  %v675 = vunpack.c.l.b16 %v127
  %v676 = vunpack.c.l.b16 %v128
  %v677 = vunpack.c.l.b16 %v129
  %v678 = vunpack.c.l.b16 %v130
  %v679 = vunpack.c.l.b16 %v131
  %v680 = vunpack.c.l.b16 %v132
  %v681 = vunpack.c.l.b16 %v133
  %v682 = vunpack.c.l.b16 %v134
  %v683 = vunpack.c.l.b16 %v135
  %v684 = vunpack.c.l.b16 %v136
  %v685 = vunpack.c.l.b16 %v137
  %v686 = vunpack.c.l.b16 %v138
  %v687 = vunpack.c.l.b16 %v139
  %v688 = vunpack.c.l.b16 %v140
  %v689 = vunpack.c.l.b16 %v141
  %v690 = vunpack.c.l.b16 %v142
  %v691 = vunpack.c.l.b16 %v143
  %v692 = vunpack.c.l.b16 %v144
  %v693 = vunpack.c.l.b16 %v145
  %v694 = vunpack.c.l.b16 %v146
  %v695 = vunpack.c.l.b16 %v147
  %v696 = vunpack.c.l.b16 %v148
  %v697 = vunpack.c.l.b16 %v149
  %v698 = vunpack.c.l.b16 %v150
  %v699 = vunpack.c.l.b16 %v151
  %v700 = vunpack.c.l.b16 %v152
  %v701 = vunpack.c.l.b16 %v153
  %v702 = vunpack.c.l.b16 %v154
  %v703 = vunpack.c.l.b16 %v155
  %v704 = vunpack.c.l.b16 %v156
  %v705 = vunpack.c.l.b16 %v157
  %v706 = vunpack.c.l.b16 %v158
  %v707 = vunpack.c.l.b16 %v159
  %v708 = vunpack.c.l.b16 %v160
  %v709 = vunpack.c.l.b16 %v161
  %v710 = vunpack.c.l.b16 %v162
  %v711 = vunpack.c.l.b16 %v163
  %v712 = vunpack.c.l.b16 %v164
  %v713 = vunpack.c.l.b16 %v165
  %v714 = vunpack.c.l.b16 %v166
  %v715 = vunpack.c.l.b16 %v167
  %v716 = vunpack.c.l.b16 %v168
  %v717 = vunpack.c.l.b16 %v169
  %v718 = vunpack.c.l.b16 %v170
  %v719 = vunpack.c.l.b16 %v171
  %v720 = vunpack.c.l.b16 %v172
  %v721 = vunpack.c.l.b16 %v173
  %v722 = vunpack.c.l.b16 %v174
  %v723 = vunpack.c.l.b16 %v175
  %v724 = vunpack.c.l.b16 %v176
  %v725 = vunpack.c.l.b16 %v177
  %v726 = vunpack.c.l.b16 %v178
  %v727 = vunpack.c.l.b16 %v179
  %v728 = vunpack.c.l.b16 %v180
  %v729 = vunpack.c.l.b16 %v181
  %v730 = vunpack.c.l.b16 %v182
  %v731 = vunpack.c.l.b16 %v183
  %v732 = vunpack.c.l.b16 %v184
  %v733 = vunpack.c.l.b16 %v185
  %v734 = vunpack.c.l.b16 %v186
  %v735 = vunpack.c.l.b16 %v187
  %v736 = vunpack.c.l.b16 %v188
  %v737 = vunpack.c.l.b16 %v189
  %v738 = vunpack.c.l.b16 %v190
  %v739 = vunpack.c.l.b16 %v191
  %v740 = vunpack.c.l.b16 %v192
  %v741 = vunpack.c.l.b16 %v193
  %v742 = vunpack.c.l.b16 %v194
  %v743 = vunpack.c.l.b16 %v195
  %v744 = vunpack.c.l.b16 %v196
  %v745 = vunpack.c.l.b16 %v197
  %v746 = vunpack.c.l.b16 %v198
  %v747 = vunpack.c.l.b16 %v199
  %v748 = vunpack.c.l.b16 %v200
  %v749 = vunpack.c.l.b16 %v201
  %v750 = vunpack.c.l.b16 %v202
  %v751 = vunpack.c.l.b16 %v203
  %v752 = vunpack.c.l.b16 %v204
  %v753 = vunpack.c.l.b16 %v205
  %v754 = vunpack.c.l.b16 %v206
  %v755 = vunpack.c.l.b16 %v207
  %v756 = vunpack.c.l.b16 %v208
  %v757 = vunpack.c.l.b16 %v209
  %v758 = vunpack.c.l.b16 %v210
  %v759 = vunpack.c.l.b16 %v211
  %v760 = vunpack.c.l.b16 %v212
  %v761 = vunpack.c.l.b16 %v213
  %v762 = vunpack.c.l.b16 %v214
  %v763 = vunpack.c.l.b16 %v215
  %v764 = vunpack.c.l.b16 %v216
  %v765 = vunpack.c.l.b16 %v217
  %v766 = vunpack.c.l.b16 %v218
  %v767 = vunpack.c.l.b16 %v219
  %v768 = vunpack.c.l.b16 %v220
  %v769 = vunpack.c.l.b16 %v221
  %v770 = vunpack.c.l.b16 %v222
  %v771 = vunpack.c.l.b16 %v223
  %v772 = vunpack.c.l.b16 %v224
  %v773 = vunpack.c.l.b16 %v225
  %v774 = vunpack.c.l.b16 %v226
  %v775 = vunpack.c.l.b16 %v227
  %v776 = vunpack.c.l.b16 %v228
  %v777 = vunpack.c.l.b16 %v229
  %v778 = vunpack.c.l.b16 %v230
  %v779 = vunpack.c.l.b16 %v231
  %v780 = vunpack.c.l.b16 %v232
  %v781 = vunpack.c.l.b16 %v233
  %v782 = vunpack.c.l.b16 %v234
  %v783 = vunpack.c.l.b16 %v235
  %v784 = vunpack.c.l.b16 %v236
  %v785 = vunpack.c.l.b16 %v237
  %v786 = vunpack.c.l.b16 %v238
  %v787 = vunpack.c.l.b16 %v239
  %v788 = vunpack.c.l.b16 %v240
  %v789 = vunpack.c.l.b16 %v241
  %v790 = vunpack.c.l.b16 %v242
  %v791 = vunpack.c.l.b16 %v243
  %v792 = vunpack.c.l.b16 %v244
  %v793 = vunpack.c.l.b16 %v245
  %v794 = vunpack.c.l.b16 %v246
  %v795 = vunpack.c.l.b16 %v247
  %v796 = vunpack.c.l.b16 %v248
  %v797 = vunpack.c.l.b16 %v249
  %v798 = vunpack.c.l.b16 %v250
  %v799 = vunpack.c.l.b16 %v251
  %v800 = vunpack.c.l.b16 %v252
  %v801 = vunpack.c.l.b16 %v253
  %v802 = vunpack.c.l.b16 %v254
  %v803 = vunpack.c.l.b16 %v255
  %v804 = vunpack.c.l.b16 %v256
  %v805 = vunpack.c.l.b16 %v257
  %v806 = vunpack.c.l.b16 %v258
  %v807 = vunpack.c.l.b16 %v259
  %v808 = vunpack.c.l.b16 %v260
  %v809 = vunpack.c.l.b16 %v261
  %v810 = vunpack.c.l.b16 %v262
  %v811 = vunpack.c.l.b16 %v263
  %v812 = vunpack.c.l.b16 %v264
  %v813 = vunpack.c.l.b16 %v265
  %v814 = vunpack.c.l.b16 %v266
  %v815 = vunpack.c.l.b16 %v267
  %v816 = vunpack.c.l.b16 %v268
  %v817 = vunpack.c.l.b16 %v269
  %v818 = vunpack.c.l.b16 %v270
  %v819 = vunpack.c.l.b16 %v271
  %v820 = vunpack.c.l.b16 %v272
  %v821 = vunpack.c.l.b16 %v273
  %v822 = vunpack.c.l.b16 %v274
  %v823 = vunpack.c.l.b16 %v275
  %v824 = vunpack.c.l.b16 %v276
  %v825 = vunpack.c.l.b16 %v277
  %v826 = vunpack.c.l.b16 %v278
  %v827 = vunpack.c.l.b16 %v279
  %v828 = vunpack.c.l.b16 %v280
  %v829 = vpack.c.b16 %v574, %v573
  %v830 = vpack.c.b16 %v576, %v575
  %v831 = vpack.c.b16 %v578, %v577
  %v832 = vpack.c.b16 %v580, %v579
  %v833 = vpack.c.b16 %v582, %v581
  %v834 = vpack.c.b16 %v584, %v583
  %v835 = vpack.c.b16 %v586, %v585
  %v836 = vpack.c.b16 %v588, %v587
  %v837 = vpack.c.b16 %v590, %v589
  %v838 = vpack.c.b16 %v592, %v591
  %v839 = vpack.c.b16 %v594, %v593
  %v840 = vpack.c.b16 %v596, %v595
  %v841 = vpack.c.b16 %v598, %v597
  %v842 = vpack.c.b16 %v600, %v599
  %v843 = vpack.c.b16 %v602, %v601
  %v844 = vpack.c.b16 %v604, %v603
  %v845 = vpack.c.b16 %v606, %v605
  %v846 = vpack.c.b16 %v608, %v607
  %v847 = vpack.c.b16 %v610, %v609
  %v848 = vpack.c.b16 %v612, %v611
  %v849 = vpack.c.b16 %v614, %v613
  %v850 = vpack.c.b16 %v616, %v615
  %v851 = vpack.c.b16 %v618, %v617
  %v852 = vpack.c.b16 %v620, %v619
  %v853 = vpack.c.b16 %v622, %v621
  %v854 = vpack.c.b16 %v624, %v623
  %v855 = vpack.c.b16 %v626, %v625
  %v856 = vpack.c.b16 %v628, %v627
  %v857 = vpack.c.b16 %v630, %v629
  %v858 = vpack.c.b16 %v632, %v631
  %v859 = vpack.c.b16 %v634, %v633
  %v860 = vpack.c.b16 %v636, %v635
  %v861 = vpack.c.b16 %v638, %v637
  %v862 = vpack.c.b16 %v640, %v639
  %v863 = vpack.c.b16 %v642, %v641
  %v864 = vpack.c.b16 %v644, %v643
  %v865 = vpack.c.b16 %v646, %v645
  %v866 = vpack.c.b16 %v648, %v647
  %v867 = vpack.c.b16 %v650, %v649
  %v868 = vpack.c.b16 %v652, %v651
  %v869 = vpack.c.b16 %v654, %v653
  %v870 = vpack.c.b16 %v656, %v655
  %v871 = vpack.c.b16 %v658, %v657
  %v872 = vpack.c.b16 %v660, %v659
  %v873 = vpack.c.b16 %v662, %v661
  %v874 = vpack.c.b16 %v664, %v663
  %v875 = vpack.c.b16 %v666, %v665
  %v876 = vpack.c.b16 %v668, %v667
  %v877 = vpack.c.b16 %v670, %v669
  %v878 = vpack.c.b16 %v672, %v671
  %v879 = vpack.c.b16 %v674, %v673
  %v880 = vpack.c.b16 %v676, %v675
  %v881 = vpack.c.b16 %v678, %v677
  %v882 = vpack.c.b16 %v680, %v679
  %v883 = vpack.c.b16 %v682, %v681
  %v884 = vpack.c.b16 %v684, %v683
  %v885 = vpack.c.b16 %v686, %v685
  %v886 = vpack.c.b16 %v688, %v687
  %v887 = vpack.c.b16 %v690, %v689
  %v888 = vpack.c.b16 %v692, %v691
  %v889 = vpack.c.b16 %v694, %v693
  %v890 = vpack.c.b16 %v696, %v695
  %v891 = vpack.c.b16 %v698, %v697
  %v892 = vpack.c.b16 %v700, %v699
  %v893 = vpack.c.b16 %v702, %v701
  %v894 = vpack.c.b16 %v704, %v703
  %v895 = vpack.c.b16 %v706, %v705
  %v896 = vpack.c.b16 %v708, %v707
  %v897 = vpack.c.b16 %v710, %v709
  %v898 = vpack.c.b16 %v712, %v711
  %v899 = vpack.c.b16 %v714, %v713
  %v900 = vpack.c.b16 %v716, %v715
  %v901 = vpack.c.b16 %v718, %v717
  %v902 = vpack.c.b16 %v720, %v719
  %v903 = vpack.c.b16 %v722, %v721
  %v904 = vpack.c.b16 %v724, %v723
  %v905 = vpack.c.b16 %v726, %v725
  %v906 = vpack.c.b16 %v728, %v727
  %v907 = vpack.c.b16 %v730, %v729
  %v908 = vpack.c.b16 %v732, %v731
  %v909 = vpack.c.b16 %v734, %v733
  %v910 = vpack.c.b16 %v736, %v735
  %v911 = vpack.c.b16 %v738, %v737
  %v912 = vpack.c.b16 %v740, %v739
  %v913 = vpack.c.b16 %v742, %v741
  %v914 = vpack.c.b16 %v744, %v743
  %v915 = vpack.c.b16 %v746, %v745
  %v916 = vpack.c.b16 %v748, %v747
  %v917 = vpack.c.b16 %v750, %v749
  %v918 = vpack.c.b16 %v752, %v751
  %v919 = vpack.c.b16 %v754, %v753
  %v920 = vpack.c.b16 %v756, %v755
  %v921 = vpack.c.b16 %v758, %v757
  %v922 = vpack.c.b16 %v760, %v759
  %v923 = vpack.c.b16 %v762, %v761
  %v924 = vpack.c.b16 %v764, %v763
  %v925 = vpack.c.b16 %v766, %v765
  %v926 = vpack.c.b16 %v768, %v767
  %v927 = vpack.c.b16 %v770, %v769
  %v928 = vpack.c.b16 %v772, %v771
  %v929 = vpack.c.b16 %v774, %v773
  %v930 = vpack.c.b16 %v776, %v775
  %v931 = vpack.c.b16 %v778, %v777
  %v932 = vpack.c.b16 %v780, %v779
  %v933 = vpack.c.b16 %v782, %v781
  %v934 = vpack.c.b16 %v784, %v783
  %v935 = vpack.c.b16 %v786, %v785
  %v936 = vpack.c.b16 %v788, %v787
  %v937 = vpack.c.b16 %v790, %v789
  %v938 = vpack.c.b16 %v792, %v791
  %v939 = vpack.c.b16 %v794, %v793
  %v940 = vpack.c.b16 %v796, %v795
  %v941 = vpack.c.b16 %v798, %v797
  %v942 = vpack.c.b16 %v800, %v799
  %v943 = vpack.c.b16 %v802, %v801
  %v944 = vpack.c.b16 %v804, %v803
  %v945 = vpack.c.b16 %v806, %v805
  %v946 = vpack.c.b16 %v808, %v807
  %v947 = vpack.c.b16 %v810, %v809
  %v948 = vpack.c.b16 %v812, %v811
  %v949 = vpack.c.b16 %v814, %v813
  %v950 = vpack.c.b16 %v816, %v815
  %v951 = vpack.c.b16 %v818, %v817
  %v952 = vpack.c.b16 %v820, %v819
  %v953 = vpack.c.b16 %v822, %v821
  %v954 = vpack.c.b16 %v824, %v823
  %v955 = vpack.c.b16 %v826, %v825
  %v956 = vpack.c.b16 %v828, %v827
  %1085 = vmatpush.bf16.msra.mxu0 %v836
  %1086 = vmatpush.bf16.msra.mxu0 %v835
  %1087 = vmatpush.bf16.msra.mxu0 %v834
  %1088 = vmatpush.bf16.msra.mxu0 %v833
  %1089 = vmatpush.bf16.msra.mxu0 %v832
  %1090 = vmatpush.bf16.msra.mxu0 %v831
  %1091 = vmatpush.bf16.msra.mxu0 %v830
  %1092 = vmatpush.bf16.msra.mxu0 %v829
  %1093 = vmatmul.bf16.gmra.mxu0 %v283
  %v1094 = vpop.f32.mrf.mxu0
  %v1095 = vadd.f32 0.0, %v1094
  %v1096 = vpop.f32.mrf.mxu0
  %1097 = vdwg.mxu0
  %1098 = vmatpush.bf16.msra.mxu0 %v844
  %1099 = vmatpush.bf16.msra.mxu0 %v843
  %1100 = vmatpush.bf16.msra.mxu0 %v842
  %1101 = vmatpush.bf16.msra.mxu0 %v841
  %1102 = vmatpush.bf16.msra.mxu0 %v840
  %1103 = vmatpush.bf16.msra.mxu0 %v839
  %1104 = vmatpush.bf16.msra.mxu0 %v838
  %1105 = vmatpush.bf16.msra.mxu0 %v837
  %1106 = vmatmul.bf16.gmra.mxu0 %v284
  %v1107 = vpop.f32.mrf.mxu0
  %v1108 = vadd.f32 %v1095, %v1107
  %v1109 = vpop.f32.mrf.mxu0
  %1110 = vdwg.mxu0
  %1111 = vmatpush.bf16.msra.mxu0 %v852
  %1112 = vmatpush.bf16.msra.mxu0 %v851
  %1113 = vmatpush.bf16.msra.mxu0 %v850
  %1114 = vmatpush.bf16.msra.mxu0 %v849
  %1115 = vmatpush.bf16.msra.mxu0 %v848
  %1116 = vmatpush.bf16.msra.mxu0 %v847
  %1117 = vmatpush.bf16.msra.mxu0 %v846
  %1118 = vmatpush.bf16.msra.mxu0 %v845
  %1119 = vmatmul.bf16.gmra.mxu0 %v285
  %v1120 = vpop.f32.mrf.mxu0
  %v1121 = vadd.f32 %v1108, %v1120
  %v1122 = vpop.f32.mrf.mxu0
  %1123 = vdwg.mxu0
  %1124 = vmatpush.bf16.msra.mxu0 %v860
  %1125 = vmatpush.bf16.msra.mxu0 %v859
  %1126 = vmatpush.bf16.msra.mxu0 %v858
  %1127 = vmatpush.bf16.msra.mxu0 %v857
  %1128 = vmatpush.bf16.msra.mxu0 %v856
  %1129 = vmatpush.bf16.msra.mxu0 %v855
  %1130 = vmatpush.bf16.msra.mxu0 %v854
  %1131 = vmatpush.bf16.msra.mxu0 %v853
  %1132 = vmatmul.bf16.gmra.mxu0 %v286
  %v1133 = vpop.f32.mrf.mxu0
  %v1134 = vadd.f32 %v1121, %v1133
  %v1135 = vpop.f32.mrf.mxu0
  %1136 = vdwg.mxu0
  %1137 = vmatpush.bf16.msra.mxu0 %v868
  %1138 = vmatpush.bf16.msra.mxu0 %v867
  %1139 = vmatpush.bf16.msra.mxu0 %v866
  %1140 = vmatpush.bf16.msra.mxu0 %v865
  %1141 = vmatpush.bf16.msra.mxu0 %v864
  %1142 = vmatpush.bf16.msra.mxu0 %v863
  %1143 = vmatpush.bf16.msra.mxu0 %v862
  %1144 = vmatpush.bf16.msra.mxu0 %v861
  %1145 = vmatmul.bf16.gmra.mxu0 %v287
  %v1146 = vpop.f32.mrf.mxu0
  %v1147 = vadd.f32 %v1134, %v1146
  %v1148 = vpop.f32.mrf.mxu0
  %1149 = vdwg.mxu0
  %1150 = vmatpush.bf16.msra.mxu0 %v876
  %1151 = vmatpush.bf16.msra.mxu0 %v875
  %1152 = vmatpush.bf16.msra.mxu0 %v874
  %1153 = vmatpush.bf16.msra.mxu0 %v873
  %1154 = vmatpush.bf16.msra.mxu0 %v872
  %1155 = vmatpush.bf16.msra.mxu0 %v871
  %1156 = vmatpush.bf16.msra.mxu0 %v870
  %1157 = vmatpush.bf16.msra.mxu0 %v869
  %1158 = vmatmul.bf16.gmra.mxu0 %v288
  %v1159 = vpop.f32.mrf.mxu0
  %v1160 = vadd.f32 %v1147, %v1159
  %v1161 = vpop.f32.mrf.mxu0
  %1162 = vdwg.mxu0
  %1163 = vmatpush.bf16.msra.mxu0 %v884
  %1164 = vmatpush.bf16.msra.mxu0 %v883
  %1165 = vmatpush.bf16.msra.mxu0 %v882
  %1166 = vmatpush.bf16.msra.mxu0 %v881
  %1167 = vmatpush.bf16.msra.mxu0 %v880
  %1168 = vmatpush.bf16.msra.mxu0 %v879
  %1169 = vmatpush.bf16.msra.mxu0 %v878
  %1170 = vmatpush.bf16.msra.mxu0 %v877
  %1171 = vmatmul.bf16.gmra.mxu0 %v289
  %v1172 = vpop.f32.mrf.mxu0
  %v1173 = vadd.f32 %v1160, %v1172
  %v1174 = vpop.f32.mrf.mxu0
  %1175 = vdwg.mxu0
  %1176 = vmatpush.bf16.msra.mxu0 %v892
  %1177 = vmatpush.bf16.msra.mxu0 %v891
  %1178 = vmatpush.bf16.msra.mxu0 %v890
  %1179 = vmatpush.bf16.msra.mxu0 %v889
  %1180 = vmatpush.bf16.msra.mxu0 %v888
  %1181 = vmatpush.bf16.msra.mxu0 %v887
  %1182 = vmatpush.bf16.msra.mxu0 %v886
  %1183 = vmatpush.bf16.msra.mxu0 %v885
  %1184 = vmatmul.bf16.gmra.mxu0 %v290
  %v1185 = vpop.f32.mrf.mxu0
  %v1186 = vadd.f32 %v1173, %v1185
  %v1187 = vpop.f32.mrf.mxu0
  %1188 = vdwg.mxu0
  %1189 = vmatpush.bf16.msra.mxu0 %v900
  %1190 = vmatpush.bf16.msra.mxu0 %v899
  %1191 = vmatpush.bf16.msra.mxu0 %v898
  %1192 = vmatpush.bf16.msra.mxu0 %v897
  %1193 = vmatpush.bf16.msra.mxu0 %v896
  %1194 = vmatpush.bf16.msra.mxu0 %v895
  %1195 = vmatpush.bf16.msra.mxu0 %v894
  %1196 = vmatpush.bf16.msra.mxu0 %v893
  %1197 = vmatmul.bf16.gmra.mxu0 %v293
  %v1198 = vpop.f32.mrf.mxu0
  %v1199 = vadd.f32 %v1186, %v1198
  %v1200 = vpop.f32.mrf.mxu0
  %1201 = vdwg.mxu0
  %1202 = vmatpush.bf16.msra.mxu0 %v908
  %1203 = vmatpush.bf16.msra.mxu0 %v907
  %1204 = vmatpush.bf16.msra.mxu0 %v906
  %1205 = vmatpush.bf16.msra.mxu0 %v905
  %1206 = vmatpush.bf16.msra.mxu0 %v904
  %1207 = vmatpush.bf16.msra.mxu0 %v903
  %1208 = vmatpush.bf16.msra.mxu0 %v902
  %1209 = vmatpush.bf16.msra.mxu0 %v901
  %1210 = vmatmul.bf16.gmra.mxu0 %v294
  %v1211 = vpop.f32.mrf.mxu0
  %v1212 = vadd.f32 %v1199, %v1211
  %v1213 = vpop.f32.mrf.mxu0
  %1214 = vdwg.mxu0
  %1215 = vmatpush.bf16.msra.mxu0 %v916
  %1216 = vmatpush.bf16.msra.mxu0 %v915
  %1217 = vmatpush.bf16.msra.mxu0 %v914
  %1218 = vmatpush.bf16.msra.mxu0 %v913
  %1219 = vmatpush.bf16.msra.mxu0 %v912
  %1220 = vmatpush.bf16.msra.mxu0 %v911
  %1221 = vmatpush.bf16.msra.mxu0 %v910
  %1222 = vmatpush.bf16.msra.mxu0 %v909
  %1223 = vmatmul.bf16.gmra.mxu0 %v295
  %v1224 = vpop.f32.mrf.mxu0
  %v1225 = vadd.f32 %v1212, %v1224
  %v1226 = vpop.f32.mrf.mxu0
  %1227 = vdwg.mxu0
  %1228 = vmatpush.bf16.msra.mxu0 %v924
  %1229 = vmatpush.bf16.msra.mxu0 %v923
  %1230 = vmatpush.bf16.msra.mxu0 %v922
  %1231 = vmatpush.bf16.msra.mxu0 %v921
  %1232 = vmatpush.bf16.msra.mxu0 %v920
  %1233 = vmatpush.bf16.msra.mxu0 %v919
  %1234 = vmatpush.bf16.msra.mxu0 %v918
  %1235 = vmatpush.bf16.msra.mxu0 %v917
  %1236 = vmatmul.bf16.gmra.mxu0 %v296
  %v1237 = vpop.f32.mrf.mxu0
  %v1238 = vadd.f32 %v1225, %v1237
  %v1239 = vpop.f32.mrf.mxu0
  %1240 = vdwg.mxu0
  %1241 = vmatpush.bf16.msra.mxu0 %v932
  %1242 = vmatpush.bf16.msra.mxu0 %v931
  %1243 = vmatpush.bf16.msra.mxu0 %v930
  %1244 = vmatpush.bf16.msra.mxu0 %v929
  %1245 = vmatpush.bf16.msra.mxu0 %v928
  %1246 = vmatpush.bf16.msra.mxu0 %v927
  %1247 = vmatpush.bf16.msra.mxu0 %v926
  %1248 = vmatpush.bf16.msra.mxu0 %v925
  %1249 = vmatmul.bf16.gmra.mxu0 %v297
  %v1250 = vpop.f32.mrf.mxu0
  %v1251 = vadd.f32 %v1238, %v1250
  %v1252 = vpop.f32.mrf.mxu0
  %1253 = vdwg.mxu0
  %1254 = vmatpush.bf16.msra.mxu0 %v940
  %1255 = vmatpush.bf16.msra.mxu0 %v939
  %1256 = vmatpush.bf16.msra.mxu0 %v938
  %1257 = vmatpush.bf16.msra.mxu0 %v937
  %1258 = vmatpush.bf16.msra.mxu0 %v936
  %1259 = vmatpush.bf16.msra.mxu0 %v935
  %1260 = vmatpush.bf16.msra.mxu0 %v934
  %1261 = vmatpush.bf16.msra.mxu0 %v933
  %1262 = vmatmul.bf16.gmra.mxu0 %v298
  %v1263 = vpop.f32.mrf.mxu0
  %v1264 = vadd.f32 %v1251, %v1263
  %v1265 = vpop.f32.mrf.mxu0
  %1266 = vdwg.mxu0
  %1267 = vmatpush.bf16.msra.mxu0 %v948
  %1268 = vmatpush.bf16.msra.mxu0 %v947
  %1269 = vmatpush.bf16.msra.mxu0 %v946
  %1270 = vmatpush.bf16.msra.mxu0 %v945
  %1271 = vmatpush.bf16.msra.mxu0 %v944
  %1272 = vmatpush.bf16.msra.mxu0 %v943
  %1273 = vmatpush.bf16.msra.mxu0 %v942
  %1274 = vmatpush.bf16.msra.mxu0 %v941
  %1275 = vmatmul.bf16.gmra.mxu0 %v299
  %v1276 = vpop.f32.mrf.mxu0
  %v1277 = vadd.f32 %v1264, %v1276
  %v1278 = vpop.f32.mrf.mxu0
  %1279 = vdwg.mxu0
  %1280 = vmatpush.bf16.msra.mxu0 %v956
  %1281 = vmatpush.bf16.msra.mxu0 %v955
  %1282 = vmatpush.bf16.msra.mxu0 %v954
  %1283 = vmatpush.bf16.msra.mxu0 %v953
  %1284 = vmatpush.bf16.msra.mxu0 %v952
  %1285 = vmatpush.bf16.msra.mxu0 %v951
  %1286 = vmatpush.bf16.msra.mxu0 %v950
  %1287 = vmatpush.bf16.msra.mxu0 %v949
  %1288 = vmatmul.bf16.gmra.mxu0 %v300
  %v1289 = vpop.f32.mrf.mxu0
  %v1290 = vadd.f32 %v1277, %v1289
  %v1291 = vpop.f32.mrf.mxu0
  %1292 = vdwg.mxu0
  %v1293 = vadd.f32 %v22, %v1290
  %vm1294 = vcmask 1024
  %1295 = vst.msk [vmem:[#allocation2] sm:$0x3] %vm1294, %v1293
  // Predicated region
  $region18: #{discriminator_forward.15} parent=0 // pred_check
    %p1296 = pneg %p16
  $region19: #{discriminator_forward.15} parent=0 // pred_check_branch
    %1298 = sbr.rel (%p1296) target = $region21
  $region20: #{discriminator_forward.15} parent=0 // pred_region
    %v1299 = vld [vmem:[#allocation2] sm:$0x3]
    %v1300 = vld [vmem:[#allocation3] sm:$0x1]
    %v1302 = vperm.slane %v1300, 0
    %v1304 = vadd.f32 %v1299, %v1302
    %v1305 = vsub.f32 0.0, %v1304
    %v1306 = vmul.f32 %v1305, 1.442695
    %v1307 = vpow.pop %v1306
    %v1308 = vadd.f32 %v1307, 1.0
    %v1309 = vrcp.pop %v1308
    %v1310 = vmul.f32 %v1308, %v1309
    %v1311 = vsub.f32 1.0, %v1310
    %v1312 = vmul.f32 %v1309, %v1311
    %v1313 = vadd.f32 %v1309, %v1312
    %vm1314 = vweird.f32 %v1308
    %vm1315 = vweird.f32 %v1309
    %vm1316 = vmor %vm1314, %vm1315
    %v1317 = vsel %vm1316, %v1309, %v1313
    %v1318 = vand.u32 2147483647, %v1308
    %vm1319 = vcmp.eq.f32.partialorder %v1318, 8.507059e+37
    %v1320 = vand.u32 %v1308, 2147483648
    %v1321 = vor.u32 1.1754944e-38, %v1320
    %v1322 = vsel %vm1319, %v1321, %v1317
    %v1323 = vmul.f32 1.0, %v1322
    %1324 = vst.msk [vmem:[%s3] sm:$0x3] %vm1294, %v1323
  $region21: #{discriminator_forward.15} parent=0 // pred_fallthru
    _
  // Predicated region
  $region22: #{discriminator_forward.15} parent=0 // pred_check
    _
  $region23: #{discriminator_forward.15} parent=0 // pred_check_branch
    %1326 = sbr.rel (0) target = $region25
  $region24: #{discriminator_forward.15} parent=0 // pred_region
    _
  $region25: #{discriminator_forward.15} parent=0 // pred_fallthru
    _
  // Predicated region
  $region26: #{discriminator_forward.15} parent=0 // pred_check
    _
  $region27: #{discriminator_forward.15} parent=0 // pred_check_branch
    %1328 = sbr.rel (0) target = $region29
  $region28: #{discriminator_forward.15} parent=0 // pred_region
    _
  $region29: #{discriminator_forward.15} parent=0 // pred_fallthru
    _

</llo_original>
